<compile_context>
chip_gen: v7x
topology: tpu7x:2x2x1
jax: 0.10.0
libtpu: 0.0.40
codegen_flags: <defaults>
</compile_context>

<pallas_src>
import jax
import jax.numpy as jnp
from jax.experimental import pallas as pl
from jax.experimental.pallas import tpu as pltpu


# ----------------------------------------------------------------------------
# The single fused kernel: conv1+pool -> conv2+pool -> flatten -> FC stack
# ----------------------------------------------------------------------------
def _fused_forward_kernel(x1_ref, w1_ref, b1_ref, w2_ref, b2_ref,
                          w3_ref, b3_ref, w4_ref, b4_ref, w5_ref, b5_ref,
                          out_ref,
                          acc1_ref, y1p_ref, x2_ref, acc2_ref, y2_ref,
                          flat_ref):
    f32 = jnp.float32
    bf16 = jnp.bfloat16

    # ---------------- block1: Conv3x3(pad=1) as one im2col dot --------------
    # x1_ref : (1, 1024, 128) bf16, rows = (h, w) of the 32x32 image,
    #          cols = (tap, cin) packed K = 9*8 = 72 (zero padded to 128).
    # w1_ref : (128, 128) bf16  (K x Cout, 16 real out channels -> 128).
    acc1_ref[...] = jnp.dot(x1_ref[0], w1_ref[...],
                            preferred_element_type=f32)          # (1024,128)

    # MaxPool2d(2): rows are (h, w) with W=32, so w-pairs are adjacent rows
    # (strided loads) and h-pairs use a tiling-preserving reshape.  Bias+ReLU
    # commute with max, so they run on the 4x smaller pooled tensor, in f32.
    wmax = jnp.maximum(acc1_ref[pl.ds(0, 512, 2), :],
                       acc1_ref[pl.ds(1, 512, 2), :])             # (512,128)
    wmax = wmax.reshape(16, 2, 16, 128)
    y1 = jnp.maximum(wmax[:, 0], wmax[:, 1])                      # (16,16,128)
    y1 = jnp.maximum(y1 + b1_ref[...], 0.0)                       # bias + ReLU

    # ---- block2 im2col built in VMEM: K = 9 taps x 16 real ch = 144 --------
    # y1p_ref: (18, 18, 16) zero-padded pooled activations (conv padding=1).
    # x2_ref : (16, 16, 256) rows=(h, w), lanes=(tap, ch), 144 real columns.
    y1p_ref[...] = jnp.zeros(y1p_ref.shape, f32)
    x2_ref[...] = jnp.zeros(x2_ref.shape, f32)
    y1p_ref[1:17, 1:17, :] = y1[:, :, :16]
    for kh in range(3):
        for kw in range(3):
            t = kh * 3 + kw
            x2_ref[:, :, 16 * t:16 * (t + 1)] = (
                y1p_ref[kh:kh + 16, kw:kw + 16, :])

    # ---------------- block2: Conv3x3(pad=1) as K=256 dots ------------------
    # w2_ref : (256, 128) bf16 (144 real K rows, 32 real out channels).
    w2 = w2_ref[...]
    for h in range(16):
        xrow = x2_ref[h].astype(bf16)                             # (16, 256)
        acc2_ref[16 * h:16 * (h + 1), :] = jnp.dot(
            xrow, w2, preferred_element_type=f32)                 # (16, 128)

    wmax2 = jnp.maximum(acc2_ref[pl.ds(0, 128, 2), :],
                        acc2_ref[pl.ds(1, 128, 2), :])            # (128,128)
    wmax2 = wmax2.reshape(8, 2, 8, 128)
    y2 = jnp.maximum(wmax2[:, 0], wmax2[:, 1])                    # (8,8,128)
    y2_ref[...] = jnp.maximum(y2 + b2_ref[...], 0.0)              # bias + ReLU

    # ------------- flatten to a lane-dense (1, 2048) feature row ------------
    # Order is (h, w, c) with the 32 real channels innermost; w3's rows were
    # permuted offline to match, so no NHWC->NCHW transpose is needed.
    for pos in range(64):
        h, w = pos // 8, pos % 8
        flat_ref[0:1, 32 * pos:32 * (pos + 1)] = y2_ref[h, w:w + 1, 0:32]

    # ------------- block3 + classifier: fused FC stack (VMEM) ---------------
    xf = flat_ref[...].astype(bf16)                               # (1, 2048)
    h1 = jnp.dot(xf, w3_ref[...], preferred_element_type=f32) + b3_ref[...]
    h1 = jnp.maximum(h1, 0.0).astype(bf16)                        # (1, 512)
    h2 = jnp.dot(h1, w4_ref[...], preferred_element_type=f32) + b4_ref[...]
    h2 = jnp.maximum(h2, 0.0).astype(bf16)                        # (1, 128)
    logits = (jnp.dot(h2, w5_ref[...], preferred_element_type=f32)
              + b5_ref[...])                                      # (1, 128) f32
    out_ref[0] = logits


def fused_forward(x1, p):
    """x1: (B, 1024, 128) bf16 im2col of block1 -> (B, 1, 128) padded logits."""
    B = x1.shape[0]
    return pl.pallas_call(
        _fused_forward_kernel,
        out_shape=jax.ShapeDtypeStruct((B, 1, 128), jnp.float32),
        grid=(B,),
        in_specs=[
            pl.BlockSpec((1, 1024, 128), lambda b: (b, 0, 0)),    # x1
            pl.BlockSpec((128, 128), lambda b: (0, 0)),           # w1
            pl.BlockSpec((1, 128), lambda b: (0, 0)),             # b1
            pl.BlockSpec((256, 128), lambda b: (0, 0)),           # w2
            pl.BlockSpec((1, 128), lambda b: (0, 0)),             # b2
            pl.BlockSpec((2048, 512), lambda b: (0, 0)),          # w3
            pl.BlockSpec((1, 512), lambda b: (0, 0)),             # b3
            pl.BlockSpec((512, 128), lambda b: (0, 0)),           # w4
            pl.BlockSpec((1, 128), lambda b: (0, 0)),             # b4
            pl.BlockSpec((128, 128), lambda b: (0, 0)),           # w5 (padded)
            pl.BlockSpec((1, 128), lambda b: (0, 0)),             # b5 (padded)
        ],
        out_specs=pl.BlockSpec((1, 1, 128), lambda b: (b, 0, 0)),
        scratch_shapes=[
            pltpu.VMEM((1024, 128), jnp.float32),    # block1 conv accumulator
            pltpu.VMEM((18, 18, 16), jnp.float32),   # zero-padded pooled y1
            pltpu.VMEM((16, 16, 256), jnp.float32),  # block2 im2col matrix
            pltpu.VMEM((256, 128), jnp.float32),     # block2 conv accumulator
            pltpu.VMEM((8, 8, 128), jnp.float32),    # pooled y2
            pltpu.VMEM((1, 2048), jnp.float32),      # flattened features
        ],
        compiler_params=pltpu.CompilerParams(
            dimension_semantics=("parallel",)),
    )(x1, p["w1"], p["b1"], p["w2"], p["b2"],
      p["w3"], p["b3"], p["w4"], p["b4"], p["w5"], p["b5"])


# ----------------------------------------------------------------------------
# Forward: tiny XLA glue (block1 im2col of the raw input) + one fused kernel
# ----------------------------------------------------------------------------
def split_cnn_forward(x_nchw, p):
    """SplitCNN forward: (B, 3, 32, 32) f32 NCHW -> (B, 10) f32 logits."""
    B = x_nchw.shape[0]
    # Block1 im2col: K columns ordered (tap, cin), tap = kh*3+kw, cin padded 3->8.
    x = jnp.transpose(x_nchw, (0, 2, 3, 1)).astype(jnp.bfloat16)   # (B,32,32,3)
    x = jnp.pad(x, ((0, 0), (1, 1), (1, 1), (0, 5)))               # (B,34,34,8)
    wins = [x[:, kh:kh + 32, kw:kw + 32, :]
            for kh in range(3) for kw in range(3)]
    x1 = jnp.stack(wins, axis=3).reshape(B, 1024, 72)              # (B,1024,72)
    x1 = jnp.pad(x1, ((0, 0), (0, 0), (0, 56)))                    # (B,1024,128)
    logits_pad = fused_forward(x1, p)                              # (B,1,128)
    return logits_pad[:, 0, :10]


# ----------------------------------------------------------------------------
# Parameters: PyTorch-shaped init + one-time offline re-layout (outside jit)
# ----------------------------------------------------------------------------
def init_params(key):
    """Deterministic synthetic parameters in PyTorch shapes (out-major)."""
    ks = jax.random.split(key, 10)
    def rn(k, shape, fan_in):
        return jax.random.normal(k, shape, jnp.float32) / jnp.sqrt(fan_in)
    return {
        "w1": rn(ks[0], (16, 3, 3, 3), 3 * 9),
        "b1": rn(ks[1], (16,), 16),
        "w2": rn(ks[2], (32, 16, 3, 3), 16 * 9),
        "b2": rn(ks[3], (32,), 32),
        "w3": rn(ks[4], (512, 32 * 8 * 8), 2048),
        "b3": rn(ks[5], (512,), 512),
        "w4": rn(ks[6], (128, 512), 512),
        "b4": rn(ks[7], (128,), 128),
        "w5": rn(ks[8], (10, 128), 128),
        "b5": rn(ks[9], (10,), 10),
    }


def prepare_params(raw):
    """One-time re-layout of PyTorch weights into kernel-friendly layouts."""
    # w1 (O=16, Cin=3, kh, kw) -> rows (kh, kw, cin_pad8)=72->128, cols 16->128.
    w1 = jnp.transpose(raw["w1"], (2, 3, 1, 0))                    # (3,3,3,16)
    w1 = jnp.pad(w1, ((0, 0), (0, 0), (0, 5), (0, 0)))             # (3,3,8,16)
    w1 = jnp.pad(w1.reshape(72, 16), ((0, 56), (0, 112)))          # (128,128)

    # w2 (O=32, Cin=16, kh, kw) -> rows (kh, kw, cin)=144->256, cols 32->128.
    w2 = jnp.transpose(raw["w2"], (2, 3, 1, 0)).reshape(144, 32)
    w2 = jnp.pad(w2, ((0, 112), (0, 96)))                          # (256,128)

    # w3 rows: PyTorch flatten order (c,h,w) -> kernel flatten order (h,w,c).
    w3 = raw["w3"].reshape(512, 32, 8, 8)                          # (n,c,h,w)
    w3 = jnp.transpose(w3, (2, 3, 1, 0)).reshape(2048, 512)        # ((h,w,c),n)

    # w5/b5 padded to 128 output lanes for lane-dense stores.
    w5 = jnp.pad(raw["w5"].T, ((0, 0), (0, 118)))                  # (128,128)

    def pad_bias(b, n):
        return jnp.pad(b, (0, n - b.shape[0])).reshape(1, n).astype(jnp.float32)

    return {
        "w1": w1.astype(jnp.bfloat16),
        "b1": pad_bias(raw["b1"], 128),
        "w2": w2.astype(jnp.bfloat16),
        "b2": pad_bias(raw["b2"], 128),
        "w3": w3.astype(jnp.bfloat16),
        "b3": raw["b3"].reshape(1, 512).astype(jnp.float32),
        "w4": raw["w4"].T.astype(jnp.bfloat16),                    # (512,128)
        "b4": raw["b4"].reshape(1, 128).astype(jnp.float32),
        "w5": w5.astype(jnp.bfloat16),
        "b5": pad_bias(raw["b5"], 128),
    }


if __name__ == "__main__":
    key = jax.random.PRNGKey(0)
    kx, kp = jax.random.split(key)
    # Linear(32*8*8) implies a 32x32 spatial input (two 2x pools -> 8x8).
    x = jax.random.normal(kx, (2, 3, 32, 32), jnp.float32)   # NCHW like PyTorch
    params = prepare_params(init_params(kp))                 # offline re-layout

    fwd = jax.jit(split_cnn_forward)
    out = jax.block_until_ready(fwd(x, params))
    assert out.shape == (2, 10) and out.dtype == jnp.float32
    assert bool(jnp.isfinite(out).all())
    print("KERNEL_OK")
</pallas_src>

<mosaic_0001>
module attributes {stable_mosaic.version = 11 : i64} {
  func.func @_fused_forward_kernel(%arg0: i32, %arg1: memref<1x1024x128xbf16, #tpu.memory_space<vmem>>, %arg2: memref<128x128xbf16, #tpu.memory_space<vmem>>, %arg3: memref<1x128xf32, #tpu.memory_space<vmem>>, %arg4: memref<256x128xbf16, #tpu.memory_space<vmem>>, %arg5: memref<1x128xf32, #tpu.memory_space<vmem>>, %arg6: memref<2048x512xbf16, #tpu.memory_space<vmem>>, %arg7: memref<1x512xf32, #tpu.memory_space<vmem>>, %arg8: memref<512x128xbf16, #tpu.memory_space<vmem>>, %arg9: memref<1x128xf32, #tpu.memory_space<vmem>>, %arg10: memref<128x128xbf16, #tpu.memory_space<vmem>>, %arg11: memref<1x128xf32, #tpu.memory_space<vmem>>, %arg12: memref<1x1x128xf32, #tpu.memory_space<vmem>>, %arg13: memref<1024x128xf32, #tpu.memory_space<vmem>>, %arg14: memref<18x18x16xf32, #tpu.memory_space<vmem>>, %arg15: memref<16x16x256xf32, #tpu.memory_space<vmem>>, %arg16: memref<256x128xf32, #tpu.memory_space<vmem>>, %arg17: memref<8x8x128xf32, #tpu.memory_space<vmem>>, %arg18: memref<1x2048xf32, #tpu.memory_space<vmem>>) attributes {dimension_semantics = [#tpu.dimension_semantics<parallel>], iteration_bounds = array<i64: 2>, scalar_prefetch = 0 : i64, scratch_operands = 6 : i64, tpu.core_type = #tpu.core_type<tc>, window_params = [{transform_indices = @transform_0, window_bounds = array<i64: 1, 1024, 128>}, {pipeline_mode = #tpu.pipeline_mode<synchronous>, transform_indices = @transform_1, window_bounds = array<i64: 128, 128>}, {pipeline_mode = #tpu.pipeline_mode<synchronous>, transform_indices = @transform_2, window_bounds = array<i64: 1, 128>}, {pipeline_mode = #tpu.pipeline_mode<synchronous>, transform_indices = @transform_3, window_bounds = array<i64: 256, 128>}, {pipeline_mode = #tpu.pipeline_mode<synchronous>, transform_indices = @transform_4, window_bounds = array<i64: 1, 128>}, {pipeline_mode = #tpu.pipeline_mode<synchronous>, transform_indices = @transform_5, window_bounds = array<i64: 2048, 512>}, {pipeline_mode = #tpu.pipeline_mode<synchronous>, transform_indices = @transform_6, window_bounds = array<i64: 1, 512>}, {pipeline_mode = #tpu.pipeline_mode<synchronous>, transform_indices = @transform_7, window_bounds = array<i64: 512, 128>}, {pipeline_mode = #tpu.pipeline_mode<synchronous>, transform_indices = @transform_8, window_bounds = array<i64: 1, 128>}, {pipeline_mode = #tpu.pipeline_mode<synchronous>, transform_indices = @transform_9, window_bounds = array<i64: 128, 128>}, {pipeline_mode = #tpu.pipeline_mode<synchronous>, transform_indices = @transform_10, window_bounds = array<i64: 1, 128>}, {transform_indices = @transform_11, window_bounds = array<i64: 1, 1, 128>}]} {
    %c0 = arith.constant 0 : index
    %c0_0 = arith.constant 0 : index
    %c0_1 = arith.constant 0 : index
    %0 = vector.load %arg1[%c0, %c0_0, %c0_1] : memref<1x1024x128xbf16, #tpu.memory_space<vmem>>, vector<1x1024x128xbf16>
    %1 = vector.shape_cast %0 : vector<1x1024x128xbf16> to vector<1024x128xbf16>
    %c0_2 = arith.constant 0 : index
    %c0_3 = arith.constant 0 : index
    %2 = vector.load %arg2[%c0_2, %c0_3] : memref<128x128xbf16, #tpu.memory_space<vmem>>, vector<128x128xbf16>
    %cst = arith.constant dense<0.000000e+00> : vector<1024x128xf32>
    %3 = tpu.matmul %1, %2, %cst {dimension_numbers = #tpu.dot_dimension_numbers<[1], [0], [0], [1], [0, 0, 1, 1], [], []>} : vector<1024x128xbf16>, vector<128x128xbf16>, vector<1024x128xf32> -> vector<1024x128xf32>
    %c0_4 = arith.constant 0 : index
    %c0_5 = arith.constant 0 : index
    %4 = vector.load %arg13[%c0_4, %c0_5] : memref<1024x128xf32, #tpu.memory_space<vmem>>, vector<1024x128xf32>
    tpu.vector_store %arg13[%c0_4, %c0_5], %3 {strides = array<i32>} : memref<1024x128xf32, #tpu.memory_space<vmem>>, vector<1024x128xf32>,
    %c0_6 = arith.constant 0 : index
    %c0_7 = arith.constant 0 : index
    %5 = tpu.strided_load %arg13[%c0_6, %c0_7] {strides = array<i32: 2, 1>} : memref<1024x128xf32, #tpu.memory_space<vmem>>, vector<512x128xf32>
    %c1 = arith.constant 1 : index
    %c0_8 = arith.constant 0 : index
    %6 = tpu.strided_load %arg13[%c1, %c0_8] {strides = array<i32: 2, 1>} : memref<1024x128xf32, #tpu.memory_space<vmem>>, vector<512x128xf32>
    %7 = arith.maximumf %5, %6 : vector<512x128xf32>
    %8 = vector.shape_cast %7 : vector<512x128xf32> to vector<16x2x16x128xf32>
    %9 = vector.extract_strided_slice %8 {offsets = [0, 0, 0, 0], sizes = [16, 1, 16, 128], strides = [1, 1, 1, 1]} : vector<16x2x16x128xf32> to vector<16x1x16x128xf32>
    %10 = vector.shape_cast %9 : vector<16x1x16x128xf32> to vector<16x16x128xf32>
    %11 = vector.extract_strided_slice %8 {offsets = [0, 1, 0, 0], sizes = [16, 1, 16, 128], strides = [1, 1, 1, 1]} : vector<16x2x16x128xf32> to vector<16x1x16x128xf32>
    %12 = vector.shape_cast %11 : vector<16x1x16x128xf32> to vector<16x16x128xf32>
    %13 = arith.maximumf %10, %12 : vector<16x16x128xf32>
    %c0_9 = arith.constant 0 : index
    %c0_10 = arith.constant 0 : index
    %14 = vector.load %arg3[%c0_9, %c0_10] : memref<1x128xf32, #tpu.memory_space<vmem>>, vector<1x128xf32>
    %15 = vector.shape_cast %14 : vector<1x128xf32> to vector<1x1x128xf32>
    %16 = vector.broadcast %15 : vector<1x1x128xf32> to vector<16x16x128xf32>
    %17 = arith.addf %13, %16 : vector<16x16x128xf32>
    %cst_11 = arith.constant 0.000000e+00 : f32
    %18 = vector.broadcast %cst_11 : f32 to vector<16x16x128xf32>
    %19 = arith.maximumf %17, %18 : vector<16x16x128xf32>
    %cst_12 = arith.constant 0.000000e+00 : f32
    %20 = vector.broadcast %cst_12 : f32 to vector<18x18x16xf32>
    %c0_13 = arith.constant 0 : index
    %c0_14 = arith.constant 0 : index
    %c0_15 = arith.constant 0 : index
    %21 = vector.load %arg14[%c0_13, %c0_14, %c0_15] : memref<18x18x16xf32, #tpu.memory_space<vmem>>, vector<18x18x16xf32>
    tpu.vector_store %arg14[%c0_13, %c0_14, %c0_15], %20 {strides = array<i32>} : memref<18x18x16xf32, #tpu.memory_space<vmem>>, vector<18x18x16xf32>,
    %cst_16 = arith.constant 0.000000e+00 : f32
    %22 = vector.broadcast %cst_16 : f32 to vector<16x16x256xf32>
    %c0_17 = arith.constant 0 : index
    %c0_18 = arith.constant 0 : index
    %c0_19 = arith.constant 0 : index
    %23 = vector.load %arg15[%c0_17, %c0_18, %c0_19] : memref<16x16x256xf32, #tpu.memory_space<vmem>>, vector<16x16x256xf32>
    tpu.vector_store %arg15[%c0_17, %c0_18, %c0_19], %22 {strides = array<i32>} : memref<16x16x256xf32, #tpu.memory_space<vmem>>, vector<16x16x256xf32>,
    %24 = vector.extract_strided_slice %19 {offsets = [0, 0, 0], sizes = [16, 16, 16], strides = [1, 1, 1]} : vector<16x16x128xf32> to vector<16x16x16xf32>
    %c1_20 = arith.constant 1 : index
    %c1_21 = arith.constant 1 : index
    %c0_22 = arith.constant 0 : index
    %25 = vector.load %arg14[%c1_20, %c1_21, %c0_22] : memref<18x18x16xf32, #tpu.memory_space<vmem>>, vector<16x16x16xf32>
    tpu.vector_store %arg14[%c1_20, %c1_21, %c0_22], %24 {strides = array<i32>} : memref<18x18x16xf32, #tpu.memory_space<vmem>>, vector<16x16x16xf32>,
    %c0_23 = arith.constant 0 : index
    %c0_24 = arith.constant 0 : index
    %c0_25 = arith.constant 0 : index
    %26 = vector.load %arg14[%c0_23, %c0_24, %c0_25] : memref<18x18x16xf32, #tpu.memory_space<vmem>>, vector<16x16x16xf32>
    %c0_26 = arith.constant 0 : index
    %c0_27 = arith.constant 0 : index
    %c0_28 = arith.constant 0 : index
    %27 = vector.load %arg15[%c0_26, %c0_27, %c0_28] : memref<16x16x256xf32, #tpu.memory_space<vmem>>, vector<16x16x16xf32>
    tpu.vector_store %arg15[%c0_26, %c0_27, %c0_28], %26 {strides = array<i32>} : memref<16x16x256xf32, #tpu.memory_space<vmem>>, vector<16x16x16xf32>,
    %c0_29 = arith.constant 0 : index
    %c1_30 = arith.constant 1 : index
    %c0_31 = arith.constant 0 : index
    %28 = vector.load %arg14[%c0_29, %c1_30, %c0_31] : memref<18x18x16xf32, #tpu.memory_space<vmem>>, vector<16x16x16xf32>
    %c0_32 = arith.constant 0 : index
    %c0_33 = arith.constant 0 : index
    %c16 = arith.constant 16 : index
    %29 = vector.load %arg15[%c0_32, %c0_33, %c16] : memref<16x16x256xf32, #tpu.memory_space<vmem>>, vector<16x16x16xf32>
    tpu.vector_store %arg15[%c0_32, %c0_33, %c16], %28 {strides = array<i32>} : memref<16x16x256xf32, #tpu.memory_space<vmem>>, vector<16x16x16xf32>,
    %c0_34 = arith.constant 0 : index
    %c2 = arith.constant 2 : index
    %c0_35 = arith.constant 0 : index
    %30 = vector.load %arg14[%c0_34, %c2, %c0_35] : memref<18x18x16xf32, #tpu.memory_space<vmem>>, vector<16x16x16xf32>
    %c0_36 = arith.constant 0 : index
    %c0_37 = arith.constant 0 : index
    %c32 = arith.constant 32 : index
    %31 = vector.load %arg15[%c0_36, %c0_37, %c32] : memref<16x16x256xf32, #tpu.memory_space<vmem>>, vector<16x16x16xf32>
    tpu.vector_store %arg15[%c0_36, %c0_37, %c32], %30 {strides = array<i32>} : memref<16x16x256xf32, #tpu.memory_space<vmem>>, vector<16x16x16xf32>,
    %c1_38 = arith.constant 1 : index
    %c0_39 = arith.constant 0 : index
    %c0_40 = arith.constant 0 : index
    %32 = vector.load %arg14[%c1_38, %c0_39, %c0_40] : memref<18x18x16xf32, #tpu.memory_space<vmem>>, vector<16x16x16xf32>
    %c0_41 = arith.constant 0 : index
    %c0_42 = arith.constant 0 : index
    %c48 = arith.constant 48 : index
    %33 = vector.load %arg15[%c0_41, %c0_42, %c48] : memref<16x16x256xf32, #tpu.memory_space<vmem>>, vector<16x16x16xf32>
    tpu.vector_store %arg15[%c0_41, %c0_42, %c48], %32 {strides = array<i32>} : memref<16x16x256xf32, #tpu.memory_space<vmem>>, vector<16x16x16xf32>,
    %c1_43 = arith.constant 1 : index
    %c1_44 = arith.constant 1 : index
    %c0_45 = arith.constant 0 : index
    %34 = vector.load %arg14[%c1_43, %c1_44, %c0_45] : memref<18x18x16xf32, #tpu.memory_space<vmem>>, vector<16x16x16xf32>
    %c0_46 = arith.constant 0 : index
    %c0_47 = arith.constant 0 : index
    %c64 = arith.constant 64 : index
    %35 = vector.load %arg15[%c0_46, %c0_47, %c64] : memref<16x16x256xf32, #tpu.memory_space<vmem>>, vector<16x16x16xf32>
    tpu.vector_store %arg15[%c0_46, %c0_47, %c64], %34 {strides = array<i32>} : memref<16x16x256xf32, #tpu.memory_space<vmem>>, vector<16x16x16xf32>,
    %c1_48 = arith.constant 1 : index
    %c2_49 = arith.constant 2 : index
    %c0_50 = arith.constant 0 : index
    %36 = vector.load %arg14[%c1_48, %c2_49, %c0_50] : memref<18x18x16xf32, #tpu.memory_space<vmem>>, vector<16x16x16xf32>
    %c0_51 = arith.constant 0 : index
    %c0_52 = arith.constant 0 : index
    %c80 = arith.constant 80 : index
    %37 = vector.load %arg15[%c0_51, %c0_52, %c80] : memref<16x16x256xf32, #tpu.memory_space<vmem>>, vector<16x16x16xf32>
    tpu.vector_store %arg15[%c0_51, %c0_52, %c80], %36 {strides = array<i32>} : memref<16x16x256xf32, #tpu.memory_space<vmem>>, vector<16x16x16xf32>,
    %c2_53 = arith.constant 2 : index
    %c0_54 = arith.constant 0 : index
    %c0_55 = arith.constant 0 : index
    %38 = vector.load %arg14[%c2_53, %c0_54, %c0_55] : memref<18x18x16xf32, #tpu.memory_space<vmem>>, vector<16x16x16xf32>
    %c0_56 = arith.constant 0 : index
    %c0_57 = arith.constant 0 : index
    %c96 = arith.constant 96 : index
    %39 = vector.load %arg15[%c0_56, %c0_57, %c96] : memref<16x16x256xf32, #tpu.memory_space<vmem>>, vector<16x16x16xf32>
    tpu.vector_store %arg15[%c0_56, %c0_57, %c96], %38 {strides = array<i32>} : memref<16x16x256xf32, #tpu.memory_space<vmem>>, vector<16x16x16xf32>,
    %c2_58 = arith.constant 2 : index
    %c1_59 = arith.constant 1 : index
    %c0_60 = arith.constant 0 : index
    %40 = vector.load %arg14[%c2_58, %c1_59, %c0_60] : memref<18x18x16xf32, #tpu.memory_space<vmem>>, vector<16x16x16xf32>
    %c0_61 = arith.constant 0 : index
    %c0_62 = arith.constant 0 : index
    %c112 = arith.constant 112 : index
    %41 = vector.load %arg15[%c0_61, %c0_62, %c112] : memref<16x16x256xf32, #tpu.memory_space<vmem>>, vector<16x16x16xf32>
    tpu.vector_store %arg15[%c0_61, %c0_62, %c112], %40 {strides = array<i32>} : memref<16x16x256xf32, #tpu.memory_space<vmem>>, vector<16x16x16xf32>,
    %c2_63 = arith.constant 2 : index
    %c2_64 = arith.constant 2 : index
    %c0_65 = arith.constant 0 : index
    %42 = vector.load %arg14[%c2_63, %c2_64, %c0_65] : memref<18x18x16xf32, #tpu.memory_space<vmem>>, vector<16x16x16xf32>
    %c0_66 = arith.constant 0 : index
    %c0_67 = arith.constant 0 : index
    %c128 = arith.constant 128 : index
    %43 = vector.load %arg15[%c0_66, %c0_67, %c128] : memref<16x16x256xf32, #tpu.memory_space<vmem>>, vector<16x16x16xf32>
    tpu.vector_store %arg15[%c0_66, %c0_67, %c128], %42 {strides = array<i32>} : memref<16x16x256xf32, #tpu.memory_space<vmem>>, vector<16x16x16xf32>,
    %c0_68 = arith.constant 0 : index
    %c0_69 = arith.constant 0 : index
    %44 = vector.load %arg4[%c0_68, %c0_69] : memref<256x128xbf16, #tpu.memory_space<vmem>>, vector<256x128xbf16>
    %c0_70 = arith.constant 0 : index
    %c0_71 = arith.constant 0 : index
    %c0_72 = arith.constant 0 : index
    %45 = vector.load %arg15[%c0_70, %c0_71, %c0_72] : memref<16x16x256xf32, #tpu.memory_space<vmem>>, vector<1x16x256xf32>
    %46 = vector.shape_cast %45 : vector<1x16x256xf32> to vector<16x256xf32>
    %47 = arith.truncf %46 : vector<16x256xf32> to vector<16x256xbf16>
    %cst_73 = arith.constant dense<0.000000e+00> : vector<16x128xf32>
    %48 = tpu.matmul %47, %44, %cst_73 {dimension_numbers = #tpu.dot_dimension_numbers<[1], [0], [0], [1], [0, 0, 1, 1], [], []>} : vector<16x256xbf16>, vector<256x128xbf16>, vector<16x128xf32> -> vector<16x128xf32>
    %c0_74 = arith.constant 0 : index
    %c0_75 = arith.constant 0 : index
    %49 = vector.load %arg16[%c0_74, %c0_75] : memref<256x128xf32, #tpu.memory_space<vmem>>, vector<16x128xf32>
    tpu.vector_store %arg16[%c0_74, %c0_75], %48 {strides = array<i32>} : memref<256x128xf32, #tpu.memory_space<vmem>>, vector<16x128xf32>,
    %c1_76 = arith.constant 1 : index
    %c0_77 = arith.constant 0 : index
    %c0_78 = arith.constant 0 : index
    %50 = vector.load %arg15[%c1_76, %c0_77, %c0_78] : memref<16x16x256xf32, #tpu.memory_space<vmem>>, vector<1x16x256xf32>
    %51 = vector.shape_cast %50 : vector<1x16x256xf32> to vector<16x256xf32>
    %52 = arith.truncf %51 : vector<16x256xf32> to vector<16x256xbf16>
    %cst_79 = arith.constant dense<0.000000e+00> : vector<16x128xf32>
    %53 = tpu.matmul %52, %44, %cst_79 {dimension_numbers = #tpu.dot_dimension_numbers<[1], [0], [0], [1], [0, 0, 1, 1], [], []>} : vector<16x256xbf16>, vector<256x128xbf16>, vector<16x128xf32> -> vector<16x128xf32>
    %c16_80 = arith.constant 16 : index
    %c0_81 = arith.constant 0 : index
    %54 = vector.load %arg16[%c16_80, %c0_81] : memref<256x128xf32, #tpu.memory_space<vmem>>, vector<16x128xf32>
    tpu.vector_store %arg16[%c16_80, %c0_81], %53 {strides = array<i32>} : memref<256x128xf32, #tpu.memory_space<vmem>>, vector<16x128xf32>,
    %c2_82 = arith.constant 2 : index
    %c0_83 = arith.constant 0 : index
    %c0_84 = arith.constant 0 : index
    %55 = vector.load %arg15[%c2_82, %c0_83, %c0_84] : memref<16x16x256xf32, #tpu.memory_space<vmem>>, vector<1x16x256xf32>
    %56 = vector.shape_cast %55 : vector<1x16x256xf32> to vector<16x256xf32>
    %57 = arith.truncf %56 : vector<16x256xf32> to vector<16x256xbf16>
    %cst_85 = arith.constant dense<0.000000e+00> : vector<16x128xf32>
    %58 = tpu.matmul %57, %44, %cst_85 {dimension_numbers = #tpu.dot_dimension_numbers<[1], [0], [0], [1], [0, 0, 1, 1], [], []>} : vector<16x256xbf16>, vector<256x128xbf16>, vector<16x128xf32> -> vector<16x128xf32>
    %c32_86 = arith.constant 32 : index
    %c0_87 = arith.constant 0 : index
    %59 = vector.load %arg16[%c32_86, %c0_87] : memref<256x128xf32, #tpu.memory_space<vmem>>, vector<16x128xf32>
    tpu.vector_store %arg16[%c32_86, %c0_87], %58 {strides = array<i32>} : memref<256x128xf32, #tpu.memory_space<vmem>>, vector<16x128xf32>,
    %c3 = arith.constant 3 : index
    %c0_88 = arith.constant 0 : index
    %c0_89 = arith.constant 0 : index
    %60 = vector.load %arg15[%c3, %c0_88, %c0_89] : memref<16x16x256xf32, #tpu.memory_space<vmem>>, vector<1x16x256xf32>
    %61 = vector.shape_cast %60 : vector<1x16x256xf32> to vector<16x256xf32>
    %62 = arith.truncf %61 : vector<16x256xf32> to vector<16x256xbf16>
    %cst_90 = arith.constant dense<0.000000e+00> : vector<16x128xf32>
    %63 = tpu.matmul %62, %44, %cst_90 {dimension_numbers = #tpu.dot_dimension_numbers<[1], [0], [0], [1], [0, 0, 1, 1], [], []>} : vector<16x256xbf16>, vector<256x128xbf16>, vector<16x128xf32> -> vector<16x128xf32>
    %c48_91 = arith.constant 48 : index
    %c0_92 = arith.constant 0 : index
    %64 = vector.load %arg16[%c48_91, %c0_92] : memref<256x128xf32, #tpu.memory_space<vmem>>, vector<16x128xf32>
    tpu.vector_store %arg16[%c48_91, %c0_92], %63 {strides = array<i32>} : memref<256x128xf32, #tpu.memory_space<vmem>>, vector<16x128xf32>,
    %c4 = arith.constant 4 : index
    %c0_93 = arith.constant 0 : index
    %c0_94 = arith.constant 0 : index
    %65 = vector.load %arg15[%c4, %c0_93, %c0_94] : memref<16x16x256xf32, #tpu.memory_space<vmem>>, vector<1x16x256xf32>
    %66 = vector.shape_cast %65 : vector<1x16x256xf32> to vector<16x256xf32>
    %67 = arith.truncf %66 : vector<16x256xf32> to vector<16x256xbf16>
    %cst_95 = arith.constant dense<0.000000e+00> : vector<16x128xf32>
    %68 = tpu.matmul %67, %44, %cst_95 {dimension_numbers = #tpu.dot_dimension_numbers<[1], [0], [0], [1], [0, 0, 1, 1], [], []>} : vector<16x256xbf16>, vector<256x128xbf16>, vector<16x128xf32> -> vector<16x128xf32>
    %c64_96 = arith.constant 64 : index
    %c0_97 = arith.constant 0 : index
    %69 = vector.load %arg16[%c64_96, %c0_97] : memref<256x128xf32, #tpu.memory_space<vmem>>, vector<16x128xf32>
    tpu.vector_store %arg16[%c64_96, %c0_97], %68 {strides = array<i32>} : memref<256x128xf32, #tpu.memory_space<vmem>>, vector<16x128xf32>,
    %c5 = arith.constant 5 : index
    %c0_98 = arith.constant 0 : index
    %c0_99 = arith.constant 0 : index
    %70 = vector.load %arg15[%c5, %c0_98, %c0_99] : memref<16x16x256xf32, #tpu.memory_space<vmem>>, vector<1x16x256xf32>
    %71 = vector.shape_cast %70 : vector<1x16x256xf32> to vector<16x256xf32>
    %72 = arith.truncf %71 : vector<16x256xf32> to vector<16x256xbf16>
    %cst_100 = arith.constant dense<0.000000e+00> : vector<16x128xf32>
    %73 = tpu.matmul %72, %44, %cst_100 {dimension_numbers = #tpu.dot_dimension_numbers<[1], [0], [0], [1], [0, 0, 1, 1], [], []>} : vector<16x256xbf16>, vector<256x128xbf16>, vector<16x128xf32> -> vector<16x128xf32>
    %c80_101 = arith.constant 80 : index
    %c0_102 = arith.constant 0 : index
    %74 = vector.load %arg16[%c80_101, %c0_102] : memref<256x128xf32, #tpu.memory_space<vmem>>, vector<16x128xf32>
    tpu.vector_store %arg16[%c80_101, %c0_102], %73 {strides = array<i32>} : memref<256x128xf32, #tpu.memory_space<vmem>>, vector<16x128xf32>,
    %c6 = arith.constant 6 : index
    %c0_103 = arith.constant 0 : index
    %c0_104 = arith.constant 0 : index
    %75 = vector.load %arg15[%c6, %c0_103, %c0_104] : memref<16x16x256xf32, #tpu.memory_space<vmem>>, vector<1x16x256xf32>
    %76 = vector.shape_cast %75 : vector<1x16x256xf32> to vector<16x256xf32>
    %77 = arith.truncf %76 : vector<16x256xf32> to vector<16x256xbf16>
    %cst_105 = arith.constant dense<0.000000e+00> : vector<16x128xf32>
    %78 = tpu.matmul %77, %44, %cst_105 {dimension_numbers = #tpu.dot_dimension_numbers<[1], [0], [0], [1], [0, 0, 1, 1], [], []>} : vector<16x256xbf16>, vector<256x128xbf16>, vector<16x128xf32> -> vector<16x128xf32>
    %c96_106 = arith.constant 96 : index
    %c0_107 = arith.constant 0 : index
    %79 = vector.load %arg16[%c96_106, %c0_107] : memref<256x128xf32, #tpu.memory_space<vmem>>, vector<16x128xf32>
    tpu.vector_store %arg16[%c96_106, %c0_107], %78 {strides = array<i32>} : memref<256x128xf32, #tpu.memory_space<vmem>>, vector<16x128xf32>,
    %c7 = arith.constant 7 : index
    %c0_108 = arith.constant 0 : index
    %c0_109 = arith.constant 0 : index
    %80 = vector.load %arg15[%c7, %c0_108, %c0_109] : memref<16x16x256xf32, #tpu.memory_space<vmem>>, vector<1x16x256xf32>
    %81 = vector.shape_cast %80 : vector<1x16x256xf32> to vector<16x256xf32>
    %82 = arith.truncf %81 : vector<16x256xf32> to vector<16x256xbf16>
    %cst_110 = arith.constant dense<0.000000e+00> : vector<16x128xf32>
    %83 = tpu.matmul %82, %44, %cst_110 {dimension_numbers = #tpu.dot_dimension_numbers<[1], [0], [0], [1], [0, 0, 1, 1], [], []>} : vector<16x256xbf16>, vector<256x128xbf16>, vector<16x128xf32> -> vector<16x128xf32>
    %c112_111 = arith.constant 112 : index
    %c0_112 = arith.constant 0 : index
    %84 = vector.load %arg16[%c112_111, %c0_112] : memref<256x128xf32, #tpu.memory_space<vmem>>, vector<16x128xf32>
    tpu.vector_store %arg16[%c112_111, %c0_112], %83 {strides = array<i32>} : memref<256x128xf32, #tpu.memory_space<vmem>>, vector<16x128xf32>,
    %c8 = arith.constant 8 : index
    %c0_113 = arith.constant 0 : index
    %c0_114 = arith.constant 0 : index
    %85 = vector.load %arg15[%c8, %c0_113, %c0_114] : memref<16x16x256xf32, #tpu.memory_space<vmem>>, vector<1x16x256xf32>
    %86 = vector.shape_cast %85 : vector<1x16x256xf32> to vector<16x256xf32>
    %87 = arith.truncf %86 : vector<16x256xf32> to vector<16x256xbf16>
    %cst_115 = arith.constant dense<0.000000e+00> : vector<16x128xf32>
    %88 = tpu.matmul %87, %44, %cst_115 {dimension_numbers = #tpu.dot_dimension_numbers<[1], [0], [0], [1], [0, 0, 1, 1], [], []>} : vector<16x256xbf16>, vector<256x128xbf16>, vector<16x128xf32> -> vector<16x128xf32>
    %c128_116 = arith.constant 128 : index
    %c0_117 = arith.constant 0 : index
    %89 = vector.load %arg16[%c128_116, %c0_117] : memref<256x128xf32, #tpu.memory_space<vmem>>, vector<16x128xf32>
    tpu.vector_store %arg16[%c128_116, %c0_117], %88 {strides = array<i32>} : memref<256x128xf32, #tpu.memory_space<vmem>>, vector<16x128xf32>,
    %c9 = arith.constant 9 : index
    %c0_118 = arith.constant 0 : index
    %c0_119 = arith.constant 0 : index
    %90 = vector.load %arg15[%c9, %c0_118, %c0_119] : memref<16x16x256xf32, #tpu.memory_space<vmem>>, vector<1x16x256xf32>
    %91 = vector.shape_cast %90 : vector<1x16x256xf32> to vector<16x256xf32>
    %92 = arith.truncf %91 : vector<16x256xf32> to vector<16x256xbf16>
    %cst_120 = arith.constant dense<0.000000e+00> : vector<16x128xf32>
    %93 = tpu.matmul %92, %44, %cst_120 {dimension_numbers = #tpu.dot_dimension_numbers<[1], [0], [0], [1], [0, 0, 1, 1], [], []>} : vector<16x256xbf16>, vector<256x128xbf16>, vector<16x128xf32> -> vector<16x128xf32>
    %c144 = arith.constant 144 : index
    %c0_121 = arith.constant 0 : index
    %94 = vector.load %arg16[%c144, %c0_121] : memref<256x128xf32, #tpu.memory_space<vmem>>, vector<16x128xf32>
    tpu.vector_store %arg16[%c144, %c0_121], %93 {strides = array<i32>} : memref<256x128xf32, #tpu.memory_space<vmem>>, vector<16x128xf32>,
    %c10 = arith.constant 10 : index
    %c0_122 = arith.constant 0 : index
    %c0_123 = arith.constant 0 : index
    %95 = vector.load %arg15[%c10, %c0_122, %c0_123] : memref<16x16x256xf32, #tpu.memory_space<vmem>>, vector<1x16x256xf32>
    %96 = vector.shape_cast %95 : vector<1x16x256xf32> to vector<16x256xf32>
    %97 = arith.truncf %96 : vector<16x256xf32> to vector<16x256xbf16>
    %cst_124 = arith.constant dense<0.000000e+00> : vector<16x128xf32>
    %98 = tpu.matmul %97, %44, %cst_124 {dimension_numbers = #tpu.dot_dimension_numbers<[1], [0], [0], [1], [0, 0, 1, 1], [], []>} : vector<16x256xbf16>, vector<256x128xbf16>, vector<16x128xf32> -> vector<16x128xf32>
    %c160 = arith.constant 160 : index
    %c0_125 = arith.constant 0 : index
    %99 = vector.load %arg16[%c160, %c0_125] : memref<256x128xf32, #tpu.memory_space<vmem>>, vector<16x128xf32>
    tpu.vector_store %arg16[%c160, %c0_125], %98 {strides = array<i32>} : memref<256x128xf32, #tpu.memory_space<vmem>>, vector<16x128xf32>,
    %c11 = arith.constant 11 : index
    %c0_126 = arith.constant 0 : index
    %c0_127 = arith.constant 0 : index
    %100 = vector.load %arg15[%c11, %c0_126, %c0_127] : memref<16x16x256xf32, #tpu.memory_space<vmem>>, vector<1x16x256xf32>
    %101 = vector.shape_cast %100 : vector<1x16x256xf32> to vector<16x256xf32>
    %102 = arith.truncf %101 : vector<16x256xf32> to vector<16x256xbf16>
    %cst_128 = arith.constant dense<0.000000e+00> : vector<16x128xf32>
    %103 = tpu.matmul %102, %44, %cst_128 {dimension_numbers = #tpu.dot_dimension_numbers<[1], [0], [0], [1], [0, 0, 1, 1], [], []>} : vector<16x256xbf16>, vector<256x128xbf16>, vector<16x128xf32> -> vector<16x128xf32>
    %c176 = arith.constant 176 : index
    %c0_129 = arith.constant 0 : index
    %104 = vector.load %arg16[%c176, %c0_129] : memref<256x128xf32, #tpu.memory_space<vmem>>, vector<16x128xf32>
    tpu.vector_store %arg16[%c176, %c0_129], %103 {strides = array<i32>} : memref<256x128xf32, #tpu.memory_space<vmem>>, vector<16x128xf32>,
    %c12 = arith.constant 12 : index
    %c0_130 = arith.constant 0 : index
    %c0_131 = arith.constant 0 : index
    %105 = vector.load %arg15[%c12, %c0_130, %c0_131] : memref<16x16x256xf32, #tpu.memory_space<vmem>>, vector<1x16x256xf32>
    %106 = vector.shape_cast %105 : vector<1x16x256xf32> to vector<16x256xf32>
    %107 = arith.truncf %106 : vector<16x256xf32> to vector<16x256xbf16>
    %cst_132 = arith.constant dense<0.000000e+00> : vector<16x128xf32>
    %108 = tpu.matmul %107, %44, %cst_132 {dimension_numbers = #tpu.dot_dimension_numbers<[1], [0], [0], [1], [0, 0, 1, 1], [], []>} : vector<16x256xbf16>, vector<256x128xbf16>, vector<16x128xf32> -> vector<16x128xf32>
    %c192 = arith.constant 192 : index
    %c0_133 = arith.constant 0 : index
    %109 = vector.load %arg16[%c192, %c0_133] : memref<256x128xf32, #tpu.memory_space<vmem>>, vector<16x128xf32>
    tpu.vector_store %arg16[%c192, %c0_133], %108 {strides = array<i32>} : memref<256x128xf32, #tpu.memory_space<vmem>>, vector<16x128xf32>,
    %c13 = arith.constant 13 : index
    %c0_134 = arith.constant 0 : index
    %c0_135 = arith.constant 0 : index
    %110 = vector.load %arg15[%c13, %c0_134, %c0_135] : memref<16x16x256xf32, #tpu.memory_space<vmem>>, vector<1x16x256xf32>
    %111 = vector.shape_cast %110 : vector<1x16x256xf32> to vector<16x256xf32>
    %112 = arith.truncf %111 : vector<16x256xf32> to vector<16x256xbf16>
    %cst_136 = arith.constant dense<0.000000e+00> : vector<16x128xf32>
    %113 = tpu.matmul %112, %44, %cst_136 {dimension_numbers = #tpu.dot_dimension_numbers<[1], [0], [0], [1], [0, 0, 1, 1], [], []>} : vector<16x256xbf16>, vector<256x128xbf16>, vector<16x128xf32> -> vector<16x128xf32>
    %c208 = arith.constant 208 : index
    %c0_137 = arith.constant 0 : index
    %114 = vector.load %arg16[%c208, %c0_137] : memref<256x128xf32, #tpu.memory_space<vmem>>, vector<16x128xf32>
    tpu.vector_store %arg16[%c208, %c0_137], %113 {strides = array<i32>} : memref<256x128xf32, #tpu.memory_space<vmem>>, vector<16x128xf32>,
    %c14 = arith.constant 14 : index
    %c0_138 = arith.constant 0 : index
    %c0_139 = arith.constant 0 : index
    %115 = vector.load %arg15[%c14, %c0_138, %c0_139] : memref<16x16x256xf32, #tpu.memory_space<vmem>>, vector<1x16x256xf32>
    %116 = vector.shape_cast %115 : vector<1x16x256xf32> to vector<16x256xf32>
    %117 = arith.truncf %116 : vector<16x256xf32> to vector<16x256xbf16>
    %cst_140 = arith.constant dense<0.000000e+00> : vector<16x128xf32>
    %118 = tpu.matmul %117, %44, %cst_140 {dimension_numbers = #tpu.dot_dimension_numbers<[1], [0], [0], [1], [0, 0, 1, 1], [], []>} : vector<16x256xbf16>, vector<256x128xbf16>, vector<16x128xf32> -> vector<16x128xf32>
    %c224 = arith.constant 224 : index
    %c0_141 = arith.constant 0 : index
    %119 = vector.load %arg16[%c224, %c0_141] : memref<256x128xf32, #tpu.memory_space<vmem>>, vector<16x128xf32>
    tpu.vector_store %arg16[%c224, %c0_141], %118 {strides = array<i32>} : memref<256x128xf32, #tpu.memory_space<vmem>>, vector<16x128xf32>,
    %c15 = arith.constant 15 : index
    %c0_142 = arith.constant 0 : index
    %c0_143 = arith.constant 0 : index
    %120 = vector.load %arg15[%c15, %c0_142, %c0_143] : memref<16x16x256xf32, #tpu.memory_space<vmem>>, vector<1x16x256xf32>
    %121 = vector.shape_cast %120 : vector<1x16x256xf32> to vector<16x256xf32>
    %122 = arith.truncf %121 : vector<16x256xf32> to vector<16x256xbf16>
    %cst_144 = arith.constant dense<0.000000e+00> : vector<16x128xf32>
    %123 = tpu.matmul %122, %44, %cst_144 {dimension_numbers = #tpu.dot_dimension_numbers<[1], [0], [0], [1], [0, 0, 1, 1], [], []>} : vector<16x256xbf16>, vector<256x128xbf16>, vector<16x128xf32> -> vector<16x128xf32>
    %c240 = arith.constant 240 : index
    %c0_145 = arith.constant 0 : index
    %124 = vector.load %arg16[%c240, %c0_145] : memref<256x128xf32, #tpu.memory_space<vmem>>, vector<16x128xf32>
    tpu.vector_store %arg16[%c240, %c0_145], %123 {strides = array<i32>} : memref<256x128xf32, #tpu.memory_space<vmem>>, vector<16x128xf32>,
    %c0_146 = arith.constant 0 : index
    %c0_147 = arith.constant 0 : index
    %125 = tpu.strided_load %arg16[%c0_146, %c0_147] {strides = array<i32: 2, 1>} : memref<256x128xf32, #tpu.memory_space<vmem>>, vector<128x128xf32>
    %c1_148 = arith.constant 1 : index
    %c0_149 = arith.constant 0 : index
    %126 = tpu.strided_load %arg16[%c1_148, %c0_149] {strides = array<i32: 2, 1>} : memref<256x128xf32, #tpu.memory_space<vmem>>, vector<128x128xf32>
    %127 = arith.maximumf %125, %126 : vector<128x128xf32>
    %128 = vector.shape_cast %127 : vector<128x128xf32> to vector<8x2x8x128xf32>
    %129 = vector.extract_strided_slice %128 {offsets = [0, 0, 0, 0], sizes = [8, 1, 8, 128], strides = [1, 1, 1, 1]} : vector<8x2x8x128xf32> to vector<8x1x8x128xf32>
    %130 = vector.shape_cast %129 : vector<8x1x8x128xf32> to vector<8x8x128xf32>
    %131 = vector.extract_strided_slice %128 {offsets = [0, 1, 0, 0], sizes = [8, 1, 8, 128], strides = [1, 1, 1, 1]} : vector<8x2x8x128xf32> to vector<8x1x8x128xf32>
    %132 = vector.shape_cast %131 : vector<8x1x8x128xf32> to vector<8x8x128xf32>
    %133 = arith.maximumf %130, %132 : vector<8x8x128xf32>
    %c0_150 = arith.constant 0 : index
    %c0_151 = arith.constant 0 : index
    %134 = vector.load %arg5[%c0_150, %c0_151] : memref<1x128xf32, #tpu.memory_space<vmem>>, vector<1x128xf32>
    %135 = vector.shape_cast %134 : vector<1x128xf32> to vector<1x1x128xf32>
    %136 = vector.broadcast %135 : vector<1x1x128xf32> to vector<8x8x128xf32>
    %137 = arith.addf %133, %136 : vector<8x8x128xf32>
    %cst_152 = arith.constant 0.000000e+00 : f32
    %138 = vector.broadcast %cst_152 : f32 to vector<8x8x128xf32>
    %139 = arith.maximumf %137, %138 : vector<8x8x128xf32>
    %c0_153 = arith.constant 0 : index
    %c0_154 = arith.constant 0 : index
    %c0_155 = arith.constant 0 : index
    %140 = vector.load %arg17[%c0_153, %c0_154, %c0_155] : memref<8x8x128xf32, #tpu.memory_space<vmem>>, vector<8x8x128xf32>
    tpu.vector_store %arg17[%c0_153, %c0_154, %c0_155], %139 {strides = array<i32>} : memref<8x8x128xf32, #tpu.memory_space<vmem>>, vector<8x8x128xf32>,
    %c0_156 = arith.constant 0 : index
    %c0_157 = arith.constant 0 : index
    %c0_158 = arith.constant 0 : index
    %141 = vector.load %arg17[%c0_156, %c0_157, %c0_158] : memref<8x8x128xf32, #tpu.memory_space<vmem>>, vector<1x1x32xf32>
    %142 = vector.shape_cast %141 : vector<1x1x32xf32> to vector<1x32xf32>
    %c0_159 = arith.constant 0 : index
    %c0_160 = arith.constant 0 : index
    %143 = vector.load %arg18[%c0_159, %c0_160] : memref<1x2048xf32, #tpu.memory_space<vmem>>, vector<1x32xf32>
    tpu.vector_store %arg18[%c0_159, %c0_160], %142 {strides = array<i32>} : memref<1x2048xf32, #tpu.memory_space<vmem>>, vector<1x32xf32>,
    %c0_161 = arith.constant 0 : index
    %c1_162 = arith.constant 1 : index
    %c0_163 = arith.constant 0 : index
    %144 = vector.load %arg17[%c0_161, %c1_162, %c0_163] : memref<8x8x128xf32, #tpu.memory_space<vmem>>, vector<1x1x32xf32>
    %145 = vector.shape_cast %144 : vector<1x1x32xf32> to vector<1x32xf32>
    %c0_164 = arith.constant 0 : index
    %c32_165 = arith.constant 32 : index
    %146 = vector.load %arg18[%c0_164, %c32_165] : memref<1x2048xf32, #tpu.memory_space<vmem>>, vector<1x32xf32>
    tpu.vector_store %arg18[%c0_164, %c32_165], %145 {strides = array<i32>} : memref<1x2048xf32, #tpu.memory_space<vmem>>, vector<1x32xf32>,
    %c0_166 = arith.constant 0 : index
    %c2_167 = arith.constant 2 : index
    %c0_168 = arith.constant 0 : index
    %147 = vector.load %arg17[%c0_166, %c2_167, %c0_168] : memref<8x8x128xf32, #tpu.memory_space<vmem>>, vector<1x1x32xf32>
    %148 = vector.shape_cast %147 : vector<1x1x32xf32> to vector<1x32xf32>
    %c0_169 = arith.constant 0 : index
    %c64_170 = arith.constant 64 : index
    %149 = vector.load %arg18[%c0_169, %c64_170] : memref<1x2048xf32, #tpu.memory_space<vmem>>, vector<1x32xf32>
    tpu.vector_store %arg18[%c0_169, %c64_170], %148 {strides = array<i32>} : memref<1x2048xf32, #tpu.memory_space<vmem>>, vector<1x32xf32>,
    %c0_171 = arith.constant 0 : index
    %c3_172 = arith.constant 3 : index
    %c0_173 = arith.constant 0 : index
    %150 = vector.load %arg17[%c0_171, %c3_172, %c0_173] : memref<8x8x128xf32, #tpu.memory_space<vmem>>, vector<1x1x32xf32>
    %151 = vector.shape_cast %150 : vector<1x1x32xf32> to vector<1x32xf32>
    %c0_174 = arith.constant 0 : index
    %c96_175 = arith.constant 96 : index
    %152 = vector.load %arg18[%c0_174, %c96_175] : memref<1x2048xf32, #tpu.memory_space<vmem>>, vector<1x32xf32>
    tpu.vector_store %arg18[%c0_174, %c96_175], %151 {strides = array<i32>} : memref<1x2048xf32, #tpu.memory_space<vmem>>, vector<1x32xf32>,
    %c0_176 = arith.constant 0 : index
    %c4_177 = arith.constant 4 : index
    %c0_178 = arith.constant 0 : index
    %153 = vector.load %arg17[%c0_176, %c4_177, %c0_178] : memref<8x8x128xf32, #tpu.memory_space<vmem>>, vector<1x1x32xf32>
    %154 = vector.shape_cast %153 : vector<1x1x32xf32> to vector<1x32xf32>
    %c0_179 = arith.constant 0 : index
    %c128_180 = arith.constant 128 : index
    %155 = vector.load %arg18[%c0_179, %c128_180] : memref<1x2048xf32, #tpu.memory_space<vmem>>, vector<1x32xf32>
    tpu.vector_store %arg18[%c0_179, %c128_180], %154 {strides = array<i32>} : memref<1x2048xf32, #tpu.memory_space<vmem>>, vector<1x32xf32>,
    %c0_181 = arith.constant 0 : index
    %c5_182 = arith.constant 5 : index
    %c0_183 = arith.constant 0 : index
    %156 = vector.load %arg17[%c0_181, %c5_182, %c0_183] : memref<8x8x128xf32, #tpu.memory_space<vmem>>, vector<1x1x32xf32>
    %157 = vector.shape_cast %156 : vector<1x1x32xf32> to vector<1x32xf32>
    %c0_184 = arith.constant 0 : index
    %c160_185 = arith.constant 160 : index
    %158 = vector.load %arg18[%c0_184, %c160_185] : memref<1x2048xf32, #tpu.memory_space<vmem>>, vector<1x32xf32>
    tpu.vector_store %arg18[%c0_184, %c160_185], %157 {strides = array<i32>} : memref<1x2048xf32, #tpu.memory_space<vmem>>, vector<1x32xf32>,
    %c0_186 = arith.constant 0 : index
    %c6_187 = arith.constant 6 : index
    %c0_188 = arith.constant 0 : index
    %159 = vector.load %arg17[%c0_186, %c6_187, %c0_188] : memref<8x8x128xf32, #tpu.memory_space<vmem>>, vector<1x1x32xf32>
    %160 = vector.shape_cast %159 : vector<1x1x32xf32> to vector<1x32xf32>
    %c0_189 = arith.constant 0 : index
    %c192_190 = arith.constant 192 : index
    %161 = vector.load %arg18[%c0_189, %c192_190] : memref<1x2048xf32, #tpu.memory_space<vmem>>, vector<1x32xf32>
    tpu.vector_store %arg18[%c0_189, %c192_190], %160 {strides = array<i32>} : memref<1x2048xf32, #tpu.memory_space<vmem>>, vector<1x32xf32>,
    %c0_191 = arith.constant 0 : index
    %c7_192 = arith.constant 7 : index
    %c0_193 = arith.constant 0 : index
    %162 = vector.load %arg17[%c0_191, %c7_192, %c0_193] : memref<8x8x128xf32, #tpu.memory_space<vmem>>, vector<1x1x32xf32>
    %163 = vector.shape_cast %162 : vector<1x1x32xf32> to vector<1x32xf32>
    %c0_194 = arith.constant 0 : index
    %c224_195 = arith.constant 224 : index
    %164 = vector.load %arg18[%c0_194, %c224_195] : memref<1x2048xf32, #tpu.memory_space<vmem>>, vector<1x32xf32>
    tpu.vector_store %arg18[%c0_194, %c224_195], %163 {strides = array<i32>} : memref<1x2048xf32, #tpu.memory_space<vmem>>, vector<1x32xf32>,
    %c1_196 = arith.constant 1 : index
    %c0_197 = arith.constant 0 : index
    %c0_198 = arith.constant 0 : index
    %165 = vector.load %arg17[%c1_196, %c0_197, %c0_198] : memref<8x8x128xf32, #tpu.memory_space<vmem>>, vector<1x1x32xf32>
    %166 = vector.shape_cast %165 : vector<1x1x32xf32> to vector<1x32xf32>
    %c0_199 = arith.constant 0 : index
    %c256 = arith.constant 256 : index
    %167 = vector.load %arg18[%c0_199, %c256] : memref<1x2048xf32, #tpu.memory_space<vmem>>, vector<1x32xf32>
    tpu.vector_store %arg18[%c0_199, %c256], %166 {strides = array<i32>} : memref<1x2048xf32, #tpu.memory_space<vmem>>, vector<1x32xf32>,
    %c1_200 = arith.constant 1 : index
    %c1_201 = arith.constant 1 : index
    %c0_202 = arith.constant 0 : index
    %168 = vector.load %arg17[%c1_200, %c1_201, %c0_202] : memref<8x8x128xf32, #tpu.memory_space<vmem>>, vector<1x1x32xf32>
    %169 = vector.shape_cast %168 : vector<1x1x32xf32> to vector<1x32xf32>
    %c0_203 = arith.constant 0 : index
    %c288 = arith.constant 288 : index
    %170 = vector.load %arg18[%c0_203, %c288] : memref<1x2048xf32, #tpu.memory_space<vmem>>, vector<1x32xf32>
    tpu.vector_store %arg18[%c0_203, %c288], %169 {strides = array<i32>} : memref<1x2048xf32, #tpu.memory_space<vmem>>, vector<1x32xf32>,
    %c1_204 = arith.constant 1 : index
    %c2_205 = arith.constant 2 : index
    %c0_206 = arith.constant 0 : index
    %171 = vector.load %arg17[%c1_204, %c2_205, %c0_206] : memref<8x8x128xf32, #tpu.memory_space<vmem>>, vector<1x1x32xf32>
    %172 = vector.shape_cast %171 : vector<1x1x32xf32> to vector<1x32xf32>
    %c0_207 = arith.constant 0 : index
    %c320 = arith.constant 320 : index
    %173 = vector.load %arg18[%c0_207, %c320] : memref<1x2048xf32, #tpu.memory_space<vmem>>, vector<1x32xf32>
    tpu.vector_store %arg18[%c0_207, %c320], %172 {strides = array<i32>} : memref<1x2048xf32, #tpu.memory_space<vmem>>, vector<1x32xf32>,
    %c1_208 = arith.constant 1 : index
    %c3_209 = arith.constant 3 : index
    %c0_210 = arith.constant 0 : index
    %174 = vector.load %arg17[%c1_208, %c3_209, %c0_210] : memref<8x8x128xf32, #tpu.memory_space<vmem>>, vector<1x1x32xf32>
    %175 = vector.shape_cast %174 : vector<1x1x32xf32> to vector<1x32xf32>
    %c0_211 = arith.constant 0 : index
    %c352 = arith.constant 352 : index
    %176 = vector.load %arg18[%c0_211, %c352] : memref<1x2048xf32, #tpu.memory_space<vmem>>, vector<1x32xf32>
    tpu.vector_store %arg18[%c0_211, %c352], %175 {strides = array<i32>} : memref<1x2048xf32, #tpu.memory_space<vmem>>, vector<1x32xf32>,
    %c1_212 = arith.constant 1 : index
    %c4_213 = arith.constant 4 : index
    %c0_214 = arith.constant 0 : index
    %177 = vector.load %arg17[%c1_212, %c4_213, %c0_214] : memref<8x8x128xf32, #tpu.memory_space<vmem>>, vector<1x1x32xf32>
    %178 = vector.shape_cast %177 : vector<1x1x32xf32> to vector<1x32xf32>
    %c0_215 = arith.constant 0 : index
    %c384 = arith.constant 384 : index
    %179 = vector.load %arg18[%c0_215, %c384] : memref<1x2048xf32, #tpu.memory_space<vmem>>, vector<1x32xf32>
    tpu.vector_store %arg18[%c0_215, %c384], %178 {strides = array<i32>} : memref<1x2048xf32, #tpu.memory_space<vmem>>, vector<1x32xf32>,
    %c1_216 = arith.constant 1 : index
    %c5_217 = arith.constant 5 : index
    %c0_218 = arith.constant 0 : index
    %180 = vector.load %arg17[%c1_216, %c5_217, %c0_218] : memref<8x8x128xf32, #tpu.memory_space<vmem>>, vector<1x1x32xf32>
    %181 = vector.shape_cast %180 : vector<1x1x32xf32> to vector<1x32xf32>
    %c0_219 = arith.constant 0 : index
    %c416 = arith.constant 416 : index
    %182 = vector.load %arg18[%c0_219, %c416] : memref<1x2048xf32, #tpu.memory_space<vmem>>, vector<1x32xf32>
    tpu.vector_store %arg18[%c0_219, %c416], %181 {strides = array<i32>} : memref<1x2048xf32, #tpu.memory_space<vmem>>, vector<1x32xf32>,
    %c1_220 = arith.constant 1 : index
    %c6_221 = arith.constant 6 : index
    %c0_222 = arith.constant 0 : index
    %183 = vector.load %arg17[%c1_220, %c6_221, %c0_222] : memref<8x8x128xf32, #tpu.memory_space<vmem>>, vector<1x1x32xf32>
    %184 = vector.shape_cast %183 : vector<1x1x32xf32> to vector<1x32xf32>
    %c0_223 = arith.constant 0 : index
    %c448 = arith.constant 448 : index
    %185 = vector.load %arg18[%c0_223, %c448] : memref<1x2048xf32, #tpu.memory_space<vmem>>, vector<1x32xf32>
    tpu.vector_store %arg18[%c0_223, %c448], %184 {strides = array<i32>} : memref<1x2048xf32, #tpu.memory_space<vmem>>, vector<1x32xf32>,
    %c1_224 = arith.constant 1 : index
    %c7_225 = arith.constant 7 : index
    %c0_226 = arith.constant 0 : index
    %186 = vector.load %arg17[%c1_224, %c7_225, %c0_226] : memref<8x8x128xf32, #tpu.memory_space<vmem>>, vector<1x1x32xf32>
    %187 = vector.shape_cast %186 : vector<1x1x32xf32> to vector<1x32xf32>
    %c0_227 = arith.constant 0 : index
    %c480 = arith.constant 480 : index
    %188 = vector.load %arg18[%c0_227, %c480] : memref<1x2048xf32, #tpu.memory_space<vmem>>, vector<1x32xf32>
    tpu.vector_store %arg18[%c0_227, %c480], %187 {strides = array<i32>} : memref<1x2048xf32, #tpu.memory_space<vmem>>, vector<1x32xf32>,
    %c2_228 = arith.constant 2 : index
    %c0_229 = arith.constant 0 : index
    %c0_230 = arith.constant 0 : index
    %189 = vector.load %arg17[%c2_228, %c0_229, %c0_230] : memref<8x8x128xf32, #tpu.memory_space<vmem>>, vector<1x1x32xf32>
    %190 = vector.shape_cast %189 : vector<1x1x32xf32> to vector<1x32xf32>
    %c0_231 = arith.constant 0 : index
    %c512 = arith.constant 512 : index
    %191 = vector.load %arg18[%c0_231, %c512] : memref<1x2048xf32, #tpu.memory_space<vmem>>, vector<1x32xf32>
    tpu.vector_store %arg18[%c0_231, %c512], %190 {strides = array<i32>} : memref<1x2048xf32, #tpu.memory_space<vmem>>, vector<1x32xf32>,
    %c2_232 = arith.constant 2 : index
    %c1_233 = arith.constant 1 : index
    %c0_234 = arith.constant 0 : index
    %192 = vector.load %arg17[%c2_232, %c1_233, %c0_234] : memref<8x8x128xf32, #tpu.memory_space<vmem>>, vector<1x1x32xf32>
    %193 = vector.shape_cast %192 : vector<1x1x32xf32> to vector<1x32xf32>
    %c0_235 = arith.constant 0 : index
    %c544 = arith.constant 544 : index
    %194 = vector.load %arg18[%c0_235, %c544] : memref<1x2048xf32, #tpu.memory_space<vmem>>, vector<1x32xf32>
    tpu.vector_store %arg18[%c0_235, %c544], %193 {strides = array<i32>} : memref<1x2048xf32, #tpu.memory_space<vmem>>, vector<1x32xf32>,
    %c2_236 = arith.constant 2 : index
    %c2_237 = arith.constant 2 : index
    %c0_238 = arith.constant 0 : index
    %195 = vector.load %arg17[%c2_236, %c2_237, %c0_238] : memref<8x8x128xf32, #tpu.memory_space<vmem>>, vector<1x1x32xf32>
    %196 = vector.shape_cast %195 : vector<1x1x32xf32> to vector<1x32xf32>
    %c0_239 = arith.constant 0 : index
    %c576 = arith.constant 576 : index
    %197 = vector.load %arg18[%c0_239, %c576] : memref<1x2048xf32, #tpu.memory_space<vmem>>, vector<1x32xf32>
    tpu.vector_store %arg18[%c0_239, %c576], %196 {strides = array<i32>} : memref<1x2048xf32, #tpu.memory_space<vmem>>, vector<1x32xf32>,
    %c2_240 = arith.constant 2 : index
    %c3_241 = arith.constant 3 : index
    %c0_242 = arith.constant 0 : index
    %198 = vector.load %arg17[%c2_240, %c3_241, %c0_242] : memref<8x8x128xf32, #tpu.memory_space<vmem>>, vector<1x1x32xf32>
    %199 = vector.shape_cast %198 : vector<1x1x32xf32> to vector<1x32xf32>
    %c0_243 = arith.constant 0 : index
    %c608 = arith.constant 608 : index
    %200 = vector.load %arg18[%c0_243, %c608] : memref<1x2048xf32, #tpu.memory_space<vmem>>, vector<1x32xf32>
    tpu.vector_store %arg18[%c0_243, %c608], %199 {strides = array<i32>} : memref<1x2048xf32, #tpu.memory_space<vmem>>, vector<1x32xf32>,
    %c2_244 = arith.constant 2 : index
    %c4_245 = arith.constant 4 : index
    %c0_246 = arith.constant 0 : index
    %201 = vector.load %arg17[%c2_244, %c4_245, %c0_246] : memref<8x8x128xf32, #tpu.memory_space<vmem>>, vector<1x1x32xf32>
    %202 = vector.shape_cast %201 : vector<1x1x32xf32> to vector<1x32xf32>
    %c0_247 = arith.constant 0 : index
    %c640 = arith.constant 640 : index
    %203 = vector.load %arg18[%c0_247, %c640] : memref<1x2048xf32, #tpu.memory_space<vmem>>, vector<1x32xf32>
    tpu.vector_store %arg18[%c0_247, %c640], %202 {strides = array<i32>} : memref<1x2048xf32, #tpu.memory_space<vmem>>, vector<1x32xf32>,
    %c2_248 = arith.constant 2 : index
    %c5_249 = arith.constant 5 : index
    %c0_250 = arith.constant 0 : index
    %204 = vector.load %arg17[%c2_248, %c5_249, %c0_250] : memref<8x8x128xf32, #tpu.memory_space<vmem>>, vector<1x1x32xf32>
    %205 = vector.shape_cast %204 : vector<1x1x32xf32> to vector<1x32xf32>
    %c0_251 = arith.constant 0 : index
    %c672 = arith.constant 672 : index
    %206 = vector.load %arg18[%c0_251, %c672] : memref<1x2048xf32, #tpu.memory_space<vmem>>, vector<1x32xf32>
    tpu.vector_store %arg18[%c0_251, %c672], %205 {strides = array<i32>} : memref<1x2048xf32, #tpu.memory_space<vmem>>, vector<1x32xf32>,
    %c2_252 = arith.constant 2 : index
    %c6_253 = arith.constant 6 : index
    %c0_254 = arith.constant 0 : index
    %207 = vector.load %arg17[%c2_252, %c6_253, %c0_254] : memref<8x8x128xf32, #tpu.memory_space<vmem>>, vector<1x1x32xf32>
    %208 = vector.shape_cast %207 : vector<1x1x32xf32> to vector<1x32xf32>
    %c0_255 = arith.constant 0 : index
    %c704 = arith.constant 704 : index
    %209 = vector.load %arg18[%c0_255, %c704] : memref<1x2048xf32, #tpu.memory_space<vmem>>, vector<1x32xf32>
    tpu.vector_store %arg18[%c0_255, %c704], %208 {strides = array<i32>} : memref<1x2048xf32, #tpu.memory_space<vmem>>, vector<1x32xf32>,
    %c2_256 = arith.constant 2 : index
    %c7_257 = arith.constant 7 : index
    %c0_258 = arith.constant 0 : index
    %210 = vector.load %arg17[%c2_256, %c7_257, %c0_258] : memref<8x8x128xf32, #tpu.memory_space<vmem>>, vector<1x1x32xf32>
    %211 = vector.shape_cast %210 : vector<1x1x32xf32> to vector<1x32xf32>
    %c0_259 = arith.constant 0 : index
    %c736 = arith.constant 736 : index
    %212 = vector.load %arg18[%c0_259, %c736] : memref<1x2048xf32, #tpu.memory_space<vmem>>, vector<1x32xf32>
    tpu.vector_store %arg18[%c0_259, %c736], %211 {strides = array<i32>} : memref<1x2048xf32, #tpu.memory_space<vmem>>, vector<1x32xf32>,
    %c3_260 = arith.constant 3 : index
    %c0_261 = arith.constant 0 : index
    %c0_262 = arith.constant 0 : index
    %213 = vector.load %arg17[%c3_260, %c0_261, %c0_262] : memref<8x8x128xf32, #tpu.memory_space<vmem>>, vector<1x1x32xf32>
    %214 = vector.shape_cast %213 : vector<1x1x32xf32> to vector<1x32xf32>
    %c0_263 = arith.constant 0 : index
    %c768 = arith.constant 768 : index
    %215 = vector.load %arg18[%c0_263, %c768] : memref<1x2048xf32, #tpu.memory_space<vmem>>, vector<1x32xf32>
    tpu.vector_store %arg18[%c0_263, %c768], %214 {strides = array<i32>} : memref<1x2048xf32, #tpu.memory_space<vmem>>, vector<1x32xf32>,
    %c3_264 = arith.constant 3 : index
    %c1_265 = arith.constant 1 : index
    %c0_266 = arith.constant 0 : index
    %216 = vector.load %arg17[%c3_264, %c1_265, %c0_266] : memref<8x8x128xf32, #tpu.memory_space<vmem>>, vector<1x1x32xf32>
    %217 = vector.shape_cast %216 : vector<1x1x32xf32> to vector<1x32xf32>
    %c0_267 = arith.constant 0 : index
    %c800 = arith.constant 800 : index
    %218 = vector.load %arg18[%c0_267, %c800] : memref<1x2048xf32, #tpu.memory_space<vmem>>, vector<1x32xf32>
    tpu.vector_store %arg18[%c0_267, %c800], %217 {strides = array<i32>} : memref<1x2048xf32, #tpu.memory_space<vmem>>, vector<1x32xf32>,
    %c3_268 = arith.constant 3 : index
    %c2_269 = arith.constant 2 : index
    %c0_270 = arith.constant 0 : index
    %219 = vector.load %arg17[%c3_268, %c2_269, %c0_270] : memref<8x8x128xf32, #tpu.memory_space<vmem>>, vector<1x1x32xf32>
    %220 = vector.shape_cast %219 : vector<1x1x32xf32> to vector<1x32xf32>
    %c0_271 = arith.constant 0 : index
    %c832 = arith.constant 832 : index
    %221 = vector.load %arg18[%c0_271, %c832] : memref<1x2048xf32, #tpu.memory_space<vmem>>, vector<1x32xf32>
    tpu.vector_store %arg18[%c0_271, %c832], %220 {strides = array<i32>} : memref<1x2048xf32, #tpu.memory_space<vmem>>, vector<1x32xf32>,
    %c3_272 = arith.constant 3 : index
    %c3_273 = arith.constant 3 : index
    %c0_274 = arith.constant 0 : index
    %222 = vector.load %arg17[%c3_272, %c3_273, %c0_274] : memref<8x8x128xf32, #tpu.memory_space<vmem>>, vector<1x1x32xf32>
    %223 = vector.shape_cast %222 : vector<1x1x32xf32> to vector<1x32xf32>
    %c0_275 = arith.constant 0 : index
    %c864 = arith.constant 864 : index
    %224 = vector.load %arg18[%c0_275, %c864] : memref<1x2048xf32, #tpu.memory_space<vmem>>, vector<1x32xf32>
    tpu.vector_store %arg18[%c0_275, %c864], %223 {strides = array<i32>} : memref<1x2048xf32, #tpu.memory_space<vmem>>, vector<1x32xf32>,
    %c3_276 = arith.constant 3 : index
    %c4_277 = arith.constant 4 : index
    %c0_278 = arith.constant 0 : index
    %225 = vector.load %arg17[%c3_276, %c4_277, %c0_278] : memref<8x8x128xf32, #tpu.memory_space<vmem>>, vector<1x1x32xf32>
    %226 = vector.shape_cast %225 : vector<1x1x32xf32> to vector<1x32xf32>
    %c0_279 = arith.constant 0 : index
    %c896 = arith.constant 896 : index
    %227 = vector.load %arg18[%c0_279, %c896] : memref<1x2048xf32, #tpu.memory_space<vmem>>, vector<1x32xf32>
    tpu.vector_store %arg18[%c0_279, %c896], %226 {strides = array<i32>} : memref<1x2048xf32, #tpu.memory_space<vmem>>, vector<1x32xf32>,
    %c3_280 = arith.constant 3 : index
    %c5_281 = arith.constant 5 : index
    %c0_282 = arith.constant 0 : index
    %228 = vector.load %arg17[%c3_280, %c5_281, %c0_282] : memref<8x8x128xf32, #tpu.memory_space<vmem>>, vector<1x1x32xf32>
    %229 = vector.shape_cast %228 : vector<1x1x32xf32> to vector<1x32xf32>
    %c0_283 = arith.constant 0 : index
    %c928 = arith.constant 928 : index
    %230 = vector.load %arg18[%c0_283, %c928] : memref<1x2048xf32, #tpu.memory_space<vmem>>, vector<1x32xf32>
    tpu.vector_store %arg18[%c0_283, %c928], %229 {strides = array<i32>} : memref<1x2048xf32, #tpu.memory_space<vmem>>, vector<1x32xf32>,
    %c3_284 = arith.constant 3 : index
    %c6_285 = arith.constant 6 : index
    %c0_286 = arith.constant 0 : index
    %231 = vector.load %arg17[%c3_284, %c6_285, %c0_286] : memref<8x8x128xf32, #tpu.memory_space<vmem>>, vector<1x1x32xf32>
    %232 = vector.shape_cast %231 : vector<1x1x32xf32> to vector<1x32xf32>
    %c0_287 = arith.constant 0 : index
    %c960 = arith.constant 960 : index
    %233 = vector.load %arg18[%c0_287, %c960] : memref<1x2048xf32, #tpu.memory_space<vmem>>, vector<1x32xf32>
    tpu.vector_store %arg18[%c0_287, %c960], %232 {strides = array<i32>} : memref<1x2048xf32, #tpu.memory_space<vmem>>, vector<1x32xf32>,
    %c3_288 = arith.constant 3 : index
    %c7_289 = arith.constant 7 : index
    %c0_290 = arith.constant 0 : index
    %234 = vector.load %arg17[%c3_288, %c7_289, %c0_290] : memref<8x8x128xf32, #tpu.memory_space<vmem>>, vector<1x1x32xf32>
    %235 = vector.shape_cast %234 : vector<1x1x32xf32> to vector<1x32xf32>
    %c0_291 = arith.constant 0 : index
    %c992 = arith.constant 992 : index
    %236 = vector.load %arg18[%c0_291, %c992] : memref<1x2048xf32, #tpu.memory_space<vmem>>, vector<1x32xf32>
    tpu.vector_store %arg18[%c0_291, %c992], %235 {strides = array<i32>} : memref<1x2048xf32, #tpu.memory_space<vmem>>, vector<1x32xf32>,
    %c4_292 = arith.constant 4 : index
    %c0_293 = arith.constant 0 : index
    %c0_294 = arith.constant 0 : index
    %237 = vector.load %arg17[%c4_292, %c0_293, %c0_294] : memref<8x8x128xf32, #tpu.memory_space<vmem>>, vector<1x1x32xf32>
    %238 = vector.shape_cast %237 : vector<1x1x32xf32> to vector<1x32xf32>
    %c0_295 = arith.constant 0 : index
    %c1024 = arith.constant 1024 : index
    %239 = vector.load %arg18[%c0_295, %c1024] : memref<1x2048xf32, #tpu.memory_space<vmem>>, vector<1x32xf32>
    tpu.vector_store %arg18[%c0_295, %c1024], %238 {strides = array<i32>} : memref<1x2048xf32, #tpu.memory_space<vmem>>, vector<1x32xf32>,
    %c4_296 = arith.constant 4 : index
    %c1_297 = arith.constant 1 : index
    %c0_298 = arith.constant 0 : index
    %240 = vector.load %arg17[%c4_296, %c1_297, %c0_298] : memref<8x8x128xf32, #tpu.memory_space<vmem>>, vector<1x1x32xf32>
    %241 = vector.shape_cast %240 : vector<1x1x32xf32> to vector<1x32xf32>
    %c0_299 = arith.constant 0 : index
    %c1056 = arith.constant 1056 : index
    %242 = vector.load %arg18[%c0_299, %c1056] : memref<1x2048xf32, #tpu.memory_space<vmem>>, vector<1x32xf32>
    tpu.vector_store %arg18[%c0_299, %c1056], %241 {strides = array<i32>} : memref<1x2048xf32, #tpu.memory_space<vmem>>, vector<1x32xf32>,
    %c4_300 = arith.constant 4 : index
    %c2_301 = arith.constant 2 : index
    %c0_302 = arith.constant 0 : index
    %243 = vector.load %arg17[%c4_300, %c2_301, %c0_302] : memref<8x8x128xf32, #tpu.memory_space<vmem>>, vector<1x1x32xf32>
    %244 = vector.shape_cast %243 : vector<1x1x32xf32> to vector<1x32xf32>
    %c0_303 = arith.constant 0 : index
    %c1088 = arith.constant 1088 : index
    %245 = vector.load %arg18[%c0_303, %c1088] : memref<1x2048xf32, #tpu.memory_space<vmem>>, vector<1x32xf32>
    tpu.vector_store %arg18[%c0_303, %c1088], %244 {strides = array<i32>} : memref<1x2048xf32, #tpu.memory_space<vmem>>, vector<1x32xf32>,
    %c4_304 = arith.constant 4 : index
    %c3_305 = arith.constant 3 : index
    %c0_306 = arith.constant 0 : index
    %246 = vector.load %arg17[%c4_304, %c3_305, %c0_306] : memref<8x8x128xf32, #tpu.memory_space<vmem>>, vector<1x1x32xf32>
    %247 = vector.shape_cast %246 : vector<1x1x32xf32> to vector<1x32xf32>
    %c0_307 = arith.constant 0 : index
    %c1120 = arith.constant 1120 : index
    %248 = vector.load %arg18[%c0_307, %c1120] : memref<1x2048xf32, #tpu.memory_space<vmem>>, vector<1x32xf32>
    tpu.vector_store %arg18[%c0_307, %c1120], %247 {strides = array<i32>} : memref<1x2048xf32, #tpu.memory_space<vmem>>, vector<1x32xf32>,
    %c4_308 = arith.constant 4 : index
    %c4_309 = arith.constant 4 : index
    %c0_310 = arith.constant 0 : index
    %249 = vector.load %arg17[%c4_308, %c4_309, %c0_310] : memref<8x8x128xf32, #tpu.memory_space<vmem>>, vector<1x1x32xf32>
    %250 = vector.shape_cast %249 : vector<1x1x32xf32> to vector<1x32xf32>
    %c0_311 = arith.constant 0 : index
    %c1152 = arith.constant 1152 : index
    %251 = vector.load %arg18[%c0_311, %c1152] : memref<1x2048xf32, #tpu.memory_space<vmem>>, vector<1x32xf32>
    tpu.vector_store %arg18[%c0_311, %c1152], %250 {strides = array<i32>} : memref<1x2048xf32, #tpu.memory_space<vmem>>, vector<1x32xf32>,
    %c4_312 = arith.constant 4 : index
    %c5_313 = arith.constant 5 : index
    %c0_314 = arith.constant 0 : index
    %252 = vector.load %arg17[%c4_312, %c5_313, %c0_314] : memref<8x8x128xf32, #tpu.memory_space<vmem>>, vector<1x1x32xf32>
    %253 = vector.shape_cast %252 : vector<1x1x32xf32> to vector<1x32xf32>
    %c0_315 = arith.constant 0 : index
    %c1184 = arith.constant 1184 : index
    %254 = vector.load %arg18[%c0_315, %c1184] : memref<1x2048xf32, #tpu.memory_space<vmem>>, vector<1x32xf32>
    tpu.vector_store %arg18[%c0_315, %c1184], %253 {strides = array<i32>} : memref<1x2048xf32, #tpu.memory_space<vmem>>, vector<1x32xf32>,
    %c4_316 = arith.constant 4 : index
    %c6_317 = arith.constant 6 : index
    %c0_318 = arith.constant 0 : index
    %255 = vector.load %arg17[%c4_316, %c6_317, %c0_318] : memref<8x8x128xf32, #tpu.memory_space<vmem>>, vector<1x1x32xf32>
    %256 = vector.shape_cast %255 : vector<1x1x32xf32> to vector<1x32xf32>
    %c0_319 = arith.constant 0 : index
    %c1216 = arith.constant 1216 : index
    %257 = vector.load %arg18[%c0_319, %c1216] : memref<1x2048xf32, #tpu.memory_space<vmem>>, vector<1x32xf32>
    tpu.vector_store %arg18[%c0_319, %c1216], %256 {strides = array<i32>} : memref<1x2048xf32, #tpu.memory_space<vmem>>, vector<1x32xf32>,
    %c4_320 = arith.constant 4 : index
    %c7_321 = arith.constant 7 : index
    %c0_322 = arith.constant 0 : index
    %258 = vector.load %arg17[%c4_320, %c7_321, %c0_322] : memref<8x8x128xf32, #tpu.memory_space<vmem>>, vector<1x1x32xf32>
    %259 = vector.shape_cast %258 : vector<1x1x32xf32> to vector<1x32xf32>
    %c0_323 = arith.constant 0 : index
    %c1248 = arith.constant 1248 : index
    %260 = vector.load %arg18[%c0_323, %c1248] : memref<1x2048xf32, #tpu.memory_space<vmem>>, vector<1x32xf32>
    tpu.vector_store %arg18[%c0_323, %c1248], %259 {strides = array<i32>} : memref<1x2048xf32, #tpu.memory_space<vmem>>, vector<1x32xf32>,
    %c5_324 = arith.constant 5 : index
    %c0_325 = arith.constant 0 : index
    %c0_326 = arith.constant 0 : index
    %261 = vector.load %arg17[%c5_324, %c0_325, %c0_326] : memref<8x8x128xf32, #tpu.memory_space<vmem>>, vector<1x1x32xf32>
    %262 = vector.shape_cast %261 : vector<1x1x32xf32> to vector<1x32xf32>
    %c0_327 = arith.constant 0 : index
    %c1280 = arith.constant 1280 : index
    %263 = vector.load %arg18[%c0_327, %c1280] : memref<1x2048xf32, #tpu.memory_space<vmem>>, vector<1x32xf32>
    tpu.vector_store %arg18[%c0_327, %c1280], %262 {strides = array<i32>} : memref<1x2048xf32, #tpu.memory_space<vmem>>, vector<1x32xf32>,
    %c5_328 = arith.constant 5 : index
    %c1_329 = arith.constant 1 : index
    %c0_330 = arith.constant 0 : index
    %264 = vector.load %arg17[%c5_328, %c1_329, %c0_330] : memref<8x8x128xf32, #tpu.memory_space<vmem>>, vector<1x1x32xf32>
    %265 = vector.shape_cast %264 : vector<1x1x32xf32> to vector<1x32xf32>
    %c0_331 = arith.constant 0 : index
    %c1312 = arith.constant 1312 : index
    %266 = vector.load %arg18[%c0_331, %c1312] : memref<1x2048xf32, #tpu.memory_space<vmem>>, vector<1x32xf32>
    tpu.vector_store %arg18[%c0_331, %c1312], %265 {strides = array<i32>} : memref<1x2048xf32, #tpu.memory_space<vmem>>, vector<1x32xf32>,
    %c5_332 = arith.constant 5 : index
    %c2_333 = arith.constant 2 : index
    %c0_334 = arith.constant 0 : index
    %267 = vector.load %arg17[%c5_332, %c2_333, %c0_334] : memref<8x8x128xf32, #tpu.memory_space<vmem>>, vector<1x1x32xf32>
    %268 = vector.shape_cast %267 : vector<1x1x32xf32> to vector<1x32xf32>
    %c0_335 = arith.constant 0 : index
    %c1344 = arith.constant 1344 : index
    %269 = vector.load %arg18[%c0_335, %c1344] : memref<1x2048xf32, #tpu.memory_space<vmem>>, vector<1x32xf32>
    tpu.vector_store %arg18[%c0_335, %c1344], %268 {strides = array<i32>} : memref<1x2048xf32, #tpu.memory_space<vmem>>, vector<1x32xf32>,
    %c5_336 = arith.constant 5 : index
    %c3_337 = arith.constant 3 : index
    %c0_338 = arith.constant 0 : index
    %270 = vector.load %arg17[%c5_336, %c3_337, %c0_338] : memref<8x8x128xf32, #tpu.memory_space<vmem>>, vector<1x1x32xf32>
    %271 = vector.shape_cast %270 : vector<1x1x32xf32> to vector<1x32xf32>
    %c0_339 = arith.constant 0 : index
    %c1376 = arith.constant 1376 : index
    %272 = vector.load %arg18[%c0_339, %c1376] : memref<1x2048xf32, #tpu.memory_space<vmem>>, vector<1x32xf32>
    tpu.vector_store %arg18[%c0_339, %c1376], %271 {strides = array<i32>} : memref<1x2048xf32, #tpu.memory_space<vmem>>, vector<1x32xf32>,
    %c5_340 = arith.constant 5 : index
    %c4_341 = arith.constant 4 : index
    %c0_342 = arith.constant 0 : index
    %273 = vector.load %arg17[%c5_340, %c4_341, %c0_342] : memref<8x8x128xf32, #tpu.memory_space<vmem>>, vector<1x1x32xf32>
    %274 = vector.shape_cast %273 : vector<1x1x32xf32> to vector<1x32xf32>
    %c0_343 = arith.constant 0 : index
    %c1408 = arith.constant 1408 : index
    %275 = vector.load %arg18[%c0_343, %c1408] : memref<1x2048xf32, #tpu.memory_space<vmem>>, vector<1x32xf32>
    tpu.vector_store %arg18[%c0_343, %c1408], %274 {strides = array<i32>} : memref<1x2048xf32, #tpu.memory_space<vmem>>, vector<1x32xf32>,
    %c5_344 = arith.constant 5 : index
    %c5_345 = arith.constant 5 : index
    %c0_346 = arith.constant 0 : index
    %276 = vector.load %arg17[%c5_344, %c5_345, %c0_346] : memref<8x8x128xf32, #tpu.memory_space<vmem>>, vector<1x1x32xf32>
    %277 = vector.shape_cast %276 : vector<1x1x32xf32> to vector<1x32xf32>
    %c0_347 = arith.constant 0 : index
    %c1440 = arith.constant 1440 : index
    %278 = vector.load %arg18[%c0_347, %c1440] : memref<1x2048xf32, #tpu.memory_space<vmem>>, vector<1x32xf32>
    tpu.vector_store %arg18[%c0_347, %c1440], %277 {strides = array<i32>} : memref<1x2048xf32, #tpu.memory_space<vmem>>, vector<1x32xf32>,
    %c5_348 = arith.constant 5 : index
    %c6_349 = arith.constant 6 : index
    %c0_350 = arith.constant 0 : index
    %279 = vector.load %arg17[%c5_348, %c6_349, %c0_350] : memref<8x8x128xf32, #tpu.memory_space<vmem>>, vector<1x1x32xf32>
    %280 = vector.shape_cast %279 : vector<1x1x32xf32> to vector<1x32xf32>
    %c0_351 = arith.constant 0 : index
    %c1472 = arith.constant 1472 : index
    %281 = vector.load %arg18[%c0_351, %c1472] : memref<1x2048xf32, #tpu.memory_space<vmem>>, vector<1x32xf32>
    tpu.vector_store %arg18[%c0_351, %c1472], %280 {strides = array<i32>} : memref<1x2048xf32, #tpu.memory_space<vmem>>, vector<1x32xf32>,
    %c5_352 = arith.constant 5 : index
    %c7_353 = arith.constant 7 : index
    %c0_354 = arith.constant 0 : index
    %282 = vector.load %arg17[%c5_352, %c7_353, %c0_354] : memref<8x8x128xf32, #tpu.memory_space<vmem>>, vector<1x1x32xf32>
    %283 = vector.shape_cast %282 : vector<1x1x32xf32> to vector<1x32xf32>
    %c0_355 = arith.constant 0 : index
    %c1504 = arith.constant 1504 : index
    %284 = vector.load %arg18[%c0_355, %c1504] : memref<1x2048xf32, #tpu.memory_space<vmem>>, vector<1x32xf32>
    tpu.vector_store %arg18[%c0_355, %c1504], %283 {strides = array<i32>} : memref<1x2048xf32, #tpu.memory_space<vmem>>, vector<1x32xf32>,
    %c6_356 = arith.constant 6 : index
    %c0_357 = arith.constant 0 : index
    %c0_358 = arith.constant 0 : index
    %285 = vector.load %arg17[%c6_356, %c0_357, %c0_358] : memref<8x8x128xf32, #tpu.memory_space<vmem>>, vector<1x1x32xf32>
    %286 = vector.shape_cast %285 : vector<1x1x32xf32> to vector<1x32xf32>
    %c0_359 = arith.constant 0 : index
    %c1536 = arith.constant 1536 : index
    %287 = vector.load %arg18[%c0_359, %c1536] : memref<1x2048xf32, #tpu.memory_space<vmem>>, vector<1x32xf32>
    tpu.vector_store %arg18[%c0_359, %c1536], %286 {strides = array<i32>} : memref<1x2048xf32, #tpu.memory_space<vmem>>, vector<1x32xf32>,
    %c6_360 = arith.constant 6 : index
    %c1_361 = arith.constant 1 : index
    %c0_362 = arith.constant 0 : index
    %288 = vector.load %arg17[%c6_360, %c1_361, %c0_362] : memref<8x8x128xf32, #tpu.memory_space<vmem>>, vector<1x1x32xf32>
    %289 = vector.shape_cast %288 : vector<1x1x32xf32> to vector<1x32xf32>
    %c0_363 = arith.constant 0 : index
    %c1568 = arith.constant 1568 : index
    %290 = vector.load %arg18[%c0_363, %c1568] : memref<1x2048xf32, #tpu.memory_space<vmem>>, vector<1x32xf32>
    tpu.vector_store %arg18[%c0_363, %c1568], %289 {strides = array<i32>} : memref<1x2048xf32, #tpu.memory_space<vmem>>, vector<1x32xf32>,
    %c6_364 = arith.constant 6 : index
    %c2_365 = arith.constant 2 : index
    %c0_366 = arith.constant 0 : index
    %291 = vector.load %arg17[%c6_364, %c2_365, %c0_366] : memref<8x8x128xf32, #tpu.memory_space<vmem>>, vector<1x1x32xf32>
    %292 = vector.shape_cast %291 : vector<1x1x32xf32> to vector<1x32xf32>
    %c0_367 = arith.constant 0 : index
    %c1600 = arith.constant 1600 : index
    %293 = vector.load %arg18[%c0_367, %c1600] : memref<1x2048xf32, #tpu.memory_space<vmem>>, vector<1x32xf32>
    tpu.vector_store %arg18[%c0_367, %c1600], %292 {strides = array<i32>} : memref<1x2048xf32, #tpu.memory_space<vmem>>, vector<1x32xf32>,
    %c6_368 = arith.constant 6 : index
    %c3_369 = arith.constant 3 : index
    %c0_370 = arith.constant 0 : index
    %294 = vector.load %arg17[%c6_368, %c3_369, %c0_370] : memref<8x8x128xf32, #tpu.memory_space<vmem>>, vector<1x1x32xf32>
    %295 = vector.shape_cast %294 : vector<1x1x32xf32> to vector<1x32xf32>
    %c0_371 = arith.constant 0 : index
    %c1632 = arith.constant 1632 : index
    %296 = vector.load %arg18[%c0_371, %c1632] : memref<1x2048xf32, #tpu.memory_space<vmem>>, vector<1x32xf32>
    tpu.vector_store %arg18[%c0_371, %c1632], %295 {strides = array<i32>} : memref<1x2048xf32, #tpu.memory_space<vmem>>, vector<1x32xf32>,
    %c6_372 = arith.constant 6 : index
    %c4_373 = arith.constant 4 : index
    %c0_374 = arith.constant 0 : index
    %297 = vector.load %arg17[%c6_372, %c4_373, %c0_374] : memref<8x8x128xf32, #tpu.memory_space<vmem>>, vector<1x1x32xf32>
    %298 = vector.shape_cast %297 : vector<1x1x32xf32> to vector<1x32xf32>
    %c0_375 = arith.constant 0 : index
    %c1664 = arith.constant 1664 : index
    %299 = vector.load %arg18[%c0_375, %c1664] : memref<1x2048xf32, #tpu.memory_space<vmem>>, vector<1x32xf32>
    tpu.vector_store %arg18[%c0_375, %c1664], %298 {strides = array<i32>} : memref<1x2048xf32, #tpu.memory_space<vmem>>, vector<1x32xf32>,
    %c6_376 = arith.constant 6 : index
    %c5_377 = arith.constant 5 : index
    %c0_378 = arith.constant 0 : index
    %300 = vector.load %arg17[%c6_376, %c5_377, %c0_378] : memref<8x8x128xf32, #tpu.memory_space<vmem>>, vector<1x1x32xf32>
    %301 = vector.shape_cast %300 : vector<1x1x32xf32> to vector<1x32xf32>
    %c0_379 = arith.constant 0 : index
    %c1696 = arith.constant 1696 : index
    %302 = vector.load %arg18[%c0_379, %c1696] : memref<1x2048xf32, #tpu.memory_space<vmem>>, vector<1x32xf32>
    tpu.vector_store %arg18[%c0_379, %c1696], %301 {strides = array<i32>} : memref<1x2048xf32, #tpu.memory_space<vmem>>, vector<1x32xf32>,
    %c6_380 = arith.constant 6 : index
    %c6_381 = arith.constant 6 : index
    %c0_382 = arith.constant 0 : index
    %303 = vector.load %arg17[%c6_380, %c6_381, %c0_382] : memref<8x8x128xf32, #tpu.memory_space<vmem>>, vector<1x1x32xf32>
    %304 = vector.shape_cast %303 : vector<1x1x32xf32> to vector<1x32xf32>
    %c0_383 = arith.constant 0 : index
    %c1728 = arith.constant 1728 : index
    %305 = vector.load %arg18[%c0_383, %c1728] : memref<1x2048xf32, #tpu.memory_space<vmem>>, vector<1x32xf32>
    tpu.vector_store %arg18[%c0_383, %c1728], %304 {strides = array<i32>} : memref<1x2048xf32, #tpu.memory_space<vmem>>, vector<1x32xf32>,
    %c6_384 = arith.constant 6 : index
    %c7_385 = arith.constant 7 : index
    %c0_386 = arith.constant 0 : index
    %306 = vector.load %arg17[%c6_384, %c7_385, %c0_386] : memref<8x8x128xf32, #tpu.memory_space<vmem>>, vector<1x1x32xf32>
    %307 = vector.shape_cast %306 : vector<1x1x32xf32> to vector<1x32xf32>
    %c0_387 = arith.constant 0 : index
    %c1760 = arith.constant 1760 : index
    %308 = vector.load %arg18[%c0_387, %c1760] : memref<1x2048xf32, #tpu.memory_space<vmem>>, vector<1x32xf32>
    tpu.vector_store %arg18[%c0_387, %c1760], %307 {strides = array<i32>} : memref<1x2048xf32, #tpu.memory_space<vmem>>, vector<1x32xf32>,
    %c7_388 = arith.constant 7 : index
    %c0_389 = arith.constant 0 : index
    %c0_390 = arith.constant 0 : index
    %309 = vector.load %arg17[%c7_388, %c0_389, %c0_390] : memref<8x8x128xf32, #tpu.memory_space<vmem>>, vector<1x1x32xf32>
    %310 = vector.shape_cast %309 : vector<1x1x32xf32> to vector<1x32xf32>
    %c0_391 = arith.constant 0 : index
    %c1792 = arith.constant 1792 : index
    %311 = vector.load %arg18[%c0_391, %c1792] : memref<1x2048xf32, #tpu.memory_space<vmem>>, vector<1x32xf32>
    tpu.vector_store %arg18[%c0_391, %c1792], %310 {strides = array<i32>} : memref<1x2048xf32, #tpu.memory_space<vmem>>, vector<1x32xf32>,
    %c7_392 = arith.constant 7 : index
    %c1_393 = arith.constant 1 : index
    %c0_394 = arith.constant 0 : index
    %312 = vector.load %arg17[%c7_392, %c1_393, %c0_394] : memref<8x8x128xf32, #tpu.memory_space<vmem>>, vector<1x1x32xf32>
    %313 = vector.shape_cast %312 : vector<1x1x32xf32> to vector<1x32xf32>
    %c0_395 = arith.constant 0 : index
    %c1824 = arith.constant 1824 : index
    %314 = vector.load %arg18[%c0_395, %c1824] : memref<1x2048xf32, #tpu.memory_space<vmem>>, vector<1x32xf32>
    tpu.vector_store %arg18[%c0_395, %c1824], %313 {strides = array<i32>} : memref<1x2048xf32, #tpu.memory_space<vmem>>, vector<1x32xf32>,
    %c7_396 = arith.constant 7 : index
    %c2_397 = arith.constant 2 : index
    %c0_398 = arith.constant 0 : index
    %315 = vector.load %arg17[%c7_396, %c2_397, %c0_398] : memref<8x8x128xf32, #tpu.memory_space<vmem>>, vector<1x1x32xf32>
    %316 = vector.shape_cast %315 : vector<1x1x32xf32> to vector<1x32xf32>
    %c0_399 = arith.constant 0 : index
    %c1856 = arith.constant 1856 : index
    %317 = vector.load %arg18[%c0_399, %c1856] : memref<1x2048xf32, #tpu.memory_space<vmem>>, vector<1x32xf32>
    tpu.vector_store %arg18[%c0_399, %c1856], %316 {strides = array<i32>} : memref<1x2048xf32, #tpu.memory_space<vmem>>, vector<1x32xf32>,
    %c7_400 = arith.constant 7 : index
    %c3_401 = arith.constant 3 : index
    %c0_402 = arith.constant 0 : index
    %318 = vector.load %arg17[%c7_400, %c3_401, %c0_402] : memref<8x8x128xf32, #tpu.memory_space<vmem>>, vector<1x1x32xf32>
    %319 = vector.shape_cast %318 : vector<1x1x32xf32> to vector<1x32xf32>
    %c0_403 = arith.constant 0 : index
    %c1888 = arith.constant 1888 : index
    %320 = vector.load %arg18[%c0_403, %c1888] : memref<1x2048xf32, #tpu.memory_space<vmem>>, vector<1x32xf32>
    tpu.vector_store %arg18[%c0_403, %c1888], %319 {strides = array<i32>} : memref<1x2048xf32, #tpu.memory_space<vmem>>, vector<1x32xf32>,
    %c7_404 = arith.constant 7 : index
    %c4_405 = arith.constant 4 : index
    %c0_406 = arith.constant 0 : index
    %321 = vector.load %arg17[%c7_404, %c4_405, %c0_406] : memref<8x8x128xf32, #tpu.memory_space<vmem>>, vector<1x1x32xf32>
    %322 = vector.shape_cast %321 : vector<1x1x32xf32> to vector<1x32xf32>
    %c0_407 = arith.constant 0 : index
    %c1920 = arith.constant 1920 : index
    %323 = vector.load %arg18[%c0_407, %c1920] : memref<1x2048xf32, #tpu.memory_space<vmem>>, vector<1x32xf32>
    tpu.vector_store %arg18[%c0_407, %c1920], %322 {strides = array<i32>} : memref<1x2048xf32, #tpu.memory_space<vmem>>, vector<1x32xf32>,
    %c7_408 = arith.constant 7 : index
    %c5_409 = arith.constant 5 : index
    %c0_410 = arith.constant 0 : index
    %324 = vector.load %arg17[%c7_408, %c5_409, %c0_410] : memref<8x8x128xf32, #tpu.memory_space<vmem>>, vector<1x1x32xf32>
    %325 = vector.shape_cast %324 : vector<1x1x32xf32> to vector<1x32xf32>
    %c0_411 = arith.constant 0 : index
    %c1952 = arith.constant 1952 : index
    %326 = vector.load %arg18[%c0_411, %c1952] : memref<1x2048xf32, #tpu.memory_space<vmem>>, vector<1x32xf32>
    tpu.vector_store %arg18[%c0_411, %c1952], %325 {strides = array<i32>} : memref<1x2048xf32, #tpu.memory_space<vmem>>, vector<1x32xf32>,
    %c7_412 = arith.constant 7 : index
    %c6_413 = arith.constant 6 : index
    %c0_414 = arith.constant 0 : index
    %327 = vector.load %arg17[%c7_412, %c6_413, %c0_414] : memref<8x8x128xf32, #tpu.memory_space<vmem>>, vector<1x1x32xf32>
    %328 = vector.shape_cast %327 : vector<1x1x32xf32> to vector<1x32xf32>
    %c0_415 = arith.constant 0 : index
    %c1984 = arith.constant 1984 : index
    %329 = vector.load %arg18[%c0_415, %c1984] : memref<1x2048xf32, #tpu.memory_space<vmem>>, vector<1x32xf32>
    tpu.vector_store %arg18[%c0_415, %c1984], %328 {strides = array<i32>} : memref<1x2048xf32, #tpu.memory_space<vmem>>, vector<1x32xf32>,
    %c7_416 = arith.constant 7 : index
    %c7_417 = arith.constant 7 : index
    %c0_418 = arith.constant 0 : index
    %330 = vector.load %arg17[%c7_416, %c7_417, %c0_418] : memref<8x8x128xf32, #tpu.memory_space<vmem>>, vector<1x1x32xf32>
    %331 = vector.shape_cast %330 : vector<1x1x32xf32> to vector<1x32xf32>
    %c0_419 = arith.constant 0 : index
    %c2016 = arith.constant 2016 : index
    %332 = vector.load %arg18[%c0_419, %c2016] : memref<1x2048xf32, #tpu.memory_space<vmem>>, vector<1x32xf32>
    tpu.vector_store %arg18[%c0_419, %c2016], %331 {strides = array<i32>} : memref<1x2048xf32, #tpu.memory_space<vmem>>, vector<1x32xf32>,
    %c0_420 = arith.constant 0 : index
    %c0_421 = arith.constant 0 : index
    %333 = vector.load %arg18[%c0_420, %c0_421] : memref<1x2048xf32, #tpu.memory_space<vmem>>, vector<1x2048xf32>
    %334 = arith.truncf %333 : vector<1x2048xf32> to vector<1x2048xbf16>
    %c0_422 = arith.constant 0 : index
    %c0_423 = arith.constant 0 : index
    %335 = vector.load %arg6[%c0_422, %c0_423] : memref<2048x512xbf16, #tpu.memory_space<vmem>>, vector<2048x512xbf16>
    %cst_424 = arith.constant dense<0.000000e+00> : vector<1x512xf32>
    %336 = tpu.matmul %334, %335, %cst_424 {dimension_numbers = #tpu.dot_dimension_numbers<[1], [0], [0], [1], [0, 0, 1, 1], [], []>} : vector<1x2048xbf16>, vector<2048x512xbf16>, vector<1x512xf32> -> vector<1x512xf32>
    %c0_425 = arith.constant 0 : index
    %c0_426 = arith.constant 0 : index
    %337 = vector.load %arg7[%c0_425, %c0_426] : memref<1x512xf32, #tpu.memory_space<vmem>>, vector<1x512xf32>
    %338 = arith.addf %336, %337 : vector<1x512xf32>
    %cst_427 = arith.constant 0.000000e+00 : f32
    %339 = vector.broadcast %cst_427 : f32 to vector<1x512xf32>
    %340 = arith.maximumf %338, %339 : vector<1x512xf32>
    %341 = arith.truncf %340 : vector<1x512xf32> to vector<1x512xbf16>
    %c0_428 = arith.constant 0 : index
    %c0_429 = arith.constant 0 : index
    %342 = vector.load %arg8[%c0_428, %c0_429] : memref<512x128xbf16, #tpu.memory_space<vmem>>, vector<512x128xbf16>
    %cst_430 = arith.constant dense<0.000000e+00> : vector<1x128xf32>
    %343 = tpu.matmul %341, %342, %cst_430 {dimension_numbers = #tpu.dot_dimension_numbers<[1], [0], [0], [1], [0, 0, 1, 1], [], []>} : vector<1x512xbf16>, vector<512x128xbf16>, vector<1x128xf32> -> vector<1x128xf32>
    %c0_431 = arith.constant 0 : index
    %c0_432 = arith.constant 0 : index
    %344 = vector.load %arg9[%c0_431, %c0_432] : memref<1x128xf32, #tpu.memory_space<vmem>>, vector<1x128xf32>
    %345 = arith.addf %343, %344 : vector<1x128xf32>
    %cst_433 = arith.constant 0.000000e+00 : f32
    %346 = vector.broadcast %cst_433 : f32 to vector<1x128xf32>
    %347 = arith.maximumf %345, %346 : vector<1x128xf32>
    %348 = arith.truncf %347 : vector<1x128xf32> to vector<1x128xbf16>
    %c0_434 = arith.constant 0 : index
    %c0_435 = arith.constant 0 : index
    %349 = vector.load %arg10[%c0_434, %c0_435] : memref<128x128xbf16, #tpu.memory_space<vmem>>, vector<128x128xbf16>
    %cst_436 = arith.constant dense<0.000000e+00> : vector<1x128xf32>
    %350 = tpu.matmul %348, %349, %cst_436 {dimension_numbers = #tpu.dot_dimension_numbers<[1], [0], [0], [1], [0, 0, 1, 1], [], []>} : vector<1x128xbf16>, vector<128x128xbf16>, vector<1x128xf32> -> vector<1x128xf32>
    %c0_437 = arith.constant 0 : index
    %c0_438 = arith.constant 0 : index
    %351 = vector.load %arg11[%c0_437, %c0_438] : memref<1x128xf32, #tpu.memory_space<vmem>>, vector<1x128xf32>
    %352 = arith.addf %350, %351 : vector<1x128xf32>
    %c0_439 = arith.constant 0 : index
    %c0_440 = arith.constant 0 : index
    %c0_441 = arith.constant 0 : index
    %353 = vector.load %arg12[%c0_439, %c0_440, %c0_441] : memref<1x1x128xf32, #tpu.memory_space<vmem>>, vector<1x1x128xf32>
    %354 = vector.shape_cast %353 : vector<1x1x128xf32> to vector<1x128xf32>
    %355 = vector.shape_cast %352 : vector<1x128xf32> to vector<1x1x128xf32>
    tpu.vector_store %arg12[%c0_439, %c0_440, %c0_441], %355 {strides = array<i32>} : memref<1x1x128xf32, #tpu.memory_space<vmem>>, vector<1x1x128xf32>,
    return
  }
  func.func @transform_0(%arg0: i32) -> (i32, i32, i32) {
    %c0_i32 = arith.constant 0 : i32
    %c0_i32_0 = arith.constant 0 : i32
    %c0_i32_1 = arith.constant 0 : i32
    return %arg0, %c0_i32, %c0_i32_0 : i32, i32, i32
  }
  func.func @transform_1(%arg0: i32) -> (i32, i32) {
    %c0_i32 = arith.constant 0 : i32
    %c0_i32_0 = arith.constant 0 : i32
    %c0_i32_1 = arith.constant 0 : i32
    return %c0_i32, %c0_i32_0 : i32, i32
  }
  func.func @transform_2(%arg0: i32) -> (i32, i32) {
    %c0_i32 = arith.constant 0 : i32
    %c0_i32_0 = arith.constant 0 : i32
    %c0_i32_1 = arith.constant 0 : i32
    return %c0_i32, %c0_i32_0 : i32, i32
  }
  func.func @transform_3(%arg0: i32) -> (i32, i32) {
    %c0_i32 = arith.constant 0 : i32
    %c0_i32_0 = arith.constant 0 : i32
    %c0_i32_1 = arith.constant 0 : i32
    return %c0_i32, %c0_i32_0 : i32, i32
  }
  func.func @transform_4(%arg0: i32) -> (i32, i32) {
    %c0_i32 = arith.constant 0 : i32
    %c0_i32_0 = arith.constant 0 : i32
    %c0_i32_1 = arith.constant 0 : i32
    return %c0_i32, %c0_i32_0 : i32, i32
  }
  func.func @transform_5(%arg0: i32) -> (i32, i32) {
    %c0_i32 = arith.constant 0 : i32
    %c0_i32_0 = arith.constant 0 : i32
    %c0_i32_1 = arith.constant 0 : i32
    return %c0_i32, %c0_i32_0 : i32, i32
  }
  func.func @transform_6(%arg0: i32) -> (i32, i32) {
    %c0_i32 = arith.constant 0 : i32
    %c0_i32_0 = arith.constant 0 : i32
    %c0_i32_1 = arith.constant 0 : i32
    return %c0_i32, %c0_i32_0 : i32, i32
  }
  func.func @transform_7(%arg0: i32) -> (i32, i32) {
    %c0_i32 = arith.constant 0 : i32
    %c0_i32_0 = arith.constant 0 : i32
    %c0_i32_1 = arith.constant 0 : i32
    return %c0_i32, %c0_i32_0 : i32, i32
  }
  func.func @transform_8(%arg0: i32) -> (i32, i32) {
    %c0_i32 = arith.constant 0 : i32
    %c0_i32_0 = arith.constant 0 : i32
    %c0_i32_1 = arith.constant 0 : i32
    return %c0_i32, %c0_i32_0 : i32, i32
  }
  func.func @transform_9(%arg0: i32) -> (i32, i32) {
    %c0_i32 = arith.constant 0 : i32
    %c0_i32_0 = arith.constant 0 : i32
    %c0_i32_1 = arith.constant 0 : i32
    return %c0_i32, %c0_i32_0 : i32, i32
  }
  func.func @transform_10(%arg0: i32) -> (i32, i32) {
    %c0_i32 = arith.constant 0 : i32
    %c0_i32_0 = arith.constant 0 : i32
    %c0_i32_1 = arith.constant 0 : i32
    return %c0_i32, %c0_i32_0 : i32, i32
  }
  func.func @transform_11(%arg0: i32) -> (i32, i32, i32) {
    %c0_i32 = arith.constant 0 : i32
    %c0_i32_0 = arith.constant 0 : i32
    %c0_i32_1 = arith.constant 0 : i32
    return %arg0, %c0_i32, %c0_i32_0 : i32, i32, i32
  }
}

</mosaic_0001>

<llo_original>
// kernel: split_cnn_forward.1
$region0: #{split_cnn_forward.1}
  #allocation0 [shape = 'u32[]', space=smem, size = 0x4, offset = 0x4, fixed_abs, tag = 'smem constant byte address 0x4 - core index']
  #allocation1 [shape = 'u32[144,128]{1,0:T(1,128)}', space=vmem, size = 0x12000, scoped, tag = 'internal scratch']
  #allocation2 [shape = 'f32[1024,128]{1,0:T(8,128)}', space=vmem, size = 0x80000, scoped, tag = 'scratch operand']
  #allocation3 [shape = 'f32[18,18,16]{2,1,0:T(8,128)}', space=vmem, size = 0x36000, scoped, tag = 'scratch operand']
  #allocation4 [shape = 'f32[16,16,256]{2,1,0:T(8,128)}', space=vmem, size = 0x40000, scoped, tag = 'scratch operand']
  #allocation5 [shape = 'f32[256,128]{1,0:T(8,128)}', space=vmem, size = 0x20000, scoped, tag = 'scratch operand']
  #allocation6 [shape = 'f32[8,8,128]{2,1,0:T(8,128)}', space=vmem, size = 0x8000, scoped, tag = 'scratch operand']
  #allocation7 [shape = 'f32[1,2048]{1,0:T(1,128)}', space=vmem, size = 0x2000, scoped, tag = 'scratch operand']
  %s0 = inlined_call_operand.vmem [shape: bf16[2,1024,128], index: 0, kind: input, shape index: {}]
  %s1 = inlined_call_operand.vmem [shape: bf16[128,128], index: 1, kind: input, shape index: {}]
  %s2 = inlined_call_operand.vmem [shape: f32[1,128], index: 2, kind: input, shape index: {}]
  %s3 = inlined_call_operand.vmem [shape: bf16[256,128], index: 3, kind: input, shape index: {}]
  %s4 = inlined_call_operand.vmem [shape: f32[1,128], index: 4, kind: input, shape index: {}]
  %s5 = inlined_call_operand.vmem [shape: bf16[2048,512], index: 5, kind: input, shape index: {}]
  %s6 = inlined_call_operand.vmem [shape: f32[1,512], index: 6, kind: input, shape index: {}]
  %s7 = inlined_call_operand.vmem [shape: bf16[512,128], index: 7, kind: input, shape index: {}]
  %s8 = inlined_call_operand.vmem [shape: f32[1,128], index: 8, kind: input, shape index: {}]
  %s9 = inlined_call_operand.vmem [shape: bf16[128,128], index: 9, kind: input, shape index: {}]
  %s10 = inlined_call_operand.vmem [shape: f32[1,128], index: 10, kind: input, shape index: {}]
  %s11 = inlined_call_operand.hbm [shape: f32[2,1,128], index: 11, kind: output, shape index: {}]
  %s12 = sld [smem:[#allocation0]]
  $region77: #{split_cnn_forward.1} parent=0
    _
  %s14 = ssub.s32 1, %s12
  %s15 = scalar_select 0, %s14, %s12
  $region1: #{split_cnn_forward.1} parent=0
    #allocation8 [shape = 'u8[1024]{0}', space=vmem, size = 0x400, scoped, tag = 'output window, operand 0']
    #allocation9 [shape = 's32[2]{0}', space=sflag, size = 0x8, scoped, tag = 'scoped memory for split_cnn_forward.1']
    %16 = vsyncpa [#allocation9], 0
    %s17 = scalar_lea.sflag [#allocation9], 1
    %18 = vsyncpa %s17, 0
    loop: start=0, step=1, limit=4
    $region2: #{split_cnn_forward.1} parent=1 // loop_pre_header
      _
    $region3: #{split_cnn_forward.1} parent=1 // loop_header
      %s20 = sphi 0, %s24
      %p21 = scmp.ge.s32.totalorder %s20, 4
      %s30 = sphi 0, %s32
      %s33 = sphi 0, %s30
      %s34 = sphi 0, %s33
      %s50 = sphi 0, %s34
      %s54 = sphi 0, %s54
      %s56 = sphi 0, %s54
      %s57 = sphi 0, %s56
      %s71 = sphi 0, %s57
      %s75 = sphi 0, %s75
      %s77 = sphi 0, %s75
      %s78 = sphi 0, %s77
      %s92 = sphi 0, %s78
      %s96 = sphi 0, %s96
      %s98 = sphi 0, %s96
      %s99 = sphi 0, %s98
      %s113 = sphi 0, %s99
      %s117 = sphi 0, %s117
      %s119 = sphi 0, %s117
      %s120 = sphi 0, %s119
      %s134 = sphi 0, %s120
      %s138 = sphi 0, %s138
      %s140 = sphi 0, %s138
      %s141 = sphi 0, %s140
      %s155 = sphi 0, %s141
      %s159 = sphi 0, %s159
      %s161 = sphi 0, %s159
      %s162 = sphi 0, %s161
      %s176 = sphi 0, %s162
      %s180 = sphi 0, %s180
      %s182 = sphi 0, %s180
      %s183 = sphi 0, %s182
      %s197 = sphi 0, %s183
      %s201 = sphi 0, %s201
      %s203 = sphi 0, %s201
      %s204 = sphi 0, %s203
      %s218 = sphi 0, %s204
      %s222 = sphi 0, %s222
      %s224 = sphi 0, %s222
      %s225 = sphi 0, %s224
      %s239 = sphi 0, %s225
      %s243 = sphi 0, %s243
      %s245 = sphi 0, %s243
      %s246 = sphi 0, %s245
      %s260 = sphi 0, %s246
      %s266 = sphi 0, %s268
      %s269 = sphi 0, %s266
      %s270 = sphi 0, %s269
      %s286 = sphi 0, %s270
    $region4: #{split_cnn_forward.1} parent=1 // loop_header_branch
      %23 = sbr.rel (%p21) target = $region8
    $region5: #{split_cnn_forward.1} parent=1 // loop_body
      %s25 = ssub.s32 %s20, 1
      %s26 = ssub.s32 %s20, 2
      %s27 = sadd.s32 %s20, 1
      %s28 = ssub.s32 %s20, %s27
      %p29 = scmp.eq.s32.totalorder %s28, 0
      %s31 = sadd.s32 %s30, 1
      %s32 = scalar_select %p29, %s30, %s31
      %p35 = pneg %p29
      %p36 = scmp.eq.s32.totalorder %s20, 1
      %p37 = por %p35, %p36
      %p38 = scmp.ne.s32.totalorder %s30, %s33
      %p39 = scmp.eq.s32.totalorder %s20, 0
      %p40 = por %p38, %p39
      %p41 = scmp.ne.s32.totalorder %s30, %s33
      %p42 = scmp.eq.s32.totalorder %s25, 1
      %p43 = por %p41, %p42
      %p44 = scmp.ne.s32.totalorder %s33, %s34
      %p45 = scmp.eq.s32.totalorder %s25, 0
      %p46 = por %p44, %p45
      %p47 = scmp.ne.s32.totalorder %s33, %s34
      %p48 = scmp.eq.s32.totalorder %s26, 1
      %p49 = por %p47, %p48
      %p51 = scmp.ne.s32.totalorder %s34, %s50
      %p52 = scmp.eq.s32.totalorder %s26, 0
      %p53 = por %p51, %p52
      %s55 = sadd.s32 %s54, 1
      %p58 = scmp.eq.s32.totalorder %s20, 1
      %p59 = scmp.ne.s32.totalorder %s54, %s56
      %p60 = scmp.eq.s32.totalorder %s20, 0
      %p61 = por %p59, %p60
      %p62 = scmp.ne.s32.totalorder %s54, %s56
      %p63 = scmp.eq.s32.totalorder %s25, 1
      %p64 = por %p62, %p63
      %p65 = scmp.ne.s32.totalorder %s56, %s57
      %p66 = scmp.eq.s32.totalorder %s25, 0
      %p67 = por %p65, %p66
      %p68 = scmp.ne.s32.totalorder %s56, %s57
      %p69 = scmp.eq.s32.totalorder %s26, 1
      %p70 = por %p68, %p69
      %p72 = scmp.ne.s32.totalorder %s57, %s71
      %p73 = scmp.eq.s32.totalorder %s26, 0
      %p74 = por %p72, %p73
      %s76 = sadd.s32 %s75, 1
      %p79 = scmp.eq.s32.totalorder %s20, 1
      %p80 = scmp.ne.s32.totalorder %s75, %s77
      %p81 = scmp.eq.s32.totalorder %s20, 0
      %p82 = por %p80, %p81
      %p83 = scmp.ne.s32.totalorder %s75, %s77
      %p84 = scmp.eq.s32.totalorder %s25, 1
      %p85 = por %p83, %p84
      %p86 = scmp.ne.s32.totalorder %s77, %s78
      %p87 = scmp.eq.s32.totalorder %s25, 0
      %p88 = por %p86, %p87
      %p89 = scmp.ne.s32.totalorder %s77, %s78
      %p90 = scmp.eq.s32.totalorder %s26, 1
      %p91 = por %p89, %p90
      %p93 = scmp.ne.s32.totalorder %s78, %s92
      %p94 = scmp.eq.s32.totalorder %s26, 0
      %p95 = por %p93, %p94
      %s97 = sadd.s32 %s96, 1
      %p100 = scmp.eq.s32.totalorder %s20, 1
      %p101 = scmp.ne.s32.totalorder %s96, %s98
      %p102 = scmp.eq.s32.totalorder %s20, 0
      %p103 = por %p101, %p102
      %p104 = scmp.ne.s32.totalorder %s96, %s98
      %p105 = scmp.eq.s32.totalorder %s25, 1
      %p106 = por %p104, %p105
      %p107 = scmp.ne.s32.totalorder %s98, %s99
      %p108 = scmp.eq.s32.totalorder %s25, 0
      %p109 = por %p107, %p108
      %p110 = scmp.ne.s32.totalorder %s98, %s99
      %p111 = scmp.eq.s32.totalorder %s26, 1
      %p112 = por %p110, %p111
      %p114 = scmp.ne.s32.totalorder %s99, %s113
      %p115 = scmp.eq.s32.totalorder %s26, 0
      %p116 = por %p114, %p115
      %s118 = sadd.s32 %s117, 1
      %p121 = scmp.eq.s32.totalorder %s20, 1
      %p122 = scmp.ne.s32.totalorder %s117, %s119
      %p123 = scmp.eq.s32.totalorder %s20, 0
      %p124 = por %p122, %p123
      %p125 = scmp.ne.s32.totalorder %s117, %s119
      %p126 = scmp.eq.s32.totalorder %s25, 1
      %p127 = por %p125, %p126
      %p128 = scmp.ne.s32.totalorder %s119, %s120
      %p129 = scmp.eq.s32.totalorder %s25, 0
      %p130 = por %p128, %p129
      %p131 = scmp.ne.s32.totalorder %s119, %s120
      %p132 = scmp.eq.s32.totalorder %s26, 1
      %p133 = por %p131, %p132
      %p135 = scmp.ne.s32.totalorder %s120, %s134
      %p136 = scmp.eq.s32.totalorder %s26, 0
      %p137 = por %p135, %p136
      %s139 = sadd.s32 %s138, 1
      %p142 = scmp.eq.s32.totalorder %s20, 1
      %p143 = scmp.ne.s32.totalorder %s138, %s140
      %p144 = scmp.eq.s32.totalorder %s20, 0
      %p145 = por %p143, %p144
      %p146 = scmp.ne.s32.totalorder %s138, %s140
      %p147 = scmp.eq.s32.totalorder %s25, 1
      %p148 = por %p146, %p147
      %p149 = scmp.ne.s32.totalorder %s140, %s141
      %p150 = scmp.eq.s32.totalorder %s25, 0
      %p151 = por %p149, %p150
      %p152 = scmp.ne.s32.totalorder %s140, %s141
      %p153 = scmp.eq.s32.totalorder %s26, 1
      %p154 = por %p152, %p153
      %p156 = scmp.ne.s32.totalorder %s141, %s155
      %p157 = scmp.eq.s32.totalorder %s26, 0
      %p158 = por %p156, %p157
      %s160 = sadd.s32 %s159, 1
      %p163 = scmp.eq.s32.totalorder %s20, 1
      %p164 = scmp.ne.s32.totalorder %s159, %s161
      %p165 = scmp.eq.s32.totalorder %s20, 0
      %p166 = por %p164, %p165
      %p167 = scmp.ne.s32.totalorder %s159, %s161
      %p168 = scmp.eq.s32.totalorder %s25, 1
      %p169 = por %p167, %p168
      %p170 = scmp.ne.s32.totalorder %s161, %s162
      %p171 = scmp.eq.s32.totalorder %s25, 0
      %p172 = por %p170, %p171
      %p173 = scmp.ne.s32.totalorder %s161, %s162
      %p174 = scmp.eq.s32.totalorder %s26, 1
      %p175 = por %p173, %p174
      %p177 = scmp.ne.s32.totalorder %s162, %s176
      %p178 = scmp.eq.s32.totalorder %s26, 0
      %p179 = por %p177, %p178
      %s181 = sadd.s32 %s180, 1
      %p184 = scmp.eq.s32.totalorder %s20, 1
      %p185 = scmp.ne.s32.totalorder %s180, %s182
      %p186 = scmp.eq.s32.totalorder %s20, 0
      %p187 = por %p185, %p186
      %p188 = scmp.ne.s32.totalorder %s180, %s182
      %p189 = scmp.eq.s32.totalorder %s25, 1
      %p190 = por %p188, %p189
      %p191 = scmp.ne.s32.totalorder %s182, %s183
      %p192 = scmp.eq.s32.totalorder %s25, 0
      %p193 = por %p191, %p192
      %p194 = scmp.ne.s32.totalorder %s182, %s183
      %p195 = scmp.eq.s32.totalorder %s26, 1
      %p196 = por %p194, %p195
      %p198 = scmp.ne.s32.totalorder %s183, %s197
      %p199 = scmp.eq.s32.totalorder %s26, 0
      %p200 = por %p198, %p199
      %s202 = sadd.s32 %s201, 1
      %p205 = scmp.eq.s32.totalorder %s20, 1
      %p206 = scmp.ne.s32.totalorder %s201, %s203
      %p207 = scmp.eq.s32.totalorder %s20, 0
      %p208 = por %p206, %p207
      %p209 = scmp.ne.s32.totalorder %s201, %s203
      %p210 = scmp.eq.s32.totalorder %s25, 1
      %p211 = por %p209, %p210
      %p212 = scmp.ne.s32.totalorder %s203, %s204
      %p213 = scmp.eq.s32.totalorder %s25, 0
      %p214 = por %p212, %p213
      %p215 = scmp.ne.s32.totalorder %s203, %s204
      %p216 = scmp.eq.s32.totalorder %s26, 1
      %p217 = por %p215, %p216
      %p219 = scmp.ne.s32.totalorder %s204, %s218
      %p220 = scmp.eq.s32.totalorder %s26, 0
      %p221 = por %p219, %p220
      %s223 = sadd.s32 %s222, 1
      %p226 = scmp.eq.s32.totalorder %s20, 1
      %p227 = scmp.ne.s32.totalorder %s222, %s224
      %p228 = scmp.eq.s32.totalorder %s20, 0
      %p229 = por %p227, %p228
      %p230 = scmp.ne.s32.totalorder %s222, %s224
      %p231 = scmp.eq.s32.totalorder %s25, 1
      %p232 = por %p230, %p231
      %p233 = scmp.ne.s32.totalorder %s224, %s225
      %p234 = scmp.eq.s32.totalorder %s25, 0
      %p235 = por %p233, %p234
      %p236 = scmp.ne.s32.totalorder %s224, %s225
      %p237 = scmp.eq.s32.totalorder %s26, 1
      %p238 = por %p236, %p237
      %p240 = scmp.ne.s32.totalorder %s225, %s239
      %p241 = scmp.eq.s32.totalorder %s26, 0
      %p242 = por %p240, %p241
      %s244 = sadd.s32 %s243, 1
      %p247 = scmp.eq.s32.totalorder %s20, 1
      %p248 = scmp.ne.s32.totalorder %s243, %s245
      %p249 = scmp.eq.s32.totalorder %s20, 0
      %p250 = por %p248, %p249
      %p251 = scmp.ne.s32.totalorder %s243, %s245
      %p252 = scmp.eq.s32.totalorder %s25, 1
      %p253 = por %p251, %p252
      %p254 = scmp.ne.s32.totalorder %s245, %s246
      %p255 = scmp.eq.s32.totalorder %s25, 0
      %p256 = por %p254, %p255
      %p257 = scmp.ne.s32.totalorder %s245, %s246
      %p258 = scmp.eq.s32.totalorder %s26, 1
      %p259 = por %p257, %p258
      %p261 = scmp.ne.s32.totalorder %s246, %s260
      %p262 = scmp.eq.s32.totalorder %s26, 0
      %p263 = por %p261, %p262
      %s264 = ssub.s32 %s20, %s27
      %p265 = scmp.eq.s32.totalorder %s264, 0
      %s267 = sadd.s32 %s266, 1
      %s268 = scalar_select %p265, %s266, %s267
      %p271 = pneg %p265
      %p272 = scmp.eq.s32.totalorder %s20, 1
      %p273 = por %p271, %p272
      %p274 = scmp.ne.s32.totalorder %s266, %s269
      %p275 = scmp.eq.s32.totalorder %s20, 0
      %p276 = por %p274, %p275
      %p277 = scmp.ne.s32.totalorder %s266, %s269
      %p278 = scmp.eq.s32.totalorder %s25, 1
      %p279 = por %p277, %p278
      %p280 = scmp.ne.s32.totalorder %s269, %s270
      %p281 = scmp.eq.s32.totalorder %s25, 0
      %p282 = por %p280, %p281
      %p283 = scmp.ne.s32.totalorder %s269, %s270
      %p284 = scmp.eq.s32.totalorder %s26, 1
      %p285 = por %p283, %p284
      %p287 = scmp.ne.s32.totalorder %s270, %s286
      %p288 = scmp.eq.s32.totalorder %s26, 0
      %p289 = por %p287, %p288
      %p290 = scmp.le.s32.totalorder 1, %s20
      %p291 = scmp.lt.s32.totalorder %s20, 3
      %p292 = pnand %p290, %p291
      %p293 = pneg %p292
      // Predicated region
      $region9: #{split_cnn_forward.1} parent=5 // pred_check
        _
      $region10: #{split_cnn_forward.1} parent=5 // pred_check_branch
        %295 = sbr.rel (%p292) target = $region12
      $region11: #{split_cnn_forward.1} parent=5 // pred_region
        %s296 = ssub.s32 %s20, 1
        // Predicated region
        $region13: #{split_cnn_forward.1} parent=11 // pred_check
          %p297 = pneg %p67
        $region14: #{split_cnn_forward.1} parent=11 // pred_check_branch
          %299 = sbr.rel (%p297) target = $region16
        $region15: #{split_cnn_forward.1} parent=11 // pred_region
          _
        $region16: #{split_cnn_forward.1} parent=11 // pred_fallthru
          _
        // Predicated region
        $region17: #{split_cnn_forward.1} parent=11 // pred_check
          %p300 = pneg %p88
        $region18: #{split_cnn_forward.1} parent=11 // pred_check_branch
          %302 = sbr.rel (%p300) target = $region20
        $region19: #{split_cnn_forward.1} parent=11 // pred_region
          _
        $region20: #{split_cnn_forward.1} parent=11 // pred_fallthru
          _
        // Predicated region
        $region21: #{split_cnn_forward.1} parent=11 // pred_check
          %p303 = pneg %p109
        $region22: #{split_cnn_forward.1} parent=11 // pred_check_branch
          %305 = sbr.rel (%p303) target = $region24
        $region23: #{split_cnn_forward.1} parent=11 // pred_region
          _
        $region24: #{split_cnn_forward.1} parent=11 // pred_fallthru
          _
        // Predicated region
        $region25: #{split_cnn_forward.1} parent=11 // pred_check
          %p306 = pneg %p130
        $region26: #{split_cnn_forward.1} parent=11 // pred_check_branch
          %308 = sbr.rel (%p306) target = $region28
        $region27: #{split_cnn_forward.1} parent=11 // pred_region
          _
        $region28: #{split_cnn_forward.1} parent=11 // pred_fallthru
          _
        // Predicated region
        $region29: #{split_cnn_forward.1} parent=11 // pred_check
          %p309 = pneg %p151
        $region30: #{split_cnn_forward.1} parent=11 // pred_check_branch
          %311 = sbr.rel (%p309) target = $region32
        $region31: #{split_cnn_forward.1} parent=11 // pred_region
          _
        $region32: #{split_cnn_forward.1} parent=11 // pred_fallthru
          _
        // Predicated region
        $region33: #{split_cnn_forward.1} parent=11 // pred_check
          %p312 = pneg %p172
        $region34: #{split_cnn_forward.1} parent=11 // pred_check_branch
          %314 = sbr.rel (%p312) target = $region36
        $region35: #{split_cnn_forward.1} parent=11 // pred_region
          _
        $region36: #{split_cnn_forward.1} parent=11 // pred_fallthru
          _
        // Predicated region
        $region37: #{split_cnn_forward.1} parent=11 // pred_check
          %p315 = pneg %p193
        $region38: #{split_cnn_forward.1} parent=11 // pred_check_branch
          %317 = sbr.rel (%p315) target = $region40
        $region39: #{split_cnn_forward.1} parent=11 // pred_region
          _
        $region40: #{split_cnn_forward.1} parent=11 // pred_fallthru
          _
        // Predicated region
        $region41: #{split_cnn_forward.1} parent=11 // pred_check
          %p318 = pneg %p214
        $region42: #{split_cnn_forward.1} parent=11 // pred_check_branch
          %320 = sbr.rel (%p318) target = $region44
        $region43: #{split_cnn_forward.1} parent=11 // pred_region
          _
        $region44: #{split_cnn_forward.1} parent=11 // pred_fallthru
          _
        // Predicated region
        $region45: #{split_cnn_forward.1} parent=11 // pred_check
          %p321 = pneg %p235
        $region46: #{split_cnn_forward.1} parent=11 // pred_check_branch
          %323 = sbr.rel (%p321) target = $region48
        $region47: #{split_cnn_forward.1} parent=11 // pred_region
          _
        $region48: #{split_cnn_forward.1} parent=11 // pred_fallthru
          _
        // Predicated region
        $region49: #{split_cnn_forward.1} parent=11 // pred_check
          %p324 = pneg %p256
        $region50: #{split_cnn_forward.1} parent=11 // pred_check_branch
          %326 = sbr.rel (%p324) target = $region52
        $region51: #{split_cnn_forward.1} parent=11 // pred_region
          _
        $region52: #{split_cnn_forward.1} parent=11 // pred_fallthru
          _
      $region12: #{split_cnn_forward.1} parent=5 // pred_fallthru
        _
      %p327 = scmp.lt.s32.totalorder %s20, 2
      // Predicated region
      $region53: #{split_cnn_forward.1} parent=5 // pred_check
        %p328 = pneg %p327
      $region54: #{split_cnn_forward.1} parent=5 // pred_check_branch
        %330 = sbr.rel (%p328) target = $region56
      $region55: #{split_cnn_forward.1} parent=5 // pred_region
        // Predicated region
        $region57: #{split_cnn_forward.1} parent=55 // pred_check
          %p331 = pneg %p40
        $region58: #{split_cnn_forward.1} parent=55 // pred_check_branch
          %333 = sbr.rel (%p331) target = $region60
        $region59: #{split_cnn_forward.1} parent=55 // pred_region
          %p334 = scmp.lt.s32.totalorder %s20, 1
          %s335 = scalar_select %p334, %s20, 1
          %s336 = smul.addr %s335, 128
          %s337 = smul.addr %s336, 4
          %s338 = scalar_lea.vmem %s0, %s337
        $region60: #{split_cnn_forward.1} parent=55 // pred_fallthru
          _
      $region56: #{split_cnn_forward.1} parent=5 // pred_fallthru
        _
      %p339 = scmp.le.s32.totalorder 1, %s20
      %p340 = scmp.lt.s32.totalorder %s20, 3
      %p341 = pnand %p339, %p340
      %p342 = pneg %p341
      // Predicated region
      $region61: #{split_cnn_forward.1} parent=5 // pred_check
        _
      $region62: #{split_cnn_forward.1} parent=5 // pred_check_branch
        %344 = sbr.rel (%p341) target = $region64
      $region63: #{split_cnn_forward.1} parent=5 // pred_region
        %s345 = ssub.s32 %s20, 1
        %p346 = scmp.lt.s32.totalorder %s25, 1
        %s347 = scalar_select %p346, %s25, 1
        %s348 = smul.addr %s347, 128
        %s349 = smul.addr %s348, 4
        %s350 = scalar_lea.vmem %s0, %s349
        %p351 = pneg %p46
        %p352 = pneg %p43
        %p353 = pneg %p67
        %p354 = pneg %p64
        %p355 = pneg %p88
        %p356 = pneg %p85
        %p357 = pneg %p109
        %p358 = pneg %p106
        %p359 = pneg %p130
        %p360 = pneg %p127
        %p361 = pneg %p151
        %p362 = pneg %p148
        %p363 = pneg %p172
        %p364 = pneg %p169
        %p365 = pneg %p193
        %p366 = pneg %p190
        %p367 = pneg %p214
        %p368 = pneg %p211
        %p369 = pneg %p235
        %p370 = pneg %p232
        %p371 = pneg %p256
        %p372 = pneg %p253
        %p373 = pneg %p282
        %p374 = pneg %p279
        %s375 = sand.u32 %s269, 1
        %s376 = scalar_lea.sflag [#allocation9], %s375
        %s377 = sand.u32 %s269, 1
        %s378 = scalar_lea.vmem [#allocation8], %s377
        %p379 = scmp.lt.s32.totalorder %s25, 1
        %s380 = scalar_select %p379, %s25, 1
        %s381 = smul.addr %s380, 128
        %s382 = smul.addr %s381, 4
        %s383 = scalar_lea.vmem %s0, %s382
        %v385 = vld [vmem:[%s383] sm:$0xf]
        %v386 = vld [vmem:[%s383 + $0x4] sm:$0xf]
        %v387 = vld [vmem:[%s383 + $0x8] sm:$0xf]
        %v388 = vld [vmem:[%s383 + $0xc] sm:$0xf]
        %v389 = vld [vmem:[%s383 + $0x10] sm:$0xf]
        %v390 = vld [vmem:[%s383 + $0x14] sm:$0xf]
        %v391 = vld [vmem:[%s383 + $0x18] sm:$0xf]
        %v392 = vld [vmem:[%s383 + $0x1c] sm:$0xf]
        %v393 = vld [vmem:[%s383 + $0x20] sm:$0xf]
        %v394 = vld [vmem:[%s383 + $0x24] sm:$0xf]
        %v395 = vld [vmem:[%s383 + $0x28] sm:$0xf]
        %v396 = vld [vmem:[%s383 + $0x2c] sm:$0xf]
        %v397 = vld [vmem:[%s383 + $0x30] sm:$0xf]
        %v398 = vld [vmem:[%s383 + $0x34] sm:$0xf]
        %v399 = vld [vmem:[%s383 + $0x38] sm:$0xf]
        %v400 = vld [vmem:[%s383 + $0x3c] sm:$0xf]
        %v401 = vld [vmem:[%s383 + $0x40] sm:$0xf]
        %v402 = vld [vmem:[%s383 + $0x44] sm:$0xf]
        %v403 = vld [vmem:[%s383 + $0x48] sm:$0xf]
        %v404 = vld [vmem:[%s383 + $0x4c] sm:$0xf]
        %v405 = vld [vmem:[%s383 + $0x50] sm:$0xf]
        %v406 = vld [vmem:[%s383 + $0x54] sm:$0xf]
        %v407 = vld [vmem:[%s383 + $0x58] sm:$0xf]
        %v408 = vld [vmem:[%s383 + $0x5c] sm:$0xf]
        %v409 = vld [vmem:[%s383 + $0x60] sm:$0xf]
        %v410 = vld [vmem:[%s383 + $0x64] sm:$0xf]
        %v411 = vld [vmem:[%s383 + $0x68] sm:$0xf]
        %v412 = vld [vmem:[%s383 + $0x6c] sm:$0xf]
        %v413 = vld [vmem:[%s383 + $0x70] sm:$0xf]
        %v414 = vld [vmem:[%s383 + $0x74] sm:$0xf]
        %v415 = vld [vmem:[%s383 + $0x78] sm:$0xf]
        %v416 = vld [vmem:[%s383 + $0x7c] sm:$0xf]
        %v417 = vld [vmem:[%s383 + $0x80] sm:$0xf]
        %v418 = vld [vmem:[%s383 + $0x84] sm:$0xf]
        %v419 = vld [vmem:[%s383 + $0x88] sm:$0xf]
        %v420 = vld [vmem:[%s383 + $0x8c] sm:$0xf]
        %v421 = vld [vmem:[%s383 + $0x90] sm:$0xf]
        %v422 = vld [vmem:[%s383 + $0x94] sm:$0xf]
        %v423 = vld [vmem:[%s383 + $0x98] sm:$0xf]
        %v424 = vld [vmem:[%s383 + $0x9c] sm:$0xf]
        %v425 = vld [vmem:[%s383 + $0xa0] sm:$0xf]
        %v426 = vld [vmem:[%s383 + $0xa4] sm:$0xf]
        %v427 = vld [vmem:[%s383 + $0xa8] sm:$0xf]
        %v428 = vld [vmem:[%s383 + $0xac] sm:$0xf]
        %v429 = vld [vmem:[%s383 + $0xb0] sm:$0xf]
        %v430 = vld [vmem:[%s383 + $0xb4] sm:$0xf]
        %v431 = vld [vmem:[%s383 + $0xb8] sm:$0xf]
        %v432 = vld [vmem:[%s383 + $0xbc] sm:$0xf]
        %v433 = vld [vmem:[%s383 + $0xc0] sm:$0xf]
        %v434 = vld [vmem:[%s383 + $0xc4] sm:$0xf]
        %v435 = vld [vmem:[%s383 + $0xc8] sm:$0xf]
        %v436 = vld [vmem:[%s383 + $0xcc] sm:$0xf]
        %v437 = vld [vmem:[%s383 + $0xd0] sm:$0xf]
        %v438 = vld [vmem:[%s383 + $0xd4] sm:$0xf]
        %v439 = vld [vmem:[%s383 + $0xd8] sm:$0xf]
        %v440 = vld [vmem:[%s383 + $0xdc] sm:$0xf]
        %v441 = vld [vmem:[%s383 + $0xe0] sm:$0xf]
        %v442 = vld [vmem:[%s383 + $0xe4] sm:$0xf]
        %v443 = vld [vmem:[%s383 + $0xe8] sm:$0xf]
        %v444 = vld [vmem:[%s383 + $0xec] sm:$0xf]
        %v445 = vld [vmem:[%s383 + $0xf0] sm:$0xf]
        %v446 = vld [vmem:[%s383 + $0xf4] sm:$0xf]
        %v447 = vld [vmem:[%s383 + $0xf8] sm:$0xf]
        %v448 = vld [vmem:[%s383 + $0xfc] sm:$0xf]
        %v449 = vld [vmem:[%s383 + $0x100] sm:$0xf]
        %v450 = vld [vmem:[%s383 + $0x104] sm:$0xf]
        %v451 = vld [vmem:[%s383 + $0x108] sm:$0xf]
        %v452 = vld [vmem:[%s383 + $0x10c] sm:$0xf]
        %v453 = vld [vmem:[%s383 + $0x110] sm:$0xf]
        %v454 = vld [vmem:[%s383 + $0x114] sm:$0xf]
        %v455 = vld [vmem:[%s383 + $0x118] sm:$0xf]
        %v456 = vld [vmem:[%s383 + $0x11c] sm:$0xf]
        %v457 = vld [vmem:[%s383 + $0x120] sm:$0xf]
        %v458 = vld [vmem:[%s383 + $0x124] sm:$0xf]
        %v459 = vld [vmem:[%s383 + $0x128] sm:$0xf]
        %v460 = vld [vmem:[%s383 + $0x12c] sm:$0xf]
        %v461 = vld [vmem:[%s383 + $0x130] sm:$0xf]
        %v462 = vld [vmem:[%s383 + $0x134] sm:$0xf]
        %v463 = vld [vmem:[%s383 + $0x138] sm:$0xf]
        %v464 = vld [vmem:[%s383 + $0x13c] sm:$0xf]
        %v465 = vld [vmem:[%s383 + $0x140] sm:$0xf]
        %v466 = vld [vmem:[%s383 + $0x144] sm:$0xf]
        %v467 = vld [vmem:[%s383 + $0x148] sm:$0xf]
        %v468 = vld [vmem:[%s383 + $0x14c] sm:$0xf]
        %v469 = vld [vmem:[%s383 + $0x150] sm:$0xf]
        %v470 = vld [vmem:[%s383 + $0x154] sm:$0xf]
        %v471 = vld [vmem:[%s383 + $0x158] sm:$0xf]
        %v472 = vld [vmem:[%s383 + $0x15c] sm:$0xf]
        %v473 = vld [vmem:[%s383 + $0x160] sm:$0xf]
        %v474 = vld [vmem:[%s383 + $0x164] sm:$0xf]
        %v475 = vld [vmem:[%s383 + $0x168] sm:$0xf]
        %v476 = vld [vmem:[%s383 + $0x16c] sm:$0xf]
        %v477 = vld [vmem:[%s383 + $0x170] sm:$0xf]
        %v478 = vld [vmem:[%s383 + $0x174] sm:$0xf]
        %v479 = vld [vmem:[%s383 + $0x178] sm:$0xf]
        %v480 = vld [vmem:[%s383 + $0x17c] sm:$0xf]
        %v481 = vld [vmem:[%s383 + $0x180] sm:$0xf]
        %v482 = vld [vmem:[%s383 + $0x184] sm:$0xf]
        %v483 = vld [vmem:[%s383 + $0x188] sm:$0xf]
        %v484 = vld [vmem:[%s383 + $0x18c] sm:$0xf]
        %v485 = vld [vmem:[%s383 + $0x190] sm:$0xf]
        %v486 = vld [vmem:[%s383 + $0x194] sm:$0xf]
        %v487 = vld [vmem:[%s383 + $0x198] sm:$0xf]
        %v488 = vld [vmem:[%s383 + $0x19c] sm:$0xf]
        %v489 = vld [vmem:[%s383 + $0x1a0] sm:$0xf]
        %v490 = vld [vmem:[%s383 + $0x1a4] sm:$0xf]
        %v491 = vld [vmem:[%s383 + $0x1a8] sm:$0xf]
        %v492 = vld [vmem:[%s383 + $0x1ac] sm:$0xf]
        %v493 = vld [vmem:[%s383 + $0x1b0] sm:$0xf]
        %v494 = vld [vmem:[%s383 + $0x1b4] sm:$0xf]
        %v495 = vld [vmem:[%s383 + $0x1b8] sm:$0xf]
        %v496 = vld [vmem:[%s383 + $0x1bc] sm:$0xf]
        %v497 = vld [vmem:[%s383 + $0x1c0] sm:$0xf]
        %v498 = vld [vmem:[%s383 + $0x1c4] sm:$0xf]
        %v499 = vld [vmem:[%s383 + $0x1c8] sm:$0xf]
        %v500 = vld [vmem:[%s383 + $0x1cc] sm:$0xf]
        %v501 = vld [vmem:[%s383 + $0x1d0] sm:$0xf]
        %v502 = vld [vmem:[%s383 + $0x1d4] sm:$0xf]
        %v503 = vld [vmem:[%s383 + $0x1d8] sm:$0xf]
        %v504 = vld [vmem:[%s383 + $0x1dc] sm:$0xf]
        %v505 = vld [vmem:[%s383 + $0x1e0] sm:$0xf]
        %v506 = vld [vmem:[%s383 + $0x1e4] sm:$0xf]
        %v507 = vld [vmem:[%s383 + $0x1e8] sm:$0xf]
        %v508 = vld [vmem:[%s383 + $0x1ec] sm:$0xf]
        %v509 = vld [vmem:[%s383 + $0x1f0] sm:$0xf]
        %v510 = vld [vmem:[%s383 + $0x1f4] sm:$0xf]
        %v511 = vld [vmem:[%s383 + $0x1f8] sm:$0xf]
        %v512 = vld [vmem:[%s383 + $0x1fc] sm:$0xf]
        %v513 = vld [vmem:[%s1] sm:$0xf]
        %v514 = vld [vmem:[%s1 + $0x4] sm:$0xf]
        %v515 = vld [vmem:[%s1 + $0x8] sm:$0xf]
        %v516 = vld [vmem:[%s1 + $0xc] sm:$0xf]
        %v517 = vld [vmem:[%s1 + $0x10] sm:$0xf]
        %v518 = vld [vmem:[%s1 + $0x14] sm:$0xf]
        %v519 = vld [vmem:[%s1 + $0x18] sm:$0xf]
        %v520 = vld [vmem:[%s1 + $0x1c] sm:$0xf]
        %v521 = vld [vmem:[%s1 + $0x20] sm:$0xf]
        %v522 = vld [vmem:[%s1 + $0x24] sm:$0xf]
        %v523 = vld [vmem:[%s1 + $0x28] sm:$0xf]
        %v524 = vld [vmem:[%s1 + $0x2c] sm:$0xf]
        %v525 = vld [vmem:[%s1 + $0x30] sm:$0xf]
        %v526 = vld [vmem:[%s1 + $0x34] sm:$0xf]
        %v527 = vld [vmem:[%s1 + $0x38] sm:$0xf]
        %v528 = vld [vmem:[%s1 + $0x3c] sm:$0xf]
        %v657 = vunpack.c.l.b16 %v385
        %v658 = vunpack.c.l.b16 %v386
        %v659 = vunpack.c.l.b16 %v387
        %v660 = vunpack.c.l.b16 %v388
        %v661 = vunpack.c.l.b16 %v389
        %v662 = vunpack.c.l.b16 %v390
        %v663 = vunpack.c.l.b16 %v391
        %v664 = vunpack.c.l.b16 %v392
        %v665 = vunpack.c.l.b16 %v393
        %v666 = vunpack.c.l.b16 %v394
        %v667 = vunpack.c.l.b16 %v395
        %v668 = vunpack.c.l.b16 %v396
        %v669 = vunpack.c.l.b16 %v397
        %v670 = vunpack.c.l.b16 %v398
        %v671 = vunpack.c.l.b16 %v399
        %v672 = vunpack.c.l.b16 %v400
        %v673 = vunpack.c.l.b16 %v401
        %v674 = vunpack.c.l.b16 %v402
        %v675 = vunpack.c.l.b16 %v403
        %v676 = vunpack.c.l.b16 %v404
        %v677 = vunpack.c.l.b16 %v405
        %v678 = vunpack.c.l.b16 %v406
        %v679 = vunpack.c.l.b16 %v407
        %v680 = vunpack.c.l.b16 %v408
        %v681 = vunpack.c.l.b16 %v409
        %v682 = vunpack.c.l.b16 %v410
        %v683 = vunpack.c.l.b16 %v411
        %v684 = vunpack.c.l.b16 %v412
        %v685 = vunpack.c.l.b16 %v413
        %v686 = vunpack.c.l.b16 %v414
        %v687 = vunpack.c.l.b16 %v415
        %v688 = vunpack.c.l.b16 %v416
        %v689 = vunpack.c.l.b16 %v417
        %v690 = vunpack.c.l.b16 %v418
        %v691 = vunpack.c.l.b16 %v419
        %v692 = vunpack.c.l.b16 %v420
        %v693 = vunpack.c.l.b16 %v421
        %v694 = vunpack.c.l.b16 %v422
        %v695 = vunpack.c.l.b16 %v423
        %v696 = vunpack.c.l.b16 %v424
        %v697 = vunpack.c.l.b16 %v425
        %v698 = vunpack.c.l.b16 %v426
        %v699 = vunpack.c.l.b16 %v427
        %v700 = vunpack.c.l.b16 %v428
        %v701 = vunpack.c.l.b16 %v429
        %v702 = vunpack.c.l.b16 %v430
        %v703 = vunpack.c.l.b16 %v431
        %v704 = vunpack.c.l.b16 %v432
        %v705 = vunpack.c.l.b16 %v433
        %v706 = vunpack.c.l.b16 %v434
        %v707 = vunpack.c.l.b16 %v435
        %v708 = vunpack.c.l.b16 %v436
        %v709 = vunpack.c.l.b16 %v437
        %v710 = vunpack.c.l.b16 %v438
        %v711 = vunpack.c.l.b16 %v439
        %v712 = vunpack.c.l.b16 %v440
        %v713 = vunpack.c.l.b16 %v441
        %v714 = vunpack.c.l.b16 %v442
        %v715 = vunpack.c.l.b16 %v443
        %v716 = vunpack.c.l.b16 %v444
        %v717 = vunpack.c.l.b16 %v445
        %v718 = vunpack.c.l.b16 %v446
        %v719 = vunpack.c.l.b16 %v447
        %v720 = vunpack.c.l.b16 %v448
        %v721 = vunpack.c.l.b16 %v449
        %v722 = vunpack.c.l.b16 %v450
        %v723 = vunpack.c.l.b16 %v451
        %v724 = vunpack.c.l.b16 %v452
        %v725 = vunpack.c.l.b16 %v453
        %v726 = vunpack.c.l.b16 %v454
        %v727 = vunpack.c.l.b16 %v455
        %v728 = vunpack.c.l.b16 %v456
        %v729 = vunpack.c.l.b16 %v457
        %v730 = vunpack.c.l.b16 %v458
        %v731 = vunpack.c.l.b16 %v459
        %v732 = vunpack.c.l.b16 %v460
        %v733 = vunpack.c.l.b16 %v461
        %v734 = vunpack.c.l.b16 %v462
        %v735 = vunpack.c.l.b16 %v463
        %v736 = vunpack.c.l.b16 %v464
        %v737 = vunpack.c.l.b16 %v465
        %v738 = vunpack.c.l.b16 %v466
        %v739 = vunpack.c.l.b16 %v467
        %v740 = vunpack.c.l.b16 %v468
        %v741 = vunpack.c.l.b16 %v469
        %v742 = vunpack.c.l.b16 %v470
        %v743 = vunpack.c.l.b16 %v471
        %v744 = vunpack.c.l.b16 %v472
        %v745 = vunpack.c.l.b16 %v473
        %v746 = vunpack.c.l.b16 %v474
        %v747 = vunpack.c.l.b16 %v475
        %v748 = vunpack.c.l.b16 %v476
        %v749 = vunpack.c.l.b16 %v477
        %v750 = vunpack.c.l.b16 %v478
        %v751 = vunpack.c.l.b16 %v479
        %v752 = vunpack.c.l.b16 %v480
        %v753 = vunpack.c.l.b16 %v481
        %v754 = vunpack.c.l.b16 %v482
        %v755 = vunpack.c.l.b16 %v483
        %v756 = vunpack.c.l.b16 %v484
        %v757 = vunpack.c.l.b16 %v485
        %v758 = vunpack.c.l.b16 %v486
        %v759 = vunpack.c.l.b16 %v487
        %v760 = vunpack.c.l.b16 %v488
        %v761 = vunpack.c.l.b16 %v489
        %v762 = vunpack.c.l.b16 %v490
        %v763 = vunpack.c.l.b16 %v491
        %v764 = vunpack.c.l.b16 %v492
        %v765 = vunpack.c.l.b16 %v493
        %v766 = vunpack.c.l.b16 %v494
        %v767 = vunpack.c.l.b16 %v495
        %v768 = vunpack.c.l.b16 %v496
        %v769 = vunpack.c.l.b16 %v497
        %v770 = vunpack.c.l.b16 %v498
        %v771 = vunpack.c.l.b16 %v499
        %v772 = vunpack.c.l.b16 %v500
        %v773 = vunpack.c.l.b16 %v501
        %v774 = vunpack.c.l.b16 %v502
        %v775 = vunpack.c.l.b16 %v503
        %v776 = vunpack.c.l.b16 %v504
        %v777 = vunpack.c.l.b16 %v505
        %v778 = vunpack.c.l.b16 %v506
        %v779 = vunpack.c.l.b16 %v507
        %v780 = vunpack.c.l.b16 %v508
        %v781 = vunpack.c.l.b16 %v509
        %v782 = vunpack.c.l.b16 %v510
        %v783 = vunpack.c.l.b16 %v511
        %v784 = vunpack.c.l.b16 %v512
        %v785 = vpack.c.b16 %v658, %v657
        %v786 = vpack.c.b16 %v660, %v659
        %v787 = vpack.c.b16 %v662, %v661
        %v788 = vpack.c.b16 %v664, %v663
        %v789 = vpack.c.b16 %v666, %v665
        %v790 = vpack.c.b16 %v668, %v667
        %v791 = vpack.c.b16 %v670, %v669
        %v792 = vpack.c.b16 %v672, %v671
        %v793 = vpack.c.b16 %v674, %v673
        %v794 = vpack.c.b16 %v676, %v675
        %v795 = vpack.c.b16 %v678, %v677
        %v796 = vpack.c.b16 %v680, %v679
        %v797 = vpack.c.b16 %v682, %v681
        %v798 = vpack.c.b16 %v684, %v683
        %v799 = vpack.c.b16 %v686, %v685
        %v800 = vpack.c.b16 %v688, %v687
        %v801 = vpack.c.b16 %v690, %v689
        %v802 = vpack.c.b16 %v692, %v691
        %v803 = vpack.c.b16 %v694, %v693
        %v804 = vpack.c.b16 %v696, %v695
        %v805 = vpack.c.b16 %v698, %v697
        %v806 = vpack.c.b16 %v700, %v699
        %v807 = vpack.c.b16 %v702, %v701
        %v808 = vpack.c.b16 %v704, %v703
        %v809 = vpack.c.b16 %v706, %v705
        %v810 = vpack.c.b16 %v708, %v707
        %v811 = vpack.c.b16 %v710, %v709
        %v812 = vpack.c.b16 %v712, %v711
        %v813 = vpack.c.b16 %v714, %v713
        %v814 = vpack.c.b16 %v716, %v715
        %v815 = vpack.c.b16 %v718, %v717
        %v816 = vpack.c.b16 %v720, %v719
        %v817 = vpack.c.b16 %v722, %v721
        %v818 = vpack.c.b16 %v724, %v723
        %v819 = vpack.c.b16 %v726, %v725
        %v820 = vpack.c.b16 %v728, %v727
        %v821 = vpack.c.b16 %v730, %v729
        %v822 = vpack.c.b16 %v732, %v731
        %v823 = vpack.c.b16 %v734, %v733
        %v824 = vpack.c.b16 %v736, %v735
        %v825 = vpack.c.b16 %v738, %v737
        %v826 = vpack.c.b16 %v740, %v739
        %v827 = vpack.c.b16 %v742, %v741
        %v828 = vpack.c.b16 %v744, %v743
        %v829 = vpack.c.b16 %v746, %v745
        %v830 = vpack.c.b16 %v748, %v747
        %v831 = vpack.c.b16 %v750, %v749
        %v832 = vpack.c.b16 %v752, %v751
        %v833 = vpack.c.b16 %v754, %v753
        %v834 = vpack.c.b16 %v756, %v755
        %v835 = vpack.c.b16 %v758, %v757
        %v836 = vpack.c.b16 %v760, %v759
        %v837 = vpack.c.b16 %v762, %v761
        %v838 = vpack.c.b16 %v764, %v763
        %v839 = vpack.c.b16 %v766, %v765
        %v840 = vpack.c.b16 %v768, %v767
        %v841 = vpack.c.b16 %v770, %v769
        %v842 = vpack.c.b16 %v772, %v771
        %v843 = vpack.c.b16 %v774, %v773
        %v844 = vpack.c.b16 %v776, %v775
        %v845 = vpack.c.b16 %v778, %v777
        %v846 = vpack.c.b16 %v780, %v779
        %v847 = vpack.c.b16 %v782, %v781
        %v848 = vpack.c.b16 %v784, %v783
        %v929 = vunpack.c.l.b16 %v513
        %v930 = vunpack.c.l.b16 %v514
        %v931 = vunpack.c.l.b16 %v515
        %v932 = vunpack.c.l.b16 %v516
        %v933 = vunpack.c.l.b16 %v517
        %v934 = vunpack.c.l.b16 %v518
        %v935 = vunpack.c.l.b16 %v519
        %v936 = vunpack.c.l.b16 %v520
        %v937 = vunpack.c.l.b16 %v521
        %v938 = vunpack.c.l.b16 %v522
        %v939 = vunpack.c.l.b16 %v523
        %v940 = vunpack.c.l.b16 %v524
        %v941 = vunpack.c.l.b16 %v525
        %v942 = vunpack.c.l.b16 %v526
        %v943 = vunpack.c.l.b16 %v527
        %v944 = vunpack.c.l.b16 %v528
        %v945 = vpack.c.b16 %v930, %v929
        %v946 = vpack.c.b16 %v932, %v931
        %v947 = vpack.c.b16 %v934, %v933
        %v948 = vpack.c.b16 %v936, %v935
        %v949 = vpack.c.b16 %v938, %v937
        %v950 = vpack.c.b16 %v940, %v939
        %v951 = vpack.c.b16 %v942, %v941
        %v952 = vpack.c.b16 %v944, %v943
        %961 = vmatprep.subr.bf16.mxu0 0
        %962 = vmatpush1.bf16.msra.mxu0 %v945
        %963 = vmatprep.subr.bf16.mxu0 0
        %964 = vmatpush1.bf16.msra.mxu0 %v946
        %965 = vmatprep.subr.bf16.mxu0 0
        %966 = vmatpush1.bf16.msra.mxu0 %v947
        %967 = vmatprep.subr.bf16.mxu0 0
        %968 = vmatpush1.bf16.msra.mxu0 %v948
        %969 = vmatprep.subr.bf16.mxu0 0
        %970 = vmatpush1.bf16.msra.mxu0 %v949
        %971 = vmatprep.subr.bf16.mxu0 0
        %972 = vmatpush1.bf16.msra.mxu0 %v950
        %973 = vmatprep.subr.bf16.mxu0 0
        %974 = vmatpush1.bf16.msra.mxu0 %v951
        %975 = vmatprep.subr.bf16.mxu0 0
        %976 = vmatpush1.bf16.msra.mxu0 %v952
        %977 = vmatprep.subr.bf16.mxu0 0
        %978 = vmatpush1.bf16.msra.mxu0 0
        %979 = vmatprep.subr.bf16.mxu0 0
        %980 = vmatpush1.bf16.msra.mxu0 0
        %981 = vmatprep.subr.bf16.mxu0 0
        %982 = vmatpush1.bf16.msra.mxu0 0
        %983 = vmatprep.subr.bf16.mxu0 0
        %984 = vmatpush1.bf16.msra.mxu0 0
        %985 = vmatprep.subr.bf16.mxu0 0
        %986 = vmatpush1.bf16.msra.mxu0 0
        %987 = vmatprep.subr.bf16.mxu0 0
        %988 = vmatpush1.bf16.msra.mxu0 0
        %989 = vmatprep.subr.bf16.mxu0 0
        %990 = vmatpush1.bf16.msra.mxu0 0
        %991 = vmatprep.subr.bf16.mxu0 0
        %992 = vmatpush1.bf16.msra.mxu0 0
        %993 = vmatprep.mubr.bf16.mxu0 0
        %994 = vmatmul.mubr.bf16.gmra.mrb[0].mxu0 %v785
        %v995 = vpop.f32.mrb[0].mxu0
        %v996 = vadd.f32 0.0, %v995
        %v997 = vpop.f32.mrb[0].mxu0
        %v998 = vpop.f32.mrb[0].mxu0
        %v999 = vadd.f32 0.0, %v998
        %v1000 = vpop.f32.mrb[0].mxu0
        %1001 = vmatprep.mubr.bf16.mxu0 0
        %1002 = vmatmul.mubr.bf16.gmra.mrb[0].mxu0 %v786
        %v1003 = vpop.f32.mrb[0].mxu0
        %v1004 = vadd.f32 0.0, %v1003
        %v1005 = vpop.f32.mrb[0].mxu0
        %v1006 = vpop.f32.mrb[0].mxu0
        %v1007 = vadd.f32 0.0, %v1006
        %v1008 = vpop.f32.mrb[0].mxu0
        %1009 = vmatprep.mubr.bf16.mxu0 0
        %1010 = vmatmul.mubr.bf16.gmra.mrb[0].mxu0 %v787
        %v1011 = vpop.f32.mrb[0].mxu0
        %v1012 = vadd.f32 0.0, %v1011
        %v1013 = vpop.f32.mrb[0].mxu0
        %v1014 = vpop.f32.mrb[0].mxu0
        %v1015 = vadd.f32 0.0, %v1014
        %v1016 = vpop.f32.mrb[0].mxu0
        %1017 = vmatprep.mubr.bf16.mxu0 0
        %1018 = vmatmul.mubr.bf16.gmra.mrb[0].mxu0 %v788
        %v1019 = vpop.f32.mrb[0].mxu0
        %v1020 = vadd.f32 0.0, %v1019
        %v1021 = vpop.f32.mrb[0].mxu0
        %v1022 = vpop.f32.mrb[0].mxu0
        %v1023 = vadd.f32 0.0, %v1022
        %v1024 = vpop.f32.mrb[0].mxu0
        %1025 = vmatprep.mubr.bf16.mxu0 0
        %1026 = vmatmul.mubr.bf16.gmra.mrb[0].mxu0 %v789
        %v1027 = vpop.f32.mrb[0].mxu0
        %v1028 = vadd.f32 0.0, %v1027
        %v1029 = vpop.f32.mrb[0].mxu0
        %v1030 = vpop.f32.mrb[0].mxu0
        %v1031 = vadd.f32 0.0, %v1030
        %v1032 = vpop.f32.mrb[0].mxu0
        %1033 = vmatprep.mubr.bf16.mxu0 0
        %1034 = vmatmul.mubr.bf16.gmra.mrb[0].mxu0 %v790
        %v1035 = vpop.f32.mrb[0].mxu0
        %v1036 = vadd.f32 0.0, %v1035
        %v1037 = vpop.f32.mrb[0].mxu0
        %v1038 = vpop.f32.mrb[0].mxu0
        %v1039 = vadd.f32 0.0, %v1038
        %v1040 = vpop.f32.mrb[0].mxu0
        %1041 = vmatprep.mubr.bf16.mxu0 0
        %1042 = vmatmul.mubr.bf16.gmra.mrb[0].mxu0 %v791
        %v1043 = vpop.f32.mrb[0].mxu0
        %v1044 = vadd.f32 0.0, %v1043
        %v1045 = vpop.f32.mrb[0].mxu0
        %v1046 = vpop.f32.mrb[0].mxu0
        %v1047 = vadd.f32 0.0, %v1046
        %v1048 = vpop.f32.mrb[0].mxu0
        %1049 = vmatprep.mubr.bf16.mxu0 0
        %1050 = vmatmul.mubr.bf16.gmra.mrb[0].mxu0 %v792
        %v1051 = vpop.f32.mrb[0].mxu0
        %v1052 = vadd.f32 0.0, %v1051
        %v1053 = vpop.f32.mrb[0].mxu0
        %v1054 = vpop.f32.mrb[0].mxu0
        %v1055 = vadd.f32 0.0, %v1054
        %v1056 = vpop.f32.mrb[0].mxu0
        %1057 = vmatprep.mubr.bf16.mxu0 0
        %1058 = vmatmul.mubr.bf16.gmra.mrb[0].mxu0 %v793
        %v1059 = vpop.f32.mrb[0].mxu0
        %v1060 = vadd.f32 0.0, %v1059
        %v1061 = vpop.f32.mrb[0].mxu0
        %v1062 = vpop.f32.mrb[0].mxu0
        %v1063 = vadd.f32 0.0, %v1062
        %v1064 = vpop.f32.mrb[0].mxu0
        %1065 = vmatprep.mubr.bf16.mxu0 0
        %1066 = vmatmul.mubr.bf16.gmra.mrb[0].mxu0 %v794
        %v1067 = vpop.f32.mrb[0].mxu0
        %v1068 = vadd.f32 0.0, %v1067
        %v1069 = vpop.f32.mrb[0].mxu0
        %v1070 = vpop.f32.mrb[0].mxu0
        %v1071 = vadd.f32 0.0, %v1070
        %v1072 = vpop.f32.mrb[0].mxu0
        %1073 = vmatprep.mubr.bf16.mxu0 0
        %1074 = vmatmul.mubr.bf16.gmra.mrb[0].mxu0 %v795
        %v1075 = vpop.f32.mrb[0].mxu0
        %v1076 = vadd.f32 0.0, %v1075
        %v1077 = vpop.f32.mrb[0].mxu0
        %v1078 = vpop.f32.mrb[0].mxu0
        %v1079 = vadd.f32 0.0, %v1078
        %v1080 = vpop.f32.mrb[0].mxu0
        %1081 = vmatprep.mubr.bf16.mxu0 0
        %1082 = vmatmul.mubr.bf16.gmra.mrb[0].mxu0 %v796
        %v1083 = vpop.f32.mrb[0].mxu0
        %v1084 = vadd.f32 0.0, %v1083
        %v1085 = vpop.f32.mrb[0].mxu0
        %v1086 = vpop.f32.mrb[0].mxu0
        %v1087 = vadd.f32 0.0, %v1086
        %v1088 = vpop.f32.mrb[0].mxu0
        %1089 = vmatprep.mubr.bf16.mxu0 0
        %1090 = vmatmul.mubr.bf16.gmra.mrb[0].mxu0 %v797
        %v1091 = vpop.f32.mrb[0].mxu0
        %v1092 = vadd.f32 0.0, %v1091
        %v1093 = vpop.f32.mrb[0].mxu0
        %v1094 = vpop.f32.mrb[0].mxu0
        %v1095 = vadd.f32 0.0, %v1094
        %v1096 = vpop.f32.mrb[0].mxu0
        %1097 = vmatprep.mubr.bf16.mxu0 0
        %1098 = vmatmul.mubr.bf16.gmra.mrb[0].mxu0 %v798
        %v1099 = vpop.f32.mrb[0].mxu0
        %v1100 = vadd.f32 0.0, %v1099
        %v1101 = vpop.f32.mrb[0].mxu0
        %v1102 = vpop.f32.mrb[0].mxu0
        %v1103 = vadd.f32 0.0, %v1102
        %v1104 = vpop.f32.mrb[0].mxu0
        %1105 = vmatprep.mubr.bf16.mxu0 0
        %1106 = vmatmul.mubr.bf16.gmra.mrb[0].mxu0 %v799
        %v1107 = vpop.f32.mrb[0].mxu0
        %v1108 = vadd.f32 0.0, %v1107
        %v1109 = vpop.f32.mrb[0].mxu0
        %v1110 = vpop.f32.mrb[0].mxu0
        %v1111 = vadd.f32 0.0, %v1110
        %v1112 = vpop.f32.mrb[0].mxu0
        %1113 = vmatprep.mubr.bf16.mxu0 0
        %1114 = vmatmul.mubr.bf16.gmra.mrb[0].mxu0 %v800
        %v1115 = vpop.f32.mrb[0].mxu0
        %v1116 = vadd.f32 0.0, %v1115
        %v1117 = vpop.f32.mrb[0].mxu0
        %v1118 = vpop.f32.mrb[0].mxu0
        %v1119 = vadd.f32 0.0, %v1118
        %v1120 = vpop.f32.mrb[0].mxu0
        %1121 = vmatprep.mubr.bf16.mxu0 0
        %1122 = vmatmul.mubr.bf16.gmra.mrb[0].mxu0 %v801
        %v1123 = vpop.f32.mrb[0].mxu0
        %v1124 = vadd.f32 0.0, %v1123
        %v1125 = vpop.f32.mrb[0].mxu0
        %v1126 = vpop.f32.mrb[0].mxu0
        %v1127 = vadd.f32 0.0, %v1126
        %v1128 = vpop.f32.mrb[0].mxu0
        %1129 = vmatprep.mubr.bf16.mxu0 0
        %1130 = vmatmul.mubr.bf16.gmra.mrb[0].mxu0 %v802
        %v1131 = vpop.f32.mrb[0].mxu0
        %v1132 = vadd.f32 0.0, %v1131
        %v1133 = vpop.f32.mrb[0].mxu0
        %v1134 = vpop.f32.mrb[0].mxu0
        %v1135 = vadd.f32 0.0, %v1134
        %v1136 = vpop.f32.mrb[0].mxu0
        %1137 = vmatprep.mubr.bf16.mxu0 0
        %1138 = vmatmul.mubr.bf16.gmra.mrb[0].mxu0 %v803
        %v1139 = vpop.f32.mrb[0].mxu0
        %v1140 = vadd.f32 0.0, %v1139
        %v1141 = vpop.f32.mrb[0].mxu0
        %v1142 = vpop.f32.mrb[0].mxu0
        %v1143 = vadd.f32 0.0, %v1142
        %v1144 = vpop.f32.mrb[0].mxu0
        %1145 = vmatprep.mubr.bf16.mxu0 0
        %1146 = vmatmul.mubr.bf16.gmra.mrb[0].mxu0 %v804
        %v1147 = vpop.f32.mrb[0].mxu0
        %v1148 = vadd.f32 0.0, %v1147
        %v1149 = vpop.f32.mrb[0].mxu0
        %v1150 = vpop.f32.mrb[0].mxu0
        %v1151 = vadd.f32 0.0, %v1150
        %v1152 = vpop.f32.mrb[0].mxu0
        %1153 = vmatprep.mubr.bf16.mxu0 0
        %1154 = vmatmul.mubr.bf16.gmra.mrb[0].mxu0 %v805
        %v1155 = vpop.f32.mrb[0].mxu0
        %v1156 = vadd.f32 0.0, %v1155
        %v1157 = vpop.f32.mrb[0].mxu0
        %v1158 = vpop.f32.mrb[0].mxu0
        %v1159 = vadd.f32 0.0, %v1158
        %v1160 = vpop.f32.mrb[0].mxu0
        %1161 = vmatprep.mubr.bf16.mxu0 0
        %1162 = vmatmul.mubr.bf16.gmra.mrb[0].mxu0 %v806
        %v1163 = vpop.f32.mrb[0].mxu0
        %v1164 = vadd.f32 0.0, %v1163
        %v1165 = vpop.f32.mrb[0].mxu0
        %v1166 = vpop.f32.mrb[0].mxu0
        %v1167 = vadd.f32 0.0, %v1166
        %v1168 = vpop.f32.mrb[0].mxu0
        %1169 = vmatprep.mubr.bf16.mxu0 0
        %1170 = vmatmul.mubr.bf16.gmra.mrb[0].mxu0 %v807
        %v1171 = vpop.f32.mrb[0].mxu0
        %v1172 = vadd.f32 0.0, %v1171
        %v1173 = vpop.f32.mrb[0].mxu0
        %v1174 = vpop.f32.mrb[0].mxu0
        %v1175 = vadd.f32 0.0, %v1174
        %v1176 = vpop.f32.mrb[0].mxu0
        %1177 = vmatprep.mubr.bf16.mxu0 0
        %1178 = vmatmul.mubr.bf16.gmra.mrb[0].mxu0 %v808
        %v1179 = vpop.f32.mrb[0].mxu0
        %v1180 = vadd.f32 0.0, %v1179
        %v1181 = vpop.f32.mrb[0].mxu0
        %v1182 = vpop.f32.mrb[0].mxu0
        %v1183 = vadd.f32 0.0, %v1182
        %v1184 = vpop.f32.mrb[0].mxu0
        %1185 = vmatprep.mubr.bf16.mxu0 0
        %1186 = vmatmul.mubr.bf16.gmra.mrb[0].mxu0 %v809
        %v1187 = vpop.f32.mrb[0].mxu0
        %v1188 = vadd.f32 0.0, %v1187
        %v1189 = vpop.f32.mrb[0].mxu0
        %v1190 = vpop.f32.mrb[0].mxu0
        %v1191 = vadd.f32 0.0, %v1190
        %v1192 = vpop.f32.mrb[0].mxu0
        %1193 = vmatprep.mubr.bf16.mxu0 0
        %1194 = vmatmul.mubr.bf16.gmra.mrb[0].mxu0 %v810
        %v1195 = vpop.f32.mrb[0].mxu0
        %v1196 = vadd.f32 0.0, %v1195
        %v1197 = vpop.f32.mrb[0].mxu0
        %v1198 = vpop.f32.mrb[0].mxu0
        %v1199 = vadd.f32 0.0, %v1198
        %v1200 = vpop.f32.mrb[0].mxu0
        %1201 = vmatprep.mubr.bf16.mxu0 0
        %1202 = vmatmul.mubr.bf16.gmra.mrb[0].mxu0 %v811
        %v1203 = vpop.f32.mrb[0].mxu0
        %v1204 = vadd.f32 0.0, %v1203
        %v1205 = vpop.f32.mrb[0].mxu0
        %v1206 = vpop.f32.mrb[0].mxu0
        %v1207 = vadd.f32 0.0, %v1206
        %v1208 = vpop.f32.mrb[0].mxu0
        %1209 = vmatprep.mubr.bf16.mxu0 0
        %1210 = vmatmul.mubr.bf16.gmra.mrb[0].mxu0 %v812
        %v1211 = vpop.f32.mrb[0].mxu0
        %v1212 = vadd.f32 0.0, %v1211
        %v1213 = vpop.f32.mrb[0].mxu0
        %v1214 = vpop.f32.mrb[0].mxu0
        %v1215 = vadd.f32 0.0, %v1214
        %v1216 = vpop.f32.mrb[0].mxu0
        %1217 = vmatprep.mubr.bf16.mxu0 0
        %1218 = vmatmul.mubr.bf16.gmra.mrb[0].mxu0 %v813
        %v1219 = vpop.f32.mrb[0].mxu0
        %v1220 = vadd.f32 0.0, %v1219
        %v1221 = vpop.f32.mrb[0].mxu0
        %v1222 = vpop.f32.mrb[0].mxu0
        %v1223 = vadd.f32 0.0, %v1222
        %v1224 = vpop.f32.mrb[0].mxu0
        %1225 = vmatprep.mubr.bf16.mxu0 0
        %1226 = vmatmul.mubr.bf16.gmra.mrb[0].mxu0 %v814
        %v1227 = vpop.f32.mrb[0].mxu0
        %v1228 = vadd.f32 0.0, %v1227
        %v1229 = vpop.f32.mrb[0].mxu0
        %v1230 = vpop.f32.mrb[0].mxu0
        %v1231 = vadd.f32 0.0, %v1230
        %v1232 = vpop.f32.mrb[0].mxu0
        %1233 = vmatprep.mubr.bf16.mxu0 0
        %1234 = vmatmul.mubr.bf16.gmra.mrb[0].mxu0 %v815
        %v1235 = vpop.f32.mrb[0].mxu0
        %v1236 = vadd.f32 0.0, %v1235
        %v1237 = vpop.f32.mrb[0].mxu0
        %v1238 = vpop.f32.mrb[0].mxu0
        %v1239 = vadd.f32 0.0, %v1238
        %v1240 = vpop.f32.mrb[0].mxu0
        %1241 = vmatprep.mubr.bf16.mxu0 0
        %1242 = vmatmul.mubr.bf16.gmra.mrb[0].mxu0 %v816
        %v1243 = vpop.f32.mrb[0].mxu0
        %v1244 = vadd.f32 0.0, %v1243
        %v1245 = vpop.f32.mrb[0].mxu0
        %v1246 = vpop.f32.mrb[0].mxu0
        %v1247 = vadd.f32 0.0, %v1246
        %v1248 = vpop.f32.mrb[0].mxu0
        %1249 = vmatprep.mubr.bf16.mxu0 0
        %1250 = vmatmul.mubr.bf16.gmra.mrb[0].mxu0 %v817
        %v1251 = vpop.f32.mrb[0].mxu0
        %v1252 = vadd.f32 0.0, %v1251
        %v1253 = vpop.f32.mrb[0].mxu0
        %v1254 = vpop.f32.mrb[0].mxu0
        %v1255 = vadd.f32 0.0, %v1254
        %v1256 = vpop.f32.mrb[0].mxu0
        %1257 = vmatprep.mubr.bf16.mxu0 0
        %1258 = vmatmul.mubr.bf16.gmra.mrb[0].mxu0 %v818
        %v1259 = vpop.f32.mrb[0].mxu0
        %v1260 = vadd.f32 0.0, %v1259
        %v1261 = vpop.f32.mrb[0].mxu0
        %v1262 = vpop.f32.mrb[0].mxu0
        %v1263 = vadd.f32 0.0, %v1262
        %v1264 = vpop.f32.mrb[0].mxu0
        %1265 = vmatprep.mubr.bf16.mxu0 0
        %1266 = vmatmul.mubr.bf16.gmra.mrb[0].mxu0 %v819
        %v1267 = vpop.f32.mrb[0].mxu0
        %v1268 = vadd.f32 0.0, %v1267
        %v1269 = vpop.f32.mrb[0].mxu0
        %v1270 = vpop.f32.mrb[0].mxu0
        %v1271 = vadd.f32 0.0, %v1270
        %v1272 = vpop.f32.mrb[0].mxu0
        %1273 = vmatprep.mubr.bf16.mxu0 0
        %1274 = vmatmul.mubr.bf16.gmra.mrb[0].mxu0 %v820
        %v1275 = vpop.f32.mrb[0].mxu0
        %v1276 = vadd.f32 0.0, %v1275
        %v1277 = vpop.f32.mrb[0].mxu0
        %v1278 = vpop.f32.mrb[0].mxu0
        %v1279 = vadd.f32 0.0, %v1278
        %v1280 = vpop.f32.mrb[0].mxu0
        %1281 = vmatprep.mubr.bf16.mxu0 0
        %1282 = vmatmul.mubr.bf16.gmra.mrb[0].mxu0 %v821
        %v1283 = vpop.f32.mrb[0].mxu0
        %v1284 = vadd.f32 0.0, %v1283
        %v1285 = vpop.f32.mrb[0].mxu0
        %v1286 = vpop.f32.mrb[0].mxu0
        %v1287 = vadd.f32 0.0, %v1286
        %v1288 = vpop.f32.mrb[0].mxu0
        %1289 = vmatprep.mubr.bf16.mxu0 0
        %1290 = vmatmul.mubr.bf16.gmra.mrb[0].mxu0 %v822
        %v1291 = vpop.f32.mrb[0].mxu0
        %v1292 = vadd.f32 0.0, %v1291
        %v1293 = vpop.f32.mrb[0].mxu0
        %v1294 = vpop.f32.mrb[0].mxu0
        %v1295 = vadd.f32 0.0, %v1294
        %v1296 = vpop.f32.mrb[0].mxu0
        %1297 = vmatprep.mubr.bf16.mxu0 0
        %1298 = vmatmul.mubr.bf16.gmra.mrb[0].mxu0 %v823
        %v1299 = vpop.f32.mrb[0].mxu0
        %v1300 = vadd.f32 0.0, %v1299
        %v1301 = vpop.f32.mrb[0].mxu0
        %v1302 = vpop.f32.mrb[0].mxu0
        %v1303 = vadd.f32 0.0, %v1302
        %v1304 = vpop.f32.mrb[0].mxu0
        %1305 = vmatprep.mubr.bf16.mxu0 0
        %1306 = vmatmul.mubr.bf16.gmra.mrb[0].mxu0 %v824
        %v1307 = vpop.f32.mrb[0].mxu0
        %v1308 = vadd.f32 0.0, %v1307
        %v1309 = vpop.f32.mrb[0].mxu0
        %v1310 = vpop.f32.mrb[0].mxu0
        %v1311 = vadd.f32 0.0, %v1310
        %v1312 = vpop.f32.mrb[0].mxu0
        %1313 = vmatprep.mubr.bf16.mxu0 0
        %1314 = vmatmul.mubr.bf16.gmra.mrb[0].mxu0 %v825
        %v1315 = vpop.f32.mrb[0].mxu0
        %v1316 = vadd.f32 0.0, %v1315
        %v1317 = vpop.f32.mrb[0].mxu0
        %v1318 = vpop.f32.mrb[0].mxu0
        %v1319 = vadd.f32 0.0, %v1318
        %v1320 = vpop.f32.mrb[0].mxu0
        %1321 = vmatprep.mubr.bf16.mxu0 0
        %1322 = vmatmul.mubr.bf16.gmra.mrb[0].mxu0 %v826
        %v1323 = vpop.f32.mrb[0].mxu0
        %v1324 = vadd.f32 0.0, %v1323
        %v1325 = vpop.f32.mrb[0].mxu0
        %v1326 = vpop.f32.mrb[0].mxu0
        %v1327 = vadd.f32 0.0, %v1326
        %v1328 = vpop.f32.mrb[0].mxu0
        %1329 = vmatprep.mubr.bf16.mxu0 0
        %1330 = vmatmul.mubr.bf16.gmra.mrb[0].mxu0 %v827
        %v1331 = vpop.f32.mrb[0].mxu0
        %v1332 = vadd.f32 0.0, %v1331
        %v1333 = vpop.f32.mrb[0].mxu0
        %v1334 = vpop.f32.mrb[0].mxu0
        %v1335 = vadd.f32 0.0, %v1334
        %v1336 = vpop.f32.mrb[0].mxu0
        %1337 = vmatprep.mubr.bf16.mxu0 0
        %1338 = vmatmul.mubr.bf16.gmra.mrb[0].mxu0 %v828
        %v1339 = vpop.f32.mrb[0].mxu0
        %v1340 = vadd.f32 0.0, %v1339
        %v1341 = vpop.f32.mrb[0].mxu0
        %v1342 = vpop.f32.mrb[0].mxu0
        %v1343 = vadd.f32 0.0, %v1342
        %v1344 = vpop.f32.mrb[0].mxu0
        %1345 = vmatprep.mubr.bf16.mxu0 0
        %1346 = vmatmul.mubr.bf16.gmra.mrb[0].mxu0 %v829
        %v1347 = vpop.f32.mrb[0].mxu0
        %v1348 = vadd.f32 0.0, %v1347
        %v1349 = vpop.f32.mrb[0].mxu0
        %v1350 = vpop.f32.mrb[0].mxu0
        %v1351 = vadd.f32 0.0, %v1350
        %v1352 = vpop.f32.mrb[0].mxu0
        %1353 = vmatprep.mubr.bf16.mxu0 0
        %1354 = vmatmul.mubr.bf16.gmra.mrb[0].mxu0 %v830
        %v1355 = vpop.f32.mrb[0].mxu0
        %v1356 = vadd.f32 0.0, %v1355
        %v1357 = vpop.f32.mrb[0].mxu0
        %v1358 = vpop.f32.mrb[0].mxu0
        %v1359 = vadd.f32 0.0, %v1358
        %v1360 = vpop.f32.mrb[0].mxu0
        %1361 = vmatprep.mubr.bf16.mxu0 0
        %1362 = vmatmul.mubr.bf16.gmra.mrb[0].mxu0 %v831
        %v1363 = vpop.f32.mrb[0].mxu0
        %v1364 = vadd.f32 0.0, %v1363
        %v1365 = vpop.f32.mrb[0].mxu0
        %v1366 = vpop.f32.mrb[0].mxu0
        %v1367 = vadd.f32 0.0, %v1366
        %v1368 = vpop.f32.mrb[0].mxu0
        %1369 = vmatprep.mubr.bf16.mxu0 0
        %1370 = vmatmul.mubr.bf16.gmra.mrb[0].mxu0 %v832
        %v1371 = vpop.f32.mrb[0].mxu0
        %v1372 = vadd.f32 0.0, %v1371
        %v1373 = vpop.f32.mrb[0].mxu0
        %v1374 = vpop.f32.mrb[0].mxu0
        %v1375 = vadd.f32 0.0, %v1374
        %v1376 = vpop.f32.mrb[0].mxu0
        %1377 = vmatprep.mubr.bf16.mxu0 0
        %1378 = vmatmul.mubr.bf16.gmra.mrb[0].mxu0 %v833
        %v1379 = vpop.f32.mrb[0].mxu0
        %v1380 = vadd.f32 0.0, %v1379
        %v1381 = vpop.f32.mrb[0].mxu0
        %v1382 = vpop.f32.mrb[0].mxu0
        %v1383 = vadd.f32 0.0, %v1382
        %v1384 = vpop.f32.mrb[0].mxu0
        %1385 = vmatprep.mubr.bf16.mxu0 0
        %1386 = vmatmul.mubr.bf16.gmra.mrb[0].mxu0 %v834
        %v1387 = vpop.f32.mrb[0].mxu0
        %v1388 = vadd.f32 0.0, %v1387
        %v1389 = vpop.f32.mrb[0].mxu0
        %v1390 = vpop.f32.mrb[0].mxu0
        %v1391 = vadd.f32 0.0, %v1390
        %v1392 = vpop.f32.mrb[0].mxu0
        %1393 = vmatprep.mubr.bf16.mxu0 0
        %1394 = vmatmul.mubr.bf16.gmra.mrb[0].mxu0 %v835
        %v1395 = vpop.f32.mrb[0].mxu0
        %v1396 = vadd.f32 0.0, %v1395
        %v1397 = vpop.f32.mrb[0].mxu0
        %v1398 = vpop.f32.mrb[0].mxu0
        %v1399 = vadd.f32 0.0, %v1398
        %v1400 = vpop.f32.mrb[0].mxu0
        %1401 = vmatprep.mubr.bf16.mxu0 0
        %1402 = vmatmul.mubr.bf16.gmra.mrb[0].mxu0 %v836
        %v1403 = vpop.f32.mrb[0].mxu0
        %v1404 = vadd.f32 0.0, %v1403
        %v1405 = vpop.f32.mrb[0].mxu0
        %v1406 = vpop.f32.mrb[0].mxu0
        %v1407 = vadd.f32 0.0, %v1406
        %v1408 = vpop.f32.mrb[0].mxu0
        %1409 = vmatprep.mubr.bf16.mxu0 0
        %1410 = vmatmul.mubr.bf16.gmra.mrb[0].mxu0 %v837
        %v1411 = vpop.f32.mrb[0].mxu0
        %v1412 = vadd.f32 0.0, %v1411
        %v1413 = vpop.f32.mrb[0].mxu0
        %v1414 = vpop.f32.mrb[0].mxu0
        %v1415 = vadd.f32 0.0, %v1414
        %v1416 = vpop.f32.mrb[0].mxu0
        %1417 = vmatprep.mubr.bf16.mxu0 0
        %1418 = vmatmul.mubr.bf16.gmra.mrb[0].mxu0 %v838
        %v1419 = vpop.f32.mrb[0].mxu0
        %v1420 = vadd.f32 0.0, %v1419
        %v1421 = vpop.f32.mrb[0].mxu0
        %v1422 = vpop.f32.mrb[0].mxu0
        %v1423 = vadd.f32 0.0, %v1422
        %v1424 = vpop.f32.mrb[0].mxu0
        %1425 = vmatprep.mubr.bf16.mxu0 0
        %1426 = vmatmul.mubr.bf16.gmra.mrb[0].mxu0 %v839
        %v1427 = vpop.f32.mrb[0].mxu0
        %v1428 = vadd.f32 0.0, %v1427
        %v1429 = vpop.f32.mrb[0].mxu0
        %v1430 = vpop.f32.mrb[0].mxu0
        %v1431 = vadd.f32 0.0, %v1430
        %v1432 = vpop.f32.mrb[0].mxu0
        %1433 = vmatprep.mubr.bf16.mxu0 0
        %1434 = vmatmul.mubr.bf16.gmra.mrb[0].mxu0 %v840
        %v1435 = vpop.f32.mrb[0].mxu0
        %v1436 = vadd.f32 0.0, %v1435
        %v1437 = vpop.f32.mrb[0].mxu0
        %v1438 = vpop.f32.mrb[0].mxu0
        %v1439 = vadd.f32 0.0, %v1438
        %v1440 = vpop.f32.mrb[0].mxu0
        %1441 = vmatprep.mubr.bf16.mxu0 0
        %1442 = vmatmul.mubr.bf16.gmra.mrb[0].mxu0 %v841
        %v1443 = vpop.f32.mrb[0].mxu0
        %v1444 = vadd.f32 0.0, %v1443
        %v1445 = vpop.f32.mrb[0].mxu0
        %v1446 = vpop.f32.mrb[0].mxu0
        %v1447 = vadd.f32 0.0, %v1446
        %v1448 = vpop.f32.mrb[0].mxu0
        %1449 = vmatprep.mubr.bf16.mxu0 0
        %1450 = vmatmul.mubr.bf16.gmra.mrb[0].mxu0 %v842
        %v1451 = vpop.f32.mrb[0].mxu0
        %v1452 = vadd.f32 0.0, %v1451
        %v1453 = vpop.f32.mrb[0].mxu0
        %v1454 = vpop.f32.mrb[0].mxu0
        %v1455 = vadd.f32 0.0, %v1454
        %v1456 = vpop.f32.mrb[0].mxu0
        %1457 = vmatprep.mubr.bf16.mxu0 0
        %1458 = vmatmul.mubr.bf16.gmra.mrb[0].mxu0 %v843
        %v1459 = vpop.f32.mrb[0].mxu0
        %v1460 = vadd.f32 0.0, %v1459
        %v1461 = vpop.f32.mrb[0].mxu0
        %v1462 = vpop.f32.mrb[0].mxu0
        %v1463 = vadd.f32 0.0, %v1462
        %v1464 = vpop.f32.mrb[0].mxu0
        %1465 = vmatprep.mubr.bf16.mxu0 0
        %1466 = vmatmul.mubr.bf16.gmra.mrb[0].mxu0 %v844
        %v1467 = vpop.f32.mrb[0].mxu0
        %v1468 = vadd.f32 0.0, %v1467
        %v1469 = vpop.f32.mrb[0].mxu0
        %v1470 = vpop.f32.mrb[0].mxu0
        %v1471 = vadd.f32 0.0, %v1470
        %v1472 = vpop.f32.mrb[0].mxu0
        %1473 = vmatprep.mubr.bf16.mxu0 0
        %1474 = vmatmul.mubr.bf16.gmra.mrb[0].mxu0 %v845
        %v1475 = vpop.f32.mrb[0].mxu0
        %v1476 = vadd.f32 0.0, %v1475
        %v1477 = vpop.f32.mrb[0].mxu0
        %v1478 = vpop.f32.mrb[0].mxu0
        %v1479 = vadd.f32 0.0, %v1478
        %v1480 = vpop.f32.mrb[0].mxu0
        %1481 = vmatprep.mubr.bf16.mxu0 0
        %1482 = vmatmul.mubr.bf16.gmra.mrb[0].mxu0 %v846
        %v1483 = vpop.f32.mrb[0].mxu0
        %v1484 = vadd.f32 0.0, %v1483
        %v1485 = vpop.f32.mrb[0].mxu0
        %v1486 = vpop.f32.mrb[0].mxu0
        %v1487 = vadd.f32 0.0, %v1486
        %v1488 = vpop.f32.mrb[0].mxu0
        %1489 = vmatprep.mubr.bf16.mxu0 0
        %1490 = vmatmul.mubr.bf16.gmra.mrb[0].mxu0 %v847
        %v1491 = vpop.f32.mrb[0].mxu0
        %v1492 = vadd.f32 0.0, %v1491
        %v1493 = vpop.f32.mrb[0].mxu0
        %v1494 = vpop.f32.mrb[0].mxu0
        %v1495 = vadd.f32 0.0, %v1494
        %v1496 = vpop.f32.mrb[0].mxu0
        %1497 = vmatprep.mubr.bf16.mxu0 0
        %1498 = vmatmul.mubr.bf16.gmra.mrb[0].mxu0 %v848
        %v1499 = vpop.f32.mrb[0].mxu0
        %v1500 = vadd.f32 0.0, %v1499
        %v1501 = vpop.f32.mrb[0].mxu0
        %v1502 = vpop.f32.mrb[0].mxu0
        %v1503 = vadd.f32 0.0, %v1502
        %v1504 = vpop.f32.mrb[0].mxu0
        %1505 = vdwg.mxu0
        %1506 = vst [vmem:[#allocation2] sm:$0xff] %v996
        %1507 = vst [vmem:[#allocation2 + $0x8] sm:$0xff] %v999
        %1508 = vst [vmem:[#allocation2 + $0x10] sm:$0xff] %v1004
        %1509 = vst [vmem:[#allocation2 + $0x18] sm:$0xff] %v1007
        %1510 = vst [vmem:[#allocation2 + $0x20] sm:$0xff] %v1012
        %1511 = vst [vmem:[#allocation2 + $0x28] sm:$0xff] %v1015
        %1512 = vst [vmem:[#allocation2 + $0x30] sm:$0xff] %v1020
        %1513 = vst [vmem:[#allocation2 + $0x38] sm:$0xff] %v1023
        %1514 = vst [vmem:[#allocation2 + $0x40] sm:$0xff] %v1028
        %1515 = vst [vmem:[#allocation2 + $0x48] sm:$0xff] %v1031
        %1516 = vst [vmem:[#allocation2 + $0x50] sm:$0xff] %v1036
        %1517 = vst [vmem:[#allocation2 + $0x58] sm:$0xff] %v1039
        %1518 = vst [vmem:[#allocation2 + $0x60] sm:$0xff] %v1044
        %1519 = vst [vmem:[#allocation2 + $0x68] sm:$0xff] %v1047
        %1520 = vst [vmem:[#allocation2 + $0x70] sm:$0xff] %v1052
        %1521 = vst [vmem:[#allocation2 + $0x78] sm:$0xff] %v1055
        %1522 = vst [vmem:[#allocation2 + $0x80] sm:$0xff] %v1060
        %1523 = vst [vmem:[#allocation2 + $0x88] sm:$0xff] %v1063
        %1524 = vst [vmem:[#allocation2 + $0x90] sm:$0xff] %v1068
        %1525 = vst [vmem:[#allocation2 + $0x98] sm:$0xff] %v1071
        %1526 = vst [vmem:[#allocation2 + $0xa0] sm:$0xff] %v1076
        %1527 = vst [vmem:[#allocation2 + $0xa8] sm:$0xff] %v1079
        %1528 = vst [vmem:[#allocation2 + $0xb0] sm:$0xff] %v1084
        %1529 = vst [vmem:[#allocation2 + $0xb8] sm:$0xff] %v1087
        %1530 = vst [vmem:[#allocation2 + $0xc0] sm:$0xff] %v1092
        %1531 = vst [vmem:[#allocation2 + $0xc8] sm:$0xff] %v1095
        %1532 = vst [vmem:[#allocation2 + $0xd0] sm:$0xff] %v1100
        %1533 = vst [vmem:[#allocation2 + $0xd8] sm:$0xff] %v1103
        %1534 = vst [vmem:[#allocation2 + $0xe0] sm:$0xff] %v1108
        %1535 = vst [vmem:[#allocation2 + $0xe8] sm:$0xff] %v1111
        %1536 = vst [vmem:[#allocation2 + $0xf0] sm:$0xff] %v1116
        %1537 = vst [vmem:[#allocation2 + $0xf8] sm:$0xff] %v1119
        %1538 = vst [vmem:[#allocation2 + $0x100] sm:$0xff] %v1124
        %1539 = vst [vmem:[#allocation2 + $0x108] sm:$0xff] %v1127
        %1540 = vst [vmem:[#allocation2 + $0x110] sm:$0xff] %v1132
        %1541 = vst [vmem:[#allocation2 + $0x118] sm:$0xff] %v1135
        %1542 = vst [vmem:[#allocation2 + $0x120] sm:$0xff] %v1140
        %1543 = vst [vmem:[#allocation2 + $0x128] sm:$0xff] %v1143
        %1544 = vst [vmem:[#allocation2 + $0x130] sm:$0xff] %v1148
        %1545 = vst [vmem:[#allocation2 + $0x138] sm:$0xff] %v1151
        %1546 = vst [vmem:[#allocation2 + $0x140] sm:$0xff] %v1156
        %1547 = vst [vmem:[#allocation2 + $0x148] sm:$0xff] %v1159
        %1548 = vst [vmem:[#allocation2 + $0x150] sm:$0xff] %v1164
        %1549 = vst [vmem:[#allocation2 + $0x158] sm:$0xff] %v1167
        %1550 = vst [vmem:[#allocation2 + $0x160] sm:$0xff] %v1172
        %1551 = vst [vmem:[#allocation2 + $0x168] sm:$0xff] %v1175
        %1552 = vst [vmem:[#allocation2 + $0x170] sm:$0xff] %v1180
        %1553 = vst [vmem:[#allocation2 + $0x178] sm:$0xff] %v1183
        %1554 = vst [vmem:[#allocation2 + $0x180] sm:$0xff] %v1188
        %1555 = vst [vmem:[#allocation2 + $0x188] sm:$0xff] %v1191
        %1556 = vst [vmem:[#allocation2 + $0x190] sm:$0xff] %v1196
        %1557 = vst [vmem:[#allocation2 + $0x198] sm:$0xff] %v1199
        %1558 = vst [vmem:[#allocation2 + $0x1a0] sm:$0xff] %v1204
        %1559 = vst [vmem:[#allocation2 + $0x1a8] sm:$0xff] %v1207
        %1560 = vst [vmem:[#allocation2 + $0x1b0] sm:$0xff] %v1212
        %1561 = vst [vmem:[#allocation2 + $0x1b8] sm:$0xff] %v1215
        %1562 = vst [vmem:[#allocation2 + $0x1c0] sm:$0xff] %v1220
        %1563 = vst [vmem:[#allocation2 + $0x1c8] sm:$0xff] %v1223
        %1564 = vst [vmem:[#allocation2 + $0x1d0] sm:$0xff] %v1228
        %1565 = vst [vmem:[#allocation2 + $0x1d8] sm:$0xff] %v1231
        %1566 = vst [vmem:[#allocation2 + $0x1e0] sm:$0xff] %v1236
        %1567 = vst [vmem:[#allocation2 + $0x1e8] sm:$0xff] %v1239
        %1568 = vst [vmem:[#allocation2 + $0x1f0] sm:$0xff] %v1244
        %1569 = vst [vmem:[#allocation2 + $0x1f8] sm:$0xff] %v1247
        %1570 = vst [vmem:[#allocation2 + $0x200] sm:$0xff] %v1252
        %1571 = vst [vmem:[#allocation2 + $0x208] sm:$0xff] %v1255
        %1572 = vst [vmem:[#allocation2 + $0x210] sm:$0xff] %v1260
        %1573 = vst [vmem:[#allocation2 + $0x218] sm:$0xff] %v1263
        %1574 = vst [vmem:[#allocation2 + $0x220] sm:$0xff] %v1268
        %1575 = vst [vmem:[#allocation2 + $0x228] sm:$0xff] %v1271
        %1576 = vst [vmem:[#allocation2 + $0x230] sm:$0xff] %v1276
        %1577 = vst [vmem:[#allocation2 + $0x238] sm:$0xff] %v1279
        %1578 = vst [vmem:[#allocation2 + $0x240] sm:$0xff] %v1284
        %1579 = vst [vmem:[#allocation2 + $0x248] sm:$0xff] %v1287
        %1580 = vst [vmem:[#allocation2 + $0x250] sm:$0xff] %v1292
        %1581 = vst [vmem:[#allocation2 + $0x258] sm:$0xff] %v1295
        %1582 = vst [vmem:[#allocation2 + $0x260] sm:$0xff] %v1300
        %1583 = vst [vmem:[#allocation2 + $0x268] sm:$0xff] %v1303
        %1584 = vst [vmem:[#allocation2 + $0x270] sm:$0xff] %v1308
        %1585 = vst [vmem:[#allocation2 + $0x278] sm:$0xff] %v1311
        %1586 = vst [vmem:[#allocation2 + $0x280] sm:$0xff] %v1316
        %1587 = vst [vmem:[#allocation2 + $0x288] sm:$0xff] %v1319
        %1588 = vst [vmem:[#allocation2 + $0x290] sm:$0xff] %v1324
        %1589 = vst [vmem:[#allocation2 + $0x298] sm:$0xff] %v1327
        %1590 = vst [vmem:[#allocation2 + $0x2a0] sm:$0xff] %v1332
        %1591 = vst [vmem:[#allocation2 + $0x2a8] sm:$0xff] %v1335
        %1592 = vst [vmem:[#allocation2 + $0x2b0] sm:$0xff] %v1340
        %1593 = vst [vmem:[#allocation2 + $0x2b8] sm:$0xff] %v1343
        %1594 = vst [vmem:[#allocation2 + $0x2c0] sm:$0xff] %v1348
        %1595 = vst [vmem:[#allocation2 + $0x2c8] sm:$0xff] %v1351
        %1596 = vst [vmem:[#allocation2 + $0x2d0] sm:$0xff] %v1356
        %1597 = vst [vmem:[#allocation2 + $0x2d8] sm:$0xff] %v1359
        %1598 = vst [vmem:[#allocation2 + $0x2e0] sm:$0xff] %v1364
        %1599 = vst [vmem:[#allocation2 + $0x2e8] sm:$0xff] %v1367
        %1600 = vst [vmem:[#allocation2 + $0x2f0] sm:$0xff] %v1372
        %1601 = vst [vmem:[#allocation2 + $0x2f8] sm:$0xff] %v1375
        %1602 = vst [vmem:[#allocation2 + $0x300] sm:$0xff] %v1380
        %1603 = vst [vmem:[#allocation2 + $0x308] sm:$0xff] %v1383
        %1604 = vst [vmem:[#allocation2 + $0x310] sm:$0xff] %v1388
        %1605 = vst [vmem:[#allocation2 + $0x318] sm:$0xff] %v1391
        %1606 = vst [vmem:[#allocation2 + $0x320] sm:$0xff] %v1396
        %1607 = vst [vmem:[#allocation2 + $0x328] sm:$0xff] %v1399
        %1608 = vst [vmem:[#allocation2 + $0x330] sm:$0xff] %v1404
        %1609 = vst [vmem:[#allocation2 + $0x338] sm:$0xff] %v1407
        %1610 = vst [vmem:[#allocation2 + $0x340] sm:$0xff] %v1412
        %1611 = vst [vmem:[#allocation2 + $0x348] sm:$0xff] %v1415
        %1612 = vst [vmem:[#allocation2 + $0x350] sm:$0xff] %v1420
        %1613 = vst [vmem:[#allocation2 + $0x358] sm:$0xff] %v1423
        %1614 = vst [vmem:[#allocation2 + $0x360] sm:$0xff] %v1428
        %1615 = vst [vmem:[#allocation2 + $0x368] sm:$0xff] %v1431
        %1616 = vst [vmem:[#allocation2 + $0x370] sm:$0xff] %v1436
        %1617 = vst [vmem:[#allocation2 + $0x378] sm:$0xff] %v1439
        %1618 = vst [vmem:[#allocation2 + $0x380] sm:$0xff] %v1444
        %1619 = vst [vmem:[#allocation2 + $0x388] sm:$0xff] %v1447
        %1620 = vst [vmem:[#allocation2 + $0x390] sm:$0xff] %v1452
        %1621 = vst [vmem:[#allocation2 + $0x398] sm:$0xff] %v1455
        %1622 = vst [vmem:[#allocation2 + $0x3a0] sm:$0xff] %v1460
        %1623 = vst [vmem:[#allocation2 + $0x3a8] sm:$0xff] %v1463
        %1624 = vst [vmem:[#allocation2 + $0x3b0] sm:$0xff] %v1468
        %1625 = vst [vmem:[#allocation2 + $0x3b8] sm:$0xff] %v1471
        %1626 = vst [vmem:[#allocation2 + $0x3c0] sm:$0xff] %v1476
        %1627 = vst [vmem:[#allocation2 + $0x3c8] sm:$0xff] %v1479
        %1628 = vst [vmem:[#allocation2 + $0x3d0] sm:$0xff] %v1484
        %1629 = vst [vmem:[#allocation2 + $0x3d8] sm:$0xff] %v1487
        %1630 = vst [vmem:[#allocation2 + $0x3e0] sm:$0xff] %v1492
        %1631 = vst [vmem:[#allocation2 + $0x3e8] sm:$0xff] %v1495
        %1632 = vst [vmem:[#allocation2 + $0x3f0] sm:$0xff] %v1500
        %1633 = vst [vmem:[#allocation2 + $0x3f8] sm:$0xff] %v1503
        %v1634 = vld [vmem:[#allocation2] ss:$2 sm:$0xff]
        %s1635 = scalar_lea.vmem [#allocation2], 16
        %v1636 = vld [vmem:[%s1635] ss:$2 sm:$0xff]
        %s1637 = scalar_lea.vmem [#allocation2], 32
        %v1638 = vld [vmem:[%s1637] ss:$2 sm:$0xff]
        %s1639 = scalar_lea.vmem [#allocation2], 48
        %v1640 = vld [vmem:[%s1639] ss:$2 sm:$0xff]
        %s1641 = scalar_lea.vmem [#allocation2], 64
        %v1642 = vld [vmem:[%s1641] ss:$2 sm:$0xff]
        %s1643 = scalar_lea.vmem [#allocation2], 80
        %v1644 = vld [vmem:[%s1643] ss:$2 sm:$0xff]
        %s1645 = scalar_lea.vmem [#allocation2], 96
        %v1646 = vld [vmem:[%s1645] ss:$2 sm:$0xff]
        %s1647 = scalar_lea.vmem [#allocation2], 112
        %v1648 = vld [vmem:[%s1647] ss:$2 sm:$0xff]
        %s1649 = scalar_lea.vmem [#allocation2], 128
        %v1650 = vld [vmem:[%s1649] ss:$2 sm:$0xff]
        %s1651 = scalar_lea.vmem [#allocation2], 144
        %v1652 = vld [vmem:[%s1651] ss:$2 sm:$0xff]
        %s1653 = scalar_lea.vmem [#allocation2], 160
        %v1654 = vld [vmem:[%s1653] ss:$2 sm:$0xff]
        %s1655 = scalar_lea.vmem [#allocation2], 176
        %v1656 = vld [vmem:[%s1655] ss:$2 sm:$0xff]
        %s1657 = scalar_lea.vmem [#allocation2], 192
        %v1658 = vld [vmem:[%s1657] ss:$2 sm:$0xff]
        %s1659 = scalar_lea.vmem [#allocation2], 208
        %v1660 = vld [vmem:[%s1659] ss:$2 sm:$0xff]
        %s1661 = scalar_lea.vmem [#allocation2], 224
        %v1662 = vld [vmem:[%s1661] ss:$2 sm:$0xff]
        %s1663 = scalar_lea.vmem [#allocation2], 240
        %v1664 = vld [vmem:[%s1663] ss:$2 sm:$0xff]
        %s1665 = scalar_lea.vmem [#allocation2], 256
        %v1666 = vld [vmem:[%s1665] ss:$2 sm:$0xff]
        %s1667 = scalar_lea.vmem [#allocation2], 272
        %v1668 = vld [vmem:[%s1667] ss:$2 sm:$0xff]
        %s1669 = scalar_lea.vmem [#allocation2], 288
        %v1670 = vld [vmem:[%s1669] ss:$2 sm:$0xff]
        %s1671 = scalar_lea.vmem [#allocation2], 304
        %v1672 = vld [vmem:[%s1671] ss:$2 sm:$0xff]
        %s1673 = scalar_lea.vmem [#allocation2], 320
        %v1674 = vld [vmem:[%s1673] ss:$2 sm:$0xff]
        %s1675 = scalar_lea.vmem [#allocation2], 336
        %v1676 = vld [vmem:[%s1675] ss:$2 sm:$0xff]
        %s1677 = scalar_lea.vmem [#allocation2], 352
        %v1678 = vld [vmem:[%s1677] ss:$2 sm:$0xff]
        %s1679 = scalar_lea.vmem [#allocation2], 368
        %v1680 = vld [vmem:[%s1679] ss:$2 sm:$0xff]
        %s1681 = scalar_lea.vmem [#allocation2], 384
        %v1682 = vld [vmem:[%s1681] ss:$2 sm:$0xff]
        %s1683 = scalar_lea.vmem [#allocation2], 400
        %v1684 = vld [vmem:[%s1683] ss:$2 sm:$0xff]
        %s1685 = scalar_lea.vmem [#allocation2], 416
        %v1686 = vld [vmem:[%s1685] ss:$2 sm:$0xff]
        %s1687 = scalar_lea.vmem [#allocation2], 432
        %v1688 = vld [vmem:[%s1687] ss:$2 sm:$0xff]
        %s1689 = scalar_lea.vmem [#allocation2], 448
        %v1690 = vld [vmem:[%s1689] ss:$2 sm:$0xff]
        %s1691 = scalar_lea.vmem [#allocation2], 464
        %v1692 = vld [vmem:[%s1691] ss:$2 sm:$0xff]
        %s1693 = scalar_lea.vmem [#allocation2], 480
        %v1694 = vld [vmem:[%s1693] ss:$2 sm:$0xff]
        %s1695 = scalar_lea.vmem [#allocation2], 496
        %v1696 = vld [vmem:[%s1695] ss:$2 sm:$0xff]
        %s1697 = scalar_lea.vmem [#allocation2], 512
        %v1698 = vld [vmem:[%s1697] ss:$2 sm:$0xff]
        %s1699 = scalar_lea.vmem [#allocation2], 528
        %v1700 = vld [vmem:[%s1699] ss:$2 sm:$0xff]
        %s1701 = scalar_lea.vmem [#allocation2], 544
        %v1702 = vld [vmem:[%s1701] ss:$2 sm:$0xff]
        %s1703 = scalar_lea.vmem [#allocation2], 560
        %v1704 = vld [vmem:[%s1703] ss:$2 sm:$0xff]
        %s1705 = scalar_lea.vmem [#allocation2], 576
        %v1706 = vld [vmem:[%s1705] ss:$2 sm:$0xff]
        %s1707 = scalar_lea.vmem [#allocation2], 592
        %v1708 = vld [vmem:[%s1707] ss:$2 sm:$0xff]
        %s1709 = scalar_lea.vmem [#allocation2], 608
        %v1710 = vld [vmem:[%s1709] ss:$2 sm:$0xff]
        %s1711 = scalar_lea.vmem [#allocation2], 624
        %v1712 = vld [vmem:[%s1711] ss:$2 sm:$0xff]
        %s1713 = scalar_lea.vmem [#allocation2], 640
        %v1714 = vld [vmem:[%s1713] ss:$2 sm:$0xff]
        %s1715 = scalar_lea.vmem [#allocation2], 656
        %v1716 = vld [vmem:[%s1715] ss:$2 sm:$0xff]
        %s1717 = scalar_lea.vmem [#allocation2], 672
        %v1718 = vld [vmem:[%s1717] ss:$2 sm:$0xff]
        %s1719 = scalar_lea.vmem [#allocation2], 688
        %v1720 = vld [vmem:[%s1719] ss:$2 sm:$0xff]
        %s1721 = scalar_lea.vmem [#allocation2], 704
        %v1722 = vld [vmem:[%s1721] ss:$2 sm:$0xff]
        %s1723 = scalar_lea.vmem [#allocation2], 720
        %v1724 = vld [vmem:[%s1723] ss:$2 sm:$0xff]
        %s1725 = scalar_lea.vmem [#allocation2], 736
        %v1726 = vld [vmem:[%s1725] ss:$2 sm:$0xff]
        %s1727 = scalar_lea.vmem [#allocation2], 752
        %v1728 = vld [vmem:[%s1727] ss:$2 sm:$0xff]
        %s1729 = scalar_lea.vmem [#allocation2], 768
        %v1730 = vld [vmem:[%s1729] ss:$2 sm:$0xff]
        %s1731 = scalar_lea.vmem [#allocation2], 784
        %v1732 = vld [vmem:[%s1731] ss:$2 sm:$0xff]
        %s1733 = scalar_lea.vmem [#allocation2], 800
        %v1734 = vld [vmem:[%s1733] ss:$2 sm:$0xff]
        %s1735 = scalar_lea.vmem [#allocation2], 816
        %v1736 = vld [vmem:[%s1735] ss:$2 sm:$0xff]
        %s1737 = scalar_lea.vmem [#allocation2], 832
        %v1738 = vld [vmem:[%s1737] ss:$2 sm:$0xff]
        %s1739 = scalar_lea.vmem [#allocation2], 848
        %v1740 = vld [vmem:[%s1739] ss:$2 sm:$0xff]
        %s1741 = scalar_lea.vmem [#allocation2], 864
        %v1742 = vld [vmem:[%s1741] ss:$2 sm:$0xff]
        %s1743 = scalar_lea.vmem [#allocation2], 880
        %v1744 = vld [vmem:[%s1743] ss:$2 sm:$0xff]
        %s1745 = scalar_lea.vmem [#allocation2], 896
        %v1746 = vld [vmem:[%s1745] ss:$2 sm:$0xff]
        %s1747 = scalar_lea.vmem [#allocation2], 912
        %v1748 = vld [vmem:[%s1747] ss:$2 sm:$0xff]
        %s1749 = scalar_lea.vmem [#allocation2], 928
        %v1750 = vld [vmem:[%s1749] ss:$2 sm:$0xff]
        %s1751 = scalar_lea.vmem [#allocation2], 944
        %v1752 = vld [vmem:[%s1751] ss:$2 sm:$0xff]
        %s1753 = scalar_lea.vmem [#allocation2], 960
        %v1754 = vld [vmem:[%s1753] ss:$2 sm:$0xff]
        %s1755 = scalar_lea.vmem [#allocation2], 976
        %v1756 = vld [vmem:[%s1755] ss:$2 sm:$0xff]
        %s1757 = scalar_lea.vmem [#allocation2], 992
        %v1758 = vld [vmem:[%s1757] ss:$2 sm:$0xff]
        %s1759 = scalar_lea.vmem [#allocation2], 1008
        %v1760 = vld [vmem:[%s1759] ss:$2 sm:$0xff]
        %s1761 = scalar_lea.vmem [#allocation2], 1
        %v1762 = vld [vmem:[%s1761] ss:$2 sm:$0xff]
        %s1763 = scalar_lea.vmem [#allocation2], 17
        %v1764 = vld [vmem:[%s1763] ss:$2 sm:$0xff]
        %s1765 = scalar_lea.vmem [#allocation2], 33
        %v1766 = vld [vmem:[%s1765] ss:$2 sm:$0xff]
        %s1767 = scalar_lea.vmem [#allocation2], 49
        %v1768 = vld [vmem:[%s1767] ss:$2 sm:$0xff]
        %s1769 = scalar_lea.vmem [#allocation2], 65
        %v1770 = vld [vmem:[%s1769] ss:$2 sm:$0xff]
        %s1771 = scalar_lea.vmem [#allocation2], 81
        %v1772 = vld [vmem:[%s1771] ss:$2 sm:$0xff]
        %s1773 = scalar_lea.vmem [#allocation2], 97
        %v1774 = vld [vmem:[%s1773] ss:$2 sm:$0xff]
        %s1775 = scalar_lea.vmem [#allocation2], 113
        %v1776 = vld [vmem:[%s1775] ss:$2 sm:$0xff]
        %s1777 = scalar_lea.vmem [#allocation2], 129
        %v1778 = vld [vmem:[%s1777] ss:$2 sm:$0xff]
        %s1779 = scalar_lea.vmem [#allocation2], 145
        %v1780 = vld [vmem:[%s1779] ss:$2 sm:$0xff]
        %s1781 = scalar_lea.vmem [#allocation2], 161
        %v1782 = vld [vmem:[%s1781] ss:$2 sm:$0xff]
        %s1783 = scalar_lea.vmem [#allocation2], 177
        %v1784 = vld [vmem:[%s1783] ss:$2 sm:$0xff]
        %s1785 = scalar_lea.vmem [#allocation2], 193
        %v1786 = vld [vmem:[%s1785] ss:$2 sm:$0xff]
        %s1787 = scalar_lea.vmem [#allocation2], 209
        %v1788 = vld [vmem:[%s1787] ss:$2 sm:$0xff]
        %s1789 = scalar_lea.vmem [#allocation2], 225
        %v1790 = vld [vmem:[%s1789] ss:$2 sm:$0xff]
        %s1791 = scalar_lea.vmem [#allocation2], 241
        %v1792 = vld [vmem:[%s1791] ss:$2 sm:$0xff]
        %s1793 = scalar_lea.vmem [#allocation2], 257
        %v1794 = vld [vmem:[%s1793] ss:$2 sm:$0xff]
        %s1795 = scalar_lea.vmem [#allocation2], 273
        %v1796 = vld [vmem:[%s1795] ss:$2 sm:$0xff]
        %s1797 = scalar_lea.vmem [#allocation2], 289
        %v1798 = vld [vmem:[%s1797] ss:$2 sm:$0xff]
        %s1799 = scalar_lea.vmem [#allocation2], 305
        %v1800 = vld [vmem:[%s1799] ss:$2 sm:$0xff]
        %s1801 = scalar_lea.vmem [#allocation2], 321
        %v1802 = vld [vmem:[%s1801] ss:$2 sm:$0xff]
        %s1803 = scalar_lea.vmem [#allocation2], 337
        %v1804 = vld [vmem:[%s1803] ss:$2 sm:$0xff]
        %s1805 = scalar_lea.vmem [#allocation2], 353
        %v1806 = vld [vmem:[%s1805] ss:$2 sm:$0xff]
        %s1807 = scalar_lea.vmem [#allocation2], 369
        %v1808 = vld [vmem:[%s1807] ss:$2 sm:$0xff]
        %s1809 = scalar_lea.vmem [#allocation2], 385
        %v1810 = vld [vmem:[%s1809] ss:$2 sm:$0xff]
        %s1811 = scalar_lea.vmem [#allocation2], 401
        %v1812 = vld [vmem:[%s1811] ss:$2 sm:$0xff]
        %s1813 = scalar_lea.vmem [#allocation2], 417
        %v1814 = vld [vmem:[%s1813] ss:$2 sm:$0xff]
        %s1815 = scalar_lea.vmem [#allocation2], 433
        %v1816 = vld [vmem:[%s1815] ss:$2 sm:$0xff]
        %s1817 = scalar_lea.vmem [#allocation2], 449
        %v1818 = vld [vmem:[%s1817] ss:$2 sm:$0xff]
        %s1819 = scalar_lea.vmem [#allocation2], 465
        %v1820 = vld [vmem:[%s1819] ss:$2 sm:$0xff]
        %s1821 = scalar_lea.vmem [#allocation2], 481
        %v1822 = vld [vmem:[%s1821] ss:$2 sm:$0xff]
        %s1823 = scalar_lea.vmem [#allocation2], 497
        %v1824 = vld [vmem:[%s1823] ss:$2 sm:$0xff]
        %s1825 = scalar_lea.vmem [#allocation2], 513
        %v1826 = vld [vmem:[%s1825] ss:$2 sm:$0xff]
        %s1827 = scalar_lea.vmem [#allocation2], 529
        %v1828 = vld [vmem:[%s1827] ss:$2 sm:$0xff]
        %s1829 = scalar_lea.vmem [#allocation2], 545
        %v1830 = vld [vmem:[%s1829] ss:$2 sm:$0xff]
        %s1831 = scalar_lea.vmem [#allocation2], 561
        %v1832 = vld [vmem:[%s1831] ss:$2 sm:$0xff]
        %s1833 = scalar_lea.vmem [#allocation2], 577
        %v1834 = vld [vmem:[%s1833] ss:$2 sm:$0xff]
        %s1835 = scalar_lea.vmem [#allocation2], 593
        %v1836 = vld [vmem:[%s1835] ss:$2 sm:$0xff]
        %s1837 = scalar_lea.vmem [#allocation2], 609
        %v1838 = vld [vmem:[%s1837] ss:$2 sm:$0xff]
        %s1839 = scalar_lea.vmem [#allocation2], 625
        %v1840 = vld [vmem:[%s1839] ss:$2 sm:$0xff]
        %s1841 = scalar_lea.vmem [#allocation2], 641
        %v1842 = vld [vmem:[%s1841] ss:$2 sm:$0xff]
        %s1843 = scalar_lea.vmem [#allocation2], 657
        %v1844 = vld [vmem:[%s1843] ss:$2 sm:$0xff]
        %s1845 = scalar_lea.vmem [#allocation2], 673
        %v1846 = vld [vmem:[%s1845] ss:$2 sm:$0xff]
        %s1847 = scalar_lea.vmem [#allocation2], 689
        %v1848 = vld [vmem:[%s1847] ss:$2 sm:$0xff]
        %s1849 = scalar_lea.vmem [#allocation2], 705
        %v1850 = vld [vmem:[%s1849] ss:$2 sm:$0xff]
        %s1851 = scalar_lea.vmem [#allocation2], 721
        %v1852 = vld [vmem:[%s1851] ss:$2 sm:$0xff]
        %s1853 = scalar_lea.vmem [#allocation2], 737
        %v1854 = vld [vmem:[%s1853] ss:$2 sm:$0xff]
        %s1855 = scalar_lea.vmem [#allocation2], 753
        %v1856 = vld [vmem:[%s1855] ss:$2 sm:$0xff]
        %s1857 = scalar_lea.vmem [#allocation2], 769
        %v1858 = vld [vmem:[%s1857] ss:$2 sm:$0xff]
        %s1859 = scalar_lea.vmem [#allocation2], 785
        %v1860 = vld [vmem:[%s1859] ss:$2 sm:$0xff]
        %s1861 = scalar_lea.vmem [#allocation2], 801
        %v1862 = vld [vmem:[%s1861] ss:$2 sm:$0xff]
        %s1863 = scalar_lea.vmem [#allocation2], 817
        %v1864 = vld [vmem:[%s1863] ss:$2 sm:$0xff]
        %s1865 = scalar_lea.vmem [#allocation2], 833
        %v1866 = vld [vmem:[%s1865] ss:$2 sm:$0xff]
        %s1867 = scalar_lea.vmem [#allocation2], 849
        %v1868 = vld [vmem:[%s1867] ss:$2 sm:$0xff]
        %s1869 = scalar_lea.vmem [#allocation2], 865
        %v1870 = vld [vmem:[%s1869] ss:$2 sm:$0xff]
        %s1871 = scalar_lea.vmem [#allocation2], 881
        %v1872 = vld [vmem:[%s1871] ss:$2 sm:$0xff]
        %s1873 = scalar_lea.vmem [#allocation2], 897
        %v1874 = vld [vmem:[%s1873] ss:$2 sm:$0xff]
        %s1875 = scalar_lea.vmem [#allocation2], 913
        %v1876 = vld [vmem:[%s1875] ss:$2 sm:$0xff]
        %s1877 = scalar_lea.vmem [#allocation2], 929
        %v1878 = vld [vmem:[%s1877] ss:$2 sm:$0xff]
        %s1879 = scalar_lea.vmem [#allocation2], 945
        %v1880 = vld [vmem:[%s1879] ss:$2 sm:$0xff]
        %s1881 = scalar_lea.vmem [#allocation2], 961
        %v1882 = vld [vmem:[%s1881] ss:$2 sm:$0xff]
        %s1883 = scalar_lea.vmem [#allocation2], 977
        %v1884 = vld [vmem:[%s1883] ss:$2 sm:$0xff]
        %s1885 = scalar_lea.vmem [#allocation2], 993
        %v1886 = vld [vmem:[%s1885] ss:$2 sm:$0xff]
        %s1887 = scalar_lea.vmem [#allocation2], 1009
        %v1888 = vld [vmem:[%s1887] ss:$2 sm:$0xff]
        %v1889 = vmax.f32 %v1634, %v1762
        %v1890 = vmax.f32 %v1636, %v1764
        %v1891 = vmax.f32 %v1638, %v1766
        %v1892 = vmax.f32 %v1640, %v1768
        %v1893 = vmax.f32 %v1642, %v1770
        %v1894 = vmax.f32 %v1644, %v1772
        %v1895 = vmax.f32 %v1646, %v1774
        %v1896 = vmax.f32 %v1648, %v1776
        %v1897 = vmax.f32 %v1650, %v1778
        %v1898 = vmax.f32 %v1652, %v1780
        %v1899 = vmax.f32 %v1654, %v1782
        %v1900 = vmax.f32 %v1656, %v1784
        %v1901 = vmax.f32 %v1658, %v1786
        %v1902 = vmax.f32 %v1660, %v1788
        %v1903 = vmax.f32 %v1662, %v1790
        %v1904 = vmax.f32 %v1664, %v1792
        %v1905 = vmax.f32 %v1666, %v1794
        %v1906 = vmax.f32 %v1668, %v1796
        %v1907 = vmax.f32 %v1670, %v1798
        %v1908 = vmax.f32 %v1672, %v1800
        %v1909 = vmax.f32 %v1674, %v1802
        %v1910 = vmax.f32 %v1676, %v1804
        %v1911 = vmax.f32 %v1678, %v1806
        %v1912 = vmax.f32 %v1680, %v1808
        %v1913 = vmax.f32 %v1682, %v1810
        %v1914 = vmax.f32 %v1684, %v1812
        %v1915 = vmax.f32 %v1686, %v1814
        %v1916 = vmax.f32 %v1688, %v1816
        %v1917 = vmax.f32 %v1690, %v1818
        %v1918 = vmax.f32 %v1692, %v1820
        %v1919 = vmax.f32 %v1694, %v1822
        %v1920 = vmax.f32 %v1696, %v1824
        %v1921 = vmax.f32 %v1698, %v1826
        %v1922 = vmax.f32 %v1700, %v1828
        %v1923 = vmax.f32 %v1702, %v1830
        %v1924 = vmax.f32 %v1704, %v1832
        %v1925 = vmax.f32 %v1706, %v1834
        %v1926 = vmax.f32 %v1708, %v1836
        %v1927 = vmax.f32 %v1710, %v1838
        %v1928 = vmax.f32 %v1712, %v1840
        %v1929 = vmax.f32 %v1714, %v1842
        %v1930 = vmax.f32 %v1716, %v1844
        %v1931 = vmax.f32 %v1718, %v1846
        %v1932 = vmax.f32 %v1720, %v1848
        %v1933 = vmax.f32 %v1722, %v1850
        %v1934 = vmax.f32 %v1724, %v1852
        %v1935 = vmax.f32 %v1726, %v1854
        %v1936 = vmax.f32 %v1728, %v1856
        %v1937 = vmax.f32 %v1730, %v1858
        %v1938 = vmax.f32 %v1732, %v1860
        %v1939 = vmax.f32 %v1734, %v1862
        %v1940 = vmax.f32 %v1736, %v1864
        %v1941 = vmax.f32 %v1738, %v1866
        %v1942 = vmax.f32 %v1740, %v1868
        %v1943 = vmax.f32 %v1742, %v1870
        %v1944 = vmax.f32 %v1744, %v1872
        %v1945 = vmax.f32 %v1746, %v1874
        %v1946 = vmax.f32 %v1748, %v1876
        %v1947 = vmax.f32 %v1750, %v1878
        %v1948 = vmax.f32 %v1752, %v1880
        %v1949 = vmax.f32 %v1754, %v1882
        %v1950 = vmax.f32 %v1756, %v1884
        %v1951 = vmax.f32 %v1758, %v1886
        %v1952 = vmax.f32 %v1760, %v1888
        %v1953 = vmax.f32 %v1889, %v1891
        %v1954 = vmax.f32 %v1890, %v1892
        %v1955 = vmax.f32 %v1893, %v1895
        %v1956 = vmax.f32 %v1894, %v1896
        %v1957 = vmax.f32 %v1897, %v1899
        %v1958 = vmax.f32 %v1898, %v1900
        %v1959 = vmax.f32 %v1901, %v1903
        %v1960 = vmax.f32 %v1902, %v1904
        %v1961 = vmax.f32 %v1905, %v1907
        %v1962 = vmax.f32 %v1906, %v1908
        %v1963 = vmax.f32 %v1909, %v1911
        %v1964 = vmax.f32 %v1910, %v1912
        %v1965 = vmax.f32 %v1913, %v1915
        %v1966 = vmax.f32 %v1914, %v1916
        %v1967 = vmax.f32 %v1917, %v1919
        %v1968 = vmax.f32 %v1918, %v1920
        %v1969 = vmax.f32 %v1921, %v1923
        %v1970 = vmax.f32 %v1922, %v1924
        %v1971 = vmax.f32 %v1925, %v1927
        %v1972 = vmax.f32 %v1926, %v1928
        %v1973 = vmax.f32 %v1929, %v1931
        %v1974 = vmax.f32 %v1930, %v1932
        %v1975 = vmax.f32 %v1933, %v1935
        %v1976 = vmax.f32 %v1934, %v1936
        %v1977 = vmax.f32 %v1937, %v1939
        %v1978 = vmax.f32 %v1938, %v1940
        %v1979 = vmax.f32 %v1941, %v1943
        %v1980 = vmax.f32 %v1942, %v1944
        %v1981 = vmax.f32 %v1945, %v1947
        %v1982 = vmax.f32 %v1946, %v1948
        %v1983 = vmax.f32 %v1949, %v1951
        %v1984 = vmax.f32 %v1950, %v1952
        %v1985 = vld [vmem:[%s2] sm:$0x1]
        %v1987 = vlaneseq
        %v1988 = vshrl.u32 %v1987, 7
        %v1989 = vsub.s32 0, %v1988
        %v1990 = vrot.slane %v1985, %v1989
        %v1992 = vadd.f32 %v1953, %v1990
        %v1993 = vadd.f32 %v1954, %v1990
        %v1994 = vadd.f32 %v1955, %v1990
        %v1995 = vadd.f32 %v1956, %v1990
        %v1996 = vadd.f32 %v1957, %v1990
        %v1997 = vadd.f32 %v1958, %v1990
        %v1998 = vadd.f32 %v1959, %v1990
        %v1999 = vadd.f32 %v1960, %v1990
        %v2000 = vadd.f32 %v1961, %v1990
        %v2001 = vadd.f32 %v1962, %v1990
        %v2002 = vadd.f32 %v1963, %v1990
        %v2003 = vadd.f32 %v1964, %v1990
        %v2004 = vadd.f32 %v1965, %v1990
        %v2005 = vadd.f32 %v1966, %v1990
        %v2006 = vadd.f32 %v1967, %v1990
        %v2007 = vadd.f32 %v1968, %v1990
        %v2008 = vadd.f32 %v1969, %v1990
        %v2009 = vadd.f32 %v1970, %v1990
        %v2010 = vadd.f32 %v1971, %v1990
        %v2011 = vadd.f32 %v1972, %v1990
        %v2012 = vadd.f32 %v1973, %v1990
        %v2013 = vadd.f32 %v1974, %v1990
        %v2014 = vadd.f32 %v1975, %v1990
        %v2015 = vadd.f32 %v1976, %v1990
        %v2016 = vadd.f32 %v1977, %v1990
        %v2017 = vadd.f32 %v1978, %v1990
        %v2018 = vadd.f32 %v1979, %v1990
        %v2019 = vadd.f32 %v1980, %v1990
        %v2020 = vadd.f32 %v1981, %v1990
        %v2021 = vadd.f32 %v1982, %v1990
        %v2022 = vadd.f32 %v1983, %v1990
        %v2023 = vadd.f32 %v1984, %v1990
        %v2024 = vmax.f32 %v1992, 0.0
        %v2025 = vmax.f32 %v1993, 0.0
        %v2026 = vmax.f32 %v1994, 0.0
        %v2027 = vmax.f32 %v1995, 0.0
        %v2028 = vmax.f32 %v1996, 0.0
        %v2029 = vmax.f32 %v1997, 0.0
        %v2030 = vmax.f32 %v1998, 0.0
        %v2031 = vmax.f32 %v1999, 0.0
        %v2032 = vmax.f32 %v2000, 0.0
        %v2033 = vmax.f32 %v2001, 0.0
        %v2034 = vmax.f32 %v2002, 0.0
        %v2035 = vmax.f32 %v2003, 0.0
        %v2036 = vmax.f32 %v2004, 0.0
        %v2037 = vmax.f32 %v2005, 0.0
        %v2038 = vmax.f32 %v2006, 0.0
        %v2039 = vmax.f32 %v2007, 0.0
        %v2040 = vmax.f32 %v2008, 0.0
        %v2041 = vmax.f32 %v2009, 0.0
        %v2042 = vmax.f32 %v2010, 0.0
        %v2043 = vmax.f32 %v2011, 0.0
        %v2044 = vmax.f32 %v2012, 0.0
        %v2045 = vmax.f32 %v2013, 0.0
        %v2046 = vmax.f32 %v2014, 0.0
        %v2047 = vmax.f32 %v2015, 0.0
        %v2048 = vmax.f32 %v2016, 0.0
        %v2049 = vmax.f32 %v2017, 0.0
        %v2050 = vmax.f32 %v2018, 0.0
        %v2051 = vmax.f32 %v2019, 0.0
        %v2052 = vmax.f32 %v2020, 0.0
        %v2053 = vmax.f32 %v2021, 0.0
        %v2054 = vmax.f32 %v2022, 0.0
        %v2055 = vmax.f32 %v2023, 0.0
        %vm2056 = vcmask 130048
        %2057 = vst.msk [vmem:[#allocation3] sm:$0xff] %vm2056, 0.0
        %2058 = vst.msk [vmem:[#allocation3 + $0x8] sm:$0xff] %vm2056, 0.0
        %vm2059 = vcmask 123904
        %2060 = vst.msk [vmem:[#allocation3 + $0x10] sm:$0x3] %vm2059, 0.0
        %2061 = vst.msk [vmem:[#allocation3 + $0x18] sm:$0xff] %vm2056, 0.0
        %2062 = vst.msk [vmem:[#allocation3 + $0x20] sm:$0xff] %vm2056, 0.0
        %2063 = vst.msk [vmem:[#allocation3 + $0x28] sm:$0x3] %vm2059, 0.0
        %2064 = vst.msk [vmem:[#allocation3 + $0x30] sm:$0xff] %vm2056, 0.0
        %2065 = vst.msk [vmem:[#allocation3 + $0x38] sm:$0xff] %vm2056, 0.0
        %2066 = vst.msk [vmem:[#allocation3 + $0x40] sm:$0x3] %vm2059, 0.0
        %2067 = vst.msk [vmem:[#allocation3 + $0x48] sm:$0xff] %vm2056, 0.0
        %2068 = vst.msk [vmem:[#allocation3 + $0x50] sm:$0xff] %vm2056, 0.0
        %2069 = vst.msk [vmem:[#allocation3 + $0x58] sm:$0x3] %vm2059, 0.0
        %2070 = vst.msk [vmem:[#allocation3 + $0x60] sm:$0xff] %vm2056, 0.0
        %2071 = vst.msk [vmem:[#allocation3 + $0x68] sm:$0xff] %vm2056, 0.0
        %2072 = vst.msk [vmem:[#allocation3 + $0x70] sm:$0x3] %vm2059, 0.0
        %2073 = vst.msk [vmem:[#allocation3 + $0x78] sm:$0xff] %vm2056, 0.0
        %2074 = vst.msk [vmem:[#allocation3 + $0x80] sm:$0xff] %vm2056, 0.0
        %2075 = vst.msk [vmem:[#allocation3 + $0x88] sm:$0x3] %vm2059, 0.0
        %2076 = vst.msk [vmem:[#allocation3 + $0x90] sm:$0xff] %vm2056, 0.0
        %2077 = vst.msk [vmem:[#allocation3 + $0x98] sm:$0xff] %vm2056, 0.0
        %2078 = vst.msk [vmem:[#allocation3 + $0xa0] sm:$0x3] %vm2059, 0.0
        %2079 = vst.msk [vmem:[#allocation3 + $0xa8] sm:$0xff] %vm2056, 0.0
        %2080 = vst.msk [vmem:[#allocation3 + $0xb0] sm:$0xff] %vm2056, 0.0
        %2081 = vst.msk [vmem:[#allocation3 + $0xb8] sm:$0x3] %vm2059, 0.0
        %2082 = vst.msk [vmem:[#allocation3 + $0xc0] sm:$0xff] %vm2056, 0.0
        %2083 = vst.msk [vmem:[#allocation3 + $0xc8] sm:$0xff] %vm2056, 0.0
        %2084 = vst.msk [vmem:[#allocation3 + $0xd0] sm:$0x3] %vm2059, 0.0
        %2085 = vst.msk [vmem:[#allocation3 + $0xd8] sm:$0xff] %vm2056, 0.0
        %2086 = vst.msk [vmem:[#allocation3 + $0xe0] sm:$0xff] %vm2056, 0.0
        %2087 = vst.msk [vmem:[#allocation3 + $0xe8] sm:$0x3] %vm2059, 0.0
        %2088 = vst.msk [vmem:[#allocation3 + $0xf0] sm:$0xff] %vm2056, 0.0
        %2089 = vst.msk [vmem:[#allocation3 + $0xf8] sm:$0xff] %vm2056, 0.0
        %2090 = vst.msk [vmem:[#allocation3 + $0x100] sm:$0x3] %vm2059, 0.0
        %2091 = vst.msk [vmem:[#allocation3 + $0x108] sm:$0xff] %vm2056, 0.0
        %2092 = vst.msk [vmem:[#allocation3 + $0x110] sm:$0xff] %vm2056, 0.0
        %2093 = vst.msk [vmem:[#allocation3 + $0x118] sm:$0x3] %vm2059, 0.0
        %2094 = vst.msk [vmem:[#allocation3 + $0x120] sm:$0xff] %vm2056, 0.0
        %2095 = vst.msk [vmem:[#allocation3 + $0x128] sm:$0xff] %vm2056, 0.0
        %2096 = vst.msk [vmem:[#allocation3 + $0x130] sm:$0x3] %vm2059, 0.0
        %2097 = vst.msk [vmem:[#allocation3 + $0x138] sm:$0xff] %vm2056, 0.0
        %2098 = vst.msk [vmem:[#allocation3 + $0x140] sm:$0xff] %vm2056, 0.0
        %2099 = vst.msk [vmem:[#allocation3 + $0x148] sm:$0x3] %vm2059, 0.0
        %2100 = vst.msk [vmem:[#allocation3 + $0x150] sm:$0xff] %vm2056, 0.0
        %2101 = vst.msk [vmem:[#allocation3 + $0x158] sm:$0xff] %vm2056, 0.0
        %2102 = vst.msk [vmem:[#allocation3 + $0x160] sm:$0x3] %vm2059, 0.0
        %2103 = vst.msk [vmem:[#allocation3 + $0x168] sm:$0xff] %vm2056, 0.0
        %2104 = vst.msk [vmem:[#allocation3 + $0x170] sm:$0xff] %vm2056, 0.0
        %2105 = vst.msk [vmem:[#allocation3 + $0x178] sm:$0x3] %vm2059, 0.0
        %2106 = vst.msk [vmem:[#allocation3 + $0x180] sm:$0xff] %vm2056, 0.0
        %2107 = vst.msk [vmem:[#allocation3 + $0x188] sm:$0xff] %vm2056, 0.0
        %2108 = vst.msk [vmem:[#allocation3 + $0x190] sm:$0x3] %vm2059, 0.0
        %2109 = vst.msk [vmem:[#allocation3 + $0x198] sm:$0xff] %vm2056, 0.0
        %2110 = vst.msk [vmem:[#allocation3 + $0x1a0] sm:$0xff] %vm2056, 0.0
        %2111 = vst.msk [vmem:[#allocation3 + $0x1a8] sm:$0x3] %vm2059, 0.0
        %2112 = vst [vmem:[#allocation4] sm:$0xff] 0.0
        %2113 = vst [vmem:[#allocation4 + $0x8] sm:$0xff] 0.0
        %2114 = vst [vmem:[#allocation4 + $0x10] sm:$0xff] 0.0
        %2115 = vst [vmem:[#allocation4 + $0x18] sm:$0xff] 0.0
        %2116 = vst [vmem:[#allocation4 + $0x20] sm:$0xff] 0.0
        %2117 = vst [vmem:[#allocation4 + $0x28] sm:$0xff] 0.0
        %2118 = vst [vmem:[#allocation4 + $0x30] sm:$0xff] 0.0
        %2119 = vst [vmem:[#allocation4 + $0x38] sm:$0xff] 0.0
        %2120 = vst [vmem:[#allocation4 + $0x40] sm:$0xff] 0.0
        %2121 = vst [vmem:[#allocation4 + $0x48] sm:$0xff] 0.0
        %2122 = vst [vmem:[#allocation4 + $0x50] sm:$0xff] 0.0
        %2123 = vst [vmem:[#allocation4 + $0x58] sm:$0xff] 0.0
        %2124 = vst [vmem:[#allocation4 + $0x60] sm:$0xff] 0.0
        %2125 = vst [vmem:[#allocation4 + $0x68] sm:$0xff] 0.0
        %2126 = vst [vmem:[#allocation4 + $0x70] sm:$0xff] 0.0
        %2127 = vst [vmem:[#allocation4 + $0x78] sm:$0xff] 0.0
        %2128 = vst [vmem:[#allocation4 + $0x80] sm:$0xff] 0.0
        %2129 = vst [vmem:[#allocation4 + $0x88] sm:$0xff] 0.0
        %2130 = vst [vmem:[#allocation4 + $0x90] sm:$0xff] 0.0
        %2131 = vst [vmem:[#allocation4 + $0x98] sm:$0xff] 0.0
        %2132 = vst [vmem:[#allocation4 + $0xa0] sm:$0xff] 0.0
        %2133 = vst [vmem:[#allocation4 + $0xa8] sm:$0xff] 0.0
        %2134 = vst [vmem:[#allocation4 + $0xb0] sm:$0xff] 0.0
        %2135 = vst [vmem:[#allocation4 + $0xb8] sm:$0xff] 0.0
        %2136 = vst [vmem:[#allocation4 + $0xc0] sm:$0xff] 0.0
        %2137 = vst [vmem:[#allocation4 + $0xc8] sm:$0xff] 0.0
        %2138 = vst [vmem:[#allocation4 + $0xd0] sm:$0xff] 0.0
        %2139 = vst [vmem:[#allocation4 + $0xd8] sm:$0xff] 0.0
        %2140 = vst [vmem:[#allocation4 + $0xe0] sm:$0xff] 0.0
        %2141 = vst [vmem:[#allocation4 + $0xe8] sm:$0xff] 0.0
        %2142 = vst [vmem:[#allocation4 + $0xf0] sm:$0xff] 0.0
        %2143 = vst [vmem:[#allocation4 + $0xf8] sm:$0xff] 0.0
        %2144 = vst [vmem:[#allocation4 + $0x100] sm:$0xff] 0.0
        %2145 = vst [vmem:[#allocation4 + $0x108] sm:$0xff] 0.0
        %2146 = vst [vmem:[#allocation4 + $0x110] sm:$0xff] 0.0
        %2147 = vst [vmem:[#allocation4 + $0x118] sm:$0xff] 0.0
        %2148 = vst [vmem:[#allocation4 + $0x120] sm:$0xff] 0.0
        %2149 = vst [vmem:[#allocation4 + $0x128] sm:$0xff] 0.0
        %2150 = vst [vmem:[#allocation4 + $0x130] sm:$0xff] 0.0
        %2151 = vst [vmem:[#allocation4 + $0x138] sm:$0xff] 0.0
        %2152 = vst [vmem:[#allocation4 + $0x140] sm:$0xff] 0.0
        %2153 = vst [vmem:[#allocation4 + $0x148] sm:$0xff] 0.0
        %2154 = vst [vmem:[#allocation4 + $0x150] sm:$0xff] 0.0
        %2155 = vst [vmem:[#allocation4 + $0x158] sm:$0xff] 0.0
        %2156 = vst [vmem:[#allocation4 + $0x160] sm:$0xff] 0.0
        %2157 = vst [vmem:[#allocation4 + $0x168] sm:$0xff] 0.0
        %2158 = vst [vmem:[#allocation4 + $0x170] sm:$0xff] 0.0
        %2159 = vst [vmem:[#allocation4 + $0x178] sm:$0xff] 0.0
        %2160 = vst [vmem:[#allocation4 + $0x180] sm:$0xff] 0.0
        %2161 = vst [vmem:[#allocation4 + $0x188] sm:$0xff] 0.0
        %2162 = vst [vmem:[#allocation4 + $0x190] sm:$0xff] 0.0
        %2163 = vst [vmem:[#allocation4 + $0x198] sm:$0xff] 0.0
        %2164 = vst [vmem:[#allocation4 + $0x1a0] sm:$0xff] 0.0
        %2165 = vst [vmem:[#allocation4 + $0x1a8] sm:$0xff] 0.0
        %2166 = vst [vmem:[#allocation4 + $0x1b0] sm:$0xff] 0.0
        %2167 = vst [vmem:[#allocation4 + $0x1b8] sm:$0xff] 0.0
        %2168 = vst [vmem:[#allocation4 + $0x1c0] sm:$0xff] 0.0
        %2169 = vst [vmem:[#allocation4 + $0x1c8] sm:$0xff] 0.0
        %2170 = vst [vmem:[#allocation4 + $0x1d0] sm:$0xff] 0.0
        %2171 = vst [vmem:[#allocation4 + $0x1d8] sm:$0xff] 0.0
        %2172 = vst [vmem:[#allocation4 + $0x1e0] sm:$0xff] 0.0
        %2173 = vst [vmem:[#allocation4 + $0x1e8] sm:$0xff] 0.0
        %2174 = vst [vmem:[#allocation4 + $0x1f0] sm:$0xff] 0.0
        %2175 = vst [vmem:[#allocation4 + $0x1f8] sm:$0xff] 0.0
        %s2176 = scalar_lea.vmem [#allocation3], 24
        %2177 = vst.msk [vmem:[%s2176 + $0x1] sm:$0xff] %vm2056, %v2024
        %2178 = vst.msk [vmem:[%s2176 + $0x9] sm:$0xff] %vm2056, %v2025
        %2179 = vst.msk [vmem:[%s2176 + $0x19] sm:$0xff] %vm2056, %v2026
        %2180 = vst.msk [vmem:[%s2176 + $0x21] sm:$0xff] %vm2056, %v2027
        %2181 = vst.msk [vmem:[%s2176 + $0x31] sm:$0xff] %vm2056, %v2028
        %2182 = vst.msk [vmem:[%s2176 + $0x39] sm:$0xff] %vm2056, %v2029
        %2183 = vst.msk [vmem:[%s2176 + $0x49] sm:$0xff] %vm2056, %v2030
        %2184 = vst.msk [vmem:[%s2176 + $0x51] sm:$0xff] %vm2056, %v2031
        %2185 = vst.msk [vmem:[%s2176 + $0x61] sm:$0xff] %vm2056, %v2032
        %2186 = vst.msk [vmem:[%s2176 + $0x69] sm:$0xff] %vm2056, %v2033
        %2187 = vst.msk [vmem:[%s2176 + $0x79] sm:$0xff] %vm2056, %v2034
        %2188 = vst.msk [vmem:[%s2176 + $0x81] sm:$0xff] %vm2056, %v2035
        %2189 = vst.msk [vmem:[%s2176 + $0x91] sm:$0xff] %vm2056, %v2036
        %2190 = vst.msk [vmem:[%s2176 + $0x99] sm:$0xff] %vm2056, %v2037
        %2191 = vst.msk [vmem:[%s2176 + $0xa9] sm:$0xff] %vm2056, %v2038
        %2192 = vst.msk [vmem:[%s2176 + $0xb1] sm:$0xff] %vm2056, %v2039
        %2193 = vst.msk [vmem:[%s2176 + $0xc1] sm:$0xff] %vm2056, %v2040
        %2194 = vst.msk [vmem:[%s2176 + $0xc9] sm:$0xff] %vm2056, %v2041
        %2195 = vst.msk [vmem:[%s2176 + $0xd9] sm:$0xff] %vm2056, %v2042
        %2196 = vst.msk [vmem:[%s2176 + $0xe1] sm:$0xff] %vm2056, %v2043
        %2197 = vst.msk [vmem:[%s2176 + $0xf1] sm:$0xff] %vm2056, %v2044
        %2198 = vst.msk [vmem:[%s2176 + $0xf9] sm:$0xff] %vm2056, %v2045
        %2199 = vst.msk [vmem:[%s2176 + $0x109] sm:$0xff] %vm2056, %v2046
        %2200 = vst.msk [vmem:[%s2176 + $0x111] sm:$0xff] %vm2056, %v2047
        %2201 = vst.msk [vmem:[%s2176 + $0x121] sm:$0xff] %vm2056, %v2048
        %2202 = vst.msk [vmem:[%s2176 + $0x129] sm:$0xff] %vm2056, %v2049
        %2203 = vst.msk [vmem:[%s2176 + $0x139] sm:$0xff] %vm2056, %v2050
        %2204 = vst.msk [vmem:[%s2176 + $0x141] sm:$0xff] %vm2056, %v2051
        %2205 = vst.msk [vmem:[%s2176 + $0x151] sm:$0xff] %vm2056, %v2052
        %2206 = vst.msk [vmem:[%s2176 + $0x159] sm:$0xff] %vm2056, %v2053
        %2207 = vst.msk [vmem:[%s2176 + $0x169] sm:$0xff] %vm2056, %v2054
        %2208 = vst.msk [vmem:[%s2176 + $0x171] sm:$0xff] %vm2056, %v2055
        %v2209 = vld [vmem:[#allocation3] sm:$0xff]
        %v2210 = vld [vmem:[#allocation3 + $0x8] sm:$0xff]
        %v2211 = vld [vmem:[#allocation3 + $0x18] sm:$0xff]
        %v2212 = vld [vmem:[#allocation3 + $0x20] sm:$0xff]
        %v2213 = vld [vmem:[#allocation3 + $0x30] sm:$0xff]
        %v2214 = vld [vmem:[#allocation3 + $0x38] sm:$0xff]
        %v2215 = vld [vmem:[#allocation3 + $0x48] sm:$0xff]
        %v2216 = vld [vmem:[#allocation3 + $0x50] sm:$0xff]
        %v2217 = vld [vmem:[#allocation3 + $0x60] sm:$0xff]
        %v2218 = vld [vmem:[#allocation3 + $0x68] sm:$0xff]
        %v2219 = vld [vmem:[#allocation3 + $0x78] sm:$0xff]
        %v2220 = vld [vmem:[#allocation3 + $0x80] sm:$0xff]
        %v2221 = vld [vmem:[#allocation3 + $0x90] sm:$0xff]
        %v2222 = vld [vmem:[#allocation3 + $0x98] sm:$0xff]
        %v2223 = vld [vmem:[#allocation3 + $0xa8] sm:$0xff]
        %v2224 = vld [vmem:[#allocation3 + $0xb0] sm:$0xff]
        %v2225 = vld [vmem:[#allocation3 + $0xc0] sm:$0xff]
        %v2226 = vld [vmem:[#allocation3 + $0xc8] sm:$0xff]
        %v2227 = vld [vmem:[#allocation3 + $0xd8] sm:$0xff]
        %v2228 = vld [vmem:[#allocation3 + $0xe0] sm:$0xff]
        %v2229 = vld [vmem:[#allocation3 + $0xf0] sm:$0xff]
        %v2230 = vld [vmem:[#allocation3 + $0xf8] sm:$0xff]
        %v2231 = vld [vmem:[#allocation3 + $0x108] sm:$0xff]
        %v2232 = vld [vmem:[#allocation3 + $0x110] sm:$0xff]
        %v2233 = vld [vmem:[#allocation3 + $0x120] sm:$0xff]
        %v2234 = vld [vmem:[#allocation3 + $0x128] sm:$0xff]
        %v2235 = vld [vmem:[#allocation3 + $0x138] sm:$0xff]
        %v2236 = vld [vmem:[#allocation3 + $0x140] sm:$0xff]
        %v2237 = vld [vmem:[#allocation3 + $0x150] sm:$0xff]
        %v2238 = vld [vmem:[#allocation3 + $0x158] sm:$0xff]
        %v2239 = vld [vmem:[#allocation3 + $0x168] sm:$0xff]
        %v2240 = vld [vmem:[#allocation3 + $0x170] sm:$0xff]
        %2241 = vst.msk [vmem:[#allocation4] sm:$0xff] %vm2056, %v2209
        %2242 = vst.msk [vmem:[#allocation4 + $0x10] sm:$0xff] %vm2056, %v2210
        %2243 = vst.msk [vmem:[#allocation4 + $0x20] sm:$0xff] %vm2056, %v2211
        %2244 = vst.msk [vmem:[#allocation4 + $0x30] sm:$0xff] %vm2056, %v2212
        %2245 = vst.msk [vmem:[#allocation4 + $0x40] sm:$0xff] %vm2056, %v2213
        %2246 = vst.msk [vmem:[#allocation4 + $0x50] sm:$0xff] %vm2056, %v2214
        %2247 = vst.msk [vmem:[#allocation4 + $0x60] sm:$0xff] %vm2056, %v2215
        %2248 = vst.msk [vmem:[#allocation4 + $0x70] sm:$0xff] %vm2056, %v2216
        %2249 = vst.msk [vmem:[#allocation4 + $0x80] sm:$0xff] %vm2056, %v2217
        %2250 = vst.msk [vmem:[#allocation4 + $0x90] sm:$0xff] %vm2056, %v2218
        %2251 = vst.msk [vmem:[#allocation4 + $0xa0] sm:$0xff] %vm2056, %v2219
        %2252 = vst.msk [vmem:[#allocation4 + $0xb0] sm:$0xff] %vm2056, %v2220
        %2253 = vst.msk [vmem:[#allocation4 + $0xc0] sm:$0xff] %vm2056, %v2221
        %2254 = vst.msk [vmem:[#allocation4 + $0xd0] sm:$0xff] %vm2056, %v2222
        %2255 = vst.msk [vmem:[#allocation4 + $0xe0] sm:$0xff] %vm2056, %v2223
        %2256 = vst.msk [vmem:[#allocation4 + $0xf0] sm:$0xff] %vm2056, %v2224
        %2257 = vst.msk [vmem:[#allocation4 + $0x100] sm:$0xff] %vm2056, %v2225
        %2258 = vst.msk [vmem:[#allocation4 + $0x110] sm:$0xff] %vm2056, %v2226
        %2259 = vst.msk [vmem:[#allocation4 + $0x120] sm:$0xff] %vm2056, %v2227
        %2260 = vst.msk [vmem:[#allocation4 + $0x130] sm:$0xff] %vm2056, %v2228
        %2261 = vst.msk [vmem:[#allocation4 + $0x140] sm:$0xff] %vm2056, %v2229
        %2262 = vst.msk [vmem:[#allocation4 + $0x150] sm:$0xff] %vm2056, %v2230
        %2263 = vst.msk [vmem:[#allocation4 + $0x160] sm:$0xff] %vm2056, %v2231
        %2264 = vst.msk [vmem:[#allocation4 + $0x170] sm:$0xff] %vm2056, %v2232
        %2265 = vst.msk [vmem:[#allocation4 + $0x180] sm:$0xff] %vm2056, %v2233
        %2266 = vst.msk [vmem:[#allocation4 + $0x190] sm:$0xff] %vm2056, %v2234
        %2267 = vst.msk [vmem:[#allocation4 + $0x1a0] sm:$0xff] %vm2056, %v2235
        %2268 = vst.msk [vmem:[#allocation4 + $0x1b0] sm:$0xff] %vm2056, %v2236
        %2269 = vst.msk [vmem:[#allocation4 + $0x1c0] sm:$0xff] %vm2056, %v2237
        %2270 = vst.msk [vmem:[#allocation4 + $0x1d0] sm:$0xff] %vm2056, %v2238
        %2271 = vst.msk [vmem:[#allocation4 + $0x1e0] sm:$0xff] %vm2056, %v2239
        %2272 = vst.msk [vmem:[#allocation4 + $0x1f0] sm:$0xff] %vm2056, %v2240
        %v2273 = vld [vmem:[#allocation3 + $0x1] sm:$0xff]
        %v2274 = vld [vmem:[#allocation3 + $0x9] sm:$0xff]
        %v2275 = vld [vmem:[#allocation3 + $0x19] sm:$0xff]
        %v2276 = vld [vmem:[#allocation3 + $0x21] sm:$0xff]
        %v2277 = vld [vmem:[#allocation3 + $0x31] sm:$0xff]
        %v2278 = vld [vmem:[#allocation3 + $0x39] sm:$0xff]
        %v2279 = vld [vmem:[#allocation3 + $0x49] sm:$0xff]
        %v2280 = vld [vmem:[#allocation3 + $0x51] sm:$0xff]
        %v2281 = vld [vmem:[#allocation3 + $0x61] sm:$0xff]
        %v2282 = vld [vmem:[#allocation3 + $0x69] sm:$0xff]
        %v2283 = vld [vmem:[#allocation3 + $0x79] sm:$0xff]
        %v2284 = vld [vmem:[#allocation3 + $0x81] sm:$0xff]
        %v2285 = vld [vmem:[#allocation3 + $0x91] sm:$0xff]
        %v2286 = vld [vmem:[#allocation3 + $0x99] sm:$0xff]
        %v2287 = vld [vmem:[#allocation3 + $0xa9] sm:$0xff]
        %v2288 = vld [vmem:[#allocation3 + $0xb1] sm:$0xff]
        %v2289 = vld [vmem:[#allocation3 + $0xc1] sm:$0xff]
        %v2290 = vld [vmem:[#allocation3 + $0xc9] sm:$0xff]
        %v2291 = vld [vmem:[#allocation3 + $0xd9] sm:$0xff]
        %v2292 = vld [vmem:[#allocation3 + $0xe1] sm:$0xff]
        %v2293 = vld [vmem:[#allocation3 + $0xf1] sm:$0xff]
        %v2294 = vld [vmem:[#allocation3 + $0xf9] sm:$0xff]
        %v2295 = vld [vmem:[#allocation3 + $0x109] sm:$0xff]
        %v2296 = vld [vmem:[#allocation3 + $0x111] sm:$0xff]
        %v2297 = vld [vmem:[#allocation3 + $0x121] sm:$0xff]
        %v2298 = vld [vmem:[#allocation3 + $0x129] sm:$0xff]
        %v2299 = vld [vmem:[#allocation3 + $0x139] sm:$0xff]
        %v2300 = vld [vmem:[#allocation3 + $0x141] sm:$0xff]
        %v2301 = vld [vmem:[#allocation3 + $0x151] sm:$0xff]
        %v2302 = vld [vmem:[#allocation3 + $0x159] sm:$0xff]
        %v2303 = vld [vmem:[#allocation3 + $0x169] sm:$0xff]
        %v2304 = vld [vmem:[#allocation3 + $0x171] sm:$0xff]
        %2337 = vrot.lane.b32.xlu0 %v2273, 16
        %v2338 = vpop.permute.xlu0 %2337
        %2339 = vrot.lane.b32.xlu0 %v2274, 16
        %v2340 = vpop.permute.xlu0 %2339
        %2341 = vrot.lane.b32.xlu0 %v2275, 16
        %v2342 = vpop.permute.xlu0 %2341
        %2343 = vrot.lane.b32.xlu0 %v2276, 16
        %v2344 = vpop.permute.xlu0 %2343
        %2345 = vrot.lane.b32.xlu0 %v2277, 16
        %v2346 = vpop.permute.xlu0 %2345
        %2347 = vrot.lane.b32.xlu0 %v2278, 16
        %v2348 = vpop.permute.xlu0 %2347
        %2349 = vrot.lane.b32.xlu0 %v2279, 16
        %v2350 = vpop.permute.xlu0 %2349
        %2351 = vrot.lane.b32.xlu0 %v2280, 16
        %v2352 = vpop.permute.xlu0 %2351
        %2353 = vrot.lane.b32.xlu0 %v2281, 16
        %v2354 = vpop.permute.xlu0 %2353
        %2355 = vrot.lane.b32.xlu0 %v2282, 16
        %v2356 = vpop.permute.xlu0 %2355
        %2357 = vrot.lane.b32.xlu0 %v2283, 16
        %v2358 = vpop.permute.xlu0 %2357
        %2359 = vrot.lane.b32.xlu0 %v2284, 16
        %v2360 = vpop.permute.xlu0 %2359
        %2361 = vrot.lane.b32.xlu0 %v2285, 16
        %v2362 = vpop.permute.xlu0 %2361
        %2363 = vrot.lane.b32.xlu0 %v2286, 16
        %v2364 = vpop.permute.xlu0 %2363
        %2365 = vrot.lane.b32.xlu0 %v2287, 16
        %v2366 = vpop.permute.xlu0 %2365
        %2367 = vrot.lane.b32.xlu0 %v2288, 16
        %v2368 = vpop.permute.xlu0 %2367
        %2369 = vrot.lane.b32.xlu0 %v2289, 16
        %v2370 = vpop.permute.xlu0 %2369
        %2371 = vrot.lane.b32.xlu0 %v2290, 16
        %v2372 = vpop.permute.xlu0 %2371
        %2373 = vrot.lane.b32.xlu0 %v2291, 16
        %v2374 = vpop.permute.xlu0 %2373
        %2375 = vrot.lane.b32.xlu0 %v2292, 16
        %v2376 = vpop.permute.xlu0 %2375
        %2377 = vrot.lane.b32.xlu0 %v2293, 16
        %v2378 = vpop.permute.xlu0 %2377
        %2379 = vrot.lane.b32.xlu0 %v2294, 16
        %v2380 = vpop.permute.xlu0 %2379
        %2381 = vrot.lane.b32.xlu0 %v2295, 16
        %v2382 = vpop.permute.xlu0 %2381
        %2383 = vrot.lane.b32.xlu0 %v2296, 16
        %v2384 = vpop.permute.xlu0 %2383
        %2385 = vrot.lane.b32.xlu0 %v2297, 16
        %v2386 = vpop.permute.xlu0 %2385
        %2387 = vrot.lane.b32.xlu0 %v2298, 16
        %v2388 = vpop.permute.xlu0 %2387
        %2389 = vrot.lane.b32.xlu0 %v2299, 16
        %v2390 = vpop.permute.xlu0 %2389
        %2391 = vrot.lane.b32.xlu0 %v2300, 16
        %v2392 = vpop.permute.xlu0 %2391
        %2393 = vrot.lane.b32.xlu0 %v2301, 16
        %v2394 = vpop.permute.xlu0 %2393
        %2395 = vrot.lane.b32.xlu0 %v2302, 16
        %v2396 = vpop.permute.xlu0 %2395
        %2397 = vrot.lane.b32.xlu0 %v2303, 16
        %v2398 = vpop.permute.xlu0 %2397
        %2399 = vrot.lane.b32.xlu0 %v2304, 16
        %v2400 = vpop.permute.xlu0 %2399
        %vm2433 = vcmask 261248
        %2434 = vst.msk [vmem:[#allocation4] sm:$0xff] %vm2433, %v2338
        %2435 = vst.msk [vmem:[#allocation4 + $0x10] sm:$0xff] %vm2433, %v2340
        %2436 = vst.msk [vmem:[#allocation4 + $0x20] sm:$0xff] %vm2433, %v2342
        %2437 = vst.msk [vmem:[#allocation4 + $0x30] sm:$0xff] %vm2433, %v2344
        %2438 = vst.msk [vmem:[#allocation4 + $0x40] sm:$0xff] %vm2433, %v2346
        %2439 = vst.msk [vmem:[#allocation4 + $0x50] sm:$0xff] %vm2433, %v2348
        %2440 = vst.msk [vmem:[#allocation4 + $0x60] sm:$0xff] %vm2433, %v2350
        %2441 = vst.msk [vmem:[#allocation4 + $0x70] sm:$0xff] %vm2433, %v2352
        %2442 = vst.msk [vmem:[#allocation4 + $0x80] sm:$0xff] %vm2433, %v2354
        %2443 = vst.msk [vmem:[#allocation4 + $0x90] sm:$0xff] %vm2433, %v2356
        %2444 = vst.msk [vmem:[#allocation4 + $0xa0] sm:$0xff] %vm2433, %v2358
        %2445 = vst.msk [vmem:[#allocation4 + $0xb0] sm:$0xff] %vm2433, %v2360
        %2446 = vst.msk [vmem:[#allocation4 + $0xc0] sm:$0xff] %vm2433, %v2362
        %2447 = vst.msk [vmem:[#allocation4 + $0xd0] sm:$0xff] %vm2433, %v2364
        %2448 = vst.msk [vmem:[#allocation4 + $0xe0] sm:$0xff] %vm2433, %v2366
        %2449 = vst.msk [vmem:[#allocation4 + $0xf0] sm:$0xff] %vm2433, %v2368
        %2450 = vst.msk [vmem:[#allocation4 + $0x100] sm:$0xff] %vm2433, %v2370
        %2451 = vst.msk [vmem:[#allocation4 + $0x110] sm:$0xff] %vm2433, %v2372
        %2452 = vst.msk [vmem:[#allocation4 + $0x120] sm:$0xff] %vm2433, %v2374
        %2453 = vst.msk [vmem:[#allocation4 + $0x130] sm:$0xff] %vm2433, %v2376
        %2454 = vst.msk [vmem:[#allocation4 + $0x140] sm:$0xff] %vm2433, %v2378
        %2455 = vst.msk [vmem:[#allocation4 + $0x150] sm:$0xff] %vm2433, %v2380
        %2456 = vst.msk [vmem:[#allocation4 + $0x160] sm:$0xff] %vm2433, %v2382
        %2457 = vst.msk [vmem:[#allocation4 + $0x170] sm:$0xff] %vm2433, %v2384
        %2458 = vst.msk [vmem:[#allocation4 + $0x180] sm:$0xff] %vm2433, %v2386
        %2459 = vst.msk [vmem:[#allocation4 + $0x190] sm:$0xff] %vm2433, %v2388
        %2460 = vst.msk [vmem:[#allocation4 + $0x1a0] sm:$0xff] %vm2433, %v2390
        %2461 = vst.msk [vmem:[#allocation4 + $0x1b0] sm:$0xff] %vm2433, %v2392
        %2462 = vst.msk [vmem:[#allocation4 + $0x1c0] sm:$0xff] %vm2433, %v2394
        %2463 = vst.msk [vmem:[#allocation4 + $0x1d0] sm:$0xff] %vm2433, %v2396
        %2464 = vst.msk [vmem:[#allocation4 + $0x1e0] sm:$0xff] %vm2433, %v2398
        %2465 = vst.msk [vmem:[#allocation4 + $0x1f0] sm:$0xff] %vm2433, %v2400
        %v2466 = vld [vmem:[#allocation3 + $0x2] sm:$0xff]
        %v2467 = vld [vmem:[#allocation3 + $0xa] sm:$0xff]
        %v2468 = vld [vmem:[#allocation3 + $0x1a] sm:$0xff]
        %v2469 = vld [vmem:[#allocation3 + $0x22] sm:$0xff]
        %v2470 = vld [vmem:[#allocation3 + $0x32] sm:$0xff]
        %v2471 = vld [vmem:[#allocation3 + $0x3a] sm:$0xff]
        %v2472 = vld [vmem:[#allocation3 + $0x4a] sm:$0xff]
        %v2473 = vld [vmem:[#allocation3 + $0x52] sm:$0xff]
        %v2474 = vld [vmem:[#allocation3 + $0x62] sm:$0xff]
        %v2475 = vld [vmem:[#allocation3 + $0x6a] sm:$0xff]
        %v2476 = vld [vmem:[#allocation3 + $0x7a] sm:$0xff]
        %v2477 = vld [vmem:[#allocation3 + $0x82] sm:$0xff]
        %v2478 = vld [vmem:[#allocation3 + $0x92] sm:$0xff]
        %v2479 = vld [vmem:[#allocation3 + $0x9a] sm:$0xff]
        %v2480 = vld [vmem:[#allocation3 + $0xaa] sm:$0xff]
        %v2481 = vld [vmem:[#allocation3 + $0xb2] sm:$0xff]
        %v2482 = vld [vmem:[#allocation3 + $0xc2] sm:$0xff]
        %v2483 = vld [vmem:[#allocation3 + $0xca] sm:$0xff]
        %v2484 = vld [vmem:[#allocation3 + $0xda] sm:$0xff]
        %v2485 = vld [vmem:[#allocation3 + $0xe2] sm:$0xff]
        %v2486 = vld [vmem:[#allocation3 + $0xf2] sm:$0xff]
        %v2487 = vld [vmem:[#allocation3 + $0xfa] sm:$0xff]
        %v2488 = vld [vmem:[#allocation3 + $0x10a] sm:$0xff]
        %v2489 = vld [vmem:[#allocation3 + $0x112] sm:$0xff]
        %v2490 = vld [vmem:[#allocation3 + $0x122] sm:$0xff]
        %v2491 = vld [vmem:[#allocation3 + $0x12a] sm:$0xff]
        %v2492 = vld [vmem:[#allocation3 + $0x13a] sm:$0xff]
        %v2493 = vld [vmem:[#allocation3 + $0x142] sm:$0xff]
        %v2494 = vld [vmem:[#allocation3 + $0x152] sm:$0xff]
        %v2495 = vld [vmem:[#allocation3 + $0x15a] sm:$0xff]
        %v2496 = vld [vmem:[#allocation3 + $0x16a] sm:$0xff]
        %v2497 = vld [vmem:[#allocation3 + $0x172] sm:$0xff]
        %2530 = vrot.lane.b32.xlu0 %v2466, 32
        %v2531 = vpop.permute.xlu0 %2530
        %2532 = vrot.lane.b32.xlu0 %v2467, 32
        %v2533 = vpop.permute.xlu0 %2532
        %2534 = vrot.lane.b32.xlu0 %v2468, 32
        %v2535 = vpop.permute.xlu0 %2534
        %2536 = vrot.lane.b32.xlu0 %v2469, 32
        %v2537 = vpop.permute.xlu0 %2536
        %2538 = vrot.lane.b32.xlu0 %v2470, 32
        %v2539 = vpop.permute.xlu0 %2538
        %2540 = vrot.lane.b32.xlu0 %v2471, 32
        %v2541 = vpop.permute.xlu0 %2540
        %2542 = vrot.lane.b32.xlu0 %v2472, 32
        %v2543 = vpop.permute.xlu0 %2542
        %2544 = vrot.lane.b32.xlu0 %v2473, 32
        %v2545 = vpop.permute.xlu0 %2544
        %2546 = vrot.lane.b32.xlu0 %v2474, 32
        %v2547 = vpop.permute.xlu0 %2546
        %2548 = vrot.lane.b32.xlu0 %v2475, 32
        %v2549 = vpop.permute.xlu0 %2548
        %2550 = vrot.lane.b32.xlu0 %v2476, 32
        %v2551 = vpop.permute.xlu0 %2550
        %2552 = vrot.lane.b32.xlu0 %v2477, 32
        %v2553 = vpop.permute.xlu0 %2552
        %2554 = vrot.lane.b32.xlu0 %v2478, 32
        %v2555 = vpop.permute.xlu0 %2554
        %2556 = vrot.lane.b32.xlu0 %v2479, 32
        %v2557 = vpop.permute.xlu0 %2556
        %2558 = vrot.lane.b32.xlu0 %v2480, 32
        %v2559 = vpop.permute.xlu0 %2558
        %2560 = vrot.lane.b32.xlu0 %v2481, 32
        %v2561 = vpop.permute.xlu0 %2560
        %2562 = vrot.lane.b32.xlu0 %v2482, 32
        %v2563 = vpop.permute.xlu0 %2562
        %2564 = vrot.lane.b32.xlu0 %v2483, 32
        %v2565 = vpop.permute.xlu0 %2564
        %2566 = vrot.lane.b32.xlu0 %v2484, 32
        %v2567 = vpop.permute.xlu0 %2566
        %2568 = vrot.lane.b32.xlu0 %v2485, 32
        %v2569 = vpop.permute.xlu0 %2568
        %2570 = vrot.lane.b32.xlu0 %v2486, 32
        %v2571 = vpop.permute.xlu0 %2570
        %2572 = vrot.lane.b32.xlu0 %v2487, 32
        %v2573 = vpop.permute.xlu0 %2572
        %2574 = vrot.lane.b32.xlu0 %v2488, 32
        %v2575 = vpop.permute.xlu0 %2574
        %2576 = vrot.lane.b32.xlu0 %v2489, 32
        %v2577 = vpop.permute.xlu0 %2576
        %2578 = vrot.lane.b32.xlu0 %v2490, 32
        %v2579 = vpop.permute.xlu0 %2578
        %2580 = vrot.lane.b32.xlu0 %v2491, 32
        %v2581 = vpop.permute.xlu0 %2580
        %2582 = vrot.lane.b32.xlu0 %v2492, 32
        %v2583 = vpop.permute.xlu0 %2582
        %2584 = vrot.lane.b32.xlu0 %v2493, 32
        %v2585 = vpop.permute.xlu0 %2584
        %2586 = vrot.lane.b32.xlu0 %v2494, 32
        %v2587 = vpop.permute.xlu0 %2586
        %2588 = vrot.lane.b32.xlu0 %v2495, 32
        %v2589 = vpop.permute.xlu0 %2588
        %2590 = vrot.lane.b32.xlu0 %v2496, 32
        %v2591 = vpop.permute.xlu0 %2590
        %2592 = vrot.lane.b32.xlu0 %v2497, 32
        %v2593 = vpop.permute.xlu0 %2592
        %vm2626 = vcmask 392448
        %2627 = vst.msk [vmem:[#allocation4] sm:$0xff] %vm2626, %v2531
        %2628 = vst.msk [vmem:[#allocation4 + $0x10] sm:$0xff] %vm2626, %v2533
        %2629 = vst.msk [vmem:[#allocation4 + $0x20] sm:$0xff] %vm2626, %v2535
        %2630 = vst.msk [vmem:[#allocation4 + $0x30] sm:$0xff] %vm2626, %v2537
        %2631 = vst.msk [vmem:[#allocation4 + $0x40] sm:$0xff] %vm2626, %v2539
        %2632 = vst.msk [vmem:[#allocation4 + $0x50] sm:$0xff] %vm2626, %v2541
        %2633 = vst.msk [vmem:[#allocation4 + $0x60] sm:$0xff] %vm2626, %v2543
        %2634 = vst.msk [vmem:[#allocation4 + $0x70] sm:$0xff] %vm2626, %v2545
        %2635 = vst.msk [vmem:[#allocation4 + $0x80] sm:$0xff] %vm2626, %v2547
        %2636 = vst.msk [vmem:[#allocation4 + $0x90] sm:$0xff] %vm2626, %v2549
        %2637 = vst.msk [vmem:[#allocation4 + $0xa0] sm:$0xff] %vm2626, %v2551
        %2638 = vst.msk [vmem:[#allocation4 + $0xb0] sm:$0xff] %vm2626, %v2553
        %2639 = vst.msk [vmem:[#allocation4 + $0xc0] sm:$0xff] %vm2626, %v2555
        %2640 = vst.msk [vmem:[#allocation4 + $0xd0] sm:$0xff] %vm2626, %v2557
        %2641 = vst.msk [vmem:[#allocation4 + $0xe0] sm:$0xff] %vm2626, %v2559
        %2642 = vst.msk [vmem:[#allocation4 + $0xf0] sm:$0xff] %vm2626, %v2561
        %2643 = vst.msk [vmem:[#allocation4 + $0x100] sm:$0xff] %vm2626, %v2563
        %2644 = vst.msk [vmem:[#allocation4 + $0x110] sm:$0xff] %vm2626, %v2565
        %2645 = vst.msk [vmem:[#allocation4 + $0x120] sm:$0xff] %vm2626, %v2567
        %2646 = vst.msk [vmem:[#allocation4 + $0x130] sm:$0xff] %vm2626, %v2569
        %2647 = vst.msk [vmem:[#allocation4 + $0x140] sm:$0xff] %vm2626, %v2571
        %2648 = vst.msk [vmem:[#allocation4 + $0x150] sm:$0xff] %vm2626, %v2573
        %2649 = vst.msk [vmem:[#allocation4 + $0x160] sm:$0xff] %vm2626, %v2575
        %2650 = vst.msk [vmem:[#allocation4 + $0x170] sm:$0xff] %vm2626, %v2577
        %2651 = vst.msk [vmem:[#allocation4 + $0x180] sm:$0xff] %vm2626, %v2579
        %2652 = vst.msk [vmem:[#allocation4 + $0x190] sm:$0xff] %vm2626, %v2581
        %2653 = vst.msk [vmem:[#allocation4 + $0x1a0] sm:$0xff] %vm2626, %v2583
        %2654 = vst.msk [vmem:[#allocation4 + $0x1b0] sm:$0xff] %vm2626, %v2585
        %2655 = vst.msk [vmem:[#allocation4 + $0x1c0] sm:$0xff] %vm2626, %v2587
        %2656 = vst.msk [vmem:[#allocation4 + $0x1d0] sm:$0xff] %vm2626, %v2589
        %2657 = vst.msk [vmem:[#allocation4 + $0x1e0] sm:$0xff] %vm2626, %v2591
        %2658 = vst.msk [vmem:[#allocation4 + $0x1f0] sm:$0xff] %vm2626, %v2593
        %v2659 = vld [vmem:[%s2176] sm:$0xff]
        %v2660 = vld [vmem:[%s2176 + $0x8] sm:$0xff]
        %v2661 = vld [vmem:[%s2176 + $0x18] sm:$0xff]
        %v2662 = vld [vmem:[%s2176 + $0x20] sm:$0xff]
        %v2663 = vld [vmem:[%s2176 + $0x30] sm:$0xff]
        %v2664 = vld [vmem:[%s2176 + $0x38] sm:$0xff]
        %v2665 = vld [vmem:[%s2176 + $0x48] sm:$0xff]
        %v2666 = vld [vmem:[%s2176 + $0x50] sm:$0xff]
        %v2667 = vld [vmem:[%s2176 + $0x60] sm:$0xff]
        %v2668 = vld [vmem:[%s2176 + $0x68] sm:$0xff]
        %v2669 = vld [vmem:[%s2176 + $0x78] sm:$0xff]
        %v2670 = vld [vmem:[%s2176 + $0x80] sm:$0xff]
        %v2671 = vld [vmem:[%s2176 + $0x90] sm:$0xff]
        %v2672 = vld [vmem:[%s2176 + $0x98] sm:$0xff]
        %v2673 = vld [vmem:[%s2176 + $0xa8] sm:$0xff]
        %v2674 = vld [vmem:[%s2176 + $0xb0] sm:$0xff]
        %v2675 = vld [vmem:[%s2176 + $0xc0] sm:$0xff]
        %v2676 = vld [vmem:[%s2176 + $0xc8] sm:$0xff]
        %v2677 = vld [vmem:[%s2176 + $0xd8] sm:$0xff]
        %v2678 = vld [vmem:[%s2176 + $0xe0] sm:$0xff]
        %v2679 = vld [vmem:[%s2176 + $0xf0] sm:$0xff]
        %v2680 = vld [vmem:[%s2176 + $0xf8] sm:$0xff]
        %v2681 = vld [vmem:[%s2176 + $0x108] sm:$0xff]
        %v2682 = vld [vmem:[%s2176 + $0x110] sm:$0xff]
        %v2683 = vld [vmem:[%s2176 + $0x120] sm:$0xff]
        %v2684 = vld [vmem:[%s2176 + $0x128] sm:$0xff]
        %v2685 = vld [vmem:[%s2176 + $0x138] sm:$0xff]
        %v2686 = vld [vmem:[%s2176 + $0x140] sm:$0xff]
        %v2687 = vld [vmem:[%s2176 + $0x150] sm:$0xff]
        %v2688 = vld [vmem:[%s2176 + $0x158] sm:$0xff]
        %v2689 = vld [vmem:[%s2176 + $0x168] sm:$0xff]
        %v2690 = vld [vmem:[%s2176 + $0x170] sm:$0xff]
        %2723 = vrot.lane.b32.xlu0 %v2659, 48
        %v2724 = vpop.permute.xlu0 %2723
        %2725 = vrot.lane.b32.xlu0 %v2660, 48
        %v2726 = vpop.permute.xlu0 %2725
        %2727 = vrot.lane.b32.xlu0 %v2661, 48
        %v2728 = vpop.permute.xlu0 %2727
        %2729 = vrot.lane.b32.xlu0 %v2662, 48
        %v2730 = vpop.permute.xlu0 %2729
        %2731 = vrot.lane.b32.xlu0 %v2663, 48
        %v2732 = vpop.permute.xlu0 %2731
        %2733 = vrot.lane.b32.xlu0 %v2664, 48
        %v2734 = vpop.permute.xlu0 %2733
        %2735 = vrot.lane.b32.xlu0 %v2665, 48
        %v2736 = vpop.permute.xlu0 %2735
        %2737 = vrot.lane.b32.xlu0 %v2666, 48
        %v2738 = vpop.permute.xlu0 %2737
        %2739 = vrot.lane.b32.xlu0 %v2667, 48
        %v2740 = vpop.permute.xlu0 %2739
        %2741 = vrot.lane.b32.xlu0 %v2668, 48
        %v2742 = vpop.permute.xlu0 %2741
        %2743 = vrot.lane.b32.xlu0 %v2669, 48
        %v2744 = vpop.permute.xlu0 %2743
        %2745 = vrot.lane.b32.xlu0 %v2670, 48
        %v2746 = vpop.permute.xlu0 %2745
        %2747 = vrot.lane.b32.xlu0 %v2671, 48
        %v2748 = vpop.permute.xlu0 %2747
        %2749 = vrot.lane.b32.xlu0 %v2672, 48
        %v2750 = vpop.permute.xlu0 %2749
        %2751 = vrot.lane.b32.xlu0 %v2673, 48
        %v2752 = vpop.permute.xlu0 %2751
        %2753 = vrot.lane.b32.xlu0 %v2674, 48
        %v2754 = vpop.permute.xlu0 %2753
        %2755 = vrot.lane.b32.xlu0 %v2675, 48
        %v2756 = vpop.permute.xlu0 %2755
        %2757 = vrot.lane.b32.xlu0 %v2676, 48
        %v2758 = vpop.permute.xlu0 %2757
        %2759 = vrot.lane.b32.xlu0 %v2677, 48
        %v2760 = vpop.permute.xlu0 %2759
        %2761 = vrot.lane.b32.xlu0 %v2678, 48
        %v2762 = vpop.permute.xlu0 %2761
        %2763 = vrot.lane.b32.xlu0 %v2679, 48
        %v2764 = vpop.permute.xlu0 %2763
        %2765 = vrot.lane.b32.xlu0 %v2680, 48
        %v2766 = vpop.permute.xlu0 %2765
        %2767 = vrot.lane.b32.xlu0 %v2681, 48
        %v2768 = vpop.permute.xlu0 %2767
        %2769 = vrot.lane.b32.xlu0 %v2682, 48
        %v2770 = vpop.permute.xlu0 %2769
        %2771 = vrot.lane.b32.xlu0 %v2683, 48
        %v2772 = vpop.permute.xlu0 %2771
        %2773 = vrot.lane.b32.xlu0 %v2684, 48
        %v2774 = vpop.permute.xlu0 %2773
        %2775 = vrot.lane.b32.xlu0 %v2685, 48
        %v2776 = vpop.permute.xlu0 %2775
        %2777 = vrot.lane.b32.xlu0 %v2686, 48
        %v2778 = vpop.permute.xlu0 %2777
        %2779 = vrot.lane.b32.xlu0 %v2687, 48
        %v2780 = vpop.permute.xlu0 %2779
        %2781 = vrot.lane.b32.xlu0 %v2688, 48
        %v2782 = vpop.permute.xlu0 %2781
        %2783 = vrot.lane.b32.xlu0 %v2689, 48
        %v2784 = vpop.permute.xlu0 %2783
        %2785 = vrot.lane.b32.xlu0 %v2690, 48
        %v2786 = vpop.permute.xlu0 %2785
        %vm2819 = vcmask 523648
        %2820 = vst.msk [vmem:[#allocation4] sm:$0xff] %vm2819, %v2724
        %2821 = vst.msk [vmem:[#allocation4 + $0x10] sm:$0xff] %vm2819, %v2726
        %2822 = vst.msk [vmem:[#allocation4 + $0x20] sm:$0xff] %vm2819, %v2728
        %2823 = vst.msk [vmem:[#allocation4 + $0x30] sm:$0xff] %vm2819, %v2730
        %2824 = vst.msk [vmem:[#allocation4 + $0x40] sm:$0xff] %vm2819, %v2732
        %2825 = vst.msk [vmem:[#allocation4 + $0x50] sm:$0xff] %vm2819, %v2734
        %2826 = vst.msk [vmem:[#allocation4 + $0x60] sm:$0xff] %vm2819, %v2736
        %2827 = vst.msk [vmem:[#allocation4 + $0x70] sm:$0xff] %vm2819, %v2738
        %2828 = vst.msk [vmem:[#allocation4 + $0x80] sm:$0xff] %vm2819, %v2740
        %2829 = vst.msk [vmem:[#allocation4 + $0x90] sm:$0xff] %vm2819, %v2742
        %2830 = vst.msk [vmem:[#allocation4 + $0xa0] sm:$0xff] %vm2819, %v2744
        %2831 = vst.msk [vmem:[#allocation4 + $0xb0] sm:$0xff] %vm2819, %v2746
        %2832 = vst.msk [vmem:[#allocation4 + $0xc0] sm:$0xff] %vm2819, %v2748
        %2833 = vst.msk [vmem:[#allocation4 + $0xd0] sm:$0xff] %vm2819, %v2750
        %2834 = vst.msk [vmem:[#allocation4 + $0xe0] sm:$0xff] %vm2819, %v2752
        %2835 = vst.msk [vmem:[#allocation4 + $0xf0] sm:$0xff] %vm2819, %v2754
        %2836 = vst.msk [vmem:[#allocation4 + $0x100] sm:$0xff] %vm2819, %v2756
        %2837 = vst.msk [vmem:[#allocation4 + $0x110] sm:$0xff] %vm2819, %v2758
        %2838 = vst.msk [vmem:[#allocation4 + $0x120] sm:$0xff] %vm2819, %v2760
        %2839 = vst.msk [vmem:[#allocation4 + $0x130] sm:$0xff] %vm2819, %v2762
        %2840 = vst.msk [vmem:[#allocation4 + $0x140] sm:$0xff] %vm2819, %v2764
        %2841 = vst.msk [vmem:[#allocation4 + $0x150] sm:$0xff] %vm2819, %v2766
        %2842 = vst.msk [vmem:[#allocation4 + $0x160] sm:$0xff] %vm2819, %v2768
        %2843 = vst.msk [vmem:[#allocation4 + $0x170] sm:$0xff] %vm2819, %v2770
        %2844 = vst.msk [vmem:[#allocation4 + $0x180] sm:$0xff] %vm2819, %v2772
        %2845 = vst.msk [vmem:[#allocation4 + $0x190] sm:$0xff] %vm2819, %v2774
        %2846 = vst.msk [vmem:[#allocation4 + $0x1a0] sm:$0xff] %vm2819, %v2776
        %2847 = vst.msk [vmem:[#allocation4 + $0x1b0] sm:$0xff] %vm2819, %v2778
        %2848 = vst.msk [vmem:[#allocation4 + $0x1c0] sm:$0xff] %vm2819, %v2780
        %2849 = vst.msk [vmem:[#allocation4 + $0x1d0] sm:$0xff] %vm2819, %v2782
        %2850 = vst.msk [vmem:[#allocation4 + $0x1e0] sm:$0xff] %vm2819, %v2784
        %2851 = vst.msk [vmem:[#allocation4 + $0x1f0] sm:$0xff] %vm2819, %v2786
        %v2852 = vld [vmem:[%s2176 + $0x1] sm:$0xff]
        %v2853 = vld [vmem:[%s2176 + $0x9] sm:$0xff]
        %v2854 = vld [vmem:[%s2176 + $0x19] sm:$0xff]
        %v2855 = vld [vmem:[%s2176 + $0x21] sm:$0xff]
        %v2856 = vld [vmem:[%s2176 + $0x31] sm:$0xff]
        %v2857 = vld [vmem:[%s2176 + $0x39] sm:$0xff]
        %v2858 = vld [vmem:[%s2176 + $0x49] sm:$0xff]
        %v2859 = vld [vmem:[%s2176 + $0x51] sm:$0xff]
        %v2860 = vld [vmem:[%s2176 + $0x61] sm:$0xff]
        %v2861 = vld [vmem:[%s2176 + $0x69] sm:$0xff]
        %v2862 = vld [vmem:[%s2176 + $0x79] sm:$0xff]
        %v2863 = vld [vmem:[%s2176 + $0x81] sm:$0xff]
        %v2864 = vld [vmem:[%s2176 + $0x91] sm:$0xff]
        %v2865 = vld [vmem:[%s2176 + $0x99] sm:$0xff]
        %v2866 = vld [vmem:[%s2176 + $0xa9] sm:$0xff]
        %v2867 = vld [vmem:[%s2176 + $0xb1] sm:$0xff]
        %v2868 = vld [vmem:[%s2176 + $0xc1] sm:$0xff]
        %v2869 = vld [vmem:[%s2176 + $0xc9] sm:$0xff]
        %v2870 = vld [vmem:[%s2176 + $0xd9] sm:$0xff]
        %v2871 = vld [vmem:[%s2176 + $0xe1] sm:$0xff]
        %v2872 = vld [vmem:[%s2176 + $0xf1] sm:$0xff]
        %v2873 = vld [vmem:[%s2176 + $0xf9] sm:$0xff]
        %v2874 = vld [vmem:[%s2176 + $0x109] sm:$0xff]
        %v2875 = vld [vmem:[%s2176 + $0x111] sm:$0xff]
        %v2876 = vld [vmem:[%s2176 + $0x121] sm:$0xff]
        %v2877 = vld [vmem:[%s2176 + $0x129] sm:$0xff]
        %v2878 = vld [vmem:[%s2176 + $0x139] sm:$0xff]
        %v2879 = vld [vmem:[%s2176 + $0x141] sm:$0xff]
        %v2880 = vld [vmem:[%s2176 + $0x151] sm:$0xff]
        %v2881 = vld [vmem:[%s2176 + $0x159] sm:$0xff]
        %v2882 = vld [vmem:[%s2176 + $0x169] sm:$0xff]
        %v2883 = vld [vmem:[%s2176 + $0x171] sm:$0xff]
        %2916 = vrot.lane.b32.xlu0 %v2852, 64
        %v2917 = vpop.permute.xlu0 %2916
        %2918 = vrot.lane.b32.xlu0 %v2853, 64
        %v2919 = vpop.permute.xlu0 %2918
        %2920 = vrot.lane.b32.xlu0 %v2854, 64
        %v2921 = vpop.permute.xlu0 %2920
        %2922 = vrot.lane.b32.xlu0 %v2855, 64
        %v2923 = vpop.permute.xlu0 %2922
        %2924 = vrot.lane.b32.xlu0 %v2856, 64
        %v2925 = vpop.permute.xlu0 %2924
        %2926 = vrot.lane.b32.xlu0 %v2857, 64
        %v2927 = vpop.permute.xlu0 %2926
        %2928 = vrot.lane.b32.xlu0 %v2858, 64
        %v2929 = vpop.permute.xlu0 %2928
        %2930 = vrot.lane.b32.xlu0 %v2859, 64
        %v2931 = vpop.permute.xlu0 %2930
        %2932 = vrot.lane.b32.xlu0 %v2860, 64
        %v2933 = vpop.permute.xlu0 %2932
        %2934 = vrot.lane.b32.xlu0 %v2861, 64
        %v2935 = vpop.permute.xlu0 %2934
        %2936 = vrot.lane.b32.xlu0 %v2862, 64
        %v2937 = vpop.permute.xlu0 %2936
        %2938 = vrot.lane.b32.xlu0 %v2863, 64
        %v2939 = vpop.permute.xlu0 %2938
        %2940 = vrot.lane.b32.xlu0 %v2864, 64
        %v2941 = vpop.permute.xlu0 %2940
        %2942 = vrot.lane.b32.xlu0 %v2865, 64
        %v2943 = vpop.permute.xlu0 %2942
        %2944 = vrot.lane.b32.xlu0 %v2866, 64
        %v2945 = vpop.permute.xlu0 %2944
        %2946 = vrot.lane.b32.xlu0 %v2867, 64
        %v2947 = vpop.permute.xlu0 %2946
        %2948 = vrot.lane.b32.xlu0 %v2868, 64
        %v2949 = vpop.permute.xlu0 %2948
        %2950 = vrot.lane.b32.xlu0 %v2869, 64
        %v2951 = vpop.permute.xlu0 %2950
        %2952 = vrot.lane.b32.xlu0 %v2870, 64
        %v2953 = vpop.permute.xlu0 %2952
        %2954 = vrot.lane.b32.xlu0 %v2871, 64
        %v2955 = vpop.permute.xlu0 %2954
        %2956 = vrot.lane.b32.xlu0 %v2872, 64
        %v2957 = vpop.permute.xlu0 %2956
        %2958 = vrot.lane.b32.xlu0 %v2873, 64
        %v2959 = vpop.permute.xlu0 %2958
        %2960 = vrot.lane.b32.xlu0 %v2874, 64
        %v2961 = vpop.permute.xlu0 %2960
        %2962 = vrot.lane.b32.xlu0 %v2875, 64
        %v2963 = vpop.permute.xlu0 %2962
        %2964 = vrot.lane.b32.xlu0 %v2876, 64
        %v2965 = vpop.permute.xlu0 %2964
        %2966 = vrot.lane.b32.xlu0 %v2877, 64
        %v2967 = vpop.permute.xlu0 %2966
        %2968 = vrot.lane.b32.xlu0 %v2878, 64
        %v2969 = vpop.permute.xlu0 %2968
        %2970 = vrot.lane.b32.xlu0 %v2879, 64
        %v2971 = vpop.permute.xlu0 %2970
        %2972 = vrot.lane.b32.xlu0 %v2880, 64
        %v2973 = vpop.permute.xlu0 %2972
        %2974 = vrot.lane.b32.xlu0 %v2881, 64
        %v2975 = vpop.permute.xlu0 %2974
        %2976 = vrot.lane.b32.xlu0 %v2882, 64
        %v2977 = vpop.permute.xlu0 %2976
        %2978 = vrot.lane.b32.xlu0 %v2883, 64
        %v2979 = vpop.permute.xlu0 %2978
        %vm3012 = vcmask 654848
        %3013 = vst.msk [vmem:[#allocation4] sm:$0xff] %vm3012, %v2917
        %3014 = vst.msk [vmem:[#allocation4 + $0x10] sm:$0xff] %vm3012, %v2919
        %3015 = vst.msk [vmem:[#allocation4 + $0x20] sm:$0xff] %vm3012, %v2921
        %3016 = vst.msk [vmem:[#allocation4 + $0x30] sm:$0xff] %vm3012, %v2923
        %3017 = vst.msk [vmem:[#allocation4 + $0x40] sm:$0xff] %vm3012, %v2925
        %3018 = vst.msk [vmem:[#allocation4 + $0x50] sm:$0xff] %vm3012, %v2927
        %3019 = vst.msk [vmem:[#allocation4 + $0x60] sm:$0xff] %vm3012, %v2929
        %3020 = vst.msk [vmem:[#allocation4 + $0x70] sm:$0xff] %vm3012, %v2931
        %3021 = vst.msk [vmem:[#allocation4 + $0x80] sm:$0xff] %vm3012, %v2933
        %3022 = vst.msk [vmem:[#allocation4 + $0x90] sm:$0xff] %vm3012, %v2935
        %3023 = vst.msk [vmem:[#allocation4 + $0xa0] sm:$0xff] %vm3012, %v2937
        %3024 = vst.msk [vmem:[#allocation4 + $0xb0] sm:$0xff] %vm3012, %v2939
        %3025 = vst.msk [vmem:[#allocation4 + $0xc0] sm:$0xff] %vm3012, %v2941
        %3026 = vst.msk [vmem:[#allocation4 + $0xd0] sm:$0xff] %vm3012, %v2943
        %3027 = vst.msk [vmem:[#allocation4 + $0xe0] sm:$0xff] %vm3012, %v2945
        %3028 = vst.msk [vmem:[#allocation4 + $0xf0] sm:$0xff] %vm3012, %v2947
        %3029 = vst.msk [vmem:[#allocation4 + $0x100] sm:$0xff] %vm3012, %v2949
        %3030 = vst.msk [vmem:[#allocation4 + $0x110] sm:$0xff] %vm3012, %v2951
        %3031 = vst.msk [vmem:[#allocation4 + $0x120] sm:$0xff] %vm3012, %v2953
        %3032 = vst.msk [vmem:[#allocation4 + $0x130] sm:$0xff] %vm3012, %v2955
        %3033 = vst.msk [vmem:[#allocation4 + $0x140] sm:$0xff] %vm3012, %v2957
        %3034 = vst.msk [vmem:[#allocation4 + $0x150] sm:$0xff] %vm3012, %v2959
        %3035 = vst.msk [vmem:[#allocation4 + $0x160] sm:$0xff] %vm3012, %v2961
        %3036 = vst.msk [vmem:[#allocation4 + $0x170] sm:$0xff] %vm3012, %v2963
        %3037 = vst.msk [vmem:[#allocation4 + $0x180] sm:$0xff] %vm3012, %v2965
        %3038 = vst.msk [vmem:[#allocation4 + $0x190] sm:$0xff] %vm3012, %v2967
        %3039 = vst.msk [vmem:[#allocation4 + $0x1a0] sm:$0xff] %vm3012, %v2969
        %3040 = vst.msk [vmem:[#allocation4 + $0x1b0] sm:$0xff] %vm3012, %v2971
        %3041 = vst.msk [vmem:[#allocation4 + $0x1c0] sm:$0xff] %vm3012, %v2973
        %3042 = vst.msk [vmem:[#allocation4 + $0x1d0] sm:$0xff] %vm3012, %v2975
        %3043 = vst.msk [vmem:[#allocation4 + $0x1e0] sm:$0xff] %vm3012, %v2977
        %3044 = vst.msk [vmem:[#allocation4 + $0x1f0] sm:$0xff] %vm3012, %v2979
        %v3045 = vld [vmem:[%s2176 + $0x2] sm:$0xff]
        %v3046 = vld [vmem:[%s2176 + $0xa] sm:$0xff]
        %v3047 = vld [vmem:[%s2176 + $0x1a] sm:$0xff]
        %v3048 = vld [vmem:[%s2176 + $0x22] sm:$0xff]
        %v3049 = vld [vmem:[%s2176 + $0x32] sm:$0xff]
        %v3050 = vld [vmem:[%s2176 + $0x3a] sm:$0xff]
        %v3051 = vld [vmem:[%s2176 + $0x4a] sm:$0xff]
        %v3052 = vld [vmem:[%s2176 + $0x52] sm:$0xff]
        %v3053 = vld [vmem:[%s2176 + $0x62] sm:$0xff]
        %v3054 = vld [vmem:[%s2176 + $0x6a] sm:$0xff]
        %v3055 = vld [vmem:[%s2176 + $0x7a] sm:$0xff]
        %v3056 = vld [vmem:[%s2176 + $0x82] sm:$0xff]
        %v3057 = vld [vmem:[%s2176 + $0x92] sm:$0xff]
        %v3058 = vld [vmem:[%s2176 + $0x9a] sm:$0xff]
        %v3059 = vld [vmem:[%s2176 + $0xaa] sm:$0xff]
        %v3060 = vld [vmem:[%s2176 + $0xb2] sm:$0xff]
        %v3061 = vld [vmem:[%s2176 + $0xc2] sm:$0xff]
        %v3062 = vld [vmem:[%s2176 + $0xca] sm:$0xff]
        %v3063 = vld [vmem:[%s2176 + $0xda] sm:$0xff]
        %v3064 = vld [vmem:[%s2176 + $0xe2] sm:$0xff]
        %v3065 = vld [vmem:[%s2176 + $0xf2] sm:$0xff]
        %v3066 = vld [vmem:[%s2176 + $0xfa] sm:$0xff]
        %v3067 = vld [vmem:[%s2176 + $0x10a] sm:$0xff]
        %v3068 = vld [vmem:[%s2176 + $0x112] sm:$0xff]
        %v3069 = vld [vmem:[%s2176 + $0x122] sm:$0xff]
        %v3070 = vld [vmem:[%s2176 + $0x12a] sm:$0xff]
        %v3071 = vld [vmem:[%s2176 + $0x13a] sm:$0xff]
        %v3072 = vld [vmem:[%s2176 + $0x142] sm:$0xff]
        %v3073 = vld [vmem:[%s2176 + $0x152] sm:$0xff]
        %v3074 = vld [vmem:[%s2176 + $0x15a] sm:$0xff]
        %v3075 = vld [vmem:[%s2176 + $0x16a] sm:$0xff]
        %v3076 = vld [vmem:[%s2176 + $0x172] sm:$0xff]
        %3109 = vrot.lane.b32.xlu0 %v3045, 80
        %v3110 = vpop.permute.xlu0 %3109
        %3111 = vrot.lane.b32.xlu0 %v3046, 80
        %v3112 = vpop.permute.xlu0 %3111
        %3113 = vrot.lane.b32.xlu0 %v3047, 80
        %v3114 = vpop.permute.xlu0 %3113
        %3115 = vrot.lane.b32.xlu0 %v3048, 80
        %v3116 = vpop.permute.xlu0 %3115
        %3117 = vrot.lane.b32.xlu0 %v3049, 80
        %v3118 = vpop.permute.xlu0 %3117
        %3119 = vrot.lane.b32.xlu0 %v3050, 80
        %v3120 = vpop.permute.xlu0 %3119
        %3121 = vrot.lane.b32.xlu0 %v3051, 80
        %v3122 = vpop.permute.xlu0 %3121
        %3123 = vrot.lane.b32.xlu0 %v3052, 80
        %v3124 = vpop.permute.xlu0 %3123
        %3125 = vrot.lane.b32.xlu0 %v3053, 80
        %v3126 = vpop.permute.xlu0 %3125
        %3127 = vrot.lane.b32.xlu0 %v3054, 80
        %v3128 = vpop.permute.xlu0 %3127
        %3129 = vrot.lane.b32.xlu0 %v3055, 80
        %v3130 = vpop.permute.xlu0 %3129
        %3131 = vrot.lane.b32.xlu0 %v3056, 80
        %v3132 = vpop.permute.xlu0 %3131
        %3133 = vrot.lane.b32.xlu0 %v3057, 80
        %v3134 = vpop.permute.xlu0 %3133
        %3135 = vrot.lane.b32.xlu0 %v3058, 80
        %v3136 = vpop.permute.xlu0 %3135
        %3137 = vrot.lane.b32.xlu0 %v3059, 80
        %v3138 = vpop.permute.xlu0 %3137
        %3139 = vrot.lane.b32.xlu0 %v3060, 80
        %v3140 = vpop.permute.xlu0 %3139
        %3141 = vrot.lane.b32.xlu0 %v3061, 80
        %v3142 = vpop.permute.xlu0 %3141
        %3143 = vrot.lane.b32.xlu0 %v3062, 80
        %v3144 = vpop.permute.xlu0 %3143
        %3145 = vrot.lane.b32.xlu0 %v3063, 80
        %v3146 = vpop.permute.xlu0 %3145
        %3147 = vrot.lane.b32.xlu0 %v3064, 80
        %v3148 = vpop.permute.xlu0 %3147
        %3149 = vrot.lane.b32.xlu0 %v3065, 80
        %v3150 = vpop.permute.xlu0 %3149
        %3151 = vrot.lane.b32.xlu0 %v3066, 80
        %v3152 = vpop.permute.xlu0 %3151
        %3153 = vrot.lane.b32.xlu0 %v3067, 80
        %v3154 = vpop.permute.xlu0 %3153
        %3155 = vrot.lane.b32.xlu0 %v3068, 80
        %v3156 = vpop.permute.xlu0 %3155
        %3157 = vrot.lane.b32.xlu0 %v3069, 80
        %v3158 = vpop.permute.xlu0 %3157
        %3159 = vrot.lane.b32.xlu0 %v3070, 80
        %v3160 = vpop.permute.xlu0 %3159
        %3161 = vrot.lane.b32.xlu0 %v3071, 80
        %v3162 = vpop.permute.xlu0 %3161
        %3163 = vrot.lane.b32.xlu0 %v3072, 80
        %v3164 = vpop.permute.xlu0 %3163
        %3165 = vrot.lane.b32.xlu0 %v3073, 80
        %v3166 = vpop.permute.xlu0 %3165
        %3167 = vrot.lane.b32.xlu0 %v3074, 80
        %v3168 = vpop.permute.xlu0 %3167
        %3169 = vrot.lane.b32.xlu0 %v3075, 80
        %v3170 = vpop.permute.xlu0 %3169
        %3171 = vrot.lane.b32.xlu0 %v3076, 80
        %v3172 = vpop.permute.xlu0 %3171
        %vm3205 = vcmask 786048
        %3206 = vst.msk [vmem:[#allocation4] sm:$0xff] %vm3205, %v3110
        %3207 = vst.msk [vmem:[#allocation4 + $0x10] sm:$0xff] %vm3205, %v3112
        %3208 = vst.msk [vmem:[#allocation4 + $0x20] sm:$0xff] %vm3205, %v3114
        %3209 = vst.msk [vmem:[#allocation4 + $0x30] sm:$0xff] %vm3205, %v3116
        %3210 = vst.msk [vmem:[#allocation4 + $0x40] sm:$0xff] %vm3205, %v3118
        %3211 = vst.msk [vmem:[#allocation4 + $0x50] sm:$0xff] %vm3205, %v3120
        %3212 = vst.msk [vmem:[#allocation4 + $0x60] sm:$0xff] %vm3205, %v3122
        %3213 = vst.msk [vmem:[#allocation4 + $0x70] sm:$0xff] %vm3205, %v3124
        %3214 = vst.msk [vmem:[#allocation4 + $0x80] sm:$0xff] %vm3205, %v3126
        %3215 = vst.msk [vmem:[#allocation4 + $0x90] sm:$0xff] %vm3205, %v3128
        %3216 = vst.msk [vmem:[#allocation4 + $0xa0] sm:$0xff] %vm3205, %v3130
        %3217 = vst.msk [vmem:[#allocation4 + $0xb0] sm:$0xff] %vm3205, %v3132
        %3218 = vst.msk [vmem:[#allocation4 + $0xc0] sm:$0xff] %vm3205, %v3134
        %3219 = vst.msk [vmem:[#allocation4 + $0xd0] sm:$0xff] %vm3205, %v3136
        %3220 = vst.msk [vmem:[#allocation4 + $0xe0] sm:$0xff] %vm3205, %v3138
        %3221 = vst.msk [vmem:[#allocation4 + $0xf0] sm:$0xff] %vm3205, %v3140
        %3222 = vst.msk [vmem:[#allocation4 + $0x100] sm:$0xff] %vm3205, %v3142
        %3223 = vst.msk [vmem:[#allocation4 + $0x110] sm:$0xff] %vm3205, %v3144
        %3224 = vst.msk [vmem:[#allocation4 + $0x120] sm:$0xff] %vm3205, %v3146
        %3225 = vst.msk [vmem:[#allocation4 + $0x130] sm:$0xff] %vm3205, %v3148
        %3226 = vst.msk [vmem:[#allocation4 + $0x140] sm:$0xff] %vm3205, %v3150
        %3227 = vst.msk [vmem:[#allocation4 + $0x150] sm:$0xff] %vm3205, %v3152
        %3228 = vst.msk [vmem:[#allocation4 + $0x160] sm:$0xff] %vm3205, %v3154
        %3229 = vst.msk [vmem:[#allocation4 + $0x170] sm:$0xff] %vm3205, %v3156
        %3230 = vst.msk [vmem:[#allocation4 + $0x180] sm:$0xff] %vm3205, %v3158
        %3231 = vst.msk [vmem:[#allocation4 + $0x190] sm:$0xff] %vm3205, %v3160
        %3232 = vst.msk [vmem:[#allocation4 + $0x1a0] sm:$0xff] %vm3205, %v3162
        %3233 = vst.msk [vmem:[#allocation4 + $0x1b0] sm:$0xff] %vm3205, %v3164
        %3234 = vst.msk [vmem:[#allocation4 + $0x1c0] sm:$0xff] %vm3205, %v3166
        %3235 = vst.msk [vmem:[#allocation4 + $0x1d0] sm:$0xff] %vm3205, %v3168
        %3236 = vst.msk [vmem:[#allocation4 + $0x1e0] sm:$0xff] %vm3205, %v3170
        %3237 = vst.msk [vmem:[#allocation4 + $0x1f0] sm:$0xff] %vm3205, %v3172
        %s3238 = scalar_lea.vmem [#allocation3], 48
        %v3239 = vld [vmem:[%s3238] sm:$0xff]
        %v3240 = vld [vmem:[%s3238 + $0x8] sm:$0xff]
        %v3241 = vld [vmem:[%s3238 + $0x18] sm:$0xff]
        %v3242 = vld [vmem:[%s3238 + $0x20] sm:$0xff]
        %v3243 = vld [vmem:[%s3238 + $0x30] sm:$0xff]
        %v3244 = vld [vmem:[%s3238 + $0x38] sm:$0xff]
        %v3245 = vld [vmem:[%s3238 + $0x48] sm:$0xff]
        %v3246 = vld [vmem:[%s3238 + $0x50] sm:$0xff]
        %v3247 = vld [vmem:[%s3238 + $0x60] sm:$0xff]
        %v3248 = vld [vmem:[%s3238 + $0x68] sm:$0xff]
        %v3249 = vld [vmem:[%s3238 + $0x78] sm:$0xff]
        %v3250 = vld [vmem:[%s3238 + $0x80] sm:$0xff]
        %v3251 = vld [vmem:[%s3238 + $0x90] sm:$0xff]
        %v3252 = vld [vmem:[%s3238 + $0x98] sm:$0xff]
        %v3253 = vld [vmem:[%s3238 + $0xa8] sm:$0xff]
        %v3254 = vld [vmem:[%s3238 + $0xb0] sm:$0xff]
        %v3255 = vld [vmem:[%s3238 + $0xc0] sm:$0xff]
        %v3256 = vld [vmem:[%s3238 + $0xc8] sm:$0xff]
        %v3257 = vld [vmem:[%s3238 + $0xd8] sm:$0xff]
        %v3258 = vld [vmem:[%s3238 + $0xe0] sm:$0xff]
        %v3259 = vld [vmem:[%s3238 + $0xf0] sm:$0xff]
        %v3260 = vld [vmem:[%s3238 + $0xf8] sm:$0xff]
        %v3261 = vld [vmem:[%s3238 + $0x108] sm:$0xff]
        %v3262 = vld [vmem:[%s3238 + $0x110] sm:$0xff]
        %v3263 = vld [vmem:[%s3238 + $0x120] sm:$0xff]
        %v3264 = vld [vmem:[%s3238 + $0x128] sm:$0xff]
        %v3265 = vld [vmem:[%s3238 + $0x138] sm:$0xff]
        %v3266 = vld [vmem:[%s3238 + $0x140] sm:$0xff]
        %v3267 = vld [vmem:[%s3238 + $0x150] sm:$0xff]
        %v3268 = vld [vmem:[%s3238 + $0x158] sm:$0xff]
        %v3269 = vld [vmem:[%s3238 + $0x168] sm:$0xff]
        %v3270 = vld [vmem:[%s3238 + $0x170] sm:$0xff]
        %3303 = vrot.lane.b32.xlu0 %v3239, 96
        %v3304 = vpop.permute.xlu0 %3303
        %3305 = vrot.lane.b32.xlu0 %v3240, 96
        %v3306 = vpop.permute.xlu0 %3305
        %3307 = vrot.lane.b32.xlu0 %v3241, 96
        %v3308 = vpop.permute.xlu0 %3307
        %3309 = vrot.lane.b32.xlu0 %v3242, 96
        %v3310 = vpop.permute.xlu0 %3309
        %3311 = vrot.lane.b32.xlu0 %v3243, 96
        %v3312 = vpop.permute.xlu0 %3311
        %3313 = vrot.lane.b32.xlu0 %v3244, 96
        %v3314 = vpop.permute.xlu0 %3313
        %3315 = vrot.lane.b32.xlu0 %v3245, 96
        %v3316 = vpop.permute.xlu0 %3315
        %3317 = vrot.lane.b32.xlu0 %v3246, 96
        %v3318 = vpop.permute.xlu0 %3317
        %3319 = vrot.lane.b32.xlu0 %v3247, 96
        %v3320 = vpop.permute.xlu0 %3319
        %3321 = vrot.lane.b32.xlu0 %v3248, 96
        %v3322 = vpop.permute.xlu0 %3321
        %3323 = vrot.lane.b32.xlu0 %v3249, 96
        %v3324 = vpop.permute.xlu0 %3323
        %3325 = vrot.lane.b32.xlu0 %v3250, 96
        %v3326 = vpop.permute.xlu0 %3325
        %3327 = vrot.lane.b32.xlu0 %v3251, 96
        %v3328 = vpop.permute.xlu0 %3327
        %3329 = vrot.lane.b32.xlu0 %v3252, 96
        %v3330 = vpop.permute.xlu0 %3329
        %3331 = vrot.lane.b32.xlu0 %v3253, 96
        %v3332 = vpop.permute.xlu0 %3331
        %3333 = vrot.lane.b32.xlu0 %v3254, 96
        %v3334 = vpop.permute.xlu0 %3333
        %3335 = vrot.lane.b32.xlu0 %v3255, 96
        %v3336 = vpop.permute.xlu0 %3335
        %3337 = vrot.lane.b32.xlu0 %v3256, 96
        %v3338 = vpop.permute.xlu0 %3337
        %3339 = vrot.lane.b32.xlu0 %v3257, 96
        %v3340 = vpop.permute.xlu0 %3339
        %3341 = vrot.lane.b32.xlu0 %v3258, 96
        %v3342 = vpop.permute.xlu0 %3341
        %3343 = vrot.lane.b32.xlu0 %v3259, 96
        %v3344 = vpop.permute.xlu0 %3343
        %3345 = vrot.lane.b32.xlu0 %v3260, 96
        %v3346 = vpop.permute.xlu0 %3345
        %3347 = vrot.lane.b32.xlu0 %v3261, 96
        %v3348 = vpop.permute.xlu0 %3347
        %3349 = vrot.lane.b32.xlu0 %v3262, 96
        %v3350 = vpop.permute.xlu0 %3349
        %3351 = vrot.lane.b32.xlu0 %v3263, 96
        %v3352 = vpop.permute.xlu0 %3351
        %3353 = vrot.lane.b32.xlu0 %v3264, 96
        %v3354 = vpop.permute.xlu0 %3353
        %3355 = vrot.lane.b32.xlu0 %v3265, 96
        %v3356 = vpop.permute.xlu0 %3355
        %3357 = vrot.lane.b32.xlu0 %v3266, 96
        %v3358 = vpop.permute.xlu0 %3357
        %3359 = vrot.lane.b32.xlu0 %v3267, 96
        %v3360 = vpop.permute.xlu0 %3359
        %3361 = vrot.lane.b32.xlu0 %v3268, 96
        %v3362 = vpop.permute.xlu0 %3361
        %3363 = vrot.lane.b32.xlu0 %v3269, 96
        %v3364 = vpop.permute.xlu0 %3363
        %3365 = vrot.lane.b32.xlu0 %v3270, 96
        %v3366 = vpop.permute.xlu0 %3365
        %vm3399 = vcmask 917248
        %3400 = vst.msk [vmem:[#allocation4] sm:$0xff] %vm3399, %v3304
        %3401 = vst.msk [vmem:[#allocation4 + $0x10] sm:$0xff] %vm3399, %v3306
        %3402 = vst.msk [vmem:[#allocation4 + $0x20] sm:$0xff] %vm3399, %v3308
        %3403 = vst.msk [vmem:[#allocation4 + $0x30] sm:$0xff] %vm3399, %v3310
        %3404 = vst.msk [vmem:[#allocation4 + $0x40] sm:$0xff] %vm3399, %v3312
        %3405 = vst.msk [vmem:[#allocation4 + $0x50] sm:$0xff] %vm3399, %v3314
        %3406 = vst.msk [vmem:[#allocation4 + $0x60] sm:$0xff] %vm3399, %v3316
        %3407 = vst.msk [vmem:[#allocation4 + $0x70] sm:$0xff] %vm3399, %v3318
        %3408 = vst.msk [vmem:[#allocation4 + $0x80] sm:$0xff] %vm3399, %v3320
        %3409 = vst.msk [vmem:[#allocation4 + $0x90] sm:$0xff] %vm3399, %v3322
        %3410 = vst.msk [vmem:[#allocation4 + $0xa0] sm:$0xff] %vm3399, %v3324
        %3411 = vst.msk [vmem:[#allocation4 + $0xb0] sm:$0xff] %vm3399, %v3326
        %3412 = vst.msk [vmem:[#allocation4 + $0xc0] sm:$0xff] %vm3399, %v3328
        %3413 = vst.msk [vmem:[#allocation4 + $0xd0] sm:$0xff] %vm3399, %v3330
        %3414 = vst.msk [vmem:[#allocation4 + $0xe0] sm:$0xff] %vm3399, %v3332
        %3415 = vst.msk [vmem:[#allocation4 + $0xf0] sm:$0xff] %vm3399, %v3334
        %3416 = vst.msk [vmem:[#allocation4 + $0x100] sm:$0xff] %vm3399, %v3336
        %3417 = vst.msk [vmem:[#allocation4 + $0x110] sm:$0xff] %vm3399, %v3338
        %3418 = vst.msk [vmem:[#allocation4 + $0x120] sm:$0xff] %vm3399, %v3340
        %3419 = vst.msk [vmem:[#allocation4 + $0x130] sm:$0xff] %vm3399, %v3342
        %3420 = vst.msk [vmem:[#allocation4 + $0x140] sm:$0xff] %vm3399, %v3344
        %3421 = vst.msk [vmem:[#allocation4 + $0x150] sm:$0xff] %vm3399, %v3346
        %3422 = vst.msk [vmem:[#allocation4 + $0x160] sm:$0xff] %vm3399, %v3348
        %3423 = vst.msk [vmem:[#allocation4 + $0x170] sm:$0xff] %vm3399, %v3350
        %3424 = vst.msk [vmem:[#allocation4 + $0x180] sm:$0xff] %vm3399, %v3352
        %3425 = vst.msk [vmem:[#allocation4 + $0x190] sm:$0xff] %vm3399, %v3354
        %3426 = vst.msk [vmem:[#allocation4 + $0x1a0] sm:$0xff] %vm3399, %v3356
        %3427 = vst.msk [vmem:[#allocation4 + $0x1b0] sm:$0xff] %vm3399, %v3358
        %3428 = vst.msk [vmem:[#allocation4 + $0x1c0] sm:$0xff] %vm3399, %v3360
        %3429 = vst.msk [vmem:[#allocation4 + $0x1d0] sm:$0xff] %vm3399, %v3362
        %3430 = vst.msk [vmem:[#allocation4 + $0x1e0] sm:$0xff] %vm3399, %v3364
        %3431 = vst.msk [vmem:[#allocation4 + $0x1f0] sm:$0xff] %vm3399, %v3366
        %v3432 = vld [vmem:[%s3238 + $0x1] sm:$0xff]
        %v3433 = vld [vmem:[%s3238 + $0x9] sm:$0xff]
        %v3434 = vld [vmem:[%s3238 + $0x19] sm:$0xff]
        %v3435 = vld [vmem:[%s3238 + $0x21] sm:$0xff]
        %v3436 = vld [vmem:[%s3238 + $0x31] sm:$0xff]
        %v3437 = vld [vmem:[%s3238 + $0x39] sm:$0xff]
        %v3438 = vld [vmem:[%s3238 + $0x49] sm:$0xff]
        %v3439 = vld [vmem:[%s3238 + $0x51] sm:$0xff]
        %v3440 = vld [vmem:[%s3238 + $0x61] sm:$0xff]
        %v3441 = vld [vmem:[%s3238 + $0x69] sm:$0xff]
        %v3442 = vld [vmem:[%s3238 + $0x79] sm:$0xff]
        %v3443 = vld [vmem:[%s3238 + $0x81] sm:$0xff]
        %v3444 = vld [vmem:[%s3238 + $0x91] sm:$0xff]
        %v3445 = vld [vmem:[%s3238 + $0x99] sm:$0xff]
        %v3446 = vld [vmem:[%s3238 + $0xa9] sm:$0xff]
        %v3447 = vld [vmem:[%s3238 + $0xb1] sm:$0xff]
        %v3448 = vld [vmem:[%s3238 + $0xc1] sm:$0xff]
        %v3449 = vld [vmem:[%s3238 + $0xc9] sm:$0xff]
        %v3450 = vld [vmem:[%s3238 + $0xd9] sm:$0xff]
        %v3451 = vld [vmem:[%s3238 + $0xe1] sm:$0xff]
        %v3452 = vld [vmem:[%s3238 + $0xf1] sm:$0xff]
        %v3453 = vld [vmem:[%s3238 + $0xf9] sm:$0xff]
        %v3454 = vld [vmem:[%s3238 + $0x109] sm:$0xff]
        %v3455 = vld [vmem:[%s3238 + $0x111] sm:$0xff]
        %v3456 = vld [vmem:[%s3238 + $0x121] sm:$0xff]
        %v3457 = vld [vmem:[%s3238 + $0x129] sm:$0xff]
        %v3458 = vld [vmem:[%s3238 + $0x139] sm:$0xff]
        %v3459 = vld [vmem:[%s3238 + $0x141] sm:$0xff]
        %v3460 = vld [vmem:[%s3238 + $0x151] sm:$0xff]
        %v3461 = vld [vmem:[%s3238 + $0x159] sm:$0xff]
        %v3462 = vld [vmem:[%s3238 + $0x169] sm:$0xff]
        %v3463 = vld [vmem:[%s3238 + $0x171] sm:$0xff]
        %3496 = vrot.lane.b32.xlu0 %v3432, 112
        %v3497 = vpop.permute.xlu0 %3496
        %3498 = vrot.lane.b32.xlu0 %v3433, 112
        %v3499 = vpop.permute.xlu0 %3498
        %3500 = vrot.lane.b32.xlu0 %v3434, 112
        %v3501 = vpop.permute.xlu0 %3500
        %3502 = vrot.lane.b32.xlu0 %v3435, 112
        %v3503 = vpop.permute.xlu0 %3502
        %3504 = vrot.lane.b32.xlu0 %v3436, 112
        %v3505 = vpop.permute.xlu0 %3504
        %3506 = vrot.lane.b32.xlu0 %v3437, 112
        %v3507 = vpop.permute.xlu0 %3506
        %3508 = vrot.lane.b32.xlu0 %v3438, 112
        %v3509 = vpop.permute.xlu0 %3508
        %3510 = vrot.lane.b32.xlu0 %v3439, 112
        %v3511 = vpop.permute.xlu0 %3510
        %3512 = vrot.lane.b32.xlu0 %v3440, 112
        %v3513 = vpop.permute.xlu0 %3512
        %3514 = vrot.lane.b32.xlu0 %v3441, 112
        %v3515 = vpop.permute.xlu0 %3514
        %3516 = vrot.lane.b32.xlu0 %v3442, 112
        %v3517 = vpop.permute.xlu0 %3516
        %3518 = vrot.lane.b32.xlu0 %v3443, 112
        %v3519 = vpop.permute.xlu0 %3518
        %3520 = vrot.lane.b32.xlu0 %v3444, 112
        %v3521 = vpop.permute.xlu0 %3520
        %3522 = vrot.lane.b32.xlu0 %v3445, 112
        %v3523 = vpop.permute.xlu0 %3522
        %3524 = vrot.lane.b32.xlu0 %v3446, 112
        %v3525 = vpop.permute.xlu0 %3524
        %3526 = vrot.lane.b32.xlu0 %v3447, 112
        %v3527 = vpop.permute.xlu0 %3526
        %3528 = vrot.lane.b32.xlu0 %v3448, 112
        %v3529 = vpop.permute.xlu0 %3528
        %3530 = vrot.lane.b32.xlu0 %v3449, 112
        %v3531 = vpop.permute.xlu0 %3530
        %3532 = vrot.lane.b32.xlu0 %v3450, 112
        %v3533 = vpop.permute.xlu0 %3532
        %3534 = vrot.lane.b32.xlu0 %v3451, 112
        %v3535 = vpop.permute.xlu0 %3534
        %3536 = vrot.lane.b32.xlu0 %v3452, 112
        %v3537 = vpop.permute.xlu0 %3536
        %3538 = vrot.lane.b32.xlu0 %v3453, 112
        %v3539 = vpop.permute.xlu0 %3538
        %3540 = vrot.lane.b32.xlu0 %v3454, 112
        %v3541 = vpop.permute.xlu0 %3540
        %3542 = vrot.lane.b32.xlu0 %v3455, 112
        %v3543 = vpop.permute.xlu0 %3542
        %3544 = vrot.lane.b32.xlu0 %v3456, 112
        %v3545 = vpop.permute.xlu0 %3544
        %3546 = vrot.lane.b32.xlu0 %v3457, 112
        %v3547 = vpop.permute.xlu0 %3546
        %3548 = vrot.lane.b32.xlu0 %v3458, 112
        %v3549 = vpop.permute.xlu0 %3548
        %3550 = vrot.lane.b32.xlu0 %v3459, 112
        %v3551 = vpop.permute.xlu0 %3550
        %3552 = vrot.lane.b32.xlu0 %v3460, 112
        %v3553 = vpop.permute.xlu0 %3552
        %3554 = vrot.lane.b32.xlu0 %v3461, 112
        %v3555 = vpop.permute.xlu0 %3554
        %3556 = vrot.lane.b32.xlu0 %v3462, 112
        %v3557 = vpop.permute.xlu0 %3556
        %3558 = vrot.lane.b32.xlu0 %v3463, 112
        %v3559 = vpop.permute.xlu0 %3558
        %vm3592 = vcmask 1048448
        %3593 = vst.msk [vmem:[#allocation4] sm:$0xff] %vm3592, %v3497
        %3594 = vst.msk [vmem:[#allocation4 + $0x10] sm:$0xff] %vm3592, %v3499
        %3595 = vst.msk [vmem:[#allocation4 + $0x20] sm:$0xff] %vm3592, %v3501
        %3596 = vst.msk [vmem:[#allocation4 + $0x30] sm:$0xff] %vm3592, %v3503
        %3597 = vst.msk [vmem:[#allocation4 + $0x40] sm:$0xff] %vm3592, %v3505
        %3598 = vst.msk [vmem:[#allocation4 + $0x50] sm:$0xff] %vm3592, %v3507
        %3599 = vst.msk [vmem:[#allocation4 + $0x60] sm:$0xff] %vm3592, %v3509
        %3600 = vst.msk [vmem:[#allocation4 + $0x70] sm:$0xff] %vm3592, %v3511
        %3601 = vst.msk [vmem:[#allocation4 + $0x80] sm:$0xff] %vm3592, %v3513
        %3602 = vst.msk [vmem:[#allocation4 + $0x90] sm:$0xff] %vm3592, %v3515
        %3603 = vst.msk [vmem:[#allocation4 + $0xa0] sm:$0xff] %vm3592, %v3517
        %3604 = vst.msk [vmem:[#allocation4 + $0xb0] sm:$0xff] %vm3592, %v3519
        %3605 = vst.msk [vmem:[#allocation4 + $0xc0] sm:$0xff] %vm3592, %v3521
        %3606 = vst.msk [vmem:[#allocation4 + $0xd0] sm:$0xff] %vm3592, %v3523
        %3607 = vst.msk [vmem:[#allocation4 + $0xe0] sm:$0xff] %vm3592, %v3525
        %3608 = vst.msk [vmem:[#allocation4 + $0xf0] sm:$0xff] %vm3592, %v3527
        %3609 = vst.msk [vmem:[#allocation4 + $0x100] sm:$0xff] %vm3592, %v3529
        %3610 = vst.msk [vmem:[#allocation4 + $0x110] sm:$0xff] %vm3592, %v3531
        %3611 = vst.msk [vmem:[#allocation4 + $0x120] sm:$0xff] %vm3592, %v3533
        %3612 = vst.msk [vmem:[#allocation4 + $0x130] sm:$0xff] %vm3592, %v3535
        %3613 = vst.msk [vmem:[#allocation4 + $0x140] sm:$0xff] %vm3592, %v3537
        %3614 = vst.msk [vmem:[#allocation4 + $0x150] sm:$0xff] %vm3592, %v3539
        %3615 = vst.msk [vmem:[#allocation4 + $0x160] sm:$0xff] %vm3592, %v3541
        %3616 = vst.msk [vmem:[#allocation4 + $0x170] sm:$0xff] %vm3592, %v3543
        %3617 = vst.msk [vmem:[#allocation4 + $0x180] sm:$0xff] %vm3592, %v3545
        %3618 = vst.msk [vmem:[#allocation4 + $0x190] sm:$0xff] %vm3592, %v3547
        %3619 = vst.msk [vmem:[#allocation4 + $0x1a0] sm:$0xff] %vm3592, %v3549
        %3620 = vst.msk [vmem:[#allocation4 + $0x1b0] sm:$0xff] %vm3592, %v3551
        %3621 = vst.msk [vmem:[#allocation4 + $0x1c0] sm:$0xff] %vm3592, %v3553
        %3622 = vst.msk [vmem:[#allocation4 + $0x1d0] sm:$0xff] %vm3592, %v3555
        %3623 = vst.msk [vmem:[#allocation4 + $0x1e0] sm:$0xff] %vm3592, %v3557
        %3624 = vst.msk [vmem:[#allocation4 + $0x1f0] sm:$0xff] %vm3592, %v3559
        %v3625 = vld [vmem:[%s3238 + $0x2] sm:$0xff]
        %v3626 = vld [vmem:[%s3238 + $0xa] sm:$0xff]
        %v3627 = vld [vmem:[%s3238 + $0x1a] sm:$0xff]
        %v3628 = vld [vmem:[%s3238 + $0x22] sm:$0xff]
        %v3629 = vld [vmem:[%s3238 + $0x32] sm:$0xff]
        %v3630 = vld [vmem:[%s3238 + $0x3a] sm:$0xff]
        %v3631 = vld [vmem:[%s3238 + $0x4a] sm:$0xff]
        %v3632 = vld [vmem:[%s3238 + $0x52] sm:$0xff]
        %v3633 = vld [vmem:[%s3238 + $0x62] sm:$0xff]
        %v3634 = vld [vmem:[%s3238 + $0x6a] sm:$0xff]
        %v3635 = vld [vmem:[%s3238 + $0x7a] sm:$0xff]
        %v3636 = vld [vmem:[%s3238 + $0x82] sm:$0xff]
        %v3637 = vld [vmem:[%s3238 + $0x92] sm:$0xff]
        %v3638 = vld [vmem:[%s3238 + $0x9a] sm:$0xff]
        %v3639 = vld [vmem:[%s3238 + $0xaa] sm:$0xff]
        %v3640 = vld [vmem:[%s3238 + $0xb2] sm:$0xff]
        %v3641 = vld [vmem:[%s3238 + $0xc2] sm:$0xff]
        %v3642 = vld [vmem:[%s3238 + $0xca] sm:$0xff]
        %v3643 = vld [vmem:[%s3238 + $0xda] sm:$0xff]
        %v3644 = vld [vmem:[%s3238 + $0xe2] sm:$0xff]
        %v3645 = vld [vmem:[%s3238 + $0xf2] sm:$0xff]
        %v3646 = vld [vmem:[%s3238 + $0xfa] sm:$0xff]
        %v3647 = vld [vmem:[%s3238 + $0x10a] sm:$0xff]
        %v3648 = vld [vmem:[%s3238 + $0x112] sm:$0xff]
        %v3649 = vld [vmem:[%s3238 + $0x122] sm:$0xff]
        %v3650 = vld [vmem:[%s3238 + $0x12a] sm:$0xff]
        %v3651 = vld [vmem:[%s3238 + $0x13a] sm:$0xff]
        %v3652 = vld [vmem:[%s3238 + $0x142] sm:$0xff]
        %v3653 = vld [vmem:[%s3238 + $0x152] sm:$0xff]
        %v3654 = vld [vmem:[%s3238 + $0x15a] sm:$0xff]
        %v3655 = vld [vmem:[%s3238 + $0x16a] sm:$0xff]
        %v3656 = vld [vmem:[%s3238 + $0x172] sm:$0xff]
        %3657 = vst.msk [vmem:[#allocation4 + $0x8] sm:$0xff] %vm2056, %v3625
        %3658 = vst.msk [vmem:[#allocation4 + $0x18] sm:$0xff] %vm2056, %v3626
        %3659 = vst.msk [vmem:[#allocation4 + $0x28] sm:$0xff] %vm2056, %v3627
        %3660 = vst.msk [vmem:[#allocation4 + $0x38] sm:$0xff] %vm2056, %v3628
        %3661 = vst.msk [vmem:[#allocation4 + $0x48] sm:$0xff] %vm2056, %v3629
        %3662 = vst.msk [vmem:[#allocation4 + $0x58] sm:$0xff] %vm2056, %v3630
        %3663 = vst.msk [vmem:[#allocation4 + $0x68] sm:$0xff] %vm2056, %v3631
        %3664 = vst.msk [vmem:[#allocation4 + $0x78] sm:$0xff] %vm2056, %v3632
        %3665 = vst.msk [vmem:[#allocation4 + $0x88] sm:$0xff] %vm2056, %v3633
        %3666 = vst.msk [vmem:[#allocation4 + $0x98] sm:$0xff] %vm2056, %v3634
        %3667 = vst.msk [vmem:[#allocation4 + $0xa8] sm:$0xff] %vm2056, %v3635
        %3668 = vst.msk [vmem:[#allocation4 + $0xb8] sm:$0xff] %vm2056, %v3636
        %3669 = vst.msk [vmem:[#allocation4 + $0xc8] sm:$0xff] %vm2056, %v3637
        %3670 = vst.msk [vmem:[#allocation4 + $0xd8] sm:$0xff] %vm2056, %v3638
        %3671 = vst.msk [vmem:[#allocation4 + $0xe8] sm:$0xff] %vm2056, %v3639
        %3672 = vst.msk [vmem:[#allocation4 + $0xf8] sm:$0xff] %vm2056, %v3640
        %3673 = vst.msk [vmem:[#allocation4 + $0x108] sm:$0xff] %vm2056, %v3641
        %3674 = vst.msk [vmem:[#allocation4 + $0x118] sm:$0xff] %vm2056, %v3642
        %3675 = vst.msk [vmem:[#allocation4 + $0x128] sm:$0xff] %vm2056, %v3643
        %3676 = vst.msk [vmem:[#allocation4 + $0x138] sm:$0xff] %vm2056, %v3644
        %3677 = vst.msk [vmem:[#allocation4 + $0x148] sm:$0xff] %vm2056, %v3645
        %3678 = vst.msk [vmem:[#allocation4 + $0x158] sm:$0xff] %vm2056, %v3646
        %3679 = vst.msk [vmem:[#allocation4 + $0x168] sm:$0xff] %vm2056, %v3647
        %3680 = vst.msk [vmem:[#allocation4 + $0x178] sm:$0xff] %vm2056, %v3648
        %3681 = vst.msk [vmem:[#allocation4 + $0x188] sm:$0xff] %vm2056, %v3649
        %3682 = vst.msk [vmem:[#allocation4 + $0x198] sm:$0xff] %vm2056, %v3650
        %3683 = vst.msk [vmem:[#allocation4 + $0x1a8] sm:$0xff] %vm2056, %v3651
        %3684 = vst.msk [vmem:[#allocation4 + $0x1b8] sm:$0xff] %vm2056, %v3652
        %3685 = vst.msk [vmem:[#allocation4 + $0x1c8] sm:$0xff] %vm2056, %v3653
        %3686 = vst.msk [vmem:[#allocation4 + $0x1d8] sm:$0xff] %vm2056, %v3654
        %3687 = vst.msk [vmem:[#allocation4 + $0x1e8] sm:$0xff] %vm2056, %v3655
        %3688 = vst.msk [vmem:[#allocation4 + $0x1f8] sm:$0xff] %vm2056, %v3656
        %v3689 = vld [vmem:[%s3] sm:$0xf]
        %v3690 = vld [vmem:[%s3 + $0x4] sm:$0xf]
        %v3691 = vld [vmem:[%s3 + $0x8] sm:$0xf]
        %v3692 = vld [vmem:[%s3 + $0xc] sm:$0xf]
        %v3693 = vld [vmem:[%s3 + $0x10] sm:$0xf]
        %v3694 = vld [vmem:[%s3 + $0x14] sm:$0xf]
        %v3695 = vld [vmem:[%s3 + $0x18] sm:$0xf]
        %v3696 = vld [vmem:[%s3 + $0x1c] sm:$0xf]
        %v3697 = vld [vmem:[%s3 + $0x20] sm:$0xf]
        %v3698 = vld [vmem:[%s3 + $0x24] sm:$0xf]
        %v3699 = vld [vmem:[%s3 + $0x28] sm:$0xf]
        %v3700 = vld [vmem:[%s3 + $0x2c] sm:$0xf]
        %v3701 = vld [vmem:[%s3 + $0x30] sm:$0xf]
        %v3702 = vld [vmem:[%s3 + $0x34] sm:$0xf]
        %v3703 = vld [vmem:[%s3 + $0x38] sm:$0xf]
        %v3704 = vld [vmem:[%s3 + $0x3c] sm:$0xf]
        %v3705 = vld [vmem:[%s3 + $0x40] sm:$0xf]
        %v3706 = vld [vmem:[%s3 + $0x44] sm:$0xf]
        %v3707 = vld [vmem:[%s3 + $0x48] sm:$0xf]
        %v3708 = vld [vmem:[%s3 + $0x4c] sm:$0xf]
        %v3709 = vld [vmem:[%s3 + $0x50] sm:$0xf]
        %v3710 = vld [vmem:[%s3 + $0x54] sm:$0xf]
        %v3711 = vld [vmem:[%s3 + $0x58] sm:$0xf]
        %v3712 = vld [vmem:[%s3 + $0x5c] sm:$0xf]
        %v3713 = vld [vmem:[%s3 + $0x60] sm:$0xf]
        %v3714 = vld [vmem:[%s3 + $0x64] sm:$0xf]
        %v3715 = vld [vmem:[%s3 + $0x68] sm:$0xf]
        %v3716 = vld [vmem:[%s3 + $0x6c] sm:$0xf]
        %v3717 = vld [vmem:[%s3 + $0x70] sm:$0xf]
        %v3718 = vld [vmem:[%s3 + $0x74] sm:$0xf]
        %v3719 = vld [vmem:[%s3 + $0x78] sm:$0xf]
        %v3720 = vld [vmem:[%s3 + $0x7c] sm:$0xf]
        %v3721 = vld [vmem:[#allocation4] sm:$0xff]
        %v3722 = vld [vmem:[#allocation4 + $0x8] sm:$0xff]
        %v3723 = vld [vmem:[#allocation4 + $0x10] sm:$0xff]
        %v3724 = vld [vmem:[#allocation4 + $0x18] sm:$0xff]
        %v3725 = vpack.c.bf16 %v3723, %v3721
        %v3726 = vpack.c.bf16 %v3724, %v3722
        %v3759 = vunpack.c.l.b16 %v3689
        %v3760 = vunpack.c.l.b16 %v3690
        %v3761 = vunpack.c.l.b16 %v3691
        %v3762 = vunpack.c.l.b16 %v3692
        %v3763 = vunpack.c.l.b16 %v3693
        %v3764 = vunpack.c.l.b16 %v3694
        %v3765 = vunpack.c.l.b16 %v3695
        %v3766 = vunpack.c.l.b16 %v3696
        %v3767 = vunpack.c.l.b16 %v3697
        %v3768 = vunpack.c.l.b16 %v3698
        %v3769 = vunpack.c.l.b16 %v3699
        %v3770 = vunpack.c.l.b16 %v3700
        %v3771 = vunpack.c.l.b16 %v3701
        %v3772 = vunpack.c.l.b16 %v3702
        %v3773 = vunpack.c.l.b16 %v3703
        %v3774 = vunpack.c.l.b16 %v3704
        %v3775 = vunpack.c.l.b16 %v3705
        %v3776 = vunpack.c.l.b16 %v3706
        %v3777 = vunpack.c.l.b16 %v3707
        %v3778 = vunpack.c.l.b16 %v3708
        %v3779 = vunpack.c.l.b16 %v3709
        %v3780 = vunpack.c.l.b16 %v3710
        %v3781 = vunpack.c.l.b16 %v3711
        %v3782 = vunpack.c.l.b16 %v3712
        %v3783 = vunpack.c.l.b16 %v3713
        %v3784 = vunpack.c.l.b16 %v3714
        %v3785 = vunpack.c.l.b16 %v3715
        %v3786 = vunpack.c.l.b16 %v3716
        %v3787 = vunpack.c.l.b16 %v3717
        %v3788 = vunpack.c.l.b16 %v3718
        %v3789 = vunpack.c.l.b16 %v3719
        %v3790 = vunpack.c.l.b16 %v3720
        %v3791 = vpack.c.b16 %v3760, %v3759
        %v3792 = vpack.c.b16 %v3762, %v3761
        %v3793 = vpack.c.b16 %v3764, %v3763
        %v3794 = vpack.c.b16 %v3766, %v3765
        %v3795 = vpack.c.b16 %v3768, %v3767
        %v3796 = vpack.c.b16 %v3770, %v3769
        %v3797 = vpack.c.b16 %v3772, %v3771
        %v3798 = vpack.c.b16 %v3774, %v3773
        %v3799 = vpack.c.b16 %v3776, %v3775
        %v3800 = vpack.c.b16 %v3778, %v3777
        %v3801 = vpack.c.b16 %v3780, %v3779
        %v3802 = vpack.c.b16 %v3782, %v3781
        %v3803 = vpack.c.b16 %v3784, %v3783
        %v3804 = vpack.c.b16 %v3786, %v3785
        %v3805 = vpack.c.b16 %v3788, %v3787
        %v3806 = vpack.c.b16 %v3790, %v3789
        %3823 = vmatprep.subr.bf16.mxu0 0
        %3824 = vmatpush1.bf16.msra.mxu0 %v3791
        %3825 = vmatprep.subr.bf16.mxu0 0
        %3826 = vmatpush1.bf16.msra.mxu0 %v3792
        %3827 = vmatprep.subr.bf16.mxu0 0
        %3828 = vmatpush1.bf16.msra.mxu0 %v3793
        %3829 = vmatprep.subr.bf16.mxu0 0
        %3830 = vmatpush1.bf16.msra.mxu0 %v3794
        %3831 = vmatprep.subr.bf16.mxu0 0
        %3832 = vmatpush1.bf16.msra.mxu0 %v3795
        %3833 = vmatprep.subr.bf16.mxu0 0
        %3834 = vmatpush1.bf16.msra.mxu0 %v3796
        %3835 = vmatprep.subr.bf16.mxu0 0
        %3836 = vmatpush1.bf16.msra.mxu0 %v3797
        %3837 = vmatprep.subr.bf16.mxu0 0
        %3838 = vmatpush1.bf16.msra.mxu0 %v3798
        %3839 = vmatprep.subr.bf16.mxu0 0
        %3840 = vmatpush1.bf16.msra.mxu0 %v3799
        %3841 = vmatprep.subr.bf16.mxu0 0
        %3842 = vmatpush1.bf16.msra.mxu0 %v3800
        %3843 = vmatprep.subr.bf16.mxu0 0
        %3844 = vmatpush1.bf16.msra.mxu0 %v3801
        %3845 = vmatprep.subr.bf16.mxu0 0
        %3846 = vmatpush1.bf16.msra.mxu0 %v3802
        %3847 = vmatprep.subr.bf16.mxu0 0
        %3848 = vmatpush1.bf16.msra.mxu0 %v3803
        %3849 = vmatprep.subr.bf16.mxu0 0
        %3850 = vmatpush1.bf16.msra.mxu0 %v3804
        %3851 = vmatprep.subr.bf16.mxu0 0
        %3852 = vmatpush1.bf16.msra.mxu0 %v3805
        %3853 = vmatprep.subr.bf16.mxu0 0
        %3854 = vmatpush1.bf16.msra.mxu0 %v3806
        %3855 = vmatprep.mubr.bf16.mxu0 %v3726
        %3856 = vmatmul.mubr.bf16.gmra.mrb[0].mxu0 %v3725
        %v3857 = vpop.f32.mrb[0].mxu0
        %v3858 = vadd.f32 0.0, %v3857
        %v3859 = vpop.f32.mrb[0].mxu0
        %v3860 = vpop.f32.mrb[0].mxu0
        %v3861 = vadd.f32 0.0, %v3860
        %v3862 = vpop.f32.mrb[0].mxu0
        %3863 = vdwg.mxu0
        %3864 = vst [vmem:[#allocation5] sm:$0xff] %v3858
        %3865 = vst [vmem:[#allocation5 + $0x8] sm:$0xff] %v3861
        %s3866 = scalar_lea.vmem [#allocation4], 32
        %v3867 = vld [vmem:[%s3866] sm:$0xff]
        %v3868 = vld [vmem:[%s3866 + $0x8] sm:$0xff]
        %v3869 = vld [vmem:[%s3866 + $0x10] sm:$0xff]
        %v3870 = vld [vmem:[%s3866 + $0x18] sm:$0xff]
        %v3871 = vpack.c.bf16 %v3869, %v3867
        %v3872 = vpack.c.bf16 %v3870, %v3868
        %3873 = vmatprep.subr.bf16.mxu0 0
        %3874 = vmatpush1.bf16.msra.mxu0 %v3791
        %3875 = vmatprep.subr.bf16.mxu0 0
        %3876 = vmatpush1.bf16.msra.mxu0 %v3792
        %3877 = vmatprep.subr.bf16.mxu0 0
        %3878 = vmatpush1.bf16.msra.mxu0 %v3793
        %3879 = vmatprep.subr.bf16.mxu0 0
        %3880 = vmatpush1.bf16.msra.mxu0 %v3794
        %3881 = vmatprep.subr.bf16.mxu0 0
        %3882 = vmatpush1.bf16.msra.mxu0 %v3795
        %3883 = vmatprep.subr.bf16.mxu0 0
        %3884 = vmatpush1.bf16.msra.mxu0 %v3796
        %3885 = vmatprep.subr.bf16.mxu0 0
        %3886 = vmatpush1.bf16.msra.mxu0 %v3797
        %3887 = vmatprep.subr.bf16.mxu0 0
        %3888 = vmatpush1.bf16.msra.mxu0 %v3798
        %3889 = vmatprep.subr.bf16.mxu0 0
        %3890 = vmatpush1.bf16.msra.mxu0 %v3799
        %3891 = vmatprep.subr.bf16.mxu0 0
        %3892 = vmatpush1.bf16.msra.mxu0 %v3800
        %3893 = vmatprep.subr.bf16.mxu0 0
        %3894 = vmatpush1.bf16.msra.mxu0 %v3801
        %3895 = vmatprep.subr.bf16.mxu0 0
        %3896 = vmatpush1.bf16.msra.mxu0 %v3802
        %3897 = vmatprep.subr.bf16.mxu0 0
        %3898 = vmatpush1.bf16.msra.mxu0 %v3803
        %3899 = vmatprep.subr.bf16.mxu0 0
        %3900 = vmatpush1.bf16.msra.mxu0 %v3804
        %3901 = vmatprep.subr.bf16.mxu0 0
        %3902 = vmatpush1.bf16.msra.mxu0 %v3805
        %3903 = vmatprep.subr.bf16.mxu0 0
        %3904 = vmatpush1.bf16.msra.mxu0 %v3806
        %3905 = vmatprep.mubr.bf16.mxu0 %v3872
        %3906 = vmatmul.mubr.bf16.gmra.mrb[0].mxu0 %v3871
        %v3907 = vpop.f32.mrb[0].mxu0
        %v3908 = vadd.f32 0.0, %v3907
        %v3909 = vpop.f32.mrb[0].mxu0
        %v3910 = vpop.f32.mrb[0].mxu0
        %v3911 = vadd.f32 0.0, %v3910
        %v3912 = vpop.f32.mrb[0].mxu0
        %3913 = vdwg.mxu0
        %3914 = vst [vmem:[#allocation5 + $0x10] sm:$0xff] %v3908
        %3915 = vst [vmem:[#allocation5 + $0x18] sm:$0xff] %v3911
        %s3916 = scalar_lea.vmem [#allocation4], 64
        %v3917 = vld [vmem:[%s3916] sm:$0xff]
        %v3918 = vld [vmem:[%s3916 + $0x8] sm:$0xff]
        %v3919 = vld [vmem:[%s3916 + $0x10] sm:$0xff]
        %v3920 = vld [vmem:[%s3916 + $0x18] sm:$0xff]
        %v3921 = vpack.c.bf16 %v3919, %v3917
        %v3922 = vpack.c.bf16 %v3920, %v3918
        %3923 = vmatprep.subr.bf16.mxu0 0
        %3924 = vmatpush1.bf16.msra.mxu0 %v3791
        %3925 = vmatprep.subr.bf16.mxu0 0
        %3926 = vmatpush1.bf16.msra.mxu0 %v3792
        %3927 = vmatprep.subr.bf16.mxu0 0
        %3928 = vmatpush1.bf16.msra.mxu0 %v3793
        %3929 = vmatprep.subr.bf16.mxu0 0
        %3930 = vmatpush1.bf16.msra.mxu0 %v3794
        %3931 = vmatprep.subr.bf16.mxu0 0
        %3932 = vmatpush1.bf16.msra.mxu0 %v3795
        %3933 = vmatprep.subr.bf16.mxu0 0
        %3934 = vmatpush1.bf16.msra.mxu0 %v3796
        %3935 = vmatprep.subr.bf16.mxu0 0
        %3936 = vmatpush1.bf16.msra.mxu0 %v3797
        %3937 = vmatprep.subr.bf16.mxu0 0
        %3938 = vmatpush1.bf16.msra.mxu0 %v3798
        %3939 = vmatprep.subr.bf16.mxu0 0
        %3940 = vmatpush1.bf16.msra.mxu0 %v3799
        %3941 = vmatprep.subr.bf16.mxu0 0
        %3942 = vmatpush1.bf16.msra.mxu0 %v3800
        %3943 = vmatprep.subr.bf16.mxu0 0
        %3944 = vmatpush1.bf16.msra.mxu0 %v3801
        %3945 = vmatprep.subr.bf16.mxu0 0
        %3946 = vmatpush1.bf16.msra.mxu0 %v3802
        %3947 = vmatprep.subr.bf16.mxu0 0
        %3948 = vmatpush1.bf16.msra.mxu0 %v3803
        %3949 = vmatprep.subr.bf16.mxu0 0
        %3950 = vmatpush1.bf16.msra.mxu0 %v3804
        %3951 = vmatprep.subr.bf16.mxu0 0
        %3952 = vmatpush1.bf16.msra.mxu0 %v3805
        %3953 = vmatprep.subr.bf16.mxu0 0
        %3954 = vmatpush1.bf16.msra.mxu0 %v3806
        %3955 = vmatprep.mubr.bf16.mxu0 %v3922
        %3956 = vmatmul.mubr.bf16.gmra.mrb[0].mxu0 %v3921
        %v3957 = vpop.f32.mrb[0].mxu0
        %v3958 = vadd.f32 0.0, %v3957
        %v3959 = vpop.f32.mrb[0].mxu0
        %v3960 = vpop.f32.mrb[0].mxu0
        %v3961 = vadd.f32 0.0, %v3960
        %v3962 = vpop.f32.mrb[0].mxu0
        %3963 = vdwg.mxu0
        %3964 = vst [vmem:[#allocation5 + $0x20] sm:$0xff] %v3958
        %3965 = vst [vmem:[#allocation5 + $0x28] sm:$0xff] %v3961
        %s3966 = scalar_lea.vmem [#allocation4], 96
        %v3967 = vld [vmem:[%s3966] sm:$0xff]
        %v3968 = vld [vmem:[%s3966 + $0x8] sm:$0xff]
        %v3969 = vld [vmem:[%s3966 + $0x10] sm:$0xff]
        %v3970 = vld [vmem:[%s3966 + $0x18] sm:$0xff]
        %v3971 = vpack.c.bf16 %v3969, %v3967
        %v3972 = vpack.c.bf16 %v3970, %v3968
        %3973 = vmatprep.subr.bf16.mxu0 0
        %3974 = vmatpush1.bf16.msra.mxu0 %v3791
        %3975 = vmatprep.subr.bf16.mxu0 0
        %3976 = vmatpush1.bf16.msra.mxu0 %v3792
        %3977 = vmatprep.subr.bf16.mxu0 0
        %3978 = vmatpush1.bf16.msra.mxu0 %v3793
        %3979 = vmatprep.subr.bf16.mxu0 0
        %3980 = vmatpush1.bf16.msra.mxu0 %v3794
        %3981 = vmatprep.subr.bf16.mxu0 0
        %3982 = vmatpush1.bf16.msra.mxu0 %v3795
        %3983 = vmatprep.subr.bf16.mxu0 0
        %3984 = vmatpush1.bf16.msra.mxu0 %v3796
        %3985 = vmatprep.subr.bf16.mxu0 0
        %3986 = vmatpush1.bf16.msra.mxu0 %v3797
        %3987 = vmatprep.subr.bf16.mxu0 0
        %3988 = vmatpush1.bf16.msra.mxu0 %v3798
        %3989 = vmatprep.subr.bf16.mxu0 0
        %3990 = vmatpush1.bf16.msra.mxu0 %v3799
        %3991 = vmatprep.subr.bf16.mxu0 0
        %3992 = vmatpush1.bf16.msra.mxu0 %v3800
        %3993 = vmatprep.subr.bf16.mxu0 0
        %3994 = vmatpush1.bf16.msra.mxu0 %v3801
        %3995 = vmatprep.subr.bf16.mxu0 0
        %3996 = vmatpush1.bf16.msra.mxu0 %v3802
        %3997 = vmatprep.subr.bf16.mxu0 0
        %3998 = vmatpush1.bf16.msra.mxu0 %v3803
        %3999 = vmatprep.subr.bf16.mxu0 0
        %4000 = vmatpush1.bf16.msra.mxu0 %v3804
        %4001 = vmatprep.subr.bf16.mxu0 0
        %4002 = vmatpush1.bf16.msra.mxu0 %v3805
        %4003 = vmatprep.subr.bf16.mxu0 0
        %4004 = vmatpush1.bf16.msra.mxu0 %v3806
        %4005 = vmatprep.mubr.bf16.mxu0 %v3972
        %4006 = vmatmul.mubr.bf16.gmra.mrb[0].mxu0 %v3971
        %v4007 = vpop.f32.mrb[0].mxu0
        %v4008 = vadd.f32 0.0, %v4007
        %v4009 = vpop.f32.mrb[0].mxu0
        %v4010 = vpop.f32.mrb[0].mxu0
        %v4011 = vadd.f32 0.0, %v4010
        %v4012 = vpop.f32.mrb[0].mxu0
        %4013 = vdwg.mxu0
        %4014 = vst [vmem:[#allocation5 + $0x30] sm:$0xff] %v4008
        %4015 = vst [vmem:[#allocation5 + $0x38] sm:$0xff] %v4011
        %s4016 = scalar_lea.vmem [#allocation4], 128
        %v4017 = vld [vmem:[%s4016] sm:$0xff]
        %v4018 = vld [vmem:[%s4016 + $0x8] sm:$0xff]
        %v4019 = vld [vmem:[%s4016 + $0x10] sm:$0xff]
        %v4020 = vld [vmem:[%s4016 + $0x18] sm:$0xff]
        %v4021 = vpack.c.bf16 %v4019, %v4017
        %v4022 = vpack.c.bf16 %v4020, %v4018
        %4023 = vmatprep.subr.bf16.mxu0 0
        %4024 = vmatpush1.bf16.msra.mxu0 %v3791
        %4025 = vmatprep.subr.bf16.mxu0 0
        %4026 = vmatpush1.bf16.msra.mxu0 %v3792
        %4027 = vmatprep.subr.bf16.mxu0 0
        %4028 = vmatpush1.bf16.msra.mxu0 %v3793
        %4029 = vmatprep.subr.bf16.mxu0 0
        %4030 = vmatpush1.bf16.msra.mxu0 %v3794
        %4031 = vmatprep.subr.bf16.mxu0 0
        %4032 = vmatpush1.bf16.msra.mxu0 %v3795
        %4033 = vmatprep.subr.bf16.mxu0 0
        %4034 = vmatpush1.bf16.msra.mxu0 %v3796
        %4035 = vmatprep.subr.bf16.mxu0 0
        %4036 = vmatpush1.bf16.msra.mxu0 %v3797
        %4037 = vmatprep.subr.bf16.mxu0 0
        %4038 = vmatpush1.bf16.msra.mxu0 %v3798
        %4039 = vmatprep.subr.bf16.mxu0 0
        %4040 = vmatpush1.bf16.msra.mxu0 %v3799
        %4041 = vmatprep.subr.bf16.mxu0 0
        %4042 = vmatpush1.bf16.msra.mxu0 %v3800
        %4043 = vmatprep.subr.bf16.mxu0 0
        %4044 = vmatpush1.bf16.msra.mxu0 %v3801
        %4045 = vmatprep.subr.bf16.mxu0 0
        %4046 = vmatpush1.bf16.msra.mxu0 %v3802
        %4047 = vmatprep.subr.bf16.mxu0 0
        %4048 = vmatpush1.bf16.msra.mxu0 %v3803
        %4049 = vmatprep.subr.bf16.mxu0 0
        %4050 = vmatpush1.bf16.msra.mxu0 %v3804
        %4051 = vmatprep.subr.bf16.mxu0 0
        %4052 = vmatpush1.bf16.msra.mxu0 %v3805
        %4053 = vmatprep.subr.bf16.mxu0 0
        %4054 = vmatpush1.bf16.msra.mxu0 %v3806
        %4055 = vmatprep.mubr.bf16.mxu0 %v4022
        %4056 = vmatmul.mubr.bf16.gmra.mrb[0].mxu0 %v4021
        %v4057 = vpop.f32.mrb[0].mxu0
        %v4058 = vadd.f32 0.0, %v4057
        %v4059 = vpop.f32.mrb[0].mxu0
        %v4060 = vpop.f32.mrb[0].mxu0
        %v4061 = vadd.f32 0.0, %v4060
        %v4062 = vpop.f32.mrb[0].mxu0
        %4063 = vdwg.mxu0
        %4064 = vst [vmem:[#allocation5 + $0x40] sm:$0xff] %v4058
        %4065 = vst [vmem:[#allocation5 + $0x48] sm:$0xff] %v4061
        %s4066 = scalar_lea.vmem [#allocation4], 160
        %v4067 = vld [vmem:[%s4066] sm:$0xff]
        %v4068 = vld [vmem:[%s4066 + $0x8] sm:$0xff]
        %v4069 = vld [vmem:[%s4066 + $0x10] sm:$0xff]
        %v4070 = vld [vmem:[%s4066 + $0x18] sm:$0xff]
        %v4071 = vpack.c.bf16 %v4069, %v4067
        %v4072 = vpack.c.bf16 %v4070, %v4068
        %4073 = vmatprep.subr.bf16.mxu0 0
        %4074 = vmatpush1.bf16.msra.mxu0 %v3791
        %4075 = vmatprep.subr.bf16.mxu0 0
        %4076 = vmatpush1.bf16.msra.mxu0 %v3792
        %4077 = vmatprep.subr.bf16.mxu0 0
        %4078 = vmatpush1.bf16.msra.mxu0 %v3793
        %4079 = vmatprep.subr.bf16.mxu0 0
        %4080 = vmatpush1.bf16.msra.mxu0 %v3794
        %4081 = vmatprep.subr.bf16.mxu0 0
        %4082 = vmatpush1.bf16.msra.mxu0 %v3795
        %4083 = vmatprep.subr.bf16.mxu0 0
        %4084 = vmatpush1.bf16.msra.mxu0 %v3796
        %4085 = vmatprep.subr.bf16.mxu0 0
        %4086 = vmatpush1.bf16.msra.mxu0 %v3797
        %4087 = vmatprep.subr.bf16.mxu0 0
        %4088 = vmatpush1.bf16.msra.mxu0 %v3798
        %4089 = vmatprep.subr.bf16.mxu0 0
        %4090 = vmatpush1.bf16.msra.mxu0 %v3799
        %4091 = vmatprep.subr.bf16.mxu0 0
        %4092 = vmatpush1.bf16.msra.mxu0 %v3800
        %4093 = vmatprep.subr.bf16.mxu0 0
        %4094 = vmatpush1.bf16.msra.mxu0 %v3801
        %4095 = vmatprep.subr.bf16.mxu0 0
        %4096 = vmatpush1.bf16.msra.mxu0 %v3802
        %4097 = vmatprep.subr.bf16.mxu0 0
        %4098 = vmatpush1.bf16.msra.mxu0 %v3803
        %4099 = vmatprep.subr.bf16.mxu0 0
        %4100 = vmatpush1.bf16.msra.mxu0 %v3804
        %4101 = vmatprep.subr.bf16.mxu0 0
        %4102 = vmatpush1.bf16.msra.mxu0 %v3805
        %4103 = vmatprep.subr.bf16.mxu0 0
        %4104 = vmatpush1.bf16.msra.mxu0 %v3806
        %4105 = vmatprep.mubr.bf16.mxu0 %v4072
        %4106 = vmatmul.mubr.bf16.gmra.mrb[0].mxu0 %v4071
        %v4107 = vpop.f32.mrb[0].mxu0
        %v4108 = vadd.f32 0.0, %v4107
        %v4109 = vpop.f32.mrb[0].mxu0
        %v4110 = vpop.f32.mrb[0].mxu0
        %v4111 = vadd.f32 0.0, %v4110
        %v4112 = vpop.f32.mrb[0].mxu0
        %4113 = vdwg.mxu0
        %4114 = vst [vmem:[#allocation5 + $0x50] sm:$0xff] %v4108
        %4115 = vst [vmem:[#allocation5 + $0x58] sm:$0xff] %v4111
        %s4116 = scalar_lea.vmem [#allocation4], 192
        %v4117 = vld [vmem:[%s4116] sm:$0xff]
        %v4118 = vld [vmem:[%s4116 + $0x8] sm:$0xff]
        %v4119 = vld [vmem:[%s4116 + $0x10] sm:$0xff]
        %v4120 = vld [vmem:[%s4116 + $0x18] sm:$0xff]
        %v4121 = vpack.c.bf16 %v4119, %v4117
        %v4122 = vpack.c.bf16 %v4120, %v4118
        %4123 = vmatprep.subr.bf16.mxu0 0
        %4124 = vmatpush1.bf16.msra.mxu0 %v3791
        %4125 = vmatprep.subr.bf16.mxu0 0
        %4126 = vmatpush1.bf16.msra.mxu0 %v3792
        %4127 = vmatprep.subr.bf16.mxu0 0
        %4128 = vmatpush1.bf16.msra.mxu0 %v3793
        %4129 = vmatprep.subr.bf16.mxu0 0
        %4130 = vmatpush1.bf16.msra.mxu0 %v3794
        %4131 = vmatprep.subr.bf16.mxu0 0
        %4132 = vmatpush1.bf16.msra.mxu0 %v3795
        %4133 = vmatprep.subr.bf16.mxu0 0
        %4134 = vmatpush1.bf16.msra.mxu0 %v3796
        %4135 = vmatprep.subr.bf16.mxu0 0
        %4136 = vmatpush1.bf16.msra.mxu0 %v3797
        %4137 = vmatprep.subr.bf16.mxu0 0
        %4138 = vmatpush1.bf16.msra.mxu0 %v3798
        %4139 = vmatprep.subr.bf16.mxu0 0
        %4140 = vmatpush1.bf16.msra.mxu0 %v3799
        %4141 = vmatprep.subr.bf16.mxu0 0
        %4142 = vmatpush1.bf16.msra.mxu0 %v3800
        %4143 = vmatprep.subr.bf16.mxu0 0
        %4144 = vmatpush1.bf16.msra.mxu0 %v3801
        %4145 = vmatprep.subr.bf16.mxu0 0
        %4146 = vmatpush1.bf16.msra.mxu0 %v3802
        %4147 = vmatprep.subr.bf16.mxu0 0
        %4148 = vmatpush1.bf16.msra.mxu0 %v3803
        %4149 = vmatprep.subr.bf16.mxu0 0
        %4150 = vmatpush1.bf16.msra.mxu0 %v3804
        %4151 = vmatprep.subr.bf16.mxu0 0
        %4152 = vmatpush1.bf16.msra.mxu0 %v3805
        %4153 = vmatprep.subr.bf16.mxu0 0
        %4154 = vmatpush1.bf16.msra.mxu0 %v3806
        %4155 = vmatprep.mubr.bf16.mxu0 %v4122
        %4156 = vmatmul.mubr.bf16.gmra.mrb[0].mxu0 %v4121
        %v4157 = vpop.f32.mrb[0].mxu0
        %v4158 = vadd.f32 0.0, %v4157
        %v4159 = vpop.f32.mrb[0].mxu0
        %v4160 = vpop.f32.mrb[0].mxu0
        %v4161 = vadd.f32 0.0, %v4160
        %v4162 = vpop.f32.mrb[0].mxu0
        %4163 = vdwg.mxu0
        %4164 = vst [vmem:[#allocation5 + $0x60] sm:$0xff] %v4158
        %4165 = vst [vmem:[#allocation5 + $0x68] sm:$0xff] %v4161
        %s4166 = scalar_lea.vmem [#allocation4], 224
        %v4167 = vld [vmem:[%s4166] sm:$0xff]
        %v4168 = vld [vmem:[%s4166 + $0x8] sm:$0xff]
        %v4169 = vld [vmem:[%s4166 + $0x10] sm:$0xff]
        %v4170 = vld [vmem:[%s4166 + $0x18] sm:$0xff]
        %v4171 = vpack.c.bf16 %v4169, %v4167
        %v4172 = vpack.c.bf16 %v4170, %v4168
        %4173 = vmatprep.subr.bf16.mxu0 0
        %4174 = vmatpush1.bf16.msra.mxu0 %v3791
        %4175 = vmatprep.subr.bf16.mxu0 0
        %4176 = vmatpush1.bf16.msra.mxu0 %v3792
        %4177 = vmatprep.subr.bf16.mxu0 0
        %4178 = vmatpush1.bf16.msra.mxu0 %v3793
        %4179 = vmatprep.subr.bf16.mxu0 0
        %4180 = vmatpush1.bf16.msra.mxu0 %v3794
        %4181 = vmatprep.subr.bf16.mxu0 0
        %4182 = vmatpush1.bf16.msra.mxu0 %v3795
        %4183 = vmatprep.subr.bf16.mxu0 0
        %4184 = vmatpush1.bf16.msra.mxu0 %v3796
        %4185 = vmatprep.subr.bf16.mxu0 0
        %4186 = vmatpush1.bf16.msra.mxu0 %v3797
        %4187 = vmatprep.subr.bf16.mxu0 0
        %4188 = vmatpush1.bf16.msra.mxu0 %v3798
        %4189 = vmatprep.subr.bf16.mxu0 0
        %4190 = vmatpush1.bf16.msra.mxu0 %v3799
        %4191 = vmatprep.subr.bf16.mxu0 0
        %4192 = vmatpush1.bf16.msra.mxu0 %v3800
        %4193 = vmatprep.subr.bf16.mxu0 0
        %4194 = vmatpush1.bf16.msra.mxu0 %v3801
        %4195 = vmatprep.subr.bf16.mxu0 0
        %4196 = vmatpush1.bf16.msra.mxu0 %v3802
        %4197 = vmatprep.subr.bf16.mxu0 0
        %4198 = vmatpush1.bf16.msra.mxu0 %v3803
        %4199 = vmatprep.subr.bf16.mxu0 0
        %4200 = vmatpush1.bf16.msra.mxu0 %v3804
        %4201 = vmatprep.subr.bf16.mxu0 0
        %4202 = vmatpush1.bf16.msra.mxu0 %v3805
        %4203 = vmatprep.subr.bf16.mxu0 0
        %4204 = vmatpush1.bf16.msra.mxu0 %v3806
        %4205 = vmatprep.mubr.bf16.mxu0 %v4172
        %4206 = vmatmul.mubr.bf16.gmra.mrb[0].mxu0 %v4171
        %v4207 = vpop.f32.mrb[0].mxu0
        %v4208 = vadd.f32 0.0, %v4207
        %v4209 = vpop.f32.mrb[0].mxu0
        %v4210 = vpop.f32.mrb[0].mxu0
        %v4211 = vadd.f32 0.0, %v4210
        %v4212 = vpop.f32.mrb[0].mxu0
        %4213 = vdwg.mxu0
        %4214 = vst [vmem:[#allocation5 + $0x70] sm:$0xff] %v4208
        %4215 = vst [vmem:[#allocation5 + $0x78] sm:$0xff] %v4211
        %s4216 = scalar_lea.vmem [#allocation4], 256
        %v4217 = vld [vmem:[%s4216] sm:$0xff]
        %v4218 = vld [vmem:[%s4216 + $0x8] sm:$0xff]
        %v4219 = vld [vmem:[%s4216 + $0x10] sm:$0xff]
        %v4220 = vld [vmem:[%s4216 + $0x18] sm:$0xff]
        %v4221 = vpack.c.bf16 %v4219, %v4217
        %v4222 = vpack.c.bf16 %v4220, %v4218
        %4223 = vmatprep.subr.bf16.mxu0 0
        %4224 = vmatpush1.bf16.msra.mxu0 %v3791
        %4225 = vmatprep.subr.bf16.mxu0 0
        %4226 = vmatpush1.bf16.msra.mxu0 %v3792
        %4227 = vmatprep.subr.bf16.mxu0 0
        %4228 = vmatpush1.bf16.msra.mxu0 %v3793
        %4229 = vmatprep.subr.bf16.mxu0 0
        %4230 = vmatpush1.bf16.msra.mxu0 %v3794
        %4231 = vmatprep.subr.bf16.mxu0 0
        %4232 = vmatpush1.bf16.msra.mxu0 %v3795
        %4233 = vmatprep.subr.bf16.mxu0 0
        %4234 = vmatpush1.bf16.msra.mxu0 %v3796
        %4235 = vmatprep.subr.bf16.mxu0 0
        %4236 = vmatpush1.bf16.msra.mxu0 %v3797
        %4237 = vmatprep.subr.bf16.mxu0 0
        %4238 = vmatpush1.bf16.msra.mxu0 %v3798
        %4239 = vmatprep.subr.bf16.mxu0 0
        %4240 = vmatpush1.bf16.msra.mxu0 %v3799
        %4241 = vmatprep.subr.bf16.mxu0 0
        %4242 = vmatpush1.bf16.msra.mxu0 %v3800
        %4243 = vmatprep.subr.bf16.mxu0 0
        %4244 = vmatpush1.bf16.msra.mxu0 %v3801
        %4245 = vmatprep.subr.bf16.mxu0 0
        %4246 = vmatpush1.bf16.msra.mxu0 %v3802
        %4247 = vmatprep.subr.bf16.mxu0 0
        %4248 = vmatpush1.bf16.msra.mxu0 %v3803
        %4249 = vmatprep.subr.bf16.mxu0 0
        %4250 = vmatpush1.bf16.msra.mxu0 %v3804
        %4251 = vmatprep.subr.bf16.mxu0 0
        %4252 = vmatpush1.bf16.msra.mxu0 %v3805
        %4253 = vmatprep.subr.bf16.mxu0 0
        %4254 = vmatpush1.bf16.msra.mxu0 %v3806
        %4255 = vmatprep.mubr.bf16.mxu0 %v4222
        %4256 = vmatmul.mubr.bf16.gmra.mrb[0].mxu0 %v4221
        %v4257 = vpop.f32.mrb[0].mxu0
        %v4258 = vadd.f32 0.0, %v4257
        %v4259 = vpop.f32.mrb[0].mxu0
        %v4260 = vpop.f32.mrb[0].mxu0
        %v4261 = vadd.f32 0.0, %v4260
        %v4262 = vpop.f32.mrb[0].mxu0
        %4263 = vdwg.mxu0
        %4264 = vst [vmem:[#allocation5 + $0x80] sm:$0xff] %v4258
        %4265 = vst [vmem:[#allocation5 + $0x88] sm:$0xff] %v4261
        %s4266 = scalar_lea.vmem [#allocation4], 288
        %v4267 = vld [vmem:[%s4266] sm:$0xff]
        %v4268 = vld [vmem:[%s4266 + $0x8] sm:$0xff]
        %v4269 = vld [vmem:[%s4266 + $0x10] sm:$0xff]
        %v4270 = vld [vmem:[%s4266 + $0x18] sm:$0xff]
        %v4271 = vpack.c.bf16 %v4269, %v4267
        %v4272 = vpack.c.bf16 %v4270, %v4268
        %4273 = vmatprep.subr.bf16.mxu0 0
        %4274 = vmatpush1.bf16.msra.mxu0 %v3791
        %4275 = vmatprep.subr.bf16.mxu0 0
        %4276 = vmatpush1.bf16.msra.mxu0 %v3792
        %4277 = vmatprep.subr.bf16.mxu0 0
        %4278 = vmatpush1.bf16.msra.mxu0 %v3793
        %4279 = vmatprep.subr.bf16.mxu0 0
        %4280 = vmatpush1.bf16.msra.mxu0 %v3794
        %4281 = vmatprep.subr.bf16.mxu0 0
        %4282 = vmatpush1.bf16.msra.mxu0 %v3795
        %4283 = vmatprep.subr.bf16.mxu0 0
        %4284 = vmatpush1.bf16.msra.mxu0 %v3796
        %4285 = vmatprep.subr.bf16.mxu0 0
        %4286 = vmatpush1.bf16.msra.mxu0 %v3797
        %4287 = vmatprep.subr.bf16.mxu0 0
        %4288 = vmatpush1.bf16.msra.mxu0 %v3798
        %4289 = vmatprep.subr.bf16.mxu0 0
        %4290 = vmatpush1.bf16.msra.mxu0 %v3799
        %4291 = vmatprep.subr.bf16.mxu0 0
        %4292 = vmatpush1.bf16.msra.mxu0 %v3800
        %4293 = vmatprep.subr.bf16.mxu0 0
        %4294 = vmatpush1.bf16.msra.mxu0 %v3801
        %4295 = vmatprep.subr.bf16.mxu0 0
        %4296 = vmatpush1.bf16.msra.mxu0 %v3802
        %4297 = vmatprep.subr.bf16.mxu0 0
        %4298 = vmatpush1.bf16.msra.mxu0 %v3803
        %4299 = vmatprep.subr.bf16.mxu0 0
        %4300 = vmatpush1.bf16.msra.mxu0 %v3804
        %4301 = vmatprep.subr.bf16.mxu0 0
        %4302 = vmatpush1.bf16.msra.mxu0 %v3805
        %4303 = vmatprep.subr.bf16.mxu0 0
        %4304 = vmatpush1.bf16.msra.mxu0 %v3806
        %4305 = vmatprep.mubr.bf16.mxu0 %v4272
        %4306 = vmatmul.mubr.bf16.gmra.mrb[0].mxu0 %v4271
        %v4307 = vpop.f32.mrb[0].mxu0
        %v4308 = vadd.f32 0.0, %v4307
        %v4309 = vpop.f32.mrb[0].mxu0
        %v4310 = vpop.f32.mrb[0].mxu0
        %v4311 = vadd.f32 0.0, %v4310
        %v4312 = vpop.f32.mrb[0].mxu0
        %4313 = vdwg.mxu0
        %4314 = vst [vmem:[#allocation5 + $0x90] sm:$0xff] %v4308
        %4315 = vst [vmem:[#allocation5 + $0x98] sm:$0xff] %v4311
        %s4316 = scalar_lea.vmem [#allocation4], 320
        %v4317 = vld [vmem:[%s4316] sm:$0xff]
        %v4318 = vld [vmem:[%s4316 + $0x8] sm:$0xff]
        %v4319 = vld [vmem:[%s4316 + $0x10] sm:$0xff]
        %v4320 = vld [vmem:[%s4316 + $0x18] sm:$0xff]
        %v4321 = vpack.c.bf16 %v4319, %v4317
        %v4322 = vpack.c.bf16 %v4320, %v4318
        %4323 = vmatprep.subr.bf16.mxu0 0
        %4324 = vmatpush1.bf16.msra.mxu0 %v3791
        %4325 = vmatprep.subr.bf16.mxu0 0
        %4326 = vmatpush1.bf16.msra.mxu0 %v3792
        %4327 = vmatprep.subr.bf16.mxu0 0
        %4328 = vmatpush1.bf16.msra.mxu0 %v3793
        %4329 = vmatprep.subr.bf16.mxu0 0
        %4330 = vmatpush1.bf16.msra.mxu0 %v3794
        %4331 = vmatprep.subr.bf16.mxu0 0
        %4332 = vmatpush1.bf16.msra.mxu0 %v3795
        %4333 = vmatprep.subr.bf16.mxu0 0
        %4334 = vmatpush1.bf16.msra.mxu0 %v3796
        %4335 = vmatprep.subr.bf16.mxu0 0
        %4336 = vmatpush1.bf16.msra.mxu0 %v3797
        %4337 = vmatprep.subr.bf16.mxu0 0
        %4338 = vmatpush1.bf16.msra.mxu0 %v3798
        %4339 = vmatprep.subr.bf16.mxu0 0
        %4340 = vmatpush1.bf16.msra.mxu0 %v3799
        %4341 = vmatprep.subr.bf16.mxu0 0
        %4342 = vmatpush1.bf16.msra.mxu0 %v3800
        %4343 = vmatprep.subr.bf16.mxu0 0
        %4344 = vmatpush1.bf16.msra.mxu0 %v3801
        %4345 = vmatprep.subr.bf16.mxu0 0
        %4346 = vmatpush1.bf16.msra.mxu0 %v3802
        %4347 = vmatprep.subr.bf16.mxu0 0
        %4348 = vmatpush1.bf16.msra.mxu0 %v3803
        %4349 = vmatprep.subr.bf16.mxu0 0
        %4350 = vmatpush1.bf16.msra.mxu0 %v3804
        %4351 = vmatprep.subr.bf16.mxu0 0
        %4352 = vmatpush1.bf16.msra.mxu0 %v3805
        %4353 = vmatprep.subr.bf16.mxu0 0
        %4354 = vmatpush1.bf16.msra.mxu0 %v3806
        %4355 = vmatprep.mubr.bf16.mxu0 %v4322
        %4356 = vmatmul.mubr.bf16.gmra.mrb[0].mxu0 %v4321
        %v4357 = vpop.f32.mrb[0].mxu0
        %v4358 = vadd.f32 0.0, %v4357
        %v4359 = vpop.f32.mrb[0].mxu0
        %v4360 = vpop.f32.mrb[0].mxu0
        %v4361 = vadd.f32 0.0, %v4360
        %v4362 = vpop.f32.mrb[0].mxu0
        %4363 = vdwg.mxu0
        %4364 = vst [vmem:[#allocation5 + $0xa0] sm:$0xff] %v4358
        %4365 = vst [vmem:[#allocation5 + $0xa8] sm:$0xff] %v4361
        %s4366 = scalar_lea.vmem [#allocation4], 352
        %v4367 = vld [vmem:[%s4366] sm:$0xff]
        %v4368 = vld [vmem:[%s4366 + $0x8] sm:$0xff]
        %v4369 = vld [vmem:[%s4366 + $0x10] sm:$0xff]
        %v4370 = vld [vmem:[%s4366 + $0x18] sm:$0xff]
        %v4371 = vpack.c.bf16 %v4369, %v4367
        %v4372 = vpack.c.bf16 %v4370, %v4368
        %4373 = vmatprep.subr.bf16.mxu0 0
        %4374 = vmatpush1.bf16.msra.mxu0 %v3791
        %4375 = vmatprep.subr.bf16.mxu0 0
        %4376 = vmatpush1.bf16.msra.mxu0 %v3792
        %4377 = vmatprep.subr.bf16.mxu0 0
        %4378 = vmatpush1.bf16.msra.mxu0 %v3793
        %4379 = vmatprep.subr.bf16.mxu0 0
        %4380 = vmatpush1.bf16.msra.mxu0 %v3794
        %4381 = vmatprep.subr.bf16.mxu0 0
        %4382 = vmatpush1.bf16.msra.mxu0 %v3795
        %4383 = vmatprep.subr.bf16.mxu0 0
        %4384 = vmatpush1.bf16.msra.mxu0 %v3796
        %4385 = vmatprep.subr.bf16.mxu0 0
        %4386 = vmatpush1.bf16.msra.mxu0 %v3797
        %4387 = vmatprep.subr.bf16.mxu0 0
        %4388 = vmatpush1.bf16.msra.mxu0 %v3798
        %4389 = vmatprep.subr.bf16.mxu0 0
        %4390 = vmatpush1.bf16.msra.mxu0 %v3799
        %4391 = vmatprep.subr.bf16.mxu0 0
        %4392 = vmatpush1.bf16.msra.mxu0 %v3800
        %4393 = vmatprep.subr.bf16.mxu0 0
        %4394 = vmatpush1.bf16.msra.mxu0 %v3801
        %4395 = vmatprep.subr.bf16.mxu0 0
        %4396 = vmatpush1.bf16.msra.mxu0 %v3802
        %4397 = vmatprep.subr.bf16.mxu0 0
        %4398 = vmatpush1.bf16.msra.mxu0 %v3803
        %4399 = vmatprep.subr.bf16.mxu0 0
        %4400 = vmatpush1.bf16.msra.mxu0 %v3804
        %4401 = vmatprep.subr.bf16.mxu0 0
        %4402 = vmatpush1.bf16.msra.mxu0 %v3805
        %4403 = vmatprep.subr.bf16.mxu0 0
        %4404 = vmatpush1.bf16.msra.mxu0 %v3806
        %4405 = vmatprep.mubr.bf16.mxu0 %v4372
        %4406 = vmatmul.mubr.bf16.gmra.mrb[0].mxu0 %v4371
        %v4407 = vpop.f32.mrb[0].mxu0
        %v4408 = vadd.f32 0.0, %v4407
        %v4409 = vpop.f32.mrb[0].mxu0
        %v4410 = vpop.f32.mrb[0].mxu0
        %v4411 = vadd.f32 0.0, %v4410
        %v4412 = vpop.f32.mrb[0].mxu0
        %4413 = vdwg.mxu0
        %4414 = vst [vmem:[#allocation5 + $0xb0] sm:$0xff] %v4408
        %4415 = vst [vmem:[#allocation5 + $0xb8] sm:$0xff] %v4411
        %s4416 = scalar_lea.vmem [#allocation4], 384
        %v4417 = vld [vmem:[%s4416] sm:$0xff]
        %v4418 = vld [vmem:[%s4416 + $0x8] sm:$0xff]
        %v4419 = vld [vmem:[%s4416 + $0x10] sm:$0xff]
        %v4420 = vld [vmem:[%s4416 + $0x18] sm:$0xff]
        %v4421 = vpack.c.bf16 %v4419, %v4417
        %v4422 = vpack.c.bf16 %v4420, %v4418
        %4423 = vmatprep.subr.bf16.mxu0 0
        %4424 = vmatpush1.bf16.msra.mxu0 %v3791
        %4425 = vmatprep.subr.bf16.mxu0 0
        %4426 = vmatpush1.bf16.msra.mxu0 %v3792
        %4427 = vmatprep.subr.bf16.mxu0 0
        %4428 = vmatpush1.bf16.msra.mxu0 %v3793
        %4429 = vmatprep.subr.bf16.mxu0 0
        %4430 = vmatpush1.bf16.msra.mxu0 %v3794
        %4431 = vmatprep.subr.bf16.mxu0 0
        %4432 = vmatpush1.bf16.msra.mxu0 %v3795
        %4433 = vmatprep.subr.bf16.mxu0 0
        %4434 = vmatpush1.bf16.msra.mxu0 %v3796
        %4435 = vmatprep.subr.bf16.mxu0 0
        %4436 = vmatpush1.bf16.msra.mxu0 %v3797
        %4437 = vmatprep.subr.bf16.mxu0 0
        %4438 = vmatpush1.bf16.msra.mxu0 %v3798
        %4439 = vmatprep.subr.bf16.mxu0 0
        %4440 = vmatpush1.bf16.msra.mxu0 %v3799
        %4441 = vmatprep.subr.bf16.mxu0 0
        %4442 = vmatpush1.bf16.msra.mxu0 %v3800
        %4443 = vmatprep.subr.bf16.mxu0 0
        %4444 = vmatpush1.bf16.msra.mxu0 %v3801
        %4445 = vmatprep.subr.bf16.mxu0 0
        %4446 = vmatpush1.bf16.msra.mxu0 %v3802
        %4447 = vmatprep.subr.bf16.mxu0 0
        %4448 = vmatpush1.bf16.msra.mxu0 %v3803
        %4449 = vmatprep.subr.bf16.mxu0 0
        %4450 = vmatpush1.bf16.msra.mxu0 %v3804
        %4451 = vmatprep.subr.bf16.mxu0 0
        %4452 = vmatpush1.bf16.msra.mxu0 %v3805
        %4453 = vmatprep.subr.bf16.mxu0 0
        %4454 = vmatpush1.bf16.msra.mxu0 %v3806
        %4455 = vmatprep.mubr.bf16.mxu0 %v4422
        %4456 = vmatmul.mubr.bf16.gmra.mrb[0].mxu0 %v4421
        %v4457 = vpop.f32.mrb[0].mxu0
        %v4458 = vadd.f32 0.0, %v4457
        %v4459 = vpop.f32.mrb[0].mxu0
        %v4460 = vpop.f32.mrb[0].mxu0
        %v4461 = vadd.f32 0.0, %v4460
        %v4462 = vpop.f32.mrb[0].mxu0
        %4463 = vdwg.mxu0
        %4464 = vst [vmem:[#allocation5 + $0xc0] sm:$0xff] %v4458
        %4465 = vst [vmem:[#allocation5 + $0xc8] sm:$0xff] %v4461
        %s4466 = scalar_lea.vmem [#allocation4], 416
        %v4467 = vld [vmem:[%s4466] sm:$0xff]
        %v4468 = vld [vmem:[%s4466 + $0x8] sm:$0xff]
        %v4469 = vld [vmem:[%s4466 + $0x10] sm:$0xff]
        %v4470 = vld [vmem:[%s4466 + $0x18] sm:$0xff]
        %v4471 = vpack.c.bf16 %v4469, %v4467
        %v4472 = vpack.c.bf16 %v4470, %v4468
        %4473 = vmatprep.subr.bf16.mxu0 0
        %4474 = vmatpush1.bf16.msra.mxu0 %v3791
        %4475 = vmatprep.subr.bf16.mxu0 0
        %4476 = vmatpush1.bf16.msra.mxu0 %v3792
        %4477 = vmatprep.subr.bf16.mxu0 0
        %4478 = vmatpush1.bf16.msra.mxu0 %v3793
        %4479 = vmatprep.subr.bf16.mxu0 0
        %4480 = vmatpush1.bf16.msra.mxu0 %v3794
        %4481 = vmatprep.subr.bf16.mxu0 0
        %4482 = vmatpush1.bf16.msra.mxu0 %v3795
        %4483 = vmatprep.subr.bf16.mxu0 0
        %4484 = vmatpush1.bf16.msra.mxu0 %v3796
        %4485 = vmatprep.subr.bf16.mxu0 0
        %4486 = vmatpush1.bf16.msra.mxu0 %v3797
        %4487 = vmatprep.subr.bf16.mxu0 0
        %4488 = vmatpush1.bf16.msra.mxu0 %v3798
        %4489 = vmatprep.subr.bf16.mxu0 0
        %4490 = vmatpush1.bf16.msra.mxu0 %v3799
        %4491 = vmatprep.subr.bf16.mxu0 0
        %4492 = vmatpush1.bf16.msra.mxu0 %v3800
        %4493 = vmatprep.subr.bf16.mxu0 0
        %4494 = vmatpush1.bf16.msra.mxu0 %v3801
        %4495 = vmatprep.subr.bf16.mxu0 0
        %4496 = vmatpush1.bf16.msra.mxu0 %v3802
        %4497 = vmatprep.subr.bf16.mxu0 0
        %4498 = vmatpush1.bf16.msra.mxu0 %v3803
        %4499 = vmatprep.subr.bf16.mxu0 0
        %4500 = vmatpush1.bf16.msra.mxu0 %v3804
        %4501 = vmatprep.subr.bf16.mxu0 0
        %4502 = vmatpush1.bf16.msra.mxu0 %v3805
        %4503 = vmatprep.subr.bf16.mxu0 0
        %4504 = vmatpush1.bf16.msra.mxu0 %v3806
        %4505 = vmatprep.mubr.bf16.mxu0 %v4472
        %4506 = vmatmul.mubr.bf16.gmra.mrb[0].mxu0 %v4471
        %v4507 = vpop.f32.mrb[0].mxu0
        %v4508 = vadd.f32 0.0, %v4507
        %v4509 = vpop.f32.mrb[0].mxu0
        %v4510 = vpop.f32.mrb[0].mxu0
        %v4511 = vadd.f32 0.0, %v4510
        %v4512 = vpop.f32.mrb[0].mxu0
        %4513 = vdwg.mxu0
        %4514 = vst [vmem:[#allocation5 + $0xd0] sm:$0xff] %v4508
        %4515 = vst [vmem:[#allocation5 + $0xd8] sm:$0xff] %v4511
        %s4516 = scalar_lea.vmem [#allocation4], 448
        %v4517 = vld [vmem:[%s4516] sm:$0xff]
        %v4518 = vld [vmem:[%s4516 + $0x8] sm:$0xff]
        %v4519 = vld [vmem:[%s4516 + $0x10] sm:$0xff]
        %v4520 = vld [vmem:[%s4516 + $0x18] sm:$0xff]
        %v4521 = vpack.c.bf16 %v4519, %v4517
        %v4522 = vpack.c.bf16 %v4520, %v4518
        %4523 = vmatprep.subr.bf16.mxu0 0
        %4524 = vmatpush1.bf16.msra.mxu0 %v3791
        %4525 = vmatprep.subr.bf16.mxu0 0
        %4526 = vmatpush1.bf16.msra.mxu0 %v3792
        %4527 = vmatprep.subr.bf16.mxu0 0
        %4528 = vmatpush1.bf16.msra.mxu0 %v3793
        %4529 = vmatprep.subr.bf16.mxu0 0
        %4530 = vmatpush1.bf16.msra.mxu0 %v3794
        %4531 = vmatprep.subr.bf16.mxu0 0
        %4532 = vmatpush1.bf16.msra.mxu0 %v3795
        %4533 = vmatprep.subr.bf16.mxu0 0
        %4534 = vmatpush1.bf16.msra.mxu0 %v3796
        %4535 = vmatprep.subr.bf16.mxu0 0
        %4536 = vmatpush1.bf16.msra.mxu0 %v3797
        %4537 = vmatprep.subr.bf16.mxu0 0
        %4538 = vmatpush1.bf16.msra.mxu0 %v3798
        %4539 = vmatprep.subr.bf16.mxu0 0
        %4540 = vmatpush1.bf16.msra.mxu0 %v3799
        %4541 = vmatprep.subr.bf16.mxu0 0
        %4542 = vmatpush1.bf16.msra.mxu0 %v3800
        %4543 = vmatprep.subr.bf16.mxu0 0
        %4544 = vmatpush1.bf16.msra.mxu0 %v3801
        %4545 = vmatprep.subr.bf16.mxu0 0
        %4546 = vmatpush1.bf16.msra.mxu0 %v3802
        %4547 = vmatprep.subr.bf16.mxu0 0
        %4548 = vmatpush1.bf16.msra.mxu0 %v3803
        %4549 = vmatprep.subr.bf16.mxu0 0
        %4550 = vmatpush1.bf16.msra.mxu0 %v3804
        %4551 = vmatprep.subr.bf16.mxu0 0
        %4552 = vmatpush1.bf16.msra.mxu0 %v3805
        %4553 = vmatprep.subr.bf16.mxu0 0
        %4554 = vmatpush1.bf16.msra.mxu0 %v3806
        %4555 = vmatprep.mubr.bf16.mxu0 %v4522
        %4556 = vmatmul.mubr.bf16.gmra.mrb[0].mxu0 %v4521
        %v4557 = vpop.f32.mrb[0].mxu0
        %v4558 = vadd.f32 0.0, %v4557
        %v4559 = vpop.f32.mrb[0].mxu0
        %v4560 = vpop.f32.mrb[0].mxu0
        %v4561 = vadd.f32 0.0, %v4560
        %v4562 = vpop.f32.mrb[0].mxu0
        %4563 = vdwg.mxu0
        %4564 = vst [vmem:[#allocation5 + $0xe0] sm:$0xff] %v4558
        %4565 = vst [vmem:[#allocation5 + $0xe8] sm:$0xff] %v4561
        %s4566 = scalar_lea.vmem [#allocation4], 480
        %v4567 = vld [vmem:[%s4566] sm:$0xff]
        %v4568 = vld [vmem:[%s4566 + $0x8] sm:$0xff]
        %v4569 = vld [vmem:[%s4566 + $0x10] sm:$0xff]
        %v4570 = vld [vmem:[%s4566 + $0x18] sm:$0xff]
        %v4571 = vpack.c.bf16 %v4569, %v4567
        %v4572 = vpack.c.bf16 %v4570, %v4568
        %4573 = vmatprep.subr.bf16.mxu0 0
        %4574 = vmatpush1.bf16.msra.mxu0 %v3791
        %4575 = vmatprep.subr.bf16.mxu0 0
        %4576 = vmatpush1.bf16.msra.mxu0 %v3792
        %4577 = vmatprep.subr.bf16.mxu0 0
        %4578 = vmatpush1.bf16.msra.mxu0 %v3793
        %4579 = vmatprep.subr.bf16.mxu0 0
        %4580 = vmatpush1.bf16.msra.mxu0 %v3794
        %4581 = vmatprep.subr.bf16.mxu0 0
        %4582 = vmatpush1.bf16.msra.mxu0 %v3795
        %4583 = vmatprep.subr.bf16.mxu0 0
        %4584 = vmatpush1.bf16.msra.mxu0 %v3796
        %4585 = vmatprep.subr.bf16.mxu0 0
        %4586 = vmatpush1.bf16.msra.mxu0 %v3797
        %4587 = vmatprep.subr.bf16.mxu0 0
        %4588 = vmatpush1.bf16.msra.mxu0 %v3798
        %4589 = vmatprep.subr.bf16.mxu0 0
        %4590 = vmatpush1.bf16.msra.mxu0 %v3799
        %4591 = vmatprep.subr.bf16.mxu0 0
        %4592 = vmatpush1.bf16.msra.mxu0 %v3800
        %4593 = vmatprep.subr.bf16.mxu0 0
        %4594 = vmatpush1.bf16.msra.mxu0 %v3801
        %4595 = vmatprep.subr.bf16.mxu0 0
        %4596 = vmatpush1.bf16.msra.mxu0 %v3802
        %4597 = vmatprep.subr.bf16.mxu0 0
        %4598 = vmatpush1.bf16.msra.mxu0 %v3803
        %4599 = vmatprep.subr.bf16.mxu0 0
        %4600 = vmatpush1.bf16.msra.mxu0 %v3804
        %4601 = vmatprep.subr.bf16.mxu0 0
        %4602 = vmatpush1.bf16.msra.mxu0 %v3805
        %4603 = vmatprep.subr.bf16.mxu0 0
        %4604 = vmatpush1.bf16.msra.mxu0 %v3806
        %4605 = vmatprep.mubr.bf16.mxu0 %v4572
        %4606 = vmatmul.mubr.bf16.gmra.mrb[0].mxu0 %v4571
        %v4607 = vpop.f32.mrb[0].mxu0
        %v4608 = vadd.f32 0.0, %v4607
        %v4609 = vpop.f32.mrb[0].mxu0
        %v4610 = vpop.f32.mrb[0].mxu0
        %v4611 = vadd.f32 0.0, %v4610
        %v4612 = vpop.f32.mrb[0].mxu0
        %4613 = vdwg.mxu0
        %4614 = vst [vmem:[#allocation5 + $0xf0] sm:$0xff] %v4608
        %4615 = vst [vmem:[#allocation5 + $0xf8] sm:$0xff] %v4611
        %v4616 = vld [vmem:[#allocation5] ss:$2 sm:$0xff]
        %s4617 = scalar_lea.vmem [#allocation5], 16
        %v4618 = vld [vmem:[%s4617] ss:$2 sm:$0xff]
        %s4619 = scalar_lea.vmem [#allocation5], 32
        %v4620 = vld [vmem:[%s4619] ss:$2 sm:$0xff]
        %s4621 = scalar_lea.vmem [#allocation5], 48
        %v4622 = vld [vmem:[%s4621] ss:$2 sm:$0xff]
        %s4623 = scalar_lea.vmem [#allocation5], 64
        %v4624 = vld [vmem:[%s4623] ss:$2 sm:$0xff]
        %s4625 = scalar_lea.vmem [#allocation5], 80
        %v4626 = vld [vmem:[%s4625] ss:$2 sm:$0xff]
        %s4627 = scalar_lea.vmem [#allocation5], 96
        %v4628 = vld [vmem:[%s4627] ss:$2 sm:$0xff]
        %s4629 = scalar_lea.vmem [#allocation5], 112
        %v4630 = vld [vmem:[%s4629] ss:$2 sm:$0xff]
        %s4631 = scalar_lea.vmem [#allocation5], 128
        %v4632 = vld [vmem:[%s4631] ss:$2 sm:$0xff]
        %s4633 = scalar_lea.vmem [#allocation5], 144
        %v4634 = vld [vmem:[%s4633] ss:$2 sm:$0xff]
        %s4635 = scalar_lea.vmem [#allocation5], 160
        %v4636 = vld [vmem:[%s4635] ss:$2 sm:$0xff]
        %s4637 = scalar_lea.vmem [#allocation5], 176
        %v4638 = vld [vmem:[%s4637] ss:$2 sm:$0xff]
        %s4639 = scalar_lea.vmem [#allocation5], 192
        %v4640 = vld [vmem:[%s4639] ss:$2 sm:$0xff]
        %s4641 = scalar_lea.vmem [#allocation5], 208
        %v4642 = vld [vmem:[%s4641] ss:$2 sm:$0xff]
        %s4643 = scalar_lea.vmem [#allocation5], 224
        %v4644 = vld [vmem:[%s4643] ss:$2 sm:$0xff]
        %s4645 = scalar_lea.vmem [#allocation5], 240
        %v4646 = vld [vmem:[%s4645] ss:$2 sm:$0xff]
        %s4647 = scalar_lea.vmem [#allocation5], 1
        %v4648 = vld [vmem:[%s4647] ss:$2 sm:$0xff]
        %s4649 = scalar_lea.vmem [#allocation5], 17
        %v4650 = vld [vmem:[%s4649] ss:$2 sm:$0xff]
        %s4651 = scalar_lea.vmem [#allocation5], 33
        %v4652 = vld [vmem:[%s4651] ss:$2 sm:$0xff]
        %s4653 = scalar_lea.vmem [#allocation5], 49
        %v4654 = vld [vmem:[%s4653] ss:$2 sm:$0xff]
        %s4655 = scalar_lea.vmem [#allocation5], 65
        %v4656 = vld [vmem:[%s4655] ss:$2 sm:$0xff]
        %s4657 = scalar_lea.vmem [#allocation5], 81
        %v4658 = vld [vmem:[%s4657] ss:$2 sm:$0xff]
        %s4659 = scalar_lea.vmem [#allocation5], 97
        %v4660 = vld [vmem:[%s4659] ss:$2 sm:$0xff]
        %s4661 = scalar_lea.vmem [#allocation5], 113
        %v4662 = vld [vmem:[%s4661] ss:$2 sm:$0xff]
        %s4663 = scalar_lea.vmem [#allocation5], 129
        %v4664 = vld [vmem:[%s4663] ss:$2 sm:$0xff]
        %s4665 = scalar_lea.vmem [#allocation5], 145
        %v4666 = vld [vmem:[%s4665] ss:$2 sm:$0xff]
        %s4667 = scalar_lea.vmem [#allocation5], 161
        %v4668 = vld [vmem:[%s4667] ss:$2 sm:$0xff]
        %s4669 = scalar_lea.vmem [#allocation5], 177
        %v4670 = vld [vmem:[%s4669] ss:$2 sm:$0xff]
        %s4671 = scalar_lea.vmem [#allocation5], 193
        %v4672 = vld [vmem:[%s4671] ss:$2 sm:$0xff]
        %s4673 = scalar_lea.vmem [#allocation5], 209
        %v4674 = vld [vmem:[%s4673] ss:$2 sm:$0xff]
        %s4675 = scalar_lea.vmem [#allocation5], 225
        %v4676 = vld [vmem:[%s4675] ss:$2 sm:$0xff]
        %s4677 = scalar_lea.vmem [#allocation5], 241
        %v4678 = vld [vmem:[%s4677] ss:$2 sm:$0xff]
        %v4679 = vmax.f32 %v4616, %v4648
        %v4680 = vmax.f32 %v4618, %v4650
        %v4681 = vmax.f32 %v4620, %v4652
        %v4682 = vmax.f32 %v4622, %v4654
        %v4683 = vmax.f32 %v4624, %v4656
        %v4684 = vmax.f32 %v4626, %v4658
        %v4685 = vmax.f32 %v4628, %v4660
        %v4686 = vmax.f32 %v4630, %v4662
        %v4687 = vmax.f32 %v4632, %v4664
        %v4688 = vmax.f32 %v4634, %v4666
        %v4689 = vmax.f32 %v4636, %v4668
        %v4690 = vmax.f32 %v4638, %v4670
        %v4691 = vmax.f32 %v4640, %v4672
        %v4692 = vmax.f32 %v4642, %v4674
        %v4693 = vmax.f32 %v4644, %v4676
        %v4694 = vmax.f32 %v4646, %v4678
        %v4695 = vmax.f32 %v4679, %v4680
        %v4696 = vmax.f32 %v4681, %v4682
        %v4697 = vmax.f32 %v4683, %v4684
        %v4698 = vmax.f32 %v4685, %v4686
        %v4699 = vmax.f32 %v4687, %v4688
        %v4700 = vmax.f32 %v4689, %v4690
        %v4701 = vmax.f32 %v4691, %v4692
        %v4702 = vmax.f32 %v4693, %v4694
        %v4703 = vld [vmem:[%s4] sm:$0x1]
        %v4705 = vlaneseq
        %v4706 = vshrl.u32 %v4705, 7
        %v4707 = vsub.s32 0, %v4706
        %v4708 = vrot.slane %v4703, %v4707
        %v4710 = vadd.f32 %v4695, %v4708
        %v4711 = vadd.f32 %v4696, %v4708
        %v4712 = vadd.f32 %v4697, %v4708
        %v4713 = vadd.f32 %v4698, %v4708
        %v4714 = vadd.f32 %v4699, %v4708
        %v4715 = vadd.f32 %v4700, %v4708
        %v4716 = vadd.f32 %v4701, %v4708
        %v4717 = vadd.f32 %v4702, %v4708
        %v4718 = vmax.f32 %v4710, 0.0
        %v4719 = vmax.f32 %v4711, 0.0
        %v4720 = vmax.f32 %v4712, 0.0
        %v4721 = vmax.f32 %v4713, 0.0
        %v4722 = vmax.f32 %v4714, 0.0
        %v4723 = vmax.f32 %v4715, 0.0
        %v4724 = vmax.f32 %v4716, 0.0
        %v4725 = vmax.f32 %v4717, 0.0
        %4726 = vst [vmem:[#allocation6] sm:$0xff] %v4718
        %4727 = vst [vmem:[#allocation6 + $0x8] sm:$0xff] %v4719
        %4728 = vst [vmem:[#allocation6 + $0x10] sm:$0xff] %v4720
        %4729 = vst [vmem:[#allocation6 + $0x18] sm:$0xff] %v4721
        %4730 = vst [vmem:[#allocation6 + $0x20] sm:$0xff] %v4722
        %4731 = vst [vmem:[#allocation6 + $0x28] sm:$0xff] %v4723
        %4732 = vst [vmem:[#allocation6 + $0x30] sm:$0xff] %v4724
        %4733 = vst [vmem:[#allocation6 + $0x38] sm:$0xff] %v4725
        %v4734 = vld [vmem:[#allocation6] sm:$0x1]
        %v4735 = vlaneseq
        %vm4736 = vcmp.ge.s32.totalorder %v4735, 0
        %vm4737 = vcmp.lt.s32.totalorder %v4735, 32
        %vm4738 = vmand %vm4736, %vm4737
        %4739 = vst.msk [vmem:[#allocation7] sm:$0x1] %vm4738, %v4734
        %v4740 = vld [vmem:[#allocation6 + $0x1] sm:$0x1]
        %v4743 = vunpack.c.l.s4 1966171168
        %v4744 = vunpack.c.0.s8 %v4743
        %v4745 = vlaneseq
        %v4746 = vshrl.u32 %v4745, 7
        %v4747 = vsub.s32 %v4744, %v4746
        %v4748 = vrot.slane %v4740, %v4747
        %v4750 = vunpack.c.l.s4 1966171168
        %v4751 = vunpack.c.0.s8 %v4750
        %v4752 = vlaneseq
        %v4753 = vshrl.u32 %v4752, 7
        %v4754 = vsub.s32 %v4751, %v4753
        %v4755 = vrot.slane %v4748, %v4754
        %4756 = vrot.lane.b32.xlu0 %v4755, 32
        %v4757 = vpop.permute.xlu0 %4756
        %vm4759 = vcmp.ge.s32.totalorder %v4735, 32
        %vm4760 = vcmp.lt.s32.totalorder %v4735, 64
        %vm4761 = vmand %vm4759, %vm4760
        %4762 = vst.msk [vmem:[#allocation7] sm:$0x1] %vm4761, %v4757
        %v4763 = vld [vmem:[#allocation6 + $0x2] sm:$0x1]
        %v4766 = vunpack.c.l.s4 1966171168
        %v4767 = vunpack.c.0.s8 %v4766
        %v4768 = vlaneseq
        %v4769 = vshrl.u32 %v4768, 7
        %v4770 = vsub.s32 %v4767, %v4769
        %v4771 = vrot.slane %v4763, %v4770
        %v4773 = vunpack.c.l.s4 1966171168
        %v4774 = vunpack.c.0.s8 %v4773
        %v4775 = vlaneseq
        %v4776 = vshrl.u32 %v4775, 7
        %v4777 = vsub.s32 %v4774, %v4776
        %v4778 = vrot.slane %v4771, %v4777
        %4779 = vrot.lane.b32.xlu0 %v4778, 64
        %v4780 = vpop.permute.xlu0 %4779
        %vm4782 = vcmp.ge.s32.totalorder %v4735, 64
        %vm4783 = vcmp.lt.s32.totalorder %v4735, 96
        %vm4784 = vmand %vm4782, %vm4783
        %4785 = vst.msk [vmem:[#allocation7] sm:$0x1] %vm4784, %v4780
        %v4786 = vld [vmem:[#allocation6 + $0x3] sm:$0x1]
        %v4789 = vunpack.c.l.s4 1966171168
        %v4790 = vunpack.c.0.s8 %v4789
        %v4791 = vlaneseq
        %v4792 = vshrl.u32 %v4791, 7
        %v4793 = vsub.s32 %v4790, %v4792
        %v4794 = vrot.slane %v4786, %v4793
        %v4796 = vunpack.c.l.s4 1966171168
        %v4797 = vunpack.c.0.s8 %v4796
        %v4798 = vlaneseq
        %v4799 = vshrl.u32 %v4798, 7
        %v4800 = vsub.s32 %v4797, %v4799
        %v4801 = vrot.slane %v4794, %v4800
        %4802 = vrot.lane.b32.xlu0 %v4801, 96
        %v4803 = vpop.permute.xlu0 %4802
        %vm4805 = vcmp.ge.s32.totalorder %v4735, 96
        %vm4806 = vcmp.lt.s32.totalorder %v4735, 128
        %vm4807 = vmand %vm4805, %vm4806
        %4808 = vst.msk [vmem:[#allocation7] sm:$0x1] %vm4807, %v4803
        %v4809 = vld [vmem:[#allocation6 + $0x4] sm:$0x1]
        %4810 = vst.msk [vmem:[#allocation7 + $0x1] sm:$0x1] %vm4738, %v4809
        %v4811 = vld [vmem:[#allocation6 + $0x5] sm:$0x1]
        %v4814 = vunpack.c.l.s4 1966171168
        %v4815 = vunpack.c.0.s8 %v4814
        %v4816 = vlaneseq
        %v4817 = vshrl.u32 %v4816, 7
        %v4818 = vsub.s32 %v4815, %v4817
        %v4819 = vrot.slane %v4811, %v4818
        %v4821 = vunpack.c.l.s4 1966171168
        %v4822 = vunpack.c.0.s8 %v4821
        %v4823 = vlaneseq
        %v4824 = vshrl.u32 %v4823, 7
        %v4825 = vsub.s32 %v4822, %v4824
        %v4826 = vrot.slane %v4819, %v4825
        %4827 = vrot.lane.b32.xlu0 %v4826, 32
        %v4828 = vpop.permute.xlu0 %4827
        %4830 = vst.msk [vmem:[#allocation7 + $0x1] sm:$0x1] %vm4761, %v4828
        %v4831 = vld [vmem:[#allocation6 + $0x6] sm:$0x1]
        %v4834 = vunpack.c.l.s4 1966171168
        %v4835 = vunpack.c.0.s8 %v4834
        %v4836 = vlaneseq
        %v4837 = vshrl.u32 %v4836, 7
        %v4838 = vsub.s32 %v4835, %v4837
        %v4839 = vrot.slane %v4831, %v4838
        %v4841 = vunpack.c.l.s4 1966171168
        %v4842 = vunpack.c.0.s8 %v4841
        %v4843 = vlaneseq
        %v4844 = vshrl.u32 %v4843, 7
        %v4845 = vsub.s32 %v4842, %v4844
        %v4846 = vrot.slane %v4839, %v4845
        %4847 = vrot.lane.b32.xlu0 %v4846, 64
        %v4848 = vpop.permute.xlu0 %4847
        %4850 = vst.msk [vmem:[#allocation7 + $0x1] sm:$0x1] %vm4784, %v4848
        %v4851 = vld [vmem:[#allocation6 + $0x7] sm:$0x1]
        %v4854 = vunpack.c.l.s4 1966171168
        %v4855 = vunpack.c.0.s8 %v4854
        %v4856 = vlaneseq
        %v4857 = vshrl.u32 %v4856, 7
        %v4858 = vsub.s32 %v4855, %v4857
        %v4859 = vrot.slane %v4851, %v4858
        %v4861 = vunpack.c.l.s4 1966171168
        %v4862 = vunpack.c.0.s8 %v4861
        %v4863 = vlaneseq
        %v4864 = vshrl.u32 %v4863, 7
        %v4865 = vsub.s32 %v4862, %v4864
        %v4866 = vrot.slane %v4859, %v4865
        %4867 = vrot.lane.b32.xlu0 %v4866, 96
        %v4868 = vpop.permute.xlu0 %4867
        %4870 = vst.msk [vmem:[#allocation7 + $0x1] sm:$0x1] %vm4807, %v4868
        %s4871 = scalar_lea.vmem [#allocation6], 8
        %v4872 = vld [vmem:[%s4871] sm:$0x1]
        %4873 = vst.msk [vmem:[#allocation7 + $0x2] sm:$0x1] %vm4738, %v4872
        %v4874 = vld [vmem:[%s4871 + $0x1] sm:$0x1]
        %v4877 = vunpack.c.l.s4 1966171168
        %v4878 = vunpack.c.0.s8 %v4877
        %v4879 = vlaneseq
        %v4880 = vshrl.u32 %v4879, 7
        %v4881 = vsub.s32 %v4878, %v4880
        %v4882 = vrot.slane %v4874, %v4881
        %v4884 = vunpack.c.l.s4 1966171168
        %v4885 = vunpack.c.0.s8 %v4884
        %v4886 = vlaneseq
        %v4887 = vshrl.u32 %v4886, 7
        %v4888 = vsub.s32 %v4885, %v4887
        %v4889 = vrot.slane %v4882, %v4888
        %4890 = vrot.lane.b32.xlu0 %v4889, 32
        %v4891 = vpop.permute.xlu0 %4890
        %4893 = vst.msk [vmem:[#allocation7 + $0x2] sm:$0x1] %vm4761, %v4891
        %v4894 = vld [vmem:[%s4871 + $0x2] sm:$0x1]
        %v4897 = vunpack.c.l.s4 1966171168
        %v4898 = vunpack.c.0.s8 %v4897
        %v4899 = vlaneseq
        %v4900 = vshrl.u32 %v4899, 7
        %v4901 = vsub.s32 %v4898, %v4900
        %v4902 = vrot.slane %v4894, %v4901
        %v4904 = vunpack.c.l.s4 1966171168
        %v4905 = vunpack.c.0.s8 %v4904
        %v4906 = vlaneseq
        %v4907 = vshrl.u32 %v4906, 7
        %v4908 = vsub.s32 %v4905, %v4907
        %v4909 = vrot.slane %v4902, %v4908
        %4910 = vrot.lane.b32.xlu0 %v4909, 64
        %v4911 = vpop.permute.xlu0 %4910
        %4913 = vst.msk [vmem:[#allocation7 + $0x2] sm:$0x1] %vm4784, %v4911
        %v4914 = vld [vmem:[%s4871 + $0x3] sm:$0x1]
        %v4917 = vunpack.c.l.s4 1966171168
        %v4918 = vunpack.c.0.s8 %v4917
        %v4919 = vlaneseq
        %v4920 = vshrl.u32 %v4919, 7
        %v4921 = vsub.s32 %v4918, %v4920
        %v4922 = vrot.slane %v4914, %v4921
        %v4924 = vunpack.c.l.s4 1966171168
        %v4925 = vunpack.c.0.s8 %v4924
        %v4926 = vlaneseq
        %v4927 = vshrl.u32 %v4926, 7
        %v4928 = vsub.s32 %v4925, %v4927
        %v4929 = vrot.slane %v4922, %v4928
        %4930 = vrot.lane.b32.xlu0 %v4929, 96
        %v4931 = vpop.permute.xlu0 %4930
        %4933 = vst.msk [vmem:[#allocation7 + $0x2] sm:$0x1] %vm4807, %v4931
        %v4934 = vld [vmem:[%s4871 + $0x4] sm:$0x1]
        %4935 = vst.msk [vmem:[#allocation7 + $0x3] sm:$0x1] %vm4738, %v4934
        %v4936 = vld [vmem:[%s4871 + $0x5] sm:$0x1]
        %v4939 = vunpack.c.l.s4 1966171168
        %v4940 = vunpack.c.0.s8 %v4939
        %v4941 = vlaneseq
        %v4942 = vshrl.u32 %v4941, 7
        %v4943 = vsub.s32 %v4940, %v4942
        %v4944 = vrot.slane %v4936, %v4943
        %v4946 = vunpack.c.l.s4 1966171168
        %v4947 = vunpack.c.0.s8 %v4946
        %v4948 = vlaneseq
        %v4949 = vshrl.u32 %v4948, 7
        %v4950 = vsub.s32 %v4947, %v4949
        %v4951 = vrot.slane %v4944, %v4950
        %4952 = vrot.lane.b32.xlu0 %v4951, 32
        %v4953 = vpop.permute.xlu0 %4952
        %4955 = vst.msk [vmem:[#allocation7 + $0x3] sm:$0x1] %vm4761, %v4953
        %v4956 = vld [vmem:[%s4871 + $0x6] sm:$0x1]
        %v4959 = vunpack.c.l.s4 1966171168
        %v4960 = vunpack.c.0.s8 %v4959
        %v4961 = vlaneseq
        %v4962 = vshrl.u32 %v4961, 7
        %v4963 = vsub.s32 %v4960, %v4962
        %v4964 = vrot.slane %v4956, %v4963
        %v4966 = vunpack.c.l.s4 1966171168
        %v4967 = vunpack.c.0.s8 %v4966
        %v4968 = vlaneseq
        %v4969 = vshrl.u32 %v4968, 7
        %v4970 = vsub.s32 %v4967, %v4969
        %v4971 = vrot.slane %v4964, %v4970
        %4972 = vrot.lane.b32.xlu0 %v4971, 64
        %v4973 = vpop.permute.xlu0 %4972
        %4975 = vst.msk [vmem:[#allocation7 + $0x3] sm:$0x1] %vm4784, %v4973
        %v4976 = vld [vmem:[%s4871 + $0x7] sm:$0x1]
        %v4979 = vunpack.c.l.s4 1966171168
        %v4980 = vunpack.c.0.s8 %v4979
        %v4981 = vlaneseq
        %v4982 = vshrl.u32 %v4981, 7
        %v4983 = vsub.s32 %v4980, %v4982
        %v4984 = vrot.slane %v4976, %v4983
        %v4986 = vunpack.c.l.s4 1966171168
        %v4987 = vunpack.c.0.s8 %v4986
        %v4988 = vlaneseq
        %v4989 = vshrl.u32 %v4988, 7
        %v4990 = vsub.s32 %v4987, %v4989
        %v4991 = vrot.slane %v4984, %v4990
        %4992 = vrot.lane.b32.xlu0 %v4991, 96
        %v4993 = vpop.permute.xlu0 %4992
        %4995 = vst.msk [vmem:[#allocation7 + $0x3] sm:$0x1] %vm4807, %v4993
        %s4996 = scalar_lea.vmem [#allocation6], 16
        %v4997 = vld [vmem:[%s4996] sm:$0x1]
        %4998 = vst.msk [vmem:[#allocation7 + $0x4] sm:$0x1] %vm4738, %v4997
        %v4999 = vld [vmem:[%s4996 + $0x1] sm:$0x1]
        %v5002 = vunpack.c.l.s4 1966171168
        %v5003 = vunpack.c.0.s8 %v5002
        %v5004 = vlaneseq
        %v5005 = vshrl.u32 %v5004, 7
        %v5006 = vsub.s32 %v5003, %v5005
        %v5007 = vrot.slane %v4999, %v5006
        %v5009 = vunpack.c.l.s4 1966171168
        %v5010 = vunpack.c.0.s8 %v5009
        %v5011 = vlaneseq
        %v5012 = vshrl.u32 %v5011, 7
        %v5013 = vsub.s32 %v5010, %v5012
        %v5014 = vrot.slane %v5007, %v5013
        %5015 = vrot.lane.b32.xlu0 %v5014, 32
        %v5016 = vpop.permute.xlu0 %5015
        %5018 = vst.msk [vmem:[#allocation7 + $0x4] sm:$0x1] %vm4761, %v5016
        %v5019 = vld [vmem:[%s4996 + $0x2] sm:$0x1]
        %v5022 = vunpack.c.l.s4 1966171168
        %v5023 = vunpack.c.0.s8 %v5022
        %v5024 = vlaneseq
        %v5025 = vshrl.u32 %v5024, 7
        %v5026 = vsub.s32 %v5023, %v5025
        %v5027 = vrot.slane %v5019, %v5026
        %v5029 = vunpack.c.l.s4 1966171168
        %v5030 = vunpack.c.0.s8 %v5029
        %v5031 = vlaneseq
        %v5032 = vshrl.u32 %v5031, 7
        %v5033 = vsub.s32 %v5030, %v5032
        %v5034 = vrot.slane %v5027, %v5033
        %5035 = vrot.lane.b32.xlu0 %v5034, 64
        %v5036 = vpop.permute.xlu0 %5035
        %5038 = vst.msk [vmem:[#allocation7 + $0x4] sm:$0x1] %vm4784, %v5036
        %v5039 = vld [vmem:[%s4996 + $0x3] sm:$0x1]
        %v5042 = vunpack.c.l.s4 1966171168
        %v5043 = vunpack.c.0.s8 %v5042
        %v5044 = vlaneseq
        %v5045 = vshrl.u32 %v5044, 7
        %v5046 = vsub.s32 %v5043, %v5045
        %v5047 = vrot.slane %v5039, %v5046
        %v5049 = vunpack.c.l.s4 1966171168
        %v5050 = vunpack.c.0.s8 %v5049
        %v5051 = vlaneseq
        %v5052 = vshrl.u32 %v5051, 7
        %v5053 = vsub.s32 %v5050, %v5052
        %v5054 = vrot.slane %v5047, %v5053
        %5055 = vrot.lane.b32.xlu0 %v5054, 96
        %v5056 = vpop.permute.xlu0 %5055
        %5058 = vst.msk [vmem:[#allocation7 + $0x4] sm:$0x1] %vm4807, %v5056
        %v5059 = vld [vmem:[%s4996 + $0x4] sm:$0x1]
        %5060 = vst.msk [vmem:[#allocation7 + $0x5] sm:$0x1] %vm4738, %v5059
        %v5061 = vld [vmem:[%s4996 + $0x5] sm:$0x1]
        %v5064 = vunpack.c.l.s4 1966171168
        %v5065 = vunpack.c.0.s8 %v5064
        %v5066 = vlaneseq
        %v5067 = vshrl.u32 %v5066, 7
        %v5068 = vsub.s32 %v5065, %v5067
        %v5069 = vrot.slane %v5061, %v5068
        %v5071 = vunpack.c.l.s4 1966171168
        %v5072 = vunpack.c.0.s8 %v5071
        %v5073 = vlaneseq
        %v5074 = vshrl.u32 %v5073, 7
        %v5075 = vsub.s32 %v5072, %v5074
        %v5076 = vrot.slane %v5069, %v5075
        %5077 = vrot.lane.b32.xlu0 %v5076, 32
        %v5078 = vpop.permute.xlu0 %5077
        %5080 = vst.msk [vmem:[#allocation7 + $0x5] sm:$0x1] %vm4761, %v5078
        %v5081 = vld [vmem:[%s4996 + $0x6] sm:$0x1]
        %v5084 = vunpack.c.l.s4 1966171168
        %v5085 = vunpack.c.0.s8 %v5084
        %v5086 = vlaneseq
        %v5087 = vshrl.u32 %v5086, 7
        %v5088 = vsub.s32 %v5085, %v5087
        %v5089 = vrot.slane %v5081, %v5088
        %v5091 = vunpack.c.l.s4 1966171168
        %v5092 = vunpack.c.0.s8 %v5091
        %v5093 = vlaneseq
        %v5094 = vshrl.u32 %v5093, 7
        %v5095 = vsub.s32 %v5092, %v5094
        %v5096 = vrot.slane %v5089, %v5095
        %5097 = vrot.lane.b32.xlu0 %v5096, 64
        %v5098 = vpop.permute.xlu0 %5097
        %5100 = vst.msk [vmem:[#allocation7 + $0x5] sm:$0x1] %vm4784, %v5098
        %v5101 = vld [vmem:[%s4996 + $0x7] sm:$0x1]
        %v5104 = vunpack.c.l.s4 1966171168
        %v5105 = vunpack.c.0.s8 %v5104
        %v5106 = vlaneseq
        %v5107 = vshrl.u32 %v5106, 7
        %v5108 = vsub.s32 %v5105, %v5107
        %v5109 = vrot.slane %v5101, %v5108
        %v5111 = vunpack.c.l.s4 1966171168
        %v5112 = vunpack.c.0.s8 %v5111
        %v5113 = vlaneseq
        %v5114 = vshrl.u32 %v5113, 7
        %v5115 = vsub.s32 %v5112, %v5114
        %v5116 = vrot.slane %v5109, %v5115
        %5117 = vrot.lane.b32.xlu0 %v5116, 96
        %v5118 = vpop.permute.xlu0 %5117
        %5120 = vst.msk [vmem:[#allocation7 + $0x5] sm:$0x1] %vm4807, %v5118
        %s5121 = scalar_lea.vmem [#allocation6], 24
        %v5122 = vld [vmem:[%s5121] sm:$0x1]
        %5123 = vst.msk [vmem:[#allocation7 + $0x6] sm:$0x1] %vm4738, %v5122
        %v5124 = vld [vmem:[%s5121 + $0x1] sm:$0x1]
        %v5127 = vunpack.c.l.s4 1966171168
        %v5128 = vunpack.c.0.s8 %v5127
        %v5129 = vlaneseq
        %v5130 = vshrl.u32 %v5129, 7
        %v5131 = vsub.s32 %v5128, %v5130
        %v5132 = vrot.slane %v5124, %v5131
        %v5134 = vunpack.c.l.s4 1966171168
        %v5135 = vunpack.c.0.s8 %v5134
        %v5136 = vlaneseq
        %v5137 = vshrl.u32 %v5136, 7
        %v5138 = vsub.s32 %v5135, %v5137
        %v5139 = vrot.slane %v5132, %v5138
        %5140 = vrot.lane.b32.xlu0 %v5139, 32
        %v5141 = vpop.permute.xlu0 %5140
        %5143 = vst.msk [vmem:[#allocation7 + $0x6] sm:$0x1] %vm4761, %v5141
        %v5144 = vld [vmem:[%s5121 + $0x2] sm:$0x1]
        %v5147 = vunpack.c.l.s4 1966171168
        %v5148 = vunpack.c.0.s8 %v5147
        %v5149 = vlaneseq
        %v5150 = vshrl.u32 %v5149, 7
        %v5151 = vsub.s32 %v5148, %v5150
        %v5152 = vrot.slane %v5144, %v5151
        %v5154 = vunpack.c.l.s4 1966171168
        %v5155 = vunpack.c.0.s8 %v5154
        %v5156 = vlaneseq
        %v5157 = vshrl.u32 %v5156, 7
        %v5158 = vsub.s32 %v5155, %v5157
        %v5159 = vrot.slane %v5152, %v5158
        %5160 = vrot.lane.b32.xlu0 %v5159, 64
        %v5161 = vpop.permute.xlu0 %5160
        %5163 = vst.msk [vmem:[#allocation7 + $0x6] sm:$0x1] %vm4784, %v5161
        %v5164 = vld [vmem:[%s5121 + $0x3] sm:$0x1]
        %v5167 = vunpack.c.l.s4 1966171168
        %v5168 = vunpack.c.0.s8 %v5167
        %v5169 = vlaneseq
        %v5170 = vshrl.u32 %v5169, 7
        %v5171 = vsub.s32 %v5168, %v5170
        %v5172 = vrot.slane %v5164, %v5171
        %v5174 = vunpack.c.l.s4 1966171168
        %v5175 = vunpack.c.0.s8 %v5174
        %v5176 = vlaneseq
        %v5177 = vshrl.u32 %v5176, 7
        %v5178 = vsub.s32 %v5175, %v5177
        %v5179 = vrot.slane %v5172, %v5178
        %5180 = vrot.lane.b32.xlu0 %v5179, 96
        %v5181 = vpop.permute.xlu0 %5180
        %5183 = vst.msk [vmem:[#allocation7 + $0x6] sm:$0x1] %vm4807, %v5181
        %v5184 = vld [vmem:[%s5121 + $0x4] sm:$0x1]
        %5185 = vst.msk [vmem:[#allocation7 + $0x7] sm:$0x1] %vm4738, %v5184
        %v5186 = vld [vmem:[%s5121 + $0x5] sm:$0x1]
        %v5189 = vunpack.c.l.s4 1966171168
        %v5190 = vunpack.c.0.s8 %v5189
        %v5191 = vlaneseq
        %v5192 = vshrl.u32 %v5191, 7
        %v5193 = vsub.s32 %v5190, %v5192
        %v5194 = vrot.slane %v5186, %v5193
        %v5196 = vunpack.c.l.s4 1966171168
        %v5197 = vunpack.c.0.s8 %v5196
        %v5198 = vlaneseq
        %v5199 = vshrl.u32 %v5198, 7
        %v5200 = vsub.s32 %v5197, %v5199
        %v5201 = vrot.slane %v5194, %v5200
        %5202 = vrot.lane.b32.xlu0 %v5201, 32
        %v5203 = vpop.permute.xlu0 %5202
        %5205 = vst.msk [vmem:[#allocation7 + $0x7] sm:$0x1] %vm4761, %v5203
        %v5206 = vld [vmem:[%s5121 + $0x6] sm:$0x1]
        %v5209 = vunpack.c.l.s4 1966171168
        %v5210 = vunpack.c.0.s8 %v5209
        %v5211 = vlaneseq
        %v5212 = vshrl.u32 %v5211, 7
        %v5213 = vsub.s32 %v5210, %v5212
        %v5214 = vrot.slane %v5206, %v5213
        %v5216 = vunpack.c.l.s4 1966171168
        %v5217 = vunpack.c.0.s8 %v5216
        %v5218 = vlaneseq
        %v5219 = vshrl.u32 %v5218, 7
        %v5220 = vsub.s32 %v5217, %v5219
        %v5221 = vrot.slane %v5214, %v5220
        %5222 = vrot.lane.b32.xlu0 %v5221, 64
        %v5223 = vpop.permute.xlu0 %5222
        %5225 = vst.msk [vmem:[#allocation7 + $0x7] sm:$0x1] %vm4784, %v5223
        %v5226 = vld [vmem:[%s5121 + $0x7] sm:$0x1]
        %v5229 = vunpack.c.l.s4 1966171168
        %v5230 = vunpack.c.0.s8 %v5229
        %v5231 = vlaneseq
        %v5232 = vshrl.u32 %v5231, 7
        %v5233 = vsub.s32 %v5230, %v5232
        %v5234 = vrot.slane %v5226, %v5233
        %v5236 = vunpack.c.l.s4 1966171168
        %v5237 = vunpack.c.0.s8 %v5236
        %v5238 = vlaneseq
        %v5239 = vshrl.u32 %v5238, 7
        %v5240 = vsub.s32 %v5237, %v5239
        %v5241 = vrot.slane %v5234, %v5240
        %5242 = vrot.lane.b32.xlu0 %v5241, 96
        %v5243 = vpop.permute.xlu0 %5242
        %5245 = vst.msk [vmem:[#allocation7 + $0x7] sm:$0x1] %vm4807, %v5243
        %s5246 = scalar_lea.vmem [#allocation6], 32
        %v5247 = vld [vmem:[%s5246] sm:$0x1]
        %5248 = vst.msk [vmem:[#allocation7 + $0x8] sm:$0x1] %vm4738, %v5247
        %v5249 = vld [vmem:[%s5246 + $0x1] sm:$0x1]
        %v5252 = vunpack.c.l.s4 1966171168
        %v5253 = vunpack.c.0.s8 %v5252
        %v5254 = vlaneseq
        %v5255 = vshrl.u32 %v5254, 7
        %v5256 = vsub.s32 %v5253, %v5255
        %v5257 = vrot.slane %v5249, %v5256
        %v5259 = vunpack.c.l.s4 1966171168
        %v5260 = vunpack.c.0.s8 %v5259
        %v5261 = vlaneseq
        %v5262 = vshrl.u32 %v5261, 7
        %v5263 = vsub.s32 %v5260, %v5262
        %v5264 = vrot.slane %v5257, %v5263
        %5265 = vrot.lane.b32.xlu0 %v5264, 32
        %v5266 = vpop.permute.xlu0 %5265
        %5268 = vst.msk [vmem:[#allocation7 + $0x8] sm:$0x1] %vm4761, %v5266
        %v5269 = vld [vmem:[%s5246 + $0x2] sm:$0x1]
        %v5272 = vunpack.c.l.s4 1966171168
        %v5273 = vunpack.c.0.s8 %v5272
        %v5274 = vlaneseq
        %v5275 = vshrl.u32 %v5274, 7
        %v5276 = vsub.s32 %v5273, %v5275
        %v5277 = vrot.slane %v5269, %v5276
        %v5279 = vunpack.c.l.s4 1966171168
        %v5280 = vunpack.c.0.s8 %v5279
        %v5281 = vlaneseq
        %v5282 = vshrl.u32 %v5281, 7
        %v5283 = vsub.s32 %v5280, %v5282
        %v5284 = vrot.slane %v5277, %v5283
        %5285 = vrot.lane.b32.xlu0 %v5284, 64
        %v5286 = vpop.permute.xlu0 %5285
        %5288 = vst.msk [vmem:[#allocation7 + $0x8] sm:$0x1] %vm4784, %v5286
        %v5289 = vld [vmem:[%s5246 + $0x3] sm:$0x1]
        %v5292 = vunpack.c.l.s4 1966171168
        %v5293 = vunpack.c.0.s8 %v5292
        %v5294 = vlaneseq
        %v5295 = vshrl.u32 %v5294, 7
        %v5296 = vsub.s32 %v5293, %v5295
        %v5297 = vrot.slane %v5289, %v5296
        %v5299 = vunpack.c.l.s4 1966171168
        %v5300 = vunpack.c.0.s8 %v5299
        %v5301 = vlaneseq
        %v5302 = vshrl.u32 %v5301, 7
        %v5303 = vsub.s32 %v5300, %v5302
        %v5304 = vrot.slane %v5297, %v5303
        %5305 = vrot.lane.b32.xlu0 %v5304, 96
        %v5306 = vpop.permute.xlu0 %5305
        %5308 = vst.msk [vmem:[#allocation7 + $0x8] sm:$0x1] %vm4807, %v5306
        %v5309 = vld [vmem:[%s5246 + $0x4] sm:$0x1]
        %5310 = vst.msk [vmem:[#allocation7 + $0x9] sm:$0x1] %vm4738, %v5309
        %v5311 = vld [vmem:[%s5246 + $0x5] sm:$0x1]
        %v5314 = vunpack.c.l.s4 1966171168
        %v5315 = vunpack.c.0.s8 %v5314
        %v5316 = vlaneseq
        %v5317 = vshrl.u32 %v5316, 7
        %v5318 = vsub.s32 %v5315, %v5317
        %v5319 = vrot.slane %v5311, %v5318
        %v5321 = vunpack.c.l.s4 1966171168
        %v5322 = vunpack.c.0.s8 %v5321
        %v5323 = vlaneseq
        %v5324 = vshrl.u32 %v5323, 7
        %v5325 = vsub.s32 %v5322, %v5324
        %v5326 = vrot.slane %v5319, %v5325
        %5327 = vrot.lane.b32.xlu0 %v5326, 32
        %v5328 = vpop.permute.xlu0 %5327
        %5330 = vst.msk [vmem:[#allocation7 + $0x9] sm:$0x1] %vm4761, %v5328
        %v5331 = vld [vmem:[%s5246 + $0x6] sm:$0x1]
        %v5334 = vunpack.c.l.s4 1966171168
        %v5335 = vunpack.c.0.s8 %v5334
        %v5336 = vlaneseq
        %v5337 = vshrl.u32 %v5336, 7
        %v5338 = vsub.s32 %v5335, %v5337
        %v5339 = vrot.slane %v5331, %v5338
        %v5341 = vunpack.c.l.s4 1966171168
        %v5342 = vunpack.c.0.s8 %v5341
        %v5343 = vlaneseq
        %v5344 = vshrl.u32 %v5343, 7
        %v5345 = vsub.s32 %v5342, %v5344
        %v5346 = vrot.slane %v5339, %v5345
        %5347 = vrot.lane.b32.xlu0 %v5346, 64
        %v5348 = vpop.permute.xlu0 %5347
        %5350 = vst.msk [vmem:[#allocation7 + $0x9] sm:$0x1] %vm4784, %v5348
        %v5351 = vld [vmem:[%s5246 + $0x7] sm:$0x1]
        %v5354 = vunpack.c.l.s4 1966171168
        %v5355 = vunpack.c.0.s8 %v5354
        %v5356 = vlaneseq
        %v5357 = vshrl.u32 %v5356, 7
        %v5358 = vsub.s32 %v5355, %v5357
        %v5359 = vrot.slane %v5351, %v5358
        %v5361 = vunpack.c.l.s4 1966171168
        %v5362 = vunpack.c.0.s8 %v5361
        %v5363 = vlaneseq
        %v5364 = vshrl.u32 %v5363, 7
        %v5365 = vsub.s32 %v5362, %v5364
        %v5366 = vrot.slane %v5359, %v5365
        %5367 = vrot.lane.b32.xlu0 %v5366, 96
        %v5368 = vpop.permute.xlu0 %5367
        %5370 = vst.msk [vmem:[#allocation7 + $0x9] sm:$0x1] %vm4807, %v5368
        %s5371 = scalar_lea.vmem [#allocation6], 40
        %v5372 = vld [vmem:[%s5371] sm:$0x1]
        %5373 = vst.msk [vmem:[#allocation7 + $0xa] sm:$0x1] %vm4738, %v5372
        %v5374 = vld [vmem:[%s5371 + $0x1] sm:$0x1]
        %v5377 = vunpack.c.l.s4 1966171168
        %v5378 = vunpack.c.0.s8 %v5377
        %v5379 = vlaneseq
        %v5380 = vshrl.u32 %v5379, 7
        %v5381 = vsub.s32 %v5378, %v5380
        %v5382 = vrot.slane %v5374, %v5381
        %v5384 = vunpack.c.l.s4 1966171168
        %v5385 = vunpack.c.0.s8 %v5384
        %v5386 = vlaneseq
        %v5387 = vshrl.u32 %v5386, 7
        %v5388 = vsub.s32 %v5385, %v5387
        %v5389 = vrot.slane %v5382, %v5388
        %5390 = vrot.lane.b32.xlu0 %v5389, 32
        %v5391 = vpop.permute.xlu0 %5390
        %5393 = vst.msk [vmem:[#allocation7 + $0xa] sm:$0x1] %vm4761, %v5391
        %v5394 = vld [vmem:[%s5371 + $0x2] sm:$0x1]
        %v5397 = vunpack.c.l.s4 1966171168
        %v5398 = vunpack.c.0.s8 %v5397
        %v5399 = vlaneseq
        %v5400 = vshrl.u32 %v5399, 7
        %v5401 = vsub.s32 %v5398, %v5400
        %v5402 = vrot.slane %v5394, %v5401
        %v5404 = vunpack.c.l.s4 1966171168
        %v5405 = vunpack.c.0.s8 %v5404
        %v5406 = vlaneseq
        %v5407 = vshrl.u32 %v5406, 7
        %v5408 = vsub.s32 %v5405, %v5407
        %v5409 = vrot.slane %v5402, %v5408
        %5410 = vrot.lane.b32.xlu0 %v5409, 64
        %v5411 = vpop.permute.xlu0 %5410
        %5413 = vst.msk [vmem:[#allocation7 + $0xa] sm:$0x1] %vm4784, %v5411
        %v5414 = vld [vmem:[%s5371 + $0x3] sm:$0x1]
        %v5417 = vunpack.c.l.s4 1966171168
        %v5418 = vunpack.c.0.s8 %v5417
        %v5419 = vlaneseq
        %v5420 = vshrl.u32 %v5419, 7
        %v5421 = vsub.s32 %v5418, %v5420
        %v5422 = vrot.slane %v5414, %v5421
        %v5424 = vunpack.c.l.s4 1966171168
        %v5425 = vunpack.c.0.s8 %v5424
        %v5426 = vlaneseq
        %v5427 = vshrl.u32 %v5426, 7
        %v5428 = vsub.s32 %v5425, %v5427
        %v5429 = vrot.slane %v5422, %v5428
        %5430 = vrot.lane.b32.xlu0 %v5429, 96
        %v5431 = vpop.permute.xlu0 %5430
        %5433 = vst.msk [vmem:[#allocation7 + $0xa] sm:$0x1] %vm4807, %v5431
        %v5434 = vld [vmem:[%s5371 + $0x4] sm:$0x1]
        %5435 = vst.msk [vmem:[#allocation7 + $0xb] sm:$0x1] %vm4738, %v5434
        %v5436 = vld [vmem:[%s5371 + $0x5] sm:$0x1]
        %v5439 = vunpack.c.l.s4 1966171168
        %v5440 = vunpack.c.0.s8 %v5439
        %v5441 = vlaneseq
        %v5442 = vshrl.u32 %v5441, 7
        %v5443 = vsub.s32 %v5440, %v5442
        %v5444 = vrot.slane %v5436, %v5443
        %v5446 = vunpack.c.l.s4 1966171168
        %v5447 = vunpack.c.0.s8 %v5446
        %v5448 = vlaneseq
        %v5449 = vshrl.u32 %v5448, 7
        %v5450 = vsub.s32 %v5447, %v5449
        %v5451 = vrot.slane %v5444, %v5450
        %5452 = vrot.lane.b32.xlu0 %v5451, 32
        %v5453 = vpop.permute.xlu0 %5452
        %5455 = vst.msk [vmem:[#allocation7 + $0xb] sm:$0x1] %vm4761, %v5453
        %v5456 = vld [vmem:[%s5371 + $0x6] sm:$0x1]
        %v5459 = vunpack.c.l.s4 1966171168
        %v5460 = vunpack.c.0.s8 %v5459
        %v5461 = vlaneseq
        %v5462 = vshrl.u32 %v5461, 7
        %v5463 = vsub.s32 %v5460, %v5462
        %v5464 = vrot.slane %v5456, %v5463
        %v5466 = vunpack.c.l.s4 1966171168
        %v5467 = vunpack.c.0.s8 %v5466
        %v5468 = vlaneseq
        %v5469 = vshrl.u32 %v5468, 7
        %v5470 = vsub.s32 %v5467, %v5469
        %v5471 = vrot.slane %v5464, %v5470
        %5472 = vrot.lane.b32.xlu0 %v5471, 64
        %v5473 = vpop.permute.xlu0 %5472
        %5475 = vst.msk [vmem:[#allocation7 + $0xb] sm:$0x1] %vm4784, %v5473
        %v5476 = vld [vmem:[%s5371 + $0x7] sm:$0x1]
        %v5479 = vunpack.c.l.s4 1966171168
        %v5480 = vunpack.c.0.s8 %v5479
        %v5481 = vlaneseq
        %v5482 = vshrl.u32 %v5481, 7
        %v5483 = vsub.s32 %v5480, %v5482
        %v5484 = vrot.slane %v5476, %v5483
        %v5486 = vunpack.c.l.s4 1966171168
        %v5487 = vunpack.c.0.s8 %v5486
        %v5488 = vlaneseq
        %v5489 = vshrl.u32 %v5488, 7
        %v5490 = vsub.s32 %v5487, %v5489
        %v5491 = vrot.slane %v5484, %v5490
        %5492 = vrot.lane.b32.xlu0 %v5491, 96
        %v5493 = vpop.permute.xlu0 %5492
        %5495 = vst.msk [vmem:[#allocation7 + $0xb] sm:$0x1] %vm4807, %v5493
        %s5496 = scalar_lea.vmem [#allocation6], 48
        %v5497 = vld [vmem:[%s5496] sm:$0x1]
        %5498 = vst.msk [vmem:[#allocation7 + $0xc] sm:$0x1] %vm4738, %v5497
        %v5499 = vld [vmem:[%s5496 + $0x1] sm:$0x1]
        %v5502 = vunpack.c.l.s4 1966171168
        %v5503 = vunpack.c.0.s8 %v5502
        %v5504 = vlaneseq
        %v5505 = vshrl.u32 %v5504, 7
        %v5506 = vsub.s32 %v5503, %v5505
        %v5507 = vrot.slane %v5499, %v5506
        %v5509 = vunpack.c.l.s4 1966171168
        %v5510 = vunpack.c.0.s8 %v5509
        %v5511 = vlaneseq
        %v5512 = vshrl.u32 %v5511, 7
        %v5513 = vsub.s32 %v5510, %v5512
        %v5514 = vrot.slane %v5507, %v5513
        %5515 = vrot.lane.b32.xlu0 %v5514, 32
        %v5516 = vpop.permute.xlu0 %5515
        %5518 = vst.msk [vmem:[#allocation7 + $0xc] sm:$0x1] %vm4761, %v5516
        %v5519 = vld [vmem:[%s5496 + $0x2] sm:$0x1]
        %v5522 = vunpack.c.l.s4 1966171168
        %v5523 = vunpack.c.0.s8 %v5522
        %v5524 = vlaneseq
        %v5525 = vshrl.u32 %v5524, 7
        %v5526 = vsub.s32 %v5523, %v5525
        %v5527 = vrot.slane %v5519, %v5526
        %v5529 = vunpack.c.l.s4 1966171168
        %v5530 = vunpack.c.0.s8 %v5529
        %v5531 = vlaneseq
        %v5532 = vshrl.u32 %v5531, 7
        %v5533 = vsub.s32 %v5530, %v5532
        %v5534 = vrot.slane %v5527, %v5533
        %5535 = vrot.lane.b32.xlu0 %v5534, 64
        %v5536 = vpop.permute.xlu0 %5535
        %5538 = vst.msk [vmem:[#allocation7 + $0xc] sm:$0x1] %vm4784, %v5536
        %v5539 = vld [vmem:[%s5496 + $0x3] sm:$0x1]
        %v5542 = vunpack.c.l.s4 1966171168
        %v5543 = vunpack.c.0.s8 %v5542
        %v5544 = vlaneseq
        %v5545 = vshrl.u32 %v5544, 7
        %v5546 = vsub.s32 %v5543, %v5545
        %v5547 = vrot.slane %v5539, %v5546
        %v5549 = vunpack.c.l.s4 1966171168
        %v5550 = vunpack.c.0.s8 %v5549
        %v5551 = vlaneseq
        %v5552 = vshrl.u32 %v5551, 7
        %v5553 = vsub.s32 %v5550, %v5552
        %v5554 = vrot.slane %v5547, %v5553
        %5555 = vrot.lane.b32.xlu0 %v5554, 96
        %v5556 = vpop.permute.xlu0 %5555
        %5558 = vst.msk [vmem:[#allocation7 + $0xc] sm:$0x1] %vm4807, %v5556
        %v5559 = vld [vmem:[%s5496 + $0x4] sm:$0x1]
        %5560 = vst.msk [vmem:[#allocation7 + $0xd] sm:$0x1] %vm4738, %v5559
        %v5561 = vld [vmem:[%s5496 + $0x5] sm:$0x1]
        %v5564 = vunpack.c.l.s4 1966171168
        %v5565 = vunpack.c.0.s8 %v5564
        %v5566 = vlaneseq
        %v5567 = vshrl.u32 %v5566, 7
        %v5568 = vsub.s32 %v5565, %v5567
        %v5569 = vrot.slane %v5561, %v5568
        %v5571 = vunpack.c.l.s4 1966171168
        %v5572 = vunpack.c.0.s8 %v5571
        %v5573 = vlaneseq
        %v5574 = vshrl.u32 %v5573, 7
        %v5575 = vsub.s32 %v5572, %v5574
        %v5576 = vrot.slane %v5569, %v5575
        %5577 = vrot.lane.b32.xlu0 %v5576, 32
        %v5578 = vpop.permute.xlu0 %5577
        %5580 = vst.msk [vmem:[#allocation7 + $0xd] sm:$0x1] %vm4761, %v5578
        %v5581 = vld [vmem:[%s5496 + $0x6] sm:$0x1]
        %v5584 = vunpack.c.l.s4 1966171168
        %v5585 = vunpack.c.0.s8 %v5584
        %v5586 = vlaneseq
        %v5587 = vshrl.u32 %v5586, 7
        %v5588 = vsub.s32 %v5585, %v5587
        %v5589 = vrot.slane %v5581, %v5588
        %v5591 = vunpack.c.l.s4 1966171168
        %v5592 = vunpack.c.0.s8 %v5591
        %v5593 = vlaneseq
        %v5594 = vshrl.u32 %v5593, 7
        %v5595 = vsub.s32 %v5592, %v5594
        %v5596 = vrot.slane %v5589, %v5595
        %5597 = vrot.lane.b32.xlu0 %v5596, 64
        %v5598 = vpop.permute.xlu0 %5597
        %5600 = vst.msk [vmem:[#allocation7 + $0xd] sm:$0x1] %vm4784, %v5598
        %v5601 = vld [vmem:[%s5496 + $0x7] sm:$0x1]
        %v5604 = vunpack.c.l.s4 1966171168
        %v5605 = vunpack.c.0.s8 %v5604
        %v5606 = vlaneseq
        %v5607 = vshrl.u32 %v5606, 7
        %v5608 = vsub.s32 %v5605, %v5607
        %v5609 = vrot.slane %v5601, %v5608
        %v5611 = vunpack.c.l.s4 1966171168
        %v5612 = vunpack.c.0.s8 %v5611
        %v5613 = vlaneseq
        %v5614 = vshrl.u32 %v5613, 7
        %v5615 = vsub.s32 %v5612, %v5614
        %v5616 = vrot.slane %v5609, %v5615
        %5617 = vrot.lane.b32.xlu0 %v5616, 96
        %v5618 = vpop.permute.xlu0 %5617
        %5620 = vst.msk [vmem:[#allocation7 + $0xd] sm:$0x1] %vm4807, %v5618
        %s5621 = scalar_lea.vmem [#allocation6], 56
        %v5622 = vld [vmem:[%s5621] sm:$0x1]
        %5623 = vst.msk [vmem:[#allocation7 + $0xe] sm:$0x1] %vm4738, %v5622
        %v5624 = vld [vmem:[%s5621 + $0x1] sm:$0x1]
        %v5627 = vunpack.c.l.s4 1966171168
        %v5628 = vunpack.c.0.s8 %v5627
        %v5629 = vlaneseq
        %v5630 = vshrl.u32 %v5629, 7
        %v5631 = vsub.s32 %v5628, %v5630
        %v5632 = vrot.slane %v5624, %v5631
        %v5634 = vunpack.c.l.s4 1966171168
        %v5635 = vunpack.c.0.s8 %v5634
        %v5636 = vlaneseq
        %v5637 = vshrl.u32 %v5636, 7
        %v5638 = vsub.s32 %v5635, %v5637
        %v5639 = vrot.slane %v5632, %v5638
        %5640 = vrot.lane.b32.xlu0 %v5639, 32
        %v5641 = vpop.permute.xlu0 %5640
        %5643 = vst.msk [vmem:[#allocation7 + $0xe] sm:$0x1] %vm4761, %v5641
        %v5644 = vld [vmem:[%s5621 + $0x2] sm:$0x1]
        %v5647 = vunpack.c.l.s4 1966171168
        %v5648 = vunpack.c.0.s8 %v5647
        %v5649 = vlaneseq
        %v5650 = vshrl.u32 %v5649, 7
        %v5651 = vsub.s32 %v5648, %v5650
        %v5652 = vrot.slane %v5644, %v5651
        %v5654 = vunpack.c.l.s4 1966171168
        %v5655 = vunpack.c.0.s8 %v5654
        %v5656 = vlaneseq
        %v5657 = vshrl.u32 %v5656, 7
        %v5658 = vsub.s32 %v5655, %v5657
        %v5659 = vrot.slane %v5652, %v5658
        %5660 = vrot.lane.b32.xlu0 %v5659, 64
        %v5661 = vpop.permute.xlu0 %5660
        %5663 = vst.msk [vmem:[#allocation7 + $0xe] sm:$0x1] %vm4784, %v5661
        %v5664 = vld [vmem:[%s5621 + $0x3] sm:$0x1]
        %v5667 = vunpack.c.l.s4 1966171168
        %v5668 = vunpack.c.0.s8 %v5667
        %v5669 = vlaneseq
        %v5670 = vshrl.u32 %v5669, 7
        %v5671 = vsub.s32 %v5668, %v5670
        %v5672 = vrot.slane %v5664, %v5671
        %v5674 = vunpack.c.l.s4 1966171168
        %v5675 = vunpack.c.0.s8 %v5674
        %v5676 = vlaneseq
        %v5677 = vshrl.u32 %v5676, 7
        %v5678 = vsub.s32 %v5675, %v5677
        %v5679 = vrot.slane %v5672, %v5678
        %5680 = vrot.lane.b32.xlu0 %v5679, 96
        %v5681 = vpop.permute.xlu0 %5680
        %5683 = vst.msk [vmem:[#allocation7 + $0xe] sm:$0x1] %vm4807, %v5681
        %v5684 = vld [vmem:[%s5621 + $0x4] sm:$0x1]
        %5685 = vst.msk [vmem:[#allocation7 + $0xf] sm:$0x1] %vm4738, %v5684
        %v5686 = vld [vmem:[%s5621 + $0x5] sm:$0x1]
        %v5689 = vunpack.c.l.s4 1966171168
        %v5690 = vunpack.c.0.s8 %v5689
        %v5691 = vlaneseq
        %v5692 = vshrl.u32 %v5691, 7
        %v5693 = vsub.s32 %v5690, %v5692
        %v5694 = vrot.slane %v5686, %v5693
        %v5696 = vunpack.c.l.s4 1966171168
        %v5697 = vunpack.c.0.s8 %v5696
        %v5698 = vlaneseq
        %v5699 = vshrl.u32 %v5698, 7
        %v5700 = vsub.s32 %v5697, %v5699
        %v5701 = vrot.slane %v5694, %v5700
        %5702 = vrot.lane.b32.xlu0 %v5701, 32
        %v5703 = vpop.permute.xlu0 %5702
        %5705 = vst.msk [vmem:[#allocation7 + $0xf] sm:$0x1] %vm4761, %v5703
        %v5706 = vld [vmem:[%s5621 + $0x6] sm:$0x1]
        %v5709 = vunpack.c.l.s4 1966171168
        %v5710 = vunpack.c.0.s8 %v5709
        %v5711 = vlaneseq
        %v5712 = vshrl.u32 %v5711, 7
        %v5713 = vsub.s32 %v5710, %v5712
        %v5714 = vrot.slane %v5706, %v5713
        %v5716 = vunpack.c.l.s4 1966171168
        %v5717 = vunpack.c.0.s8 %v5716
        %v5718 = vlaneseq
        %v5719 = vshrl.u32 %v5718, 7
        %v5720 = vsub.s32 %v5717, %v5719
        %v5721 = vrot.slane %v5714, %v5720
        %5722 = vrot.lane.b32.xlu0 %v5721, 64
        %v5723 = vpop.permute.xlu0 %5722
        %5725 = vst.msk [vmem:[#allocation7 + $0xf] sm:$0x1] %vm4784, %v5723
        %v5726 = vld [vmem:[%s5621 + $0x7] sm:$0x1]
        %v5729 = vunpack.c.l.s4 1966171168
        %v5730 = vunpack.c.0.s8 %v5729
        %v5731 = vlaneseq
        %v5732 = vshrl.u32 %v5731, 7
        %v5733 = vsub.s32 %v5730, %v5732
        %v5734 = vrot.slane %v5726, %v5733
        %v5736 = vunpack.c.l.s4 1966171168
        %v5737 = vunpack.c.0.s8 %v5736
        %v5738 = vlaneseq
        %v5739 = vshrl.u32 %v5738, 7
        %v5740 = vsub.s32 %v5737, %v5739
        %v5741 = vrot.slane %v5734, %v5740
        %5742 = vrot.lane.b32.xlu0 %v5741, 96
        %v5743 = vpop.permute.xlu0 %5742
        %5745 = vst.msk [vmem:[#allocation7 + $0xf] sm:$0x1] %vm4807, %v5743
        %v5746 = vld [vmem:[#allocation7] sm:$0xff]
        %v5747 = vld [vmem:[#allocation7 + $0x8] sm:$0xff]
        %v5750 = vlaneseq
        %v5751 = vshrl.u32 %v5750, 7
        %v5752 = vsub.s32 0, %v5751
        %v5753 = vrot.slane %v5746, %v5752
        %v5754 = vlaneseq
        %v5755 = vshrl.u32 %v5754, 7
        %v5756 = vsub.s32 1, %v5755
        %v5757 = vrot.slane %v5746, %v5756
        %v5758 = vlaneseq
        %v5759 = vshrl.u32 %v5758, 7
        %v5760 = vsub.s32 2, %v5759
        %v5761 = vrot.slane %v5746, %v5760
        %v5762 = vlaneseq
        %v5763 = vshrl.u32 %v5762, 7
        %v5764 = vsub.s32 3, %v5763
        %v5765 = vrot.slane %v5746, %v5764
        %v5766 = vlaneseq
        %v5767 = vshrl.u32 %v5766, 7
        %v5768 = vsub.s32 4, %v5767
        %v5769 = vrot.slane %v5746, %v5768
        %v5770 = vlaneseq
        %v5771 = vshrl.u32 %v5770, 7
        %v5772 = vsub.s32 5, %v5771
        %v5773 = vrot.slane %v5746, %v5772
        %v5774 = vlaneseq
        %v5775 = vshrl.u32 %v5774, 7
        %v5776 = vsub.s32 6, %v5775
        %v5777 = vrot.slane %v5746, %v5776
        %v5778 = vlaneseq
        %v5779 = vshrl.u32 %v5778, 7
        %v5780 = vsub.s32 7, %v5779
        %v5781 = vrot.slane %v5746, %v5780
        %v5782 = vlaneseq
        %v5783 = vshrl.u32 %v5782, 7
        %v5784 = vsub.s32 0, %v5783
        %v5785 = vrot.slane %v5747, %v5784
        %v5786 = vlaneseq
        %v5787 = vshrl.u32 %v5786, 7
        %v5788 = vsub.s32 1, %v5787
        %v5789 = vrot.slane %v5747, %v5788
        %v5790 = vlaneseq
        %v5791 = vshrl.u32 %v5790, 7
        %v5792 = vsub.s32 2, %v5791
        %v5793 = vrot.slane %v5747, %v5792
        %v5794 = vlaneseq
        %v5795 = vshrl.u32 %v5794, 7
        %v5796 = vsub.s32 3, %v5795
        %v5797 = vrot.slane %v5747, %v5796
        %v5798 = vlaneseq
        %v5799 = vshrl.u32 %v5798, 7
        %v5800 = vsub.s32 4, %v5799
        %v5801 = vrot.slane %v5747, %v5800
        %v5802 = vlaneseq
        %v5803 = vshrl.u32 %v5802, 7
        %v5804 = vsub.s32 5, %v5803
        %v5805 = vrot.slane %v5747, %v5804
        %v5806 = vlaneseq
        %v5807 = vshrl.u32 %v5806, 7
        %v5808 = vsub.s32 6, %v5807
        %v5809 = vrot.slane %v5747, %v5808
        %v5810 = vlaneseq
        %v5811 = vshrl.u32 %v5810, 7
        %v5812 = vsub.s32 7, %v5811
        %v5813 = vrot.slane %v5747, %v5812
        %v5830 = vpack.c.bf16 %v5753, %v5753
        %v5831 = vpack.c.bf16 %v5757, %v5757
        %v5832 = vpack.c.bf16 %v5761, %v5761
        %v5833 = vpack.c.bf16 %v5765, %v5765
        %v5834 = vpack.c.bf16 %v5769, %v5769
        %v5835 = vpack.c.bf16 %v5773, %v5773
        %v5836 = vpack.c.bf16 %v5777, %v5777
        %v5837 = vpack.c.bf16 %v5781, %v5781
        %v5838 = vpack.c.bf16 %v5785, %v5785
        %v5839 = vpack.c.bf16 %v5789, %v5789
        %v5840 = vpack.c.bf16 %v5793, %v5793
        %v5841 = vpack.c.bf16 %v5797, %v5797
        %v5842 = vpack.c.bf16 %v5801, %v5801
        %v5843 = vpack.c.bf16 %v5805, %v5805
        %v5844 = vpack.c.bf16 %v5809, %v5809
        %v5845 = vpack.c.bf16 %v5813, %v5813
        %v5846 = vld [vmem:[%s5] sm:$0xff]
        %v5847 = vld [vmem:[%s5 + $0x8] sm:$0xff]
        %v5848 = vld [vmem:[%s5 + $0x10] sm:$0xff]
        %v5849 = vld [vmem:[%s5 + $0x18] sm:$0xff]
        %v5850 = vld [vmem:[%s5 + $0x20] sm:$0xff]
        %v5851 = vld [vmem:[%s5 + $0x28] sm:$0xff]
        %v5852 = vld [vmem:[%s5 + $0x30] sm:$0xff]
        %v5853 = vld [vmem:[%s5 + $0x38] sm:$0xff]
        %v5854 = vld [vmem:[%s5 + $0x40] sm:$0xff]
        %v5855 = vld [vmem:[%s5 + $0x48] sm:$0xff]
        %v5856 = vld [vmem:[%s5 + $0x50] sm:$0xff]
        %v5857 = vld [vmem:[%s5 + $0x58] sm:$0xff]
        %v5858 = vld [vmem:[%s5 + $0x60] sm:$0xff]
        %v5859 = vld [vmem:[%s5 + $0x68] sm:$0xff]
        %v5860 = vld [vmem:[%s5 + $0x70] sm:$0xff]
        %v5861 = vld [vmem:[%s5 + $0x78] sm:$0xff]
        %v5862 = vld [vmem:[%s5 + $0x80] sm:$0xff]
        %v5863 = vld [vmem:[%s5 + $0x88] sm:$0xff]
        %v5864 = vld [vmem:[%s5 + $0x90] sm:$0xff]
        %v5865 = vld [vmem:[%s5 + $0x98] sm:$0xff]
        %v5866 = vld [vmem:[%s5 + $0xa0] sm:$0xff]
        %v5867 = vld [vmem:[%s5 + $0xa8] sm:$0xff]
        %v5868 = vld [vmem:[%s5 + $0xb0] sm:$0xff]
        %v5869 = vld [vmem:[%s5 + $0xb8] sm:$0xff]
        %v5870 = vld [vmem:[%s5 + $0xc0] sm:$0xff]
        %v5871 = vld [vmem:[%s5 + $0xc8] sm:$0xff]
        %v5872 = vld [vmem:[%s5 + $0xd0] sm:$0xff]
        %v5873 = vld [vmem:[%s5 + $0xd8] sm:$0xff]
        %v5874 = vld [vmem:[%s5 + $0xe0] sm:$0xff]
        %v5875 = vld [vmem:[%s5 + $0xe8] sm:$0xff]
        %v5876 = vld [vmem:[%s5 + $0xf0] sm:$0xff]
        %v5877 = vld [vmem:[%s5 + $0xf8] sm:$0xff]
        %v5878 = vld [vmem:[%s5 + $0x100] sm:$0xff]
        %v5879 = vld [vmem:[%s5 + $0x108] sm:$0xff]
        %v5880 = vld [vmem:[%s5 + $0x110] sm:$0xff]
        %v5881 = vld [vmem:[%s5 + $0x118] sm:$0xff]
        %v5882 = vld [vmem:[%s5 + $0x120] sm:$0xff]
        %v5883 = vld [vmem:[%s5 + $0x128] sm:$0xff]
        %v5884 = vld [vmem:[%s5 + $0x130] sm:$0xff]
        %v5885 = vld [vmem:[%s5 + $0x138] sm:$0xff]
        %v5886 = vld [vmem:[%s5 + $0x140] sm:$0xff]
        %v5887 = vld [vmem:[%s5 + $0x148] sm:$0xff]
        %v5888 = vld [vmem:[%s5 + $0x150] sm:$0xff]
        %v5889 = vld [vmem:[%s5 + $0x158] sm:$0xff]
        %v5890 = vld [vmem:[%s5 + $0x160] sm:$0xff]
        %v5891 = vld [vmem:[%s5 + $0x168] sm:$0xff]
        %v5892 = vld [vmem:[%s5 + $0x170] sm:$0xff]
        %v5893 = vld [vmem:[%s5 + $0x178] sm:$0xff]
        %v5894 = vld [vmem:[%s5 + $0x180] sm:$0xff]
        %v5895 = vld [vmem:[%s5 + $0x188] sm:$0xff]
        %v5896 = vld [vmem:[%s5 + $0x190] sm:$0xff]
        %v5897 = vld [vmem:[%s5 + $0x198] sm:$0xff]
        %v5898 = vld [vmem:[%s5 + $0x1a0] sm:$0xff]
        %v5899 = vld [vmem:[%s5 + $0x1a8] sm:$0xff]
        %v5900 = vld [vmem:[%s5 + $0x1b0] sm:$0xff]
        %v5901 = vld [vmem:[%s5 + $0x1b8] sm:$0xff]
        %v5902 = vld [vmem:[%s5 + $0x1c0] sm:$0xff]
        %v5903 = vld [vmem:[%s5 + $0x1c8] sm:$0xff]
        %v5904 = vld [vmem:[%s5 + $0x1d0] sm:$0xff]
        %v5905 = vld [vmem:[%s5 + $0x1d8] sm:$0xff]
        %v5906 = vld [vmem:[%s5 + $0x1e0] sm:$0xff]
        %v5907 = vld [vmem:[%s5 + $0x1e8] sm:$0xff]
        %v5908 = vld [vmem:[%s5 + $0x1f0] sm:$0xff]
        %v5909 = vld [vmem:[%s5 + $0x1f8] sm:$0xff]
        %v5910 = vld [vmem:[%s5 + $0x200] sm:$0xff]
        %v5911 = vld [vmem:[%s5 + $0x208] sm:$0xff]
        %v5912 = vld [vmem:[%s5 + $0x210] sm:$0xff]
        %v5913 = vld [vmem:[%s5 + $0x218] sm:$0xff]
        %v5914 = vld [vmem:[%s5 + $0x220] sm:$0xff]
        %v5915 = vld [vmem:[%s5 + $0x228] sm:$0xff]
        %v5916 = vld [vmem:[%s5 + $0x230] sm:$0xff]
        %v5917 = vld [vmem:[%s5 + $0x238] sm:$0xff]
        %v5918 = vld [vmem:[%s5 + $0x240] sm:$0xff]
        %v5919 = vld [vmem:[%s5 + $0x248] sm:$0xff]
        %v5920 = vld [vmem:[%s5 + $0x250] sm:$0xff]
        %v5921 = vld [vmem:[%s5 + $0x258] sm:$0xff]
        %v5922 = vld [vmem:[%s5 + $0x260] sm:$0xff]
        %v5923 = vld [vmem:[%s5 + $0x268] sm:$0xff]
        %v5924 = vld [vmem:[%s5 + $0x270] sm:$0xff]
        %v5925 = vld [vmem:[%s5 + $0x278] sm:$0xff]
        %v5926 = vld [vmem:[%s5 + $0x280] sm:$0xff]
        %v5927 = vld [vmem:[%s5 + $0x288] sm:$0xff]
        %v5928 = vld [vmem:[%s5 + $0x290] sm:$0xff]
        %v5929 = vld [vmem:[%s5 + $0x298] sm:$0xff]
        %v5930 = vld [vmem:[%s5 + $0x2a0] sm:$0xff]
        %v5931 = vld [vmem:[%s5 + $0x2a8] sm:$0xff]
        %v5932 = vld [vmem:[%s5 + $0x2b0] sm:$0xff]
        %v5933 = vld [vmem:[%s5 + $0x2b8] sm:$0xff]
        %v5934 = vld [vmem:[%s5 + $0x2c0] sm:$0xff]
        %v5935 = vld [vmem:[%s5 + $0x2c8] sm:$0xff]
        %v5936 = vld [vmem:[%s5 + $0x2d0] sm:$0xff]
        %v5937 = vld [vmem:[%s5 + $0x2d8] sm:$0xff]
        %v5938 = vld [vmem:[%s5 + $0x2e0] sm:$0xff]
        %v5939 = vld [vmem:[%s5 + $0x2e8] sm:$0xff]
        %v5940 = vld [vmem:[%s5 + $0x2f0] sm:$0xff]
        %v5941 = vld [vmem:[%s5 + $0x2f8] sm:$0xff]
        %v5942 = vld [vmem:[%s5 + $0x300] sm:$0xff]
        %v5943 = vld [vmem:[%s5 + $0x308] sm:$0xff]
        %v5944 = vld [vmem:[%s5 + $0x310] sm:$0xff]
        %v5945 = vld [vmem:[%s5 + $0x318] sm:$0xff]
        %v5946 = vld [vmem:[%s5 + $0x320] sm:$0xff]
        %v5947 = vld [vmem:[%s5 + $0x328] sm:$0xff]
        %v5948 = vld [vmem:[%s5 + $0x330] sm:$0xff]
        %v5949 = vld [vmem:[%s5 + $0x338] sm:$0xff]
        %v5950 = vld [vmem:[%s5 + $0x340] sm:$0xff]
        %v5951 = vld [vmem:[%s5 + $0x348] sm:$0xff]
        %v5952 = vld [vmem:[%s5 + $0x350] sm:$0xff]
        %v5953 = vld [vmem:[%s5 + $0x358] sm:$0xff]
        %v5954 = vld [vmem:[%s5 + $0x360] sm:$0xff]
        %v5955 = vld [vmem:[%s5 + $0x368] sm:$0xff]
        %v5956 = vld [vmem:[%s5 + $0x370] sm:$0xff]
        %v5957 = vld [vmem:[%s5 + $0x378] sm:$0xff]
        %v5958 = vld [vmem:[%s5 + $0x380] sm:$0xff]
        %v5959 = vld [vmem:[%s5 + $0x388] sm:$0xff]
        %v5960 = vld [vmem:[%s5 + $0x390] sm:$0xff]
        %v5961 = vld [vmem:[%s5 + $0x398] sm:$0xff]
        %v5962 = vld [vmem:[%s5 + $0x3a0] sm:$0xff]
        %v5963 = vld [vmem:[%s5 + $0x3a8] sm:$0xff]
        %v5964 = vld [vmem:[%s5 + $0x3b0] sm:$0xff]
        %v5965 = vld [vmem:[%s5 + $0x3b8] sm:$0xff]
        %v5966 = vld [vmem:[%s5 + $0x3c0] sm:$0xff]
        %v5967 = vld [vmem:[%s5 + $0x3c8] sm:$0xff]
        %v5968 = vld [vmem:[%s5 + $0x3d0] sm:$0xff]
        %v5969 = vld [vmem:[%s5 + $0x3d8] sm:$0xff]
        %v5970 = vld [vmem:[%s5 + $0x3e0] sm:$0xff]
        %v5971 = vld [vmem:[%s5 + $0x3e8] sm:$0xff]
        %v5972 = vld [vmem:[%s5 + $0x3f0] sm:$0xff]
        %v5973 = vld [vmem:[%s5 + $0x3f8] sm:$0xff]
        %v5974 = vld [vmem:[%s5 + $0x400] sm:$0xff]
        %v5975 = vld [vmem:[%s5 + $0x408] sm:$0xff]
        %v5976 = vld [vmem:[%s5 + $0x410] sm:$0xff]
        %v5977 = vld [vmem:[%s5 + $0x418] sm:$0xff]
        %v5978 = vld [vmem:[%s5 + $0x420] sm:$0xff]
        %v5979 = vld [vmem:[%s5 + $0x428] sm:$0xff]
        %v5980 = vld [vmem:[%s5 + $0x430] sm:$0xff]
        %v5981 = vld [vmem:[%s5 + $0x438] sm:$0xff]
        %v5982 = vld [vmem:[%s5 + $0x440] sm:$0xff]
        %v5983 = vld [vmem:[%s5 + $0x448] sm:$0xff]
        %v5984 = vld [vmem:[%s5 + $0x450] sm:$0xff]
        %v5985 = vld [vmem:[%s5 + $0x458] sm:$0xff]
        %v5986 = vld [vmem:[%s5 + $0x460] sm:$0xff]
        %v5987 = vld [vmem:[%s5 + $0x468] sm:$0xff]
        %v5988 = vld [vmem:[%s5 + $0x470] sm:$0xff]
        %v5989 = vld [vmem:[%s5 + $0x478] sm:$0xff]
        %v5990 = vld [vmem:[%s5 + $0x480] sm:$0xff]
        %v5991 = vld [vmem:[%s5 + $0x488] sm:$0xff]
        %v5992 = vld [vmem:[%s5 + $0x490] sm:$0xff]
        %v5993 = vld [vmem:[%s5 + $0x498] sm:$0xff]
        %v5994 = vld [vmem:[%s5 + $0x4a0] sm:$0xff]
        %v5995 = vld [vmem:[%s5 + $0x4a8] sm:$0xff]
        %v5996 = vld [vmem:[%s5 + $0x4b0] sm:$0xff]
        %v5997 = vld [vmem:[%s5 + $0x4b8] sm:$0xff]
        %v5998 = vld [vmem:[%s5 + $0x4c0] sm:$0xff]
        %v5999 = vld [vmem:[%s5 + $0x4c8] sm:$0xff]
        %v6000 = vld [vmem:[%s5 + $0x4d0] sm:$0xff]
        %v6001 = vld [vmem:[%s5 + $0x4d8] sm:$0xff]
        %v6002 = vld [vmem:[%s5 + $0x4e0] sm:$0xff]
        %v6003 = vld [vmem:[%s5 + $0x4e8] sm:$0xff]
        %v6004 = vld [vmem:[%s5 + $0x4f0] sm:$0xff]
        %v6005 = vld [vmem:[%s5 + $0x4f8] sm:$0xff]
        %v6006 = vld [vmem:[%s5 + $0x500] sm:$0xff]
        %v6007 = vld [vmem:[%s5 + $0x508] sm:$0xff]
        %v6008 = vld [vmem:[%s5 + $0x510] sm:$0xff]
        %v6009 = vld [vmem:[%s5 + $0x518] sm:$0xff]
        %v6010 = vld [vmem:[%s5 + $0x520] sm:$0xff]
        %v6011 = vld [vmem:[%s5 + $0x528] sm:$0xff]
        %v6012 = vld [vmem:[%s5 + $0x530] sm:$0xff]
        %v6013 = vld [vmem:[%s5 + $0x538] sm:$0xff]
        %v6014 = vld [vmem:[%s5 + $0x540] sm:$0xff]
        %v6015 = vld [vmem:[%s5 + $0x548] sm:$0xff]
        %v6016 = vld [vmem:[%s5 + $0x550] sm:$0xff]
        %v6017 = vld [vmem:[%s5 + $0x558] sm:$0xff]
        %v6018 = vld [vmem:[%s5 + $0x560] sm:$0xff]
        %v6019 = vld [vmem:[%s5 + $0x568] sm:$0xff]
        %v6020 = vld [vmem:[%s5 + $0x570] sm:$0xff]
        %v6021 = vld [vmem:[%s5 + $0x578] sm:$0xff]
        %v6022 = vld [vmem:[%s5 + $0x580] sm:$0xff]
        %v6023 = vld [vmem:[%s5 + $0x588] sm:$0xff]
        %v6024 = vld [vmem:[%s5 + $0x590] sm:$0xff]
        %v6025 = vld [vmem:[%s5 + $0x598] sm:$0xff]
        %v6026 = vld [vmem:[%s5 + $0x5a0] sm:$0xff]
        %v6027 = vld [vmem:[%s5 + $0x5a8] sm:$0xff]
        %v6028 = vld [vmem:[%s5 + $0x5b0] sm:$0xff]
        %v6029 = vld [vmem:[%s5 + $0x5b8] sm:$0xff]
        %v6030 = vld [vmem:[%s5 + $0x5c0] sm:$0xff]
        %v6031 = vld [vmem:[%s5 + $0x5c8] sm:$0xff]
        %v6032 = vld [vmem:[%s5 + $0x5d0] sm:$0xff]
        %v6033 = vld [vmem:[%s5 + $0x5d8] sm:$0xff]
        %v6034 = vld [vmem:[%s5 + $0x5e0] sm:$0xff]
        %v6035 = vld [vmem:[%s5 + $0x5e8] sm:$0xff]
        %v6036 = vld [vmem:[%s5 + $0x5f0] sm:$0xff]
        %v6037 = vld [vmem:[%s5 + $0x5f8] sm:$0xff]
        %v6038 = vld [vmem:[%s5 + $0x600] sm:$0xff]
        %v6039 = vld [vmem:[%s5 + $0x608] sm:$0xff]
        %v6040 = vld [vmem:[%s5 + $0x610] sm:$0xff]
        %v6041 = vld [vmem:[%s5 + $0x618] sm:$0xff]
        %v6042 = vld [vmem:[%s5 + $0x620] sm:$0xff]
        %v6043 = vld [vmem:[%s5 + $0x628] sm:$0xff]
        %v6044 = vld [vmem:[%s5 + $0x630] sm:$0xff]
        %v6045 = vld [vmem:[%s5 + $0x638] sm:$0xff]
        %v6046 = vld [vmem:[%s5 + $0x640] sm:$0xff]
        %v6047 = vld [vmem:[%s5 + $0x648] sm:$0xff]
        %v6048 = vld [vmem:[%s5 + $0x650] sm:$0xff]
        %v6049 = vld [vmem:[%s5 + $0x658] sm:$0xff]
        %v6050 = vld [vmem:[%s5 + $0x660] sm:$0xff]
        %v6051 = vld [vmem:[%s5 + $0x668] sm:$0xff]
        %v6052 = vld [vmem:[%s5 + $0x670] sm:$0xff]
        %v6053 = vld [vmem:[%s5 + $0x678] sm:$0xff]
        %v6054 = vld [vmem:[%s5 + $0x680] sm:$0xff]
        %v6055 = vld [vmem:[%s5 + $0x688] sm:$0xff]
        %v6056 = vld [vmem:[%s5 + $0x690] sm:$0xff]
        %v6057 = vld [vmem:[%s5 + $0x698] sm:$0xff]
        %v6058 = vld [vmem:[%s5 + $0x6a0] sm:$0xff]
        %v6059 = vld [vmem:[%s5 + $0x6a8] sm:$0xff]
        %v6060 = vld [vmem:[%s5 + $0x6b0] sm:$0xff]
        %v6061 = vld [vmem:[%s5 + $0x6b8] sm:$0xff]
        %v6062 = vld [vmem:[%s5 + $0x6c0] sm:$0xff]
        %v6063 = vld [vmem:[%s5 + $0x6c8] sm:$0xff]
        %v6064 = vld [vmem:[%s5 + $0x6d0] sm:$0xff]
        %v6065 = vld [vmem:[%s5 + $0x6d8] sm:$0xff]
        %v6066 = vld [vmem:[%s5 + $0x6e0] sm:$0xff]
        %v6067 = vld [vmem:[%s5 + $0x6e8] sm:$0xff]
        %v6068 = vld [vmem:[%s5 + $0x6f0] sm:$0xff]
        %v6069 = vld [vmem:[%s5 + $0x6f8] sm:$0xff]
        %v6070 = vld [vmem:[%s5 + $0x700] sm:$0xff]
        %v6071 = vld [vmem:[%s5 + $0x708] sm:$0xff]
        %v6072 = vld [vmem:[%s5 + $0x710] sm:$0xff]
        %v6073 = vld [vmem:[%s5 + $0x718] sm:$0xff]
        %v6074 = vld [vmem:[%s5 + $0x720] sm:$0xff]
        %v6075 = vld [vmem:[%s5 + $0x728] sm:$0xff]
        %v6076 = vld [vmem:[%s5 + $0x730] sm:$0xff]
        %v6077 = vld [vmem:[%s5 + $0x738] sm:$0xff]
        %v6078 = vld [vmem:[%s5 + $0x740] sm:$0xff]
        %v6079 = vld [vmem:[%s5 + $0x748] sm:$0xff]
        %v6080 = vld [vmem:[%s5 + $0x750] sm:$0xff]
        %v6081 = vld [vmem:[%s5 + $0x758] sm:$0xff]
        %v6082 = vld [vmem:[%s5 + $0x760] sm:$0xff]
        %v6083 = vld [vmem:[%s5 + $0x768] sm:$0xff]
        %v6084 = vld [vmem:[%s5 + $0x770] sm:$0xff]
        %v6085 = vld [vmem:[%s5 + $0x778] sm:$0xff]
        %v6086 = vld [vmem:[%s5 + $0x780] sm:$0xff]
        %v6087 = vld [vmem:[%s5 + $0x788] sm:$0xff]
        %v6088 = vld [vmem:[%s5 + $0x790] sm:$0xff]
        %v6089 = vld [vmem:[%s5 + $0x798] sm:$0xff]
        %v6090 = vld [vmem:[%s5 + $0x7a0] sm:$0xff]
        %v6091 = vld [vmem:[%s5 + $0x7a8] sm:$0xff]
        %v6092 = vld [vmem:[%s5 + $0x7b0] sm:$0xff]
        %v6093 = vld [vmem:[%s5 + $0x7b8] sm:$0xff]
        %v6094 = vld [vmem:[%s5 + $0x7c0] sm:$0xff]
        %v6095 = vld [vmem:[%s5 + $0x7c8] sm:$0xff]
        %v6096 = vld [vmem:[%s5 + $0x7d0] sm:$0xff]
        %v6097 = vld [vmem:[%s5 + $0x7d8] sm:$0xff]
        %v6098 = vld [vmem:[%s5 + $0x7e0] sm:$0xff]
        %v6099 = vld [vmem:[%s5 + $0x7e8] sm:$0xff]
        %v6100 = vld [vmem:[%s5 + $0x7f0] sm:$0xff]
        %v6101 = vld [vmem:[%s5 + $0x7f8] sm:$0xff]
        %v6102 = vld [vmem:[%s5 + $0x800] sm:$0xff]
        %v6103 = vld [vmem:[%s5 + $0x808] sm:$0xff]
        %v6104 = vld [vmem:[%s5 + $0x810] sm:$0xff]
        %v6105 = vld [vmem:[%s5 + $0x818] sm:$0xff]
        %v6106 = vld [vmem:[%s5 + $0x820] sm:$0xff]
        %v6107 = vld [vmem:[%s5 + $0x828] sm:$0xff]
        %v6108 = vld [vmem:[%s5 + $0x830] sm:$0xff]
        %v6109 = vld [vmem:[%s5 + $0x838] sm:$0xff]
        %v6110 = vld [vmem:[%s5 + $0x840] sm:$0xff]
        %v6111 = vld [vmem:[%s5 + $0x848] sm:$0xff]
        %v6112 = vld [vmem:[%s5 + $0x850] sm:$0xff]
        %v6113 = vld [vmem:[%s5 + $0x858] sm:$0xff]
        %v6114 = vld [vmem:[%s5 + $0x860] sm:$0xff]
        %v6115 = vld [vmem:[%s5 + $0x868] sm:$0xff]
        %v6116 = vld [vmem:[%s5 + $0x870] sm:$0xff]
        %v6117 = vld [vmem:[%s5 + $0x878] sm:$0xff]
        %v6118 = vld [vmem:[%s5 + $0x880] sm:$0xff]
        %v6119 = vld [vmem:[%s5 + $0x888] sm:$0xff]
        %v6120 = vld [vmem:[%s5 + $0x890] sm:$0xff]
        %v6121 = vld [vmem:[%s5 + $0x898] sm:$0xff]
        %v6122 = vld [vmem:[%s5 + $0x8a0] sm:$0xff]
        %v6123 = vld [vmem:[%s5 + $0x8a8] sm:$0xff]
        %v6124 = vld [vmem:[%s5 + $0x8b0] sm:$0xff]
        %v6125 = vld [vmem:[%s5 + $0x8b8] sm:$0xff]
        %v6126 = vld [vmem:[%s5 + $0x8c0] sm:$0xff]
        %v6127 = vld [vmem:[%s5 + $0x8c8] sm:$0xff]
        %v6128 = vld [vmem:[%s5 + $0x8d0] sm:$0xff]
        %v6129 = vld [vmem:[%s5 + $0x8d8] sm:$0xff]
        %v6130 = vld [vmem:[%s5 + $0x8e0] sm:$0xff]
        %v6131 = vld [vmem:[%s5 + $0x8e8] sm:$0xff]
        %v6132 = vld [vmem:[%s5 + $0x8f0] sm:$0xff]
        %v6133 = vld [vmem:[%s5 + $0x8f8] sm:$0xff]
        %v6134 = vld [vmem:[%s5 + $0x900] sm:$0xff]
        %v6135 = vld [vmem:[%s5 + $0x908] sm:$0xff]
        %v6136 = vld [vmem:[%s5 + $0x910] sm:$0xff]
        %v6137 = vld [vmem:[%s5 + $0x918] sm:$0xff]
        %v6138 = vld [vmem:[%s5 + $0x920] sm:$0xff]
        %v6139 = vld [vmem:[%s5 + $0x928] sm:$0xff]
        %v6140 = vld [vmem:[%s5 + $0x930] sm:$0xff]
        %v6141 = vld [vmem:[%s5 + $0x938] sm:$0xff]
        %v6142 = vld [vmem:[%s5 + $0x940] sm:$0xff]
        %v6143 = vld [vmem:[%s5 + $0x948] sm:$0xff]
        %v6144 = vld [vmem:[%s5 + $0x950] sm:$0xff]
        %v6145 = vld [vmem:[%s5 + $0x958] sm:$0xff]
        %v6146 = vld [vmem:[%s5 + $0x960] sm:$0xff]
        %v6147 = vld [vmem:[%s5 + $0x968] sm:$0xff]
        %v6148 = vld [vmem:[%s5 + $0x970] sm:$0xff]
        %v6149 = vld [vmem:[%s5 + $0x978] sm:$0xff]
        %v6150 = vld [vmem:[%s5 + $0x980] sm:$0xff]
        %v6151 = vld [vmem:[%s5 + $0x988] sm:$0xff]
        %v6152 = vld [vmem:[%s5 + $0x990] sm:$0xff]
        %v6153 = vld [vmem:[%s5 + $0x998] sm:$0xff]
        %v6154 = vld [vmem:[%s5 + $0x9a0] sm:$0xff]
        %v6155 = vld [vmem:[%s5 + $0x9a8] sm:$0xff]
        %v6156 = vld [vmem:[%s5 + $0x9b0] sm:$0xff]
        %v6157 = vld [vmem:[%s5 + $0x9b8] sm:$0xff]
        %v6158 = vld [vmem:[%s5 + $0x9c0] sm:$0xff]
        %v6159 = vld [vmem:[%s5 + $0x9c8] sm:$0xff]
        %v6160 = vld [vmem:[%s5 + $0x9d0] sm:$0xff]
        %v6161 = vld [vmem:[%s5 + $0x9d8] sm:$0xff]
        %v6162 = vld [vmem:[%s5 + $0x9e0] sm:$0xff]
        %v6163 = vld [vmem:[%s5 + $0x9e8] sm:$0xff]
        %v6164 = vld [vmem:[%s5 + $0x9f0] sm:$0xff]
        %v6165 = vld [vmem:[%s5 + $0x9f8] sm:$0xff]
        %v6166 = vld [vmem:[%s5 + $0xa00] sm:$0xff]
        %v6167 = vld [vmem:[%s5 + $0xa08] sm:$0xff]
        %v6168 = vld [vmem:[%s5 + $0xa10] sm:$0xff]
        %v6169 = vld [vmem:[%s5 + $0xa18] sm:$0xff]
        %v6170 = vld [vmem:[%s5 + $0xa20] sm:$0xff]
        %v6171 = vld [vmem:[%s5 + $0xa28] sm:$0xff]
        %v6172 = vld [vmem:[%s5 + $0xa30] sm:$0xff]
        %v6173 = vld [vmem:[%s5 + $0xa38] sm:$0xff]
        %v6174 = vld [vmem:[%s5 + $0xa40] sm:$0xff]
        %v6175 = vld [vmem:[%s5 + $0xa48] sm:$0xff]
        %v6176 = vld [vmem:[%s5 + $0xa50] sm:$0xff]
        %v6177 = vld [vmem:[%s5 + $0xa58] sm:$0xff]
        %v6178 = vld [vmem:[%s5 + $0xa60] sm:$0xff]
        %v6179 = vld [vmem:[%s5 + $0xa68] sm:$0xff]
        %v6180 = vld [vmem:[%s5 + $0xa70] sm:$0xff]
        %v6181 = vld [vmem:[%s5 + $0xa78] sm:$0xff]
        %v6182 = vld [vmem:[%s5 + $0xa80] sm:$0xff]
        %v6183 = vld [vmem:[%s5 + $0xa88] sm:$0xff]
        %v6184 = vld [vmem:[%s5 + $0xa90] sm:$0xff]
        %v6185 = vld [vmem:[%s5 + $0xa98] sm:$0xff]
        %v6186 = vld [vmem:[%s5 + $0xaa0] sm:$0xff]
        %v6187 = vld [vmem:[%s5 + $0xaa8] sm:$0xff]
        %v6188 = vld [vmem:[%s5 + $0xab0] sm:$0xff]
        %v6189 = vld [vmem:[%s5 + $0xab8] sm:$0xff]
        %v6190 = vld [vmem:[%s5 + $0xac0] sm:$0xff]
        %v6191 = vld [vmem:[%s5 + $0xac8] sm:$0xff]
        %v6192 = vld [vmem:[%s5 + $0xad0] sm:$0xff]
        %v6193 = vld [vmem:[%s5 + $0xad8] sm:$0xff]
        %v6194 = vld [vmem:[%s5 + $0xae0] sm:$0xff]
        %v6195 = vld [vmem:[%s5 + $0xae8] sm:$0xff]
        %v6196 = vld [vmem:[%s5 + $0xaf0] sm:$0xff]
        %v6197 = vld [vmem:[%s5 + $0xaf8] sm:$0xff]
        %v6198 = vld [vmem:[%s5 + $0xb00] sm:$0xff]
        %v6199 = vld [vmem:[%s5 + $0xb08] sm:$0xff]
        %v6200 = vld [vmem:[%s5 + $0xb10] sm:$0xff]
        %v6201 = vld [vmem:[%s5 + $0xb18] sm:$0xff]
        %v6202 = vld [vmem:[%s5 + $0xb20] sm:$0xff]
        %v6203 = vld [vmem:[%s5 + $0xb28] sm:$0xff]
        %v6204 = vld [vmem:[%s5 + $0xb30] sm:$0xff]
        %v6205 = vld [vmem:[%s5 + $0xb38] sm:$0xff]
        %v6206 = vld [vmem:[%s5 + $0xb40] sm:$0xff]
        %v6207 = vld [vmem:[%s5 + $0xb48] sm:$0xff]
        %v6208 = vld [vmem:[%s5 + $0xb50] sm:$0xff]
        %v6209 = vld [vmem:[%s5 + $0xb58] sm:$0xff]
        %v6210 = vld [vmem:[%s5 + $0xb60] sm:$0xff]
        %v6211 = vld [vmem:[%s5 + $0xb68] sm:$0xff]
        %v6212 = vld [vmem:[%s5 + $0xb70] sm:$0xff]
        %v6213 = vld [vmem:[%s5 + $0xb78] sm:$0xff]
        %v6214 = vld [vmem:[%s5 + $0xb80] sm:$0xff]
        %v6215 = vld [vmem:[%s5 + $0xb88] sm:$0xff]
        %v6216 = vld [vmem:[%s5 + $0xb90] sm:$0xff]
        %v6217 = vld [vmem:[%s5 + $0xb98] sm:$0xff]
        %v6218 = vld [vmem:[%s5 + $0xba0] sm:$0xff]
        %v6219 = vld [vmem:[%s5 + $0xba8] sm:$0xff]
        %v6220 = vld [vmem:[%s5 + $0xbb0] sm:$0xff]
        %v6221 = vld [vmem:[%s5 + $0xbb8] sm:$0xff]
        %v6222 = vld [vmem:[%s5 + $0xbc0] sm:$0xff]
        %v6223 = vld [vmem:[%s5 + $0xbc8] sm:$0xff]
        %v6224 = vld [vmem:[%s5 + $0xbd0] sm:$0xff]
        %v6225 = vld [vmem:[%s5 + $0xbd8] sm:$0xff]
        %v6226 = vld [vmem:[%s5 + $0xbe0] sm:$0xff]
        %v6227 = vld [vmem:[%s5 + $0xbe8] sm:$0xff]
        %v6228 = vld [vmem:[%s5 + $0xbf0] sm:$0xff]
        %v6229 = vld [vmem:[%s5 + $0xbf8] sm:$0xff]
        %v6230 = vld [vmem:[%s5 + $0xc00] sm:$0xff]
        %v6231 = vld [vmem:[%s5 + $0xc08] sm:$0xff]
        %v6232 = vld [vmem:[%s5 + $0xc10] sm:$0xff]
        %v6233 = vld [vmem:[%s5 + $0xc18] sm:$0xff]
        %v6234 = vld [vmem:[%s5 + $0xc20] sm:$0xff]
        %v6235 = vld [vmem:[%s5 + $0xc28] sm:$0xff]
        %v6236 = vld [vmem:[%s5 + $0xc30] sm:$0xff]
        %v6237 = vld [vmem:[%s5 + $0xc38] sm:$0xff]
        %v6238 = vld [vmem:[%s5 + $0xc40] sm:$0xff]
        %v6239 = vld [vmem:[%s5 + $0xc48] sm:$0xff]
        %v6240 = vld [vmem:[%s5 + $0xc50] sm:$0xff]
        %v6241 = vld [vmem:[%s5 + $0xc58] sm:$0xff]
        %v6242 = vld [vmem:[%s5 + $0xc60] sm:$0xff]
        %v6243 = vld [vmem:[%s5 + $0xc68] sm:$0xff]
        %v6244 = vld [vmem:[%s5 + $0xc70] sm:$0xff]
        %v6245 = vld [vmem:[%s5 + $0xc78] sm:$0xff]
        %v6246 = vld [vmem:[%s5 + $0xc80] sm:$0xff]
        %v6247 = vld [vmem:[%s5 + $0xc88] sm:$0xff]
        %v6248 = vld [vmem:[%s5 + $0xc90] sm:$0xff]
        %v6249 = vld [vmem:[%s5 + $0xc98] sm:$0xff]
        %v6250 = vld [vmem:[%s5 + $0xca0] sm:$0xff]
        %v6251 = vld [vmem:[%s5 + $0xca8] sm:$0xff]
        %v6252 = vld [vmem:[%s5 + $0xcb0] sm:$0xff]
        %v6253 = vld [vmem:[%s5 + $0xcb8] sm:$0xff]
        %v6254 = vld [vmem:[%s5 + $0xcc0] sm:$0xff]
        %v6255 = vld [vmem:[%s5 + $0xcc8] sm:$0xff]
        %v6256 = vld [vmem:[%s5 + $0xcd0] sm:$0xff]
        %v6257 = vld [vmem:[%s5 + $0xcd8] sm:$0xff]
        %v6258 = vld [vmem:[%s5 + $0xce0] sm:$0xff]
        %v6259 = vld [vmem:[%s5 + $0xce8] sm:$0xff]
        %v6260 = vld [vmem:[%s5 + $0xcf0] sm:$0xff]
        %v6261 = vld [vmem:[%s5 + $0xcf8] sm:$0xff]
        %v6262 = vld [vmem:[%s5 + $0xd00] sm:$0xff]
        %v6263 = vld [vmem:[%s5 + $0xd08] sm:$0xff]
        %v6264 = vld [vmem:[%s5 + $0xd10] sm:$0xff]
        %v6265 = vld [vmem:[%s5 + $0xd18] sm:$0xff]
        %v6266 = vld [vmem:[%s5 + $0xd20] sm:$0xff]
        %v6267 = vld [vmem:[%s5 + $0xd28] sm:$0xff]
        %v6268 = vld [vmem:[%s5 + $0xd30] sm:$0xff]
        %v6269 = vld [vmem:[%s5 + $0xd38] sm:$0xff]
        %v6270 = vld [vmem:[%s5 + $0xd40] sm:$0xff]
        %v6271 = vld [vmem:[%s5 + $0xd48] sm:$0xff]
        %v6272 = vld [vmem:[%s5 + $0xd50] sm:$0xff]
        %v6273 = vld [vmem:[%s5 + $0xd58] sm:$0xff]
        %v6274 = vld [vmem:[%s5 + $0xd60] sm:$0xff]
        %v6275 = vld [vmem:[%s5 + $0xd68] sm:$0xff]
        %v6276 = vld [vmem:[%s5 + $0xd70] sm:$0xff]
        %v6277 = vld [vmem:[%s5 + $0xd78] sm:$0xff]
        %v6278 = vld [vmem:[%s5 + $0xd80] sm:$0xff]
        %v6279 = vld [vmem:[%s5 + $0xd88] sm:$0xff]
        %v6280 = vld [vmem:[%s5 + $0xd90] sm:$0xff]
        %v6281 = vld [vmem:[%s5 + $0xd98] sm:$0xff]
        %v6282 = vld [vmem:[%s5 + $0xda0] sm:$0xff]
        %v6283 = vld [vmem:[%s5 + $0xda8] sm:$0xff]
        %v6284 = vld [vmem:[%s5 + $0xdb0] sm:$0xff]
        %v6285 = vld [vmem:[%s5 + $0xdb8] sm:$0xff]
        %v6286 = vld [vmem:[%s5 + $0xdc0] sm:$0xff]
        %v6287 = vld [vmem:[%s5 + $0xdc8] sm:$0xff]
        %v6288 = vld [vmem:[%s5 + $0xdd0] sm:$0xff]
        %v6289 = vld [vmem:[%s5 + $0xdd8] sm:$0xff]
        %v6290 = vld [vmem:[%s5 + $0xde0] sm:$0xff]
        %v6291 = vld [vmem:[%s5 + $0xde8] sm:$0xff]
        %v6292 = vld [vmem:[%s5 + $0xdf0] sm:$0xff]
        %v6293 = vld [vmem:[%s5 + $0xdf8] sm:$0xff]
        %v6294 = vld [vmem:[%s5 + $0xe00] sm:$0xff]
        %v6295 = vld [vmem:[%s5 + $0xe08] sm:$0xff]
        %v6296 = vld [vmem:[%s5 + $0xe10] sm:$0xff]
        %v6297 = vld [vmem:[%s5 + $0xe18] sm:$0xff]
        %v6298 = vld [vmem:[%s5 + $0xe20] sm:$0xff]
        %v6299 = vld [vmem:[%s5 + $0xe28] sm:$0xff]
        %v6300 = vld [vmem:[%s5 + $0xe30] sm:$0xff]
        %v6301 = vld [vmem:[%s5 + $0xe38] sm:$0xff]
        %v6302 = vld [vmem:[%s5 + $0xe40] sm:$0xff]
        %v6303 = vld [vmem:[%s5 + $0xe48] sm:$0xff]
        %v6304 = vld [vmem:[%s5 + $0xe50] sm:$0xff]
        %v6305 = vld [vmem:[%s5 + $0xe58] sm:$0xff]
        %v6306 = vld [vmem:[%s5 + $0xe60] sm:$0xff]
        %v6307 = vld [vmem:[%s5 + $0xe68] sm:$0xff]
        %v6308 = vld [vmem:[%s5 + $0xe70] sm:$0xff]
        %v6309 = vld [vmem:[%s5 + $0xe78] sm:$0xff]
        %v6310 = vld [vmem:[%s5 + $0xe80] sm:$0xff]
        %v6311 = vld [vmem:[%s5 + $0xe88] sm:$0xff]
        %v6312 = vld [vmem:[%s5 + $0xe90] sm:$0xff]
        %v6313 = vld [vmem:[%s5 + $0xe98] sm:$0xff]
        %v6314 = vld [vmem:[%s5 + $0xea0] sm:$0xff]
        %v6315 = vld [vmem:[%s5 + $0xea8] sm:$0xff]
        %v6316 = vld [vmem:[%s5 + $0xeb0] sm:$0xff]
        %v6317 = vld [vmem:[%s5 + $0xeb8] sm:$0xff]
        %v6318 = vld [vmem:[%s5 + $0xec0] sm:$0xff]
        %v6319 = vld [vmem:[%s5 + $0xec8] sm:$0xff]
        %v6320 = vld [vmem:[%s5 + $0xed0] sm:$0xff]
        %v6321 = vld [vmem:[%s5 + $0xed8] sm:$0xff]
        %v6322 = vld [vmem:[%s5 + $0xee0] sm:$0xff]
        %v6323 = vld [vmem:[%s5 + $0xee8] sm:$0xff]
        %v6324 = vld [vmem:[%s5 + $0xef0] sm:$0xff]
        %v6325 = vld [vmem:[%s5 + $0xef8] sm:$0xff]
        %v6326 = vld [vmem:[%s5 + $0xf00] sm:$0xff]
        %v6327 = vld [vmem:[%s5 + $0xf08] sm:$0xff]
        %v6328 = vld [vmem:[%s5 + $0xf10] sm:$0xff]
        %v6329 = vld [vmem:[%s5 + $0xf18] sm:$0xff]
        %v6330 = vld [vmem:[%s5 + $0xf20] sm:$0xff]
        %v6331 = vld [vmem:[%s5 + $0xf28] sm:$0xff]
        %v6332 = vld [vmem:[%s5 + $0xf30] sm:$0xff]
        %v6333 = vld [vmem:[%s5 + $0xf38] sm:$0xff]
        %v6334 = vld [vmem:[%s5 + $0xf40] sm:$0xff]
        %v6335 = vld [vmem:[%s5 + $0xf48] sm:$0xff]
        %v6336 = vld [vmem:[%s5 + $0xf50] sm:$0xff]
        %v6337 = vld [vmem:[%s5 + $0xf58] sm:$0xff]
        %v6338 = vld [vmem:[%s5 + $0xf60] sm:$0xff]
        %v6339 = vld [vmem:[%s5 + $0xf68] sm:$0xff]
        %v6340 = vld [vmem:[%s5 + $0xf70] sm:$0xff]
        %v6341 = vld [vmem:[%s5 + $0xf78] sm:$0xff]
        %v6342 = vld [vmem:[%s5 + $0xf80] sm:$0xff]
        %v6343 = vld [vmem:[%s5 + $0xf88] sm:$0xff]
        %v6344 = vld [vmem:[%s5 + $0xf90] sm:$0xff]
        %v6345 = vld [vmem:[%s5 + $0xf98] sm:$0xff]
        %v6346 = vld [vmem:[%s5 + $0xfa0] sm:$0xff]
        %v6347 = vld [vmem:[%s5 + $0xfa8] sm:$0xff]
        %v6348 = vld [vmem:[%s5 + $0xfb0] sm:$0xff]
        %v6349 = vld [vmem:[%s5 + $0xfb8] sm:$0xff]
        %v6350 = vld [vmem:[%s5 + $0xfc0] sm:$0xff]
        %v6351 = vld [vmem:[%s5 + $0xfc8] sm:$0xff]
        %v6352 = vld [vmem:[%s5 + $0xfd0] sm:$0xff]
        %v6353 = vld [vmem:[%s5 + $0xfd8] sm:$0xff]
        %v6354 = vld [vmem:[%s5 + $0xfe0] sm:$0xff]
        %v6355 = vld [vmem:[%s5 + $0xfe8] sm:$0xff]
        %v6356 = vld [vmem:[%s5 + $0xff0] sm:$0xff]
        %v6357 = vld [vmem:[%s5 + $0xff8] sm:$0xff]
        %v6358 = vld [vmem:[%s6] sm:$0xf]
        %v6871 = vunpack.c.l.b16 %v5846
        %v6872 = vunpack.c.h.b16 %v5846
        %v6873 = vunpack.c.l.b16 %v5847
        %v6874 = vunpack.c.h.b16 %v5847
        %v6875 = vunpack.c.l.b16 %v5848
        %v6876 = vunpack.c.h.b16 %v5848
        %v6877 = vunpack.c.l.b16 %v5849
        %v6878 = vunpack.c.h.b16 %v5849
        %v6879 = vunpack.c.l.b16 %v5850
        %v6880 = vunpack.c.h.b16 %v5850
        %v6881 = vunpack.c.l.b16 %v5851
        %v6882 = vunpack.c.h.b16 %v5851
        %v6883 = vunpack.c.l.b16 %v5852
        %v6884 = vunpack.c.h.b16 %v5852
        %v6885 = vunpack.c.l.b16 %v5853
        %v6886 = vunpack.c.h.b16 %v5853
        %v6887 = vunpack.c.l.b16 %v5854
        %v6888 = vunpack.c.h.b16 %v5854
        %v6889 = vunpack.c.l.b16 %v5855
        %v6890 = vunpack.c.h.b16 %v5855
        %v6891 = vunpack.c.l.b16 %v5856
        %v6892 = vunpack.c.h.b16 %v5856
        %v6893 = vunpack.c.l.b16 %v5857
        %v6894 = vunpack.c.h.b16 %v5857
        %v6895 = vunpack.c.l.b16 %v5858
        %v6896 = vunpack.c.h.b16 %v5858
        %v6897 = vunpack.c.l.b16 %v5859
        %v6898 = vunpack.c.h.b16 %v5859
        %v6899 = vunpack.c.l.b16 %v5860
        %v6900 = vunpack.c.h.b16 %v5860
        %v6901 = vunpack.c.l.b16 %v5861
        %v6902 = vunpack.c.h.b16 %v5861
        %v6903 = vunpack.c.l.b16 %v5862
        %v6904 = vunpack.c.h.b16 %v5862
        %v6905 = vunpack.c.l.b16 %v5863
        %v6906 = vunpack.c.h.b16 %v5863
        %v6907 = vunpack.c.l.b16 %v5864
        %v6908 = vunpack.c.h.b16 %v5864
        %v6909 = vunpack.c.l.b16 %v5865
        %v6910 = vunpack.c.h.b16 %v5865
        %v6911 = vunpack.c.l.b16 %v5866
        %v6912 = vunpack.c.h.b16 %v5866
        %v6913 = vunpack.c.l.b16 %v5867
        %v6914 = vunpack.c.h.b16 %v5867
        %v6915 = vunpack.c.l.b16 %v5868
        %v6916 = vunpack.c.h.b16 %v5868
        %v6917 = vunpack.c.l.b16 %v5869
        %v6918 = vunpack.c.h.b16 %v5869
        %v6919 = vunpack.c.l.b16 %v5870
        %v6920 = vunpack.c.h.b16 %v5870
        %v6921 = vunpack.c.l.b16 %v5871
        %v6922 = vunpack.c.h.b16 %v5871
        %v6923 = vunpack.c.l.b16 %v5872
        %v6924 = vunpack.c.h.b16 %v5872
        %v6925 = vunpack.c.l.b16 %v5873
        %v6926 = vunpack.c.h.b16 %v5873
        %v6927 = vunpack.c.l.b16 %v5874
        %v6928 = vunpack.c.h.b16 %v5874
        %v6929 = vunpack.c.l.b16 %v5875
        %v6930 = vunpack.c.h.b16 %v5875
        %v6931 = vunpack.c.l.b16 %v5876
        %v6932 = vunpack.c.h.b16 %v5876
        %v6933 = vunpack.c.l.b16 %v5877
        %v6934 = vunpack.c.h.b16 %v5877
        %v6935 = vunpack.c.l.b16 %v5878
        %v6936 = vunpack.c.h.b16 %v5878
        %v6937 = vunpack.c.l.b16 %v5879
        %v6938 = vunpack.c.h.b16 %v5879
        %v6939 = vunpack.c.l.b16 %v5880
        %v6940 = vunpack.c.h.b16 %v5880
        %v6941 = vunpack.c.l.b16 %v5881
        %v6942 = vunpack.c.h.b16 %v5881
        %v6943 = vunpack.c.l.b16 %v5882
        %v6944 = vunpack.c.h.b16 %v5882
        %v6945 = vunpack.c.l.b16 %v5883
        %v6946 = vunpack.c.h.b16 %v5883
        %v6947 = vunpack.c.l.b16 %v5884
        %v6948 = vunpack.c.h.b16 %v5884
        %v6949 = vunpack.c.l.b16 %v5885
        %v6950 = vunpack.c.h.b16 %v5885
        %v6951 = vunpack.c.l.b16 %v5886
        %v6952 = vunpack.c.h.b16 %v5886
        %v6953 = vunpack.c.l.b16 %v5887
        %v6954 = vunpack.c.h.b16 %v5887
        %v6955 = vunpack.c.l.b16 %v5888
        %v6956 = vunpack.c.h.b16 %v5888
        %v6957 = vunpack.c.l.b16 %v5889
        %v6958 = vunpack.c.h.b16 %v5889
        %v6959 = vunpack.c.l.b16 %v5890
        %v6960 = vunpack.c.h.b16 %v5890
        %v6961 = vunpack.c.l.b16 %v5891
        %v6962 = vunpack.c.h.b16 %v5891
        %v6963 = vunpack.c.l.b16 %v5892
        %v6964 = vunpack.c.h.b16 %v5892
        %v6965 = vunpack.c.l.b16 %v5893
        %v6966 = vunpack.c.h.b16 %v5893
        %v6967 = vunpack.c.l.b16 %v5894
        %v6968 = vunpack.c.h.b16 %v5894
        %v6969 = vunpack.c.l.b16 %v5895
        %v6970 = vunpack.c.h.b16 %v5895
        %v6971 = vunpack.c.l.b16 %v5896
        %v6972 = vunpack.c.h.b16 %v5896
        %v6973 = vunpack.c.l.b16 %v5897
        %v6974 = vunpack.c.h.b16 %v5897
        %v6975 = vunpack.c.l.b16 %v5898
        %v6976 = vunpack.c.h.b16 %v5898
        %v6977 = vunpack.c.l.b16 %v5899
        %v6978 = vunpack.c.h.b16 %v5899
        %v6979 = vunpack.c.l.b16 %v5900
        %v6980 = vunpack.c.h.b16 %v5900
        %v6981 = vunpack.c.l.b16 %v5901
        %v6982 = vunpack.c.h.b16 %v5901
        %v6983 = vunpack.c.l.b16 %v5902
        %v6984 = vunpack.c.h.b16 %v5902
        %v6985 = vunpack.c.l.b16 %v5903
        %v6986 = vunpack.c.h.b16 %v5903
        %v6987 = vunpack.c.l.b16 %v5904
        %v6988 = vunpack.c.h.b16 %v5904
        %v6989 = vunpack.c.l.b16 %v5905
        %v6990 = vunpack.c.h.b16 %v5905
        %v6991 = vunpack.c.l.b16 %v5906
        %v6992 = vunpack.c.h.b16 %v5906
        %v6993 = vunpack.c.l.b16 %v5907
        %v6994 = vunpack.c.h.b16 %v5907
        %v6995 = vunpack.c.l.b16 %v5908
        %v6996 = vunpack.c.h.b16 %v5908
        %v6997 = vunpack.c.l.b16 %v5909
        %v6998 = vunpack.c.h.b16 %v5909
        %v6999 = vunpack.c.l.b16 %v5910
        %v7000 = vunpack.c.h.b16 %v5910
        %v7001 = vunpack.c.l.b16 %v5911
        %v7002 = vunpack.c.h.b16 %v5911
        %v7003 = vunpack.c.l.b16 %v5912
        %v7004 = vunpack.c.h.b16 %v5912
        %v7005 = vunpack.c.l.b16 %v5913
        %v7006 = vunpack.c.h.b16 %v5913
        %v7007 = vunpack.c.l.b16 %v5914
        %v7008 = vunpack.c.h.b16 %v5914
        %v7009 = vunpack.c.l.b16 %v5915
        %v7010 = vunpack.c.h.b16 %v5915
        %v7011 = vunpack.c.l.b16 %v5916
        %v7012 = vunpack.c.h.b16 %v5916
        %v7013 = vunpack.c.l.b16 %v5917
        %v7014 = vunpack.c.h.b16 %v5917
        %v7015 = vunpack.c.l.b16 %v5918
        %v7016 = vunpack.c.h.b16 %v5918
        %v7017 = vunpack.c.l.b16 %v5919
        %v7018 = vunpack.c.h.b16 %v5919
        %v7019 = vunpack.c.l.b16 %v5920
        %v7020 = vunpack.c.h.b16 %v5920
        %v7021 = vunpack.c.l.b16 %v5921
        %v7022 = vunpack.c.h.b16 %v5921
        %v7023 = vunpack.c.l.b16 %v5922
        %v7024 = vunpack.c.h.b16 %v5922
        %v7025 = vunpack.c.l.b16 %v5923
        %v7026 = vunpack.c.h.b16 %v5923
        %v7027 = vunpack.c.l.b16 %v5924
        %v7028 = vunpack.c.h.b16 %v5924
        %v7029 = vunpack.c.l.b16 %v5925
        %v7030 = vunpack.c.h.b16 %v5925
        %v7031 = vunpack.c.l.b16 %v5926
        %v7032 = vunpack.c.h.b16 %v5926
        %v7033 = vunpack.c.l.b16 %v5927
        %v7034 = vunpack.c.h.b16 %v5927
        %v7035 = vunpack.c.l.b16 %v5928
        %v7036 = vunpack.c.h.b16 %v5928
        %v7037 = vunpack.c.l.b16 %v5929
        %v7038 = vunpack.c.h.b16 %v5929
        %v7039 = vunpack.c.l.b16 %v5930
        %v7040 = vunpack.c.h.b16 %v5930
        %v7041 = vunpack.c.l.b16 %v5931
        %v7042 = vunpack.c.h.b16 %v5931
        %v7043 = vunpack.c.l.b16 %v5932
        %v7044 = vunpack.c.h.b16 %v5932
        %v7045 = vunpack.c.l.b16 %v5933
        %v7046 = vunpack.c.h.b16 %v5933
        %v7047 = vunpack.c.l.b16 %v5934
        %v7048 = vunpack.c.h.b16 %v5934
        %v7049 = vunpack.c.l.b16 %v5935
        %v7050 = vunpack.c.h.b16 %v5935
        %v7051 = vunpack.c.l.b16 %v5936
        %v7052 = vunpack.c.h.b16 %v5936
        %v7053 = vunpack.c.l.b16 %v5937
        %v7054 = vunpack.c.h.b16 %v5937
        %v7055 = vunpack.c.l.b16 %v5938
        %v7056 = vunpack.c.h.b16 %v5938
        %v7057 = vunpack.c.l.b16 %v5939
        %v7058 = vunpack.c.h.b16 %v5939
        %v7059 = vunpack.c.l.b16 %v5940
        %v7060 = vunpack.c.h.b16 %v5940
        %v7061 = vunpack.c.l.b16 %v5941
        %v7062 = vunpack.c.h.b16 %v5941
        %v7063 = vunpack.c.l.b16 %v5942
        %v7064 = vunpack.c.h.b16 %v5942
        %v7065 = vunpack.c.l.b16 %v5943
        %v7066 = vunpack.c.h.b16 %v5943
        %v7067 = vunpack.c.l.b16 %v5944
        %v7068 = vunpack.c.h.b16 %v5944
        %v7069 = vunpack.c.l.b16 %v5945
        %v7070 = vunpack.c.h.b16 %v5945
        %v7071 = vunpack.c.l.b16 %v5946
        %v7072 = vunpack.c.h.b16 %v5946
        %v7073 = vunpack.c.l.b16 %v5947
        %v7074 = vunpack.c.h.b16 %v5947
        %v7075 = vunpack.c.l.b16 %v5948
        %v7076 = vunpack.c.h.b16 %v5948
        %v7077 = vunpack.c.l.b16 %v5949
        %v7078 = vunpack.c.h.b16 %v5949
        %v7079 = vunpack.c.l.b16 %v5950
        %v7080 = vunpack.c.h.b16 %v5950
        %v7081 = vunpack.c.l.b16 %v5951
        %v7082 = vunpack.c.h.b16 %v5951
        %v7083 = vunpack.c.l.b16 %v5952
        %v7084 = vunpack.c.h.b16 %v5952
        %v7085 = vunpack.c.l.b16 %v5953
        %v7086 = vunpack.c.h.b16 %v5953
        %v7087 = vunpack.c.l.b16 %v5954
        %v7088 = vunpack.c.h.b16 %v5954
        %v7089 = vunpack.c.l.b16 %v5955
        %v7090 = vunpack.c.h.b16 %v5955
        %v7091 = vunpack.c.l.b16 %v5956
        %v7092 = vunpack.c.h.b16 %v5956
        %v7093 = vunpack.c.l.b16 %v5957
        %v7094 = vunpack.c.h.b16 %v5957
        %v7095 = vunpack.c.l.b16 %v5958
        %v7096 = vunpack.c.h.b16 %v5958
        %v7097 = vunpack.c.l.b16 %v5959
        %v7098 = vunpack.c.h.b16 %v5959
        %v7099 = vunpack.c.l.b16 %v5960
        %v7100 = vunpack.c.h.b16 %v5960
        %v7101 = vunpack.c.l.b16 %v5961
        %v7102 = vunpack.c.h.b16 %v5961
        %v7103 = vunpack.c.l.b16 %v5962
        %v7104 = vunpack.c.h.b16 %v5962
        %v7105 = vunpack.c.l.b16 %v5963
        %v7106 = vunpack.c.h.b16 %v5963
        %v7107 = vunpack.c.l.b16 %v5964
        %v7108 = vunpack.c.h.b16 %v5964
        %v7109 = vunpack.c.l.b16 %v5965
        %v7110 = vunpack.c.h.b16 %v5965
        %v7111 = vunpack.c.l.b16 %v5966
        %v7112 = vunpack.c.h.b16 %v5966
        %v7113 = vunpack.c.l.b16 %v5967
        %v7114 = vunpack.c.h.b16 %v5967
        %v7115 = vunpack.c.l.b16 %v5968
        %v7116 = vunpack.c.h.b16 %v5968
        %v7117 = vunpack.c.l.b16 %v5969
        %v7118 = vunpack.c.h.b16 %v5969
        %v7119 = vunpack.c.l.b16 %v5970
        %v7120 = vunpack.c.h.b16 %v5970
        %v7121 = vunpack.c.l.b16 %v5971
        %v7122 = vunpack.c.h.b16 %v5971
        %v7123 = vunpack.c.l.b16 %v5972
        %v7124 = vunpack.c.h.b16 %v5972
        %v7125 = vunpack.c.l.b16 %v5973
        %v7126 = vunpack.c.h.b16 %v5973
        %v7127 = vunpack.c.l.b16 %v5974
        %v7128 = vunpack.c.h.b16 %v5974
        %v7129 = vunpack.c.l.b16 %v5975
        %v7130 = vunpack.c.h.b16 %v5975
        %v7131 = vunpack.c.l.b16 %v5976
        %v7132 = vunpack.c.h.b16 %v5976
        %v7133 = vunpack.c.l.b16 %v5977
        %v7134 = vunpack.c.h.b16 %v5977
        %v7135 = vunpack.c.l.b16 %v5978
        %v7136 = vunpack.c.h.b16 %v5978
        %v7137 = vunpack.c.l.b16 %v5979
        %v7138 = vunpack.c.h.b16 %v5979
        %v7139 = vunpack.c.l.b16 %v5980
        %v7140 = vunpack.c.h.b16 %v5980
        %v7141 = vunpack.c.l.b16 %v5981
        %v7142 = vunpack.c.h.b16 %v5981
        %v7143 = vunpack.c.l.b16 %v5982
        %v7144 = vunpack.c.h.b16 %v5982
        %v7145 = vunpack.c.l.b16 %v5983
        %v7146 = vunpack.c.h.b16 %v5983
        %v7147 = vunpack.c.l.b16 %v5984
        %v7148 = vunpack.c.h.b16 %v5984
        %v7149 = vunpack.c.l.b16 %v5985
        %v7150 = vunpack.c.h.b16 %v5985
        %v7151 = vunpack.c.l.b16 %v5986
        %v7152 = vunpack.c.h.b16 %v5986
        %v7153 = vunpack.c.l.b16 %v5987
        %v7154 = vunpack.c.h.b16 %v5987
        %v7155 = vunpack.c.l.b16 %v5988
        %v7156 = vunpack.c.h.b16 %v5988
        %v7157 = vunpack.c.l.b16 %v5989
        %v7158 = vunpack.c.h.b16 %v5989
        %v7159 = vunpack.c.l.b16 %v5990
        %v7160 = vunpack.c.h.b16 %v5990
        %v7161 = vunpack.c.l.b16 %v5991
        %v7162 = vunpack.c.h.b16 %v5991
        %v7163 = vunpack.c.l.b16 %v5992
        %v7164 = vunpack.c.h.b16 %v5992
        %v7165 = vunpack.c.l.b16 %v5993
        %v7166 = vunpack.c.h.b16 %v5993
        %v7167 = vunpack.c.l.b16 %v5994
        %v7168 = vunpack.c.h.b16 %v5994
        %v7169 = vunpack.c.l.b16 %v5995
        %v7170 = vunpack.c.h.b16 %v5995
        %v7171 = vunpack.c.l.b16 %v5996
        %v7172 = vunpack.c.h.b16 %v5996
        %v7173 = vunpack.c.l.b16 %v5997
        %v7174 = vunpack.c.h.b16 %v5997
        %v7175 = vunpack.c.l.b16 %v5998
        %v7176 = vunpack.c.h.b16 %v5998
        %v7177 = vunpack.c.l.b16 %v5999
        %v7178 = vunpack.c.h.b16 %v5999
        %v7179 = vunpack.c.l.b16 %v6000
        %v7180 = vunpack.c.h.b16 %v6000
        %v7181 = vunpack.c.l.b16 %v6001
        %v7182 = vunpack.c.h.b16 %v6001
        %v7183 = vunpack.c.l.b16 %v6002
        %v7184 = vunpack.c.h.b16 %v6002
        %v7185 = vunpack.c.l.b16 %v6003
        %v7186 = vunpack.c.h.b16 %v6003
        %v7187 = vunpack.c.l.b16 %v6004
        %v7188 = vunpack.c.h.b16 %v6004
        %v7189 = vunpack.c.l.b16 %v6005
        %v7190 = vunpack.c.h.b16 %v6005
        %v7191 = vunpack.c.l.b16 %v6006
        %v7192 = vunpack.c.h.b16 %v6006
        %v7193 = vunpack.c.l.b16 %v6007
        %v7194 = vunpack.c.h.b16 %v6007
        %v7195 = vunpack.c.l.b16 %v6008
        %v7196 = vunpack.c.h.b16 %v6008
        %v7197 = vunpack.c.l.b16 %v6009
        %v7198 = vunpack.c.h.b16 %v6009
        %v7199 = vunpack.c.l.b16 %v6010
        %v7200 = vunpack.c.h.b16 %v6010
        %v7201 = vunpack.c.l.b16 %v6011
        %v7202 = vunpack.c.h.b16 %v6011
        %v7203 = vunpack.c.l.b16 %v6012
        %v7204 = vunpack.c.h.b16 %v6012
        %v7205 = vunpack.c.l.b16 %v6013
        %v7206 = vunpack.c.h.b16 %v6013
        %v7207 = vunpack.c.l.b16 %v6014
        %v7208 = vunpack.c.h.b16 %v6014
        %v7209 = vunpack.c.l.b16 %v6015
        %v7210 = vunpack.c.h.b16 %v6015
        %v7211 = vunpack.c.l.b16 %v6016
        %v7212 = vunpack.c.h.b16 %v6016
        %v7213 = vunpack.c.l.b16 %v6017
        %v7214 = vunpack.c.h.b16 %v6017
        %v7215 = vunpack.c.l.b16 %v6018
        %v7216 = vunpack.c.h.b16 %v6018
        %v7217 = vunpack.c.l.b16 %v6019
        %v7218 = vunpack.c.h.b16 %v6019
        %v7219 = vunpack.c.l.b16 %v6020
        %v7220 = vunpack.c.h.b16 %v6020
        %v7221 = vunpack.c.l.b16 %v6021
        %v7222 = vunpack.c.h.b16 %v6021
        %v7223 = vunpack.c.l.b16 %v6022
        %v7224 = vunpack.c.h.b16 %v6022
        %v7225 = vunpack.c.l.b16 %v6023
        %v7226 = vunpack.c.h.b16 %v6023
        %v7227 = vunpack.c.l.b16 %v6024
        %v7228 = vunpack.c.h.b16 %v6024
        %v7229 = vunpack.c.l.b16 %v6025
        %v7230 = vunpack.c.h.b16 %v6025
        %v7231 = vunpack.c.l.b16 %v6026
        %v7232 = vunpack.c.h.b16 %v6026
        %v7233 = vunpack.c.l.b16 %v6027
        %v7234 = vunpack.c.h.b16 %v6027
        %v7235 = vunpack.c.l.b16 %v6028
        %v7236 = vunpack.c.h.b16 %v6028
        %v7237 = vunpack.c.l.b16 %v6029
        %v7238 = vunpack.c.h.b16 %v6029
        %v7239 = vunpack.c.l.b16 %v6030
        %v7240 = vunpack.c.h.b16 %v6030
        %v7241 = vunpack.c.l.b16 %v6031
        %v7242 = vunpack.c.h.b16 %v6031
        %v7243 = vunpack.c.l.b16 %v6032
        %v7244 = vunpack.c.h.b16 %v6032
        %v7245 = vunpack.c.l.b16 %v6033
        %v7246 = vunpack.c.h.b16 %v6033
        %v7247 = vunpack.c.l.b16 %v6034
        %v7248 = vunpack.c.h.b16 %v6034
        %v7249 = vunpack.c.l.b16 %v6035
        %v7250 = vunpack.c.h.b16 %v6035
        %v7251 = vunpack.c.l.b16 %v6036
        %v7252 = vunpack.c.h.b16 %v6036
        %v7253 = vunpack.c.l.b16 %v6037
        %v7254 = vunpack.c.h.b16 %v6037
        %v7255 = vunpack.c.l.b16 %v6038
        %v7256 = vunpack.c.h.b16 %v6038
        %v7257 = vunpack.c.l.b16 %v6039
        %v7258 = vunpack.c.h.b16 %v6039
        %v7259 = vunpack.c.l.b16 %v6040
        %v7260 = vunpack.c.h.b16 %v6040
        %v7261 = vunpack.c.l.b16 %v6041
        %v7262 = vunpack.c.h.b16 %v6041
        %v7263 = vunpack.c.l.b16 %v6042
        %v7264 = vunpack.c.h.b16 %v6042
        %v7265 = vunpack.c.l.b16 %v6043
        %v7266 = vunpack.c.h.b16 %v6043
        %v7267 = vunpack.c.l.b16 %v6044
        %v7268 = vunpack.c.h.b16 %v6044
        %v7269 = vunpack.c.l.b16 %v6045
        %v7270 = vunpack.c.h.b16 %v6045
        %v7271 = vunpack.c.l.b16 %v6046
        %v7272 = vunpack.c.h.b16 %v6046
        %v7273 = vunpack.c.l.b16 %v6047
        %v7274 = vunpack.c.h.b16 %v6047
        %v7275 = vunpack.c.l.b16 %v6048
        %v7276 = vunpack.c.h.b16 %v6048
        %v7277 = vunpack.c.l.b16 %v6049
        %v7278 = vunpack.c.h.b16 %v6049
        %v7279 = vunpack.c.l.b16 %v6050
        %v7280 = vunpack.c.h.b16 %v6050
        %v7281 = vunpack.c.l.b16 %v6051
        %v7282 = vunpack.c.h.b16 %v6051
        %v7283 = vunpack.c.l.b16 %v6052
        %v7284 = vunpack.c.h.b16 %v6052
        %v7285 = vunpack.c.l.b16 %v6053
        %v7286 = vunpack.c.h.b16 %v6053
        %v7287 = vunpack.c.l.b16 %v6054
        %v7288 = vunpack.c.h.b16 %v6054
        %v7289 = vunpack.c.l.b16 %v6055
        %v7290 = vunpack.c.h.b16 %v6055
        %v7291 = vunpack.c.l.b16 %v6056
        %v7292 = vunpack.c.h.b16 %v6056
        %v7293 = vunpack.c.l.b16 %v6057
        %v7294 = vunpack.c.h.b16 %v6057
        %v7295 = vunpack.c.l.b16 %v6058
        %v7296 = vunpack.c.h.b16 %v6058
        %v7297 = vunpack.c.l.b16 %v6059
        %v7298 = vunpack.c.h.b16 %v6059
        %v7299 = vunpack.c.l.b16 %v6060
        %v7300 = vunpack.c.h.b16 %v6060
        %v7301 = vunpack.c.l.b16 %v6061
        %v7302 = vunpack.c.h.b16 %v6061
        %v7303 = vunpack.c.l.b16 %v6062
        %v7304 = vunpack.c.h.b16 %v6062
        %v7305 = vunpack.c.l.b16 %v6063
        %v7306 = vunpack.c.h.b16 %v6063
        %v7307 = vunpack.c.l.b16 %v6064
        %v7308 = vunpack.c.h.b16 %v6064
        %v7309 = vunpack.c.l.b16 %v6065
        %v7310 = vunpack.c.h.b16 %v6065
        %v7311 = vunpack.c.l.b16 %v6066
        %v7312 = vunpack.c.h.b16 %v6066
        %v7313 = vunpack.c.l.b16 %v6067
        %v7314 = vunpack.c.h.b16 %v6067
        %v7315 = vunpack.c.l.b16 %v6068
        %v7316 = vunpack.c.h.b16 %v6068
        %v7317 = vunpack.c.l.b16 %v6069
        %v7318 = vunpack.c.h.b16 %v6069
        %v7319 = vunpack.c.l.b16 %v6070
        %v7320 = vunpack.c.h.b16 %v6070
        %v7321 = vunpack.c.l.b16 %v6071
        %v7322 = vunpack.c.h.b16 %v6071
        %v7323 = vunpack.c.l.b16 %v6072
        %v7324 = vunpack.c.h.b16 %v6072
        %v7325 = vunpack.c.l.b16 %v6073
        %v7326 = vunpack.c.h.b16 %v6073
        %v7327 = vunpack.c.l.b16 %v6074
        %v7328 = vunpack.c.h.b16 %v6074
        %v7329 = vunpack.c.l.b16 %v6075
        %v7330 = vunpack.c.h.b16 %v6075
        %v7331 = vunpack.c.l.b16 %v6076
        %v7332 = vunpack.c.h.b16 %v6076
        %v7333 = vunpack.c.l.b16 %v6077
        %v7334 = vunpack.c.h.b16 %v6077
        %v7335 = vunpack.c.l.b16 %v6078
        %v7336 = vunpack.c.h.b16 %v6078
        %v7337 = vunpack.c.l.b16 %v6079
        %v7338 = vunpack.c.h.b16 %v6079
        %v7339 = vunpack.c.l.b16 %v6080
        %v7340 = vunpack.c.h.b16 %v6080
        %v7341 = vunpack.c.l.b16 %v6081
        %v7342 = vunpack.c.h.b16 %v6081
        %v7343 = vunpack.c.l.b16 %v6082
        %v7344 = vunpack.c.h.b16 %v6082
        %v7345 = vunpack.c.l.b16 %v6083
        %v7346 = vunpack.c.h.b16 %v6083
        %v7347 = vunpack.c.l.b16 %v6084
        %v7348 = vunpack.c.h.b16 %v6084
        %v7349 = vunpack.c.l.b16 %v6085
        %v7350 = vunpack.c.h.b16 %v6085
        %v7351 = vunpack.c.l.b16 %v6086
        %v7352 = vunpack.c.h.b16 %v6086
        %v7353 = vunpack.c.l.b16 %v6087
        %v7354 = vunpack.c.h.b16 %v6087
        %v7355 = vunpack.c.l.b16 %v6088
        %v7356 = vunpack.c.h.b16 %v6088
        %v7357 = vunpack.c.l.b16 %v6089
        %v7358 = vunpack.c.h.b16 %v6089
        %v7359 = vunpack.c.l.b16 %v6090
        %v7360 = vunpack.c.h.b16 %v6090
        %v7361 = vunpack.c.l.b16 %v6091
        %v7362 = vunpack.c.h.b16 %v6091
        %v7363 = vunpack.c.l.b16 %v6092
        %v7364 = vunpack.c.h.b16 %v6092
        %v7365 = vunpack.c.l.b16 %v6093
        %v7366 = vunpack.c.h.b16 %v6093
        %v7367 = vunpack.c.l.b16 %v6094
        %v7368 = vunpack.c.h.b16 %v6094
        %v7369 = vunpack.c.l.b16 %v6095
        %v7370 = vunpack.c.h.b16 %v6095
        %v7371 = vunpack.c.l.b16 %v6096
        %v7372 = vunpack.c.h.b16 %v6096
        %v7373 = vunpack.c.l.b16 %v6097
        %v7374 = vunpack.c.h.b16 %v6097
        %v7375 = vunpack.c.l.b16 %v6098
        %v7376 = vunpack.c.h.b16 %v6098
        %v7377 = vunpack.c.l.b16 %v6099
        %v7378 = vunpack.c.h.b16 %v6099
        %v7379 = vunpack.c.l.b16 %v6100
        %v7380 = vunpack.c.h.b16 %v6100
        %v7381 = vunpack.c.l.b16 %v6101
        %v7382 = vunpack.c.h.b16 %v6101
        %v7383 = vunpack.c.l.b16 %v6102
        %v7384 = vunpack.c.h.b16 %v6102
        %v7385 = vunpack.c.l.b16 %v6103
        %v7386 = vunpack.c.h.b16 %v6103
        %v7387 = vunpack.c.l.b16 %v6104
        %v7388 = vunpack.c.h.b16 %v6104
        %v7389 = vunpack.c.l.b16 %v6105
        %v7390 = vunpack.c.h.b16 %v6105
        %v7391 = vunpack.c.l.b16 %v6106
        %v7392 = vunpack.c.h.b16 %v6106
        %v7393 = vunpack.c.l.b16 %v6107
        %v7394 = vunpack.c.h.b16 %v6107
        %v7395 = vunpack.c.l.b16 %v6108
        %v7396 = vunpack.c.h.b16 %v6108
        %v7397 = vunpack.c.l.b16 %v6109
        %v7398 = vunpack.c.h.b16 %v6109
        %v7399 = vunpack.c.l.b16 %v6110
        %v7400 = vunpack.c.h.b16 %v6110
        %v7401 = vunpack.c.l.b16 %v6111
        %v7402 = vunpack.c.h.b16 %v6111
        %v7403 = vunpack.c.l.b16 %v6112
        %v7404 = vunpack.c.h.b16 %v6112
        %v7405 = vunpack.c.l.b16 %v6113
        %v7406 = vunpack.c.h.b16 %v6113
        %v7407 = vunpack.c.l.b16 %v6114
        %v7408 = vunpack.c.h.b16 %v6114
        %v7409 = vunpack.c.l.b16 %v6115
        %v7410 = vunpack.c.h.b16 %v6115
        %v7411 = vunpack.c.l.b16 %v6116
        %v7412 = vunpack.c.h.b16 %v6116
        %v7413 = vunpack.c.l.b16 %v6117
        %v7414 = vunpack.c.h.b16 %v6117
        %v7415 = vunpack.c.l.b16 %v6118
        %v7416 = vunpack.c.h.b16 %v6118
        %v7417 = vunpack.c.l.b16 %v6119
        %v7418 = vunpack.c.h.b16 %v6119
        %v7419 = vunpack.c.l.b16 %v6120
        %v7420 = vunpack.c.h.b16 %v6120
        %v7421 = vunpack.c.l.b16 %v6121
        %v7422 = vunpack.c.h.b16 %v6121
        %v7423 = vunpack.c.l.b16 %v6122
        %v7424 = vunpack.c.h.b16 %v6122
        %v7425 = vunpack.c.l.b16 %v6123
        %v7426 = vunpack.c.h.b16 %v6123
        %v7427 = vunpack.c.l.b16 %v6124
        %v7428 = vunpack.c.h.b16 %v6124
        %v7429 = vunpack.c.l.b16 %v6125
        %v7430 = vunpack.c.h.b16 %v6125
        %v7431 = vunpack.c.l.b16 %v6126
        %v7432 = vunpack.c.h.b16 %v6126
        %v7433 = vunpack.c.l.b16 %v6127
        %v7434 = vunpack.c.h.b16 %v6127
        %v7435 = vunpack.c.l.b16 %v6128
        %v7436 = vunpack.c.h.b16 %v6128
        %v7437 = vunpack.c.l.b16 %v6129
        %v7438 = vunpack.c.h.b16 %v6129
        %v7439 = vunpack.c.l.b16 %v6130
        %v7440 = vunpack.c.h.b16 %v6130
        %v7441 = vunpack.c.l.b16 %v6131
        %v7442 = vunpack.c.h.b16 %v6131
        %v7443 = vunpack.c.l.b16 %v6132
        %v7444 = vunpack.c.h.b16 %v6132
        %v7445 = vunpack.c.l.b16 %v6133
        %v7446 = vunpack.c.h.b16 %v6133
        %v7447 = vunpack.c.l.b16 %v6134
        %v7448 = vunpack.c.h.b16 %v6134
        %v7449 = vunpack.c.l.b16 %v6135
        %v7450 = vunpack.c.h.b16 %v6135
        %v7451 = vunpack.c.l.b16 %v6136
        %v7452 = vunpack.c.h.b16 %v6136
        %v7453 = vunpack.c.l.b16 %v6137
        %v7454 = vunpack.c.h.b16 %v6137
        %v7455 = vunpack.c.l.b16 %v6138
        %v7456 = vunpack.c.h.b16 %v6138
        %v7457 = vunpack.c.l.b16 %v6139
        %v7458 = vunpack.c.h.b16 %v6139
        %v7459 = vunpack.c.l.b16 %v6140
        %v7460 = vunpack.c.h.b16 %v6140
        %v7461 = vunpack.c.l.b16 %v6141
        %v7462 = vunpack.c.h.b16 %v6141
        %v7463 = vunpack.c.l.b16 %v6142
        %v7464 = vunpack.c.h.b16 %v6142
        %v7465 = vunpack.c.l.b16 %v6143
        %v7466 = vunpack.c.h.b16 %v6143
        %v7467 = vunpack.c.l.b16 %v6144
        %v7468 = vunpack.c.h.b16 %v6144
        %v7469 = vunpack.c.l.b16 %v6145
        %v7470 = vunpack.c.h.b16 %v6145
        %v7471 = vunpack.c.l.b16 %v6146
        %v7472 = vunpack.c.h.b16 %v6146
        %v7473 = vunpack.c.l.b16 %v6147
        %v7474 = vunpack.c.h.b16 %v6147
        %v7475 = vunpack.c.l.b16 %v6148
        %v7476 = vunpack.c.h.b16 %v6148
        %v7477 = vunpack.c.l.b16 %v6149
        %v7478 = vunpack.c.h.b16 %v6149
        %v7479 = vunpack.c.l.b16 %v6150
        %v7480 = vunpack.c.h.b16 %v6150
        %v7481 = vunpack.c.l.b16 %v6151
        %v7482 = vunpack.c.h.b16 %v6151
        %v7483 = vunpack.c.l.b16 %v6152
        %v7484 = vunpack.c.h.b16 %v6152
        %v7485 = vunpack.c.l.b16 %v6153
        %v7486 = vunpack.c.h.b16 %v6153
        %v7487 = vunpack.c.l.b16 %v6154
        %v7488 = vunpack.c.h.b16 %v6154
        %v7489 = vunpack.c.l.b16 %v6155
        %v7490 = vunpack.c.h.b16 %v6155
        %v7491 = vunpack.c.l.b16 %v6156
        %v7492 = vunpack.c.h.b16 %v6156
        %v7493 = vunpack.c.l.b16 %v6157
        %v7494 = vunpack.c.h.b16 %v6157
        %v7495 = vunpack.c.l.b16 %v6158
        %v7496 = vunpack.c.h.b16 %v6158
        %v7497 = vunpack.c.l.b16 %v6159
        %v7498 = vunpack.c.h.b16 %v6159
        %v7499 = vunpack.c.l.b16 %v6160
        %v7500 = vunpack.c.h.b16 %v6160
        %v7501 = vunpack.c.l.b16 %v6161
        %v7502 = vunpack.c.h.b16 %v6161
        %v7503 = vunpack.c.l.b16 %v6162
        %v7504 = vunpack.c.h.b16 %v6162
        %v7505 = vunpack.c.l.b16 %v6163
        %v7506 = vunpack.c.h.b16 %v6163
        %v7507 = vunpack.c.l.b16 %v6164
        %v7508 = vunpack.c.h.b16 %v6164
        %v7509 = vunpack.c.l.b16 %v6165
        %v7510 = vunpack.c.h.b16 %v6165
        %v7511 = vunpack.c.l.b16 %v6166
        %v7512 = vunpack.c.h.b16 %v6166
        %v7513 = vunpack.c.l.b16 %v6167
        %v7514 = vunpack.c.h.b16 %v6167
        %v7515 = vunpack.c.l.b16 %v6168
        %v7516 = vunpack.c.h.b16 %v6168
        %v7517 = vunpack.c.l.b16 %v6169
        %v7518 = vunpack.c.h.b16 %v6169
        %v7519 = vunpack.c.l.b16 %v6170
        %v7520 = vunpack.c.h.b16 %v6170
        %v7521 = vunpack.c.l.b16 %v6171
        %v7522 = vunpack.c.h.b16 %v6171
        %v7523 = vunpack.c.l.b16 %v6172
        %v7524 = vunpack.c.h.b16 %v6172
        %v7525 = vunpack.c.l.b16 %v6173
        %v7526 = vunpack.c.h.b16 %v6173
        %v7527 = vunpack.c.l.b16 %v6174
        %v7528 = vunpack.c.h.b16 %v6174
        %v7529 = vunpack.c.l.b16 %v6175
        %v7530 = vunpack.c.h.b16 %v6175
        %v7531 = vunpack.c.l.b16 %v6176
        %v7532 = vunpack.c.h.b16 %v6176
        %v7533 = vunpack.c.l.b16 %v6177
        %v7534 = vunpack.c.h.b16 %v6177
        %v7535 = vunpack.c.l.b16 %v6178
        %v7536 = vunpack.c.h.b16 %v6178
        %v7537 = vunpack.c.l.b16 %v6179
        %v7538 = vunpack.c.h.b16 %v6179
        %v7539 = vunpack.c.l.b16 %v6180
        %v7540 = vunpack.c.h.b16 %v6180
        %v7541 = vunpack.c.l.b16 %v6181
        %v7542 = vunpack.c.h.b16 %v6181
        %v7543 = vunpack.c.l.b16 %v6182
        %v7544 = vunpack.c.h.b16 %v6182
        %v7545 = vunpack.c.l.b16 %v6183
        %v7546 = vunpack.c.h.b16 %v6183
        %v7547 = vunpack.c.l.b16 %v6184
        %v7548 = vunpack.c.h.b16 %v6184
        %v7549 = vunpack.c.l.b16 %v6185
        %v7550 = vunpack.c.h.b16 %v6185
        %v7551 = vunpack.c.l.b16 %v6186
        %v7552 = vunpack.c.h.b16 %v6186
        %v7553 = vunpack.c.l.b16 %v6187
        %v7554 = vunpack.c.h.b16 %v6187
        %v7555 = vunpack.c.l.b16 %v6188
        %v7556 = vunpack.c.h.b16 %v6188
        %v7557 = vunpack.c.l.b16 %v6189
        %v7558 = vunpack.c.h.b16 %v6189
        %v7559 = vunpack.c.l.b16 %v6190
        %v7560 = vunpack.c.h.b16 %v6190
        %v7561 = vunpack.c.l.b16 %v6191
        %v7562 = vunpack.c.h.b16 %v6191
        %v7563 = vunpack.c.l.b16 %v6192
        %v7564 = vunpack.c.h.b16 %v6192
        %v7565 = vunpack.c.l.b16 %v6193
        %v7566 = vunpack.c.h.b16 %v6193
        %v7567 = vunpack.c.l.b16 %v6194
        %v7568 = vunpack.c.h.b16 %v6194
        %v7569 = vunpack.c.l.b16 %v6195
        %v7570 = vunpack.c.h.b16 %v6195
        %v7571 = vunpack.c.l.b16 %v6196
        %v7572 = vunpack.c.h.b16 %v6196
        %v7573 = vunpack.c.l.b16 %v6197
        %v7574 = vunpack.c.h.b16 %v6197
        %v7575 = vunpack.c.l.b16 %v6198
        %v7576 = vunpack.c.h.b16 %v6198
        %v7577 = vunpack.c.l.b16 %v6199
        %v7578 = vunpack.c.h.b16 %v6199
        %v7579 = vunpack.c.l.b16 %v6200
        %v7580 = vunpack.c.h.b16 %v6200
        %v7581 = vunpack.c.l.b16 %v6201
        %v7582 = vunpack.c.h.b16 %v6201
        %v7583 = vunpack.c.l.b16 %v6202
        %v7584 = vunpack.c.h.b16 %v6202
        %v7585 = vunpack.c.l.b16 %v6203
        %v7586 = vunpack.c.h.b16 %v6203
        %v7587 = vunpack.c.l.b16 %v6204
        %v7588 = vunpack.c.h.b16 %v6204
        %v7589 = vunpack.c.l.b16 %v6205
        %v7590 = vunpack.c.h.b16 %v6205
        %v7591 = vunpack.c.l.b16 %v6206
        %v7592 = vunpack.c.h.b16 %v6206
        %v7593 = vunpack.c.l.b16 %v6207
        %v7594 = vunpack.c.h.b16 %v6207
        %v7595 = vunpack.c.l.b16 %v6208
        %v7596 = vunpack.c.h.b16 %v6208
        %v7597 = vunpack.c.l.b16 %v6209
        %v7598 = vunpack.c.h.b16 %v6209
        %v7599 = vunpack.c.l.b16 %v6210
        %v7600 = vunpack.c.h.b16 %v6210
        %v7601 = vunpack.c.l.b16 %v6211
        %v7602 = vunpack.c.h.b16 %v6211
        %v7603 = vunpack.c.l.b16 %v6212
        %v7604 = vunpack.c.h.b16 %v6212
        %v7605 = vunpack.c.l.b16 %v6213
        %v7606 = vunpack.c.h.b16 %v6213
        %v7607 = vunpack.c.l.b16 %v6214
        %v7608 = vunpack.c.h.b16 %v6214
        %v7609 = vunpack.c.l.b16 %v6215
        %v7610 = vunpack.c.h.b16 %v6215
        %v7611 = vunpack.c.l.b16 %v6216
        %v7612 = vunpack.c.h.b16 %v6216
        %v7613 = vunpack.c.l.b16 %v6217
        %v7614 = vunpack.c.h.b16 %v6217
        %v7615 = vunpack.c.l.b16 %v6218
        %v7616 = vunpack.c.h.b16 %v6218
        %v7617 = vunpack.c.l.b16 %v6219
        %v7618 = vunpack.c.h.b16 %v6219
        %v7619 = vunpack.c.l.b16 %v6220
        %v7620 = vunpack.c.h.b16 %v6220
        %v7621 = vunpack.c.l.b16 %v6221
        %v7622 = vunpack.c.h.b16 %v6221
        %v7623 = vunpack.c.l.b16 %v6222
        %v7624 = vunpack.c.h.b16 %v6222
        %v7625 = vunpack.c.l.b16 %v6223
        %v7626 = vunpack.c.h.b16 %v6223
        %v7627 = vunpack.c.l.b16 %v6224
        %v7628 = vunpack.c.h.b16 %v6224
        %v7629 = vunpack.c.l.b16 %v6225
        %v7630 = vunpack.c.h.b16 %v6225
        %v7631 = vunpack.c.l.b16 %v6226
        %v7632 = vunpack.c.h.b16 %v6226
        %v7633 = vunpack.c.l.b16 %v6227
        %v7634 = vunpack.c.h.b16 %v6227
        %v7635 = vunpack.c.l.b16 %v6228
        %v7636 = vunpack.c.h.b16 %v6228
        %v7637 = vunpack.c.l.b16 %v6229
        %v7638 = vunpack.c.h.b16 %v6229
        %v7639 = vunpack.c.l.b16 %v6230
        %v7640 = vunpack.c.h.b16 %v6230
        %v7641 = vunpack.c.l.b16 %v6231
        %v7642 = vunpack.c.h.b16 %v6231
        %v7643 = vunpack.c.l.b16 %v6232
        %v7644 = vunpack.c.h.b16 %v6232
        %v7645 = vunpack.c.l.b16 %v6233
        %v7646 = vunpack.c.h.b16 %v6233
        %v7647 = vunpack.c.l.b16 %v6234
        %v7648 = vunpack.c.h.b16 %v6234
        %v7649 = vunpack.c.l.b16 %v6235
        %v7650 = vunpack.c.h.b16 %v6235
        %v7651 = vunpack.c.l.b16 %v6236
        %v7652 = vunpack.c.h.b16 %v6236
        %v7653 = vunpack.c.l.b16 %v6237
        %v7654 = vunpack.c.h.b16 %v6237
        %v7655 = vunpack.c.l.b16 %v6238
        %v7656 = vunpack.c.h.b16 %v6238
        %v7657 = vunpack.c.l.b16 %v6239
        %v7658 = vunpack.c.h.b16 %v6239
        %v7659 = vunpack.c.l.b16 %v6240
        %v7660 = vunpack.c.h.b16 %v6240
        %v7661 = vunpack.c.l.b16 %v6241
        %v7662 = vunpack.c.h.b16 %v6241
        %v7663 = vunpack.c.l.b16 %v6242
        %v7664 = vunpack.c.h.b16 %v6242
        %v7665 = vunpack.c.l.b16 %v6243
        %v7666 = vunpack.c.h.b16 %v6243
        %v7667 = vunpack.c.l.b16 %v6244
        %v7668 = vunpack.c.h.b16 %v6244
        %v7669 = vunpack.c.l.b16 %v6245
        %v7670 = vunpack.c.h.b16 %v6245
        %v7671 = vunpack.c.l.b16 %v6246
        %v7672 = vunpack.c.h.b16 %v6246
        %v7673 = vunpack.c.l.b16 %v6247
        %v7674 = vunpack.c.h.b16 %v6247
        %v7675 = vunpack.c.l.b16 %v6248
        %v7676 = vunpack.c.h.b16 %v6248
        %v7677 = vunpack.c.l.b16 %v6249
        %v7678 = vunpack.c.h.b16 %v6249
        %v7679 = vunpack.c.l.b16 %v6250
        %v7680 = vunpack.c.h.b16 %v6250
        %v7681 = vunpack.c.l.b16 %v6251
        %v7682 = vunpack.c.h.b16 %v6251
        %v7683 = vunpack.c.l.b16 %v6252
        %v7684 = vunpack.c.h.b16 %v6252
        %v7685 = vunpack.c.l.b16 %v6253
        %v7686 = vunpack.c.h.b16 %v6253
        %v7687 = vunpack.c.l.b16 %v6254
        %v7688 = vunpack.c.h.b16 %v6254
        %v7689 = vunpack.c.l.b16 %v6255
        %v7690 = vunpack.c.h.b16 %v6255
        %v7691 = vunpack.c.l.b16 %v6256
        %v7692 = vunpack.c.h.b16 %v6256
        %v7693 = vunpack.c.l.b16 %v6257
        %v7694 = vunpack.c.h.b16 %v6257
        %v7695 = vunpack.c.l.b16 %v6258
        %v7696 = vunpack.c.h.b16 %v6258
        %v7697 = vunpack.c.l.b16 %v6259
        %v7698 = vunpack.c.h.b16 %v6259
        %v7699 = vunpack.c.l.b16 %v6260
        %v7700 = vunpack.c.h.b16 %v6260
        %v7701 = vunpack.c.l.b16 %v6261
        %v7702 = vunpack.c.h.b16 %v6261
        %v7703 = vunpack.c.l.b16 %v6262
        %v7704 = vunpack.c.h.b16 %v6262
        %v7705 = vunpack.c.l.b16 %v6263
        %v7706 = vunpack.c.h.b16 %v6263
        %v7707 = vunpack.c.l.b16 %v6264
        %v7708 = vunpack.c.h.b16 %v6264
        %v7709 = vunpack.c.l.b16 %v6265
        %v7710 = vunpack.c.h.b16 %v6265
        %v7711 = vunpack.c.l.b16 %v6266
        %v7712 = vunpack.c.h.b16 %v6266
        %v7713 = vunpack.c.l.b16 %v6267
        %v7714 = vunpack.c.h.b16 %v6267
        %v7715 = vunpack.c.l.b16 %v6268
        %v7716 = vunpack.c.h.b16 %v6268
        %v7717 = vunpack.c.l.b16 %v6269
        %v7718 = vunpack.c.h.b16 %v6269
        %v7719 = vunpack.c.l.b16 %v6270
        %v7720 = vunpack.c.h.b16 %v6270
        %v7721 = vunpack.c.l.b16 %v6271
        %v7722 = vunpack.c.h.b16 %v6271
        %v7723 = vunpack.c.l.b16 %v6272
        %v7724 = vunpack.c.h.b16 %v6272
        %v7725 = vunpack.c.l.b16 %v6273
        %v7726 = vunpack.c.h.b16 %v6273
        %v7727 = vunpack.c.l.b16 %v6274
        %v7728 = vunpack.c.h.b16 %v6274
        %v7729 = vunpack.c.l.b16 %v6275
        %v7730 = vunpack.c.h.b16 %v6275
        %v7731 = vunpack.c.l.b16 %v6276
        %v7732 = vunpack.c.h.b16 %v6276
        %v7733 = vunpack.c.l.b16 %v6277
        %v7734 = vunpack.c.h.b16 %v6277
        %v7735 = vunpack.c.l.b16 %v6278
        %v7736 = vunpack.c.h.b16 %v6278
        %v7737 = vunpack.c.l.b16 %v6279
        %v7738 = vunpack.c.h.b16 %v6279
        %v7739 = vunpack.c.l.b16 %v6280
        %v7740 = vunpack.c.h.b16 %v6280
        %v7741 = vunpack.c.l.b16 %v6281
        %v7742 = vunpack.c.h.b16 %v6281
        %v7743 = vunpack.c.l.b16 %v6282
        %v7744 = vunpack.c.h.b16 %v6282
        %v7745 = vunpack.c.l.b16 %v6283
        %v7746 = vunpack.c.h.b16 %v6283
        %v7747 = vunpack.c.l.b16 %v6284
        %v7748 = vunpack.c.h.b16 %v6284
        %v7749 = vunpack.c.l.b16 %v6285
        %v7750 = vunpack.c.h.b16 %v6285
        %v7751 = vunpack.c.l.b16 %v6286
        %v7752 = vunpack.c.h.b16 %v6286
        %v7753 = vunpack.c.l.b16 %v6287
        %v7754 = vunpack.c.h.b16 %v6287
        %v7755 = vunpack.c.l.b16 %v6288
        %v7756 = vunpack.c.h.b16 %v6288
        %v7757 = vunpack.c.l.b16 %v6289
        %v7758 = vunpack.c.h.b16 %v6289
        %v7759 = vunpack.c.l.b16 %v6290
        %v7760 = vunpack.c.h.b16 %v6290
        %v7761 = vunpack.c.l.b16 %v6291
        %v7762 = vunpack.c.h.b16 %v6291
        %v7763 = vunpack.c.l.b16 %v6292
        %v7764 = vunpack.c.h.b16 %v6292
        %v7765 = vunpack.c.l.b16 %v6293
        %v7766 = vunpack.c.h.b16 %v6293
        %v7767 = vunpack.c.l.b16 %v6294
        %v7768 = vunpack.c.h.b16 %v6294
        %v7769 = vunpack.c.l.b16 %v6295
        %v7770 = vunpack.c.h.b16 %v6295
        %v7771 = vunpack.c.l.b16 %v6296
        %v7772 = vunpack.c.h.b16 %v6296
        %v7773 = vunpack.c.l.b16 %v6297
        %v7774 = vunpack.c.h.b16 %v6297
        %v7775 = vunpack.c.l.b16 %v6298
        %v7776 = vunpack.c.h.b16 %v6298
        %v7777 = vunpack.c.l.b16 %v6299
        %v7778 = vunpack.c.h.b16 %v6299
        %v7779 = vunpack.c.l.b16 %v6300
        %v7780 = vunpack.c.h.b16 %v6300
        %v7781 = vunpack.c.l.b16 %v6301
        %v7782 = vunpack.c.h.b16 %v6301
        %v7783 = vunpack.c.l.b16 %v6302
        %v7784 = vunpack.c.h.b16 %v6302
        %v7785 = vunpack.c.l.b16 %v6303
        %v7786 = vunpack.c.h.b16 %v6303
        %v7787 = vunpack.c.l.b16 %v6304
        %v7788 = vunpack.c.h.b16 %v6304
        %v7789 = vunpack.c.l.b16 %v6305
        %v7790 = vunpack.c.h.b16 %v6305
        %v7791 = vunpack.c.l.b16 %v6306
        %v7792 = vunpack.c.h.b16 %v6306
        %v7793 = vunpack.c.l.b16 %v6307
        %v7794 = vunpack.c.h.b16 %v6307
        %v7795 = vunpack.c.l.b16 %v6308
        %v7796 = vunpack.c.h.b16 %v6308
        %v7797 = vunpack.c.l.b16 %v6309
        %v7798 = vunpack.c.h.b16 %v6309
        %v7799 = vunpack.c.l.b16 %v6310
        %v7800 = vunpack.c.h.b16 %v6310
        %v7801 = vunpack.c.l.b16 %v6311
        %v7802 = vunpack.c.h.b16 %v6311
        %v7803 = vunpack.c.l.b16 %v6312
        %v7804 = vunpack.c.h.b16 %v6312
        %v7805 = vunpack.c.l.b16 %v6313
        %v7806 = vunpack.c.h.b16 %v6313
        %v7807 = vunpack.c.l.b16 %v6314
        %v7808 = vunpack.c.h.b16 %v6314
        %v7809 = vunpack.c.l.b16 %v6315
        %v7810 = vunpack.c.h.b16 %v6315
        %v7811 = vunpack.c.l.b16 %v6316
        %v7812 = vunpack.c.h.b16 %v6316
        %v7813 = vunpack.c.l.b16 %v6317
        %v7814 = vunpack.c.h.b16 %v6317
        %v7815 = vunpack.c.l.b16 %v6318
        %v7816 = vunpack.c.h.b16 %v6318
        %v7817 = vunpack.c.l.b16 %v6319
        %v7818 = vunpack.c.h.b16 %v6319
        %v7819 = vunpack.c.l.b16 %v6320
        %v7820 = vunpack.c.h.b16 %v6320
        %v7821 = vunpack.c.l.b16 %v6321
        %v7822 = vunpack.c.h.b16 %v6321
        %v7823 = vunpack.c.l.b16 %v6322
        %v7824 = vunpack.c.h.b16 %v6322
        %v7825 = vunpack.c.l.b16 %v6323
        %v7826 = vunpack.c.h.b16 %v6323
        %v7827 = vunpack.c.l.b16 %v6324
        %v7828 = vunpack.c.h.b16 %v6324
        %v7829 = vunpack.c.l.b16 %v6325
        %v7830 = vunpack.c.h.b16 %v6325
        %v7831 = vunpack.c.l.b16 %v6326
        %v7832 = vunpack.c.h.b16 %v6326
        %v7833 = vunpack.c.l.b16 %v6327
        %v7834 = vunpack.c.h.b16 %v6327
        %v7835 = vunpack.c.l.b16 %v6328
        %v7836 = vunpack.c.h.b16 %v6328
        %v7837 = vunpack.c.l.b16 %v6329
        %v7838 = vunpack.c.h.b16 %v6329
        %v7839 = vunpack.c.l.b16 %v6330
        %v7840 = vunpack.c.h.b16 %v6330
        %v7841 = vunpack.c.l.b16 %v6331
        %v7842 = vunpack.c.h.b16 %v6331
        %v7843 = vunpack.c.l.b16 %v6332
        %v7844 = vunpack.c.h.b16 %v6332
        %v7845 = vunpack.c.l.b16 %v6333
        %v7846 = vunpack.c.h.b16 %v6333
        %v7847 = vunpack.c.l.b16 %v6334
        %v7848 = vunpack.c.h.b16 %v6334
        %v7849 = vunpack.c.l.b16 %v6335
        %v7850 = vunpack.c.h.b16 %v6335
        %v7851 = vunpack.c.l.b16 %v6336
        %v7852 = vunpack.c.h.b16 %v6336
        %v7853 = vunpack.c.l.b16 %v6337
        %v7854 = vunpack.c.h.b16 %v6337
        %v7855 = vunpack.c.l.b16 %v6338
        %v7856 = vunpack.c.h.b16 %v6338
        %v7857 = vunpack.c.l.b16 %v6339
        %v7858 = vunpack.c.h.b16 %v6339
        %v7859 = vunpack.c.l.b16 %v6340
        %v7860 = vunpack.c.h.b16 %v6340
        %v7861 = vunpack.c.l.b16 %v6341
        %v7862 = vunpack.c.h.b16 %v6341
        %v7863 = vunpack.c.l.b16 %v6342
        %v7864 = vunpack.c.h.b16 %v6342
        %v7865 = vunpack.c.l.b16 %v6343
        %v7866 = vunpack.c.h.b16 %v6343
        %v7867 = vunpack.c.l.b16 %v6344
        %v7868 = vunpack.c.h.b16 %v6344
        %v7869 = vunpack.c.l.b16 %v6345
        %v7870 = vunpack.c.h.b16 %v6345
        %v7871 = vunpack.c.l.b16 %v6346
        %v7872 = vunpack.c.h.b16 %v6346
        %v7873 = vunpack.c.l.b16 %v6347
        %v7874 = vunpack.c.h.b16 %v6347
        %v7875 = vunpack.c.l.b16 %v6348
        %v7876 = vunpack.c.h.b16 %v6348
        %v7877 = vunpack.c.l.b16 %v6349
        %v7878 = vunpack.c.h.b16 %v6349
        %v7879 = vunpack.c.l.b16 %v6350
        %v7880 = vunpack.c.h.b16 %v6350
        %v7881 = vunpack.c.l.b16 %v6351
        %v7882 = vunpack.c.h.b16 %v6351
        %v7883 = vunpack.c.l.b16 %v6352
        %v7884 = vunpack.c.h.b16 %v6352
        %v7885 = vunpack.c.l.b16 %v6353
        %v7886 = vunpack.c.h.b16 %v6353
        %v7887 = vunpack.c.l.b16 %v6354
        %v7888 = vunpack.c.h.b16 %v6354
        %v7889 = vunpack.c.l.b16 %v6355
        %v7890 = vunpack.c.h.b16 %v6355
        %v7891 = vunpack.c.l.b16 %v6356
        %v7892 = vunpack.c.h.b16 %v6356
        %v7893 = vunpack.c.l.b16 %v6357
        %v7894 = vunpack.c.h.b16 %v6357
        %v7895 = vpack.c.b16 %v6875, %v6871
        %v7896 = vpack.c.b16 %v6876, %v6872
        %v7897 = vpack.c.b16 %v6877, %v6873
        %v7898 = vpack.c.b16 %v6878, %v6874
        %v7899 = vpack.c.b16 %v6883, %v6879
        %v7900 = vpack.c.b16 %v6884, %v6880
        %v7901 = vpack.c.b16 %v6885, %v6881
        %v7902 = vpack.c.b16 %v6886, %v6882
        %v7903 = vpack.c.b16 %v6891, %v6887
        %v7904 = vpack.c.b16 %v6892, %v6888
        %v7905 = vpack.c.b16 %v6893, %v6889
        %v7906 = vpack.c.b16 %v6894, %v6890
        %v7907 = vpack.c.b16 %v6899, %v6895
        %v7908 = vpack.c.b16 %v6900, %v6896
        %v7909 = vpack.c.b16 %v6901, %v6897
        %v7910 = vpack.c.b16 %v6902, %v6898
        %v7911 = vpack.c.b16 %v6907, %v6903
        %v7912 = vpack.c.b16 %v6908, %v6904
        %v7913 = vpack.c.b16 %v6909, %v6905
        %v7914 = vpack.c.b16 %v6910, %v6906
        %v7915 = vpack.c.b16 %v6915, %v6911
        %v7916 = vpack.c.b16 %v6916, %v6912
        %v7917 = vpack.c.b16 %v6917, %v6913
        %v7918 = vpack.c.b16 %v6918, %v6914
        %v7919 = vpack.c.b16 %v6923, %v6919
        %v7920 = vpack.c.b16 %v6924, %v6920
        %v7921 = vpack.c.b16 %v6925, %v6921
        %v7922 = vpack.c.b16 %v6926, %v6922
        %v7923 = vpack.c.b16 %v6931, %v6927
        %v7924 = vpack.c.b16 %v6932, %v6928
        %v7925 = vpack.c.b16 %v6933, %v6929
        %v7926 = vpack.c.b16 %v6934, %v6930
        %v7927 = vpack.c.b16 %v6939, %v6935
        %v7928 = vpack.c.b16 %v6940, %v6936
        %v7929 = vpack.c.b16 %v6941, %v6937
        %v7930 = vpack.c.b16 %v6942, %v6938
        %v7931 = vpack.c.b16 %v6947, %v6943
        %v7932 = vpack.c.b16 %v6948, %v6944
        %v7933 = vpack.c.b16 %v6949, %v6945
        %v7934 = vpack.c.b16 %v6950, %v6946
        %v7935 = vpack.c.b16 %v6955, %v6951
        %v7936 = vpack.c.b16 %v6956, %v6952
        %v7937 = vpack.c.b16 %v6957, %v6953
        %v7938 = vpack.c.b16 %v6958, %v6954
        %v7939 = vpack.c.b16 %v6963, %v6959
        %v7940 = vpack.c.b16 %v6964, %v6960
        %v7941 = vpack.c.b16 %v6965, %v6961
        %v7942 = vpack.c.b16 %v6966, %v6962
        %v7943 = vpack.c.b16 %v6971, %v6967
        %v7944 = vpack.c.b16 %v6972, %v6968
        %v7945 = vpack.c.b16 %v6973, %v6969
        %v7946 = vpack.c.b16 %v6974, %v6970
        %v7947 = vpack.c.b16 %v6979, %v6975
        %v7948 = vpack.c.b16 %v6980, %v6976
        %v7949 = vpack.c.b16 %v6981, %v6977
        %v7950 = vpack.c.b16 %v6982, %v6978
        %v7951 = vpack.c.b16 %v6987, %v6983
        %v7952 = vpack.c.b16 %v6988, %v6984
        %v7953 = vpack.c.b16 %v6989, %v6985
        %v7954 = vpack.c.b16 %v6990, %v6986
        %v7955 = vpack.c.b16 %v6995, %v6991
        %v7956 = vpack.c.b16 %v6996, %v6992
        %v7957 = vpack.c.b16 %v6997, %v6993
        %v7958 = vpack.c.b16 %v6998, %v6994
        %v7959 = vpack.c.b16 %v7003, %v6999
        %v7960 = vpack.c.b16 %v7004, %v7000
        %v7961 = vpack.c.b16 %v7005, %v7001
        %v7962 = vpack.c.b16 %v7006, %v7002
        %v7963 = vpack.c.b16 %v7011, %v7007
        %v7964 = vpack.c.b16 %v7012, %v7008
        %v7965 = vpack.c.b16 %v7013, %v7009
        %v7966 = vpack.c.b16 %v7014, %v7010
        %v7967 = vpack.c.b16 %v7019, %v7015
        %v7968 = vpack.c.b16 %v7020, %v7016
        %v7969 = vpack.c.b16 %v7021, %v7017
        %v7970 = vpack.c.b16 %v7022, %v7018
        %v7971 = vpack.c.b16 %v7027, %v7023
        %v7972 = vpack.c.b16 %v7028, %v7024
        %v7973 = vpack.c.b16 %v7029, %v7025
        %v7974 = vpack.c.b16 %v7030, %v7026
        %v7975 = vpack.c.b16 %v7035, %v7031
        %v7976 = vpack.c.b16 %v7036, %v7032
        %v7977 = vpack.c.b16 %v7037, %v7033
        %v7978 = vpack.c.b16 %v7038, %v7034
        %v7979 = vpack.c.b16 %v7043, %v7039
        %v7980 = vpack.c.b16 %v7044, %v7040
        %v7981 = vpack.c.b16 %v7045, %v7041
        %v7982 = vpack.c.b16 %v7046, %v7042
        %v7983 = vpack.c.b16 %v7051, %v7047
        %v7984 = vpack.c.b16 %v7052, %v7048
        %v7985 = vpack.c.b16 %v7053, %v7049
        %v7986 = vpack.c.b16 %v7054, %v7050
        %v7987 = vpack.c.b16 %v7059, %v7055
        %v7988 = vpack.c.b16 %v7060, %v7056
        %v7989 = vpack.c.b16 %v7061, %v7057
        %v7990 = vpack.c.b16 %v7062, %v7058
        %v7991 = vpack.c.b16 %v7067, %v7063
        %v7992 = vpack.c.b16 %v7068, %v7064
        %v7993 = vpack.c.b16 %v7069, %v7065
        %v7994 = vpack.c.b16 %v7070, %v7066
        %v7995 = vpack.c.b16 %v7075, %v7071
        %v7996 = vpack.c.b16 %v7076, %v7072
        %v7997 = vpack.c.b16 %v7077, %v7073
        %v7998 = vpack.c.b16 %v7078, %v7074
        %v7999 = vpack.c.b16 %v7083, %v7079
        %v8000 = vpack.c.b16 %v7084, %v7080
        %v8001 = vpack.c.b16 %v7085, %v7081
        %v8002 = vpack.c.b16 %v7086, %v7082
        %v8003 = vpack.c.b16 %v7091, %v7087
        %v8004 = vpack.c.b16 %v7092, %v7088
        %v8005 = vpack.c.b16 %v7093, %v7089
        %v8006 = vpack.c.b16 %v7094, %v7090
        %v8007 = vpack.c.b16 %v7099, %v7095
        %v8008 = vpack.c.b16 %v7100, %v7096
        %v8009 = vpack.c.b16 %v7101, %v7097
        %v8010 = vpack.c.b16 %v7102, %v7098
        %v8011 = vpack.c.b16 %v7107, %v7103
        %v8012 = vpack.c.b16 %v7108, %v7104
        %v8013 = vpack.c.b16 %v7109, %v7105
        %v8014 = vpack.c.b16 %v7110, %v7106
        %v8015 = vpack.c.b16 %v7115, %v7111
        %v8016 = vpack.c.b16 %v7116, %v7112
        %v8017 = vpack.c.b16 %v7117, %v7113
        %v8018 = vpack.c.b16 %v7118, %v7114
        %v8019 = vpack.c.b16 %v7123, %v7119
        %v8020 = vpack.c.b16 %v7124, %v7120
        %v8021 = vpack.c.b16 %v7125, %v7121
        %v8022 = vpack.c.b16 %v7126, %v7122
        %v8023 = vpack.c.b16 %v7131, %v7127
        %v8024 = vpack.c.b16 %v7132, %v7128
        %v8025 = vpack.c.b16 %v7133, %v7129
        %v8026 = vpack.c.b16 %v7134, %v7130
        %v8027 = vpack.c.b16 %v7139, %v7135
        %v8028 = vpack.c.b16 %v7140, %v7136
        %v8029 = vpack.c.b16 %v7141, %v7137
        %v8030 = vpack.c.b16 %v7142, %v7138
        %v8031 = vpack.c.b16 %v7147, %v7143
        %v8032 = vpack.c.b16 %v7148, %v7144
        %v8033 = vpack.c.b16 %v7149, %v7145
        %v8034 = vpack.c.b16 %v7150, %v7146
        %v8035 = vpack.c.b16 %v7155, %v7151
        %v8036 = vpack.c.b16 %v7156, %v7152
        %v8037 = vpack.c.b16 %v7157, %v7153
        %v8038 = vpack.c.b16 %v7158, %v7154
        %v8039 = vpack.c.b16 %v7163, %v7159
        %v8040 = vpack.c.b16 %v7164, %v7160
        %v8041 = vpack.c.b16 %v7165, %v7161
        %v8042 = vpack.c.b16 %v7166, %v7162
        %v8043 = vpack.c.b16 %v7171, %v7167
        %v8044 = vpack.c.b16 %v7172, %v7168
        %v8045 = vpack.c.b16 %v7173, %v7169
        %v8046 = vpack.c.b16 %v7174, %v7170
        %v8047 = vpack.c.b16 %v7179, %v7175
        %v8048 = vpack.c.b16 %v7180, %v7176
        %v8049 = vpack.c.b16 %v7181, %v7177
        %v8050 = vpack.c.b16 %v7182, %v7178
        %v8051 = vpack.c.b16 %v7187, %v7183
        %v8052 = vpack.c.b16 %v7188, %v7184
        %v8053 = vpack.c.b16 %v7189, %v7185
        %v8054 = vpack.c.b16 %v7190, %v7186
        %v8055 = vpack.c.b16 %v7195, %v7191
        %v8056 = vpack.c.b16 %v7196, %v7192
        %v8057 = vpack.c.b16 %v7197, %v7193
        %v8058 = vpack.c.b16 %v7198, %v7194
        %v8059 = vpack.c.b16 %v7203, %v7199
        %v8060 = vpack.c.b16 %v7204, %v7200
        %v8061 = vpack.c.b16 %v7205, %v7201
        %v8062 = vpack.c.b16 %v7206, %v7202
        %v8063 = vpack.c.b16 %v7211, %v7207
        %v8064 = vpack.c.b16 %v7212, %v7208
        %v8065 = vpack.c.b16 %v7213, %v7209
        %v8066 = vpack.c.b16 %v7214, %v7210
        %v8067 = vpack.c.b16 %v7219, %v7215
        %v8068 = vpack.c.b16 %v7220, %v7216
        %v8069 = vpack.c.b16 %v7221, %v7217
        %v8070 = vpack.c.b16 %v7222, %v7218
        %v8071 = vpack.c.b16 %v7227, %v7223
        %v8072 = vpack.c.b16 %v7228, %v7224
        %v8073 = vpack.c.b16 %v7229, %v7225
        %v8074 = vpack.c.b16 %v7230, %v7226
        %v8075 = vpack.c.b16 %v7235, %v7231
        %v8076 = vpack.c.b16 %v7236, %v7232
        %v8077 = vpack.c.b16 %v7237, %v7233
        %v8078 = vpack.c.b16 %v7238, %v7234
        %v8079 = vpack.c.b16 %v7243, %v7239
        %v8080 = vpack.c.b16 %v7244, %v7240
        %v8081 = vpack.c.b16 %v7245, %v7241
        %v8082 = vpack.c.b16 %v7246, %v7242
        %v8083 = vpack.c.b16 %v7251, %v7247
        %v8084 = vpack.c.b16 %v7252, %v7248
        %v8085 = vpack.c.b16 %v7253, %v7249
        %v8086 = vpack.c.b16 %v7254, %v7250
        %v8087 = vpack.c.b16 %v7259, %v7255
        %v8088 = vpack.c.b16 %v7260, %v7256
        %v8089 = vpack.c.b16 %v7261, %v7257
        %v8090 = vpack.c.b16 %v7262, %v7258
        %v8091 = vpack.c.b16 %v7267, %v7263
        %v8092 = vpack.c.b16 %v7268, %v7264
        %v8093 = vpack.c.b16 %v7269, %v7265
        %v8094 = vpack.c.b16 %v7270, %v7266
        %v8095 = vpack.c.b16 %v7275, %v7271
        %v8096 = vpack.c.b16 %v7276, %v7272
        %v8097 = vpack.c.b16 %v7277, %v7273
        %v8098 = vpack.c.b16 %v7278, %v7274
        %v8099 = vpack.c.b16 %v7283, %v7279
        %v8100 = vpack.c.b16 %v7284, %v7280
        %v8101 = vpack.c.b16 %v7285, %v7281
        %v8102 = vpack.c.b16 %v7286, %v7282
        %v8103 = vpack.c.b16 %v7291, %v7287
        %v8104 = vpack.c.b16 %v7292, %v7288
        %v8105 = vpack.c.b16 %v7293, %v7289
        %v8106 = vpack.c.b16 %v7294, %v7290
        %v8107 = vpack.c.b16 %v7299, %v7295
        %v8108 = vpack.c.b16 %v7300, %v7296
        %v8109 = vpack.c.b16 %v7301, %v7297
        %v8110 = vpack.c.b16 %v7302, %v7298
        %v8111 = vpack.c.b16 %v7307, %v7303
        %v8112 = vpack.c.b16 %v7308, %v7304
        %v8113 = vpack.c.b16 %v7309, %v7305
        %v8114 = vpack.c.b16 %v7310, %v7306
        %v8115 = vpack.c.b16 %v7315, %v7311
        %v8116 = vpack.c.b16 %v7316, %v7312
        %v8117 = vpack.c.b16 %v7317, %v7313
        %v8118 = vpack.c.b16 %v7318, %v7314
        %v8119 = vpack.c.b16 %v7323, %v7319
        %v8120 = vpack.c.b16 %v7324, %v7320
        %v8121 = vpack.c.b16 %v7325, %v7321
        %v8122 = vpack.c.b16 %v7326, %v7322
        %v8123 = vpack.c.b16 %v7331, %v7327
        %v8124 = vpack.c.b16 %v7332, %v7328
        %v8125 = vpack.c.b16 %v7333, %v7329
        %v8126 = vpack.c.b16 %v7334, %v7330
        %v8127 = vpack.c.b16 %v7339, %v7335
        %v8128 = vpack.c.b16 %v7340, %v7336
        %v8129 = vpack.c.b16 %v7341, %v7337
        %v8130 = vpack.c.b16 %v7342, %v7338
        %v8131 = vpack.c.b16 %v7347, %v7343
        %v8132 = vpack.c.b16 %v7348, %v7344
        %v8133 = vpack.c.b16 %v7349, %v7345
        %v8134 = vpack.c.b16 %v7350, %v7346
        %v8135 = vpack.c.b16 %v7355, %v7351
        %v8136 = vpack.c.b16 %v7356, %v7352
        %v8137 = vpack.c.b16 %v7357, %v7353
        %v8138 = vpack.c.b16 %v7358, %v7354
        %v8139 = vpack.c.b16 %v7363, %v7359
        %v8140 = vpack.c.b16 %v7364, %v7360
        %v8141 = vpack.c.b16 %v7365, %v7361
        %v8142 = vpack.c.b16 %v7366, %v7362
        %v8143 = vpack.c.b16 %v7371, %v7367
        %v8144 = vpack.c.b16 %v7372, %v7368
        %v8145 = vpack.c.b16 %v7373, %v7369
        %v8146 = vpack.c.b16 %v7374, %v7370
        %v8147 = vpack.c.b16 %v7379, %v7375
        %v8148 = vpack.c.b16 %v7380, %v7376
        %v8149 = vpack.c.b16 %v7381, %v7377
        %v8150 = vpack.c.b16 %v7382, %v7378
        %v8151 = vpack.c.b16 %v7387, %v7383
        %v8152 = vpack.c.b16 %v7388, %v7384
        %v8153 = vpack.c.b16 %v7389, %v7385
        %v8154 = vpack.c.b16 %v7390, %v7386
        %v8155 = vpack.c.b16 %v7395, %v7391
        %v8156 = vpack.c.b16 %v7396, %v7392
        %v8157 = vpack.c.b16 %v7397, %v7393
        %v8158 = vpack.c.b16 %v7398, %v7394
        %v8159 = vpack.c.b16 %v7403, %v7399
        %v8160 = vpack.c.b16 %v7404, %v7400
        %v8161 = vpack.c.b16 %v7405, %v7401
        %v8162 = vpack.c.b16 %v7406, %v7402
        %v8163 = vpack.c.b16 %v7411, %v7407
        %v8164 = vpack.c.b16 %v7412, %v7408
        %v8165 = vpack.c.b16 %v7413, %v7409
        %v8166 = vpack.c.b16 %v7414, %v7410
        %v8167 = vpack.c.b16 %v7419, %v7415
        %v8168 = vpack.c.b16 %v7420, %v7416
        %v8169 = vpack.c.b16 %v7421, %v7417
        %v8170 = vpack.c.b16 %v7422, %v7418
        %v8171 = vpack.c.b16 %v7427, %v7423
        %v8172 = vpack.c.b16 %v7428, %v7424
        %v8173 = vpack.c.b16 %v7429, %v7425
        %v8174 = vpack.c.b16 %v7430, %v7426
        %v8175 = vpack.c.b16 %v7435, %v7431
        %v8176 = vpack.c.b16 %v7436, %v7432
        %v8177 = vpack.c.b16 %v7437, %v7433
        %v8178 = vpack.c.b16 %v7438, %v7434
        %v8179 = vpack.c.b16 %v7443, %v7439
        %v8180 = vpack.c.b16 %v7444, %v7440
        %v8181 = vpack.c.b16 %v7445, %v7441
        %v8182 = vpack.c.b16 %v7446, %v7442
        %v8183 = vpack.c.b16 %v7451, %v7447
        %v8184 = vpack.c.b16 %v7452, %v7448
        %v8185 = vpack.c.b16 %v7453, %v7449
        %v8186 = vpack.c.b16 %v7454, %v7450
        %v8187 = vpack.c.b16 %v7459, %v7455
        %v8188 = vpack.c.b16 %v7460, %v7456
        %v8189 = vpack.c.b16 %v7461, %v7457
        %v8190 = vpack.c.b16 %v7462, %v7458
        %v8191 = vpack.c.b16 %v7467, %v7463
        %v8192 = vpack.c.b16 %v7468, %v7464
        %v8193 = vpack.c.b16 %v7469, %v7465
        %v8194 = vpack.c.b16 %v7470, %v7466
        %v8195 = vpack.c.b16 %v7475, %v7471
        %v8196 = vpack.c.b16 %v7476, %v7472
        %v8197 = vpack.c.b16 %v7477, %v7473
        %v8198 = vpack.c.b16 %v7478, %v7474
        %v8199 = vpack.c.b16 %v7483, %v7479
        %v8200 = vpack.c.b16 %v7484, %v7480
        %v8201 = vpack.c.b16 %v7485, %v7481
        %v8202 = vpack.c.b16 %v7486, %v7482
        %v8203 = vpack.c.b16 %v7491, %v7487
        %v8204 = vpack.c.b16 %v7492, %v7488
        %v8205 = vpack.c.b16 %v7493, %v7489
        %v8206 = vpack.c.b16 %v7494, %v7490
        %v8207 = vpack.c.b16 %v7499, %v7495
        %v8208 = vpack.c.b16 %v7500, %v7496
        %v8209 = vpack.c.b16 %v7501, %v7497
        %v8210 = vpack.c.b16 %v7502, %v7498
        %v8211 = vpack.c.b16 %v7507, %v7503
        %v8212 = vpack.c.b16 %v7508, %v7504
        %v8213 = vpack.c.b16 %v7509, %v7505
        %v8214 = vpack.c.b16 %v7510, %v7506
        %v8215 = vpack.c.b16 %v7515, %v7511
        %v8216 = vpack.c.b16 %v7516, %v7512
        %v8217 = vpack.c.b16 %v7517, %v7513
        %v8218 = vpack.c.b16 %v7518, %v7514
        %v8219 = vpack.c.b16 %v7523, %v7519
        %v8220 = vpack.c.b16 %v7524, %v7520
        %v8221 = vpack.c.b16 %v7525, %v7521
        %v8222 = vpack.c.b16 %v7526, %v7522
        %v8223 = vpack.c.b16 %v7531, %v7527
        %v8224 = vpack.c.b16 %v7532, %v7528
        %v8225 = vpack.c.b16 %v7533, %v7529
        %v8226 = vpack.c.b16 %v7534, %v7530
        %v8227 = vpack.c.b16 %v7539, %v7535
        %v8228 = vpack.c.b16 %v7540, %v7536
        %v8229 = vpack.c.b16 %v7541, %v7537
        %v8230 = vpack.c.b16 %v7542, %v7538
        %v8231 = vpack.c.b16 %v7547, %v7543
        %v8232 = vpack.c.b16 %v7548, %v7544
        %v8233 = vpack.c.b16 %v7549, %v7545
        %v8234 = vpack.c.b16 %v7550, %v7546
        %v8235 = vpack.c.b16 %v7555, %v7551
        %v8236 = vpack.c.b16 %v7556, %v7552
        %v8237 = vpack.c.b16 %v7557, %v7553
        %v8238 = vpack.c.b16 %v7558, %v7554
        %v8239 = vpack.c.b16 %v7563, %v7559
        %v8240 = vpack.c.b16 %v7564, %v7560
        %v8241 = vpack.c.b16 %v7565, %v7561
        %v8242 = vpack.c.b16 %v7566, %v7562
        %v8243 = vpack.c.b16 %v7571, %v7567
        %v8244 = vpack.c.b16 %v7572, %v7568
        %v8245 = vpack.c.b16 %v7573, %v7569
        %v8246 = vpack.c.b16 %v7574, %v7570
        %v8247 = vpack.c.b16 %v7579, %v7575
        %v8248 = vpack.c.b16 %v7580, %v7576
        %v8249 = vpack.c.b16 %v7581, %v7577
        %v8250 = vpack.c.b16 %v7582, %v7578
        %v8251 = vpack.c.b16 %v7587, %v7583
        %v8252 = vpack.c.b16 %v7588, %v7584
        %v8253 = vpack.c.b16 %v7589, %v7585
        %v8254 = vpack.c.b16 %v7590, %v7586
        %v8255 = vpack.c.b16 %v7595, %v7591
        %v8256 = vpack.c.b16 %v7596, %v7592
        %v8257 = vpack.c.b16 %v7597, %v7593
        %v8258 = vpack.c.b16 %v7598, %v7594
        %v8259 = vpack.c.b16 %v7603, %v7599
        %v8260 = vpack.c.b16 %v7604, %v7600
        %v8261 = vpack.c.b16 %v7605, %v7601
        %v8262 = vpack.c.b16 %v7606, %v7602
        %v8263 = vpack.c.b16 %v7611, %v7607
        %v8264 = vpack.c.b16 %v7612, %v7608
        %v8265 = vpack.c.b16 %v7613, %v7609
        %v8266 = vpack.c.b16 %v7614, %v7610
        %v8267 = vpack.c.b16 %v7619, %v7615
        %v8268 = vpack.c.b16 %v7620, %v7616
        %v8269 = vpack.c.b16 %v7621, %v7617
        %v8270 = vpack.c.b16 %v7622, %v7618
        %v8271 = vpack.c.b16 %v7627, %v7623
        %v8272 = vpack.c.b16 %v7628, %v7624
        %v8273 = vpack.c.b16 %v7629, %v7625
        %v8274 = vpack.c.b16 %v7630, %v7626
        %v8275 = vpack.c.b16 %v7635, %v7631
        %v8276 = vpack.c.b16 %v7636, %v7632
        %v8277 = vpack.c.b16 %v7637, %v7633
        %v8278 = vpack.c.b16 %v7638, %v7634
        %v8279 = vpack.c.b16 %v7643, %v7639
        %v8280 = vpack.c.b16 %v7644, %v7640
        %v8281 = vpack.c.b16 %v7645, %v7641
        %v8282 = vpack.c.b16 %v7646, %v7642
        %v8283 = vpack.c.b16 %v7651, %v7647
        %v8284 = vpack.c.b16 %v7652, %v7648
        %v8285 = vpack.c.b16 %v7653, %v7649
        %v8286 = vpack.c.b16 %v7654, %v7650
        %v8287 = vpack.c.b16 %v7659, %v7655
        %v8288 = vpack.c.b16 %v7660, %v7656
        %v8289 = vpack.c.b16 %v7661, %v7657
        %v8290 = vpack.c.b16 %v7662, %v7658
        %v8291 = vpack.c.b16 %v7667, %v7663
        %v8292 = vpack.c.b16 %v7668, %v7664
        %v8293 = vpack.c.b16 %v7669, %v7665
        %v8294 = vpack.c.b16 %v7670, %v7666
        %v8295 = vpack.c.b16 %v7675, %v7671
        %v8296 = vpack.c.b16 %v7676, %v7672
        %v8297 = vpack.c.b16 %v7677, %v7673
        %v8298 = vpack.c.b16 %v7678, %v7674
        %v8299 = vpack.c.b16 %v7683, %v7679
        %v8300 = vpack.c.b16 %v7684, %v7680
        %v8301 = vpack.c.b16 %v7685, %v7681
        %v8302 = vpack.c.b16 %v7686, %v7682
        %v8303 = vpack.c.b16 %v7691, %v7687
        %v8304 = vpack.c.b16 %v7692, %v7688
        %v8305 = vpack.c.b16 %v7693, %v7689
        %v8306 = vpack.c.b16 %v7694, %v7690
        %v8307 = vpack.c.b16 %v7699, %v7695
        %v8308 = vpack.c.b16 %v7700, %v7696
        %v8309 = vpack.c.b16 %v7701, %v7697
        %v8310 = vpack.c.b16 %v7702, %v7698
        %v8311 = vpack.c.b16 %v7707, %v7703
        %v8312 = vpack.c.b16 %v7708, %v7704
        %v8313 = vpack.c.b16 %v7709, %v7705
        %v8314 = vpack.c.b16 %v7710, %v7706
        %v8315 = vpack.c.b16 %v7715, %v7711
        %v8316 = vpack.c.b16 %v7716, %v7712
        %v8317 = vpack.c.b16 %v7717, %v7713
        %v8318 = vpack.c.b16 %v7718, %v7714
        %v8319 = vpack.c.b16 %v7723, %v7719
        %v8320 = vpack.c.b16 %v7724, %v7720
        %v8321 = vpack.c.b16 %v7725, %v7721
        %v8322 = vpack.c.b16 %v7726, %v7722
        %v8323 = vpack.c.b16 %v7731, %v7727
        %v8324 = vpack.c.b16 %v7732, %v7728
        %v8325 = vpack.c.b16 %v7733, %v7729
        %v8326 = vpack.c.b16 %v7734, %v7730
        %v8327 = vpack.c.b16 %v7739, %v7735
        %v8328 = vpack.c.b16 %v7740, %v7736
        %v8329 = vpack.c.b16 %v7741, %v7737
        %v8330 = vpack.c.b16 %v7742, %v7738
        %v8331 = vpack.c.b16 %v7747, %v7743
        %v8332 = vpack.c.b16 %v7748, %v7744
        %v8333 = vpack.c.b16 %v7749, %v7745
        %v8334 = vpack.c.b16 %v7750, %v7746
        %v8335 = vpack.c.b16 %v7755, %v7751
        %v8336 = vpack.c.b16 %v7756, %v7752
        %v8337 = vpack.c.b16 %v7757, %v7753
        %v8338 = vpack.c.b16 %v7758, %v7754
        %v8339 = vpack.c.b16 %v7763, %v7759
        %v8340 = vpack.c.b16 %v7764, %v7760
        %v8341 = vpack.c.b16 %v7765, %v7761
        %v8342 = vpack.c.b16 %v7766, %v7762
        %v8343 = vpack.c.b16 %v7771, %v7767
        %v8344 = vpack.c.b16 %v7772, %v7768
        %v8345 = vpack.c.b16 %v7773, %v7769
        %v8346 = vpack.c.b16 %v7774, %v7770
        %v8347 = vpack.c.b16 %v7779, %v7775
        %v8348 = vpack.c.b16 %v7780, %v7776
        %v8349 = vpack.c.b16 %v7781, %v7777
        %v8350 = vpack.c.b16 %v7782, %v7778
        %v8351 = vpack.c.b16 %v7787, %v7783
        %v8352 = vpack.c.b16 %v7788, %v7784
        %v8353 = vpack.c.b16 %v7789, %v7785
        %v8354 = vpack.c.b16 %v7790, %v7786
        %v8355 = vpack.c.b16 %v7795, %v7791
        %v8356 = vpack.c.b16 %v7796, %v7792
        %v8357 = vpack.c.b16 %v7797, %v7793
        %v8358 = vpack.c.b16 %v7798, %v7794
        %v8359 = vpack.c.b16 %v7803, %v7799
        %v8360 = vpack.c.b16 %v7804, %v7800
        %v8361 = vpack.c.b16 %v7805, %v7801
        %v8362 = vpack.c.b16 %v7806, %v7802
        %v8363 = vpack.c.b16 %v7811, %v7807
        %v8364 = vpack.c.b16 %v7812, %v7808
        %v8365 = vpack.c.b16 %v7813, %v7809
        %v8366 = vpack.c.b16 %v7814, %v7810
        %v8367 = vpack.c.b16 %v7819, %v7815
        %v8368 = vpack.c.b16 %v7820, %v7816
        %v8369 = vpack.c.b16 %v7821, %v7817
        %v8370 = vpack.c.b16 %v7822, %v7818
        %v8371 = vpack.c.b16 %v7827, %v7823
        %v8372 = vpack.c.b16 %v7828, %v7824
        %v8373 = vpack.c.b16 %v7829, %v7825
        %v8374 = vpack.c.b16 %v7830, %v7826
        %v8375 = vpack.c.b16 %v7835, %v7831
        %v8376 = vpack.c.b16 %v7836, %v7832
        %v8377 = vpack.c.b16 %v7837, %v7833
        %v8378 = vpack.c.b16 %v7838, %v7834
        %v8379 = vpack.c.b16 %v7843, %v7839
        %v8380 = vpack.c.b16 %v7844, %v7840
        %v8381 = vpack.c.b16 %v7845, %v7841
        %v8382 = vpack.c.b16 %v7846, %v7842
        %v8383 = vpack.c.b16 %v7851, %v7847
        %v8384 = vpack.c.b16 %v7852, %v7848
        %v8385 = vpack.c.b16 %v7853, %v7849
        %v8386 = vpack.c.b16 %v7854, %v7850
        %v8387 = vpack.c.b16 %v7859, %v7855
        %v8388 = vpack.c.b16 %v7860, %v7856
        %v8389 = vpack.c.b16 %v7861, %v7857
        %v8390 = vpack.c.b16 %v7862, %v7858
        %v8391 = vpack.c.b16 %v7867, %v7863
        %v8392 = vpack.c.b16 %v7868, %v7864
        %v8393 = vpack.c.b16 %v7869, %v7865
        %v8394 = vpack.c.b16 %v7870, %v7866
        %v8395 = vpack.c.b16 %v7875, %v7871
        %v8396 = vpack.c.b16 %v7876, %v7872
        %v8397 = vpack.c.b16 %v7877, %v7873
        %v8398 = vpack.c.b16 %v7878, %v7874
        %v8399 = vpack.c.b16 %v7883, %v7879
        %v8400 = vpack.c.b16 %v7884, %v7880
        %v8401 = vpack.c.b16 %v7885, %v7881
        %v8402 = vpack.c.b16 %v7886, %v7882
        %v8403 = vpack.c.b16 %v7891, %v7887
        %v8404 = vpack.c.b16 %v7892, %v7888
        %v8405 = vpack.c.b16 %v7893, %v7889
        %v8406 = vpack.c.b16 %v7894, %v7890
        %v8920 = vlaneseq
        %v8921 = vshrl.u32 %v8920, 7
        %v8922 = vsub.s32 0, %v8921
        %v8923 = vrot.slane %v6358, %v8922
        %v8924 = vlaneseq
        %v8925 = vshrl.u32 %v8924, 7
        %v8926 = vsub.s32 1, %v8925
        %v8927 = vrot.slane %v6358, %v8926
        %v8928 = vlaneseq
        %v8929 = vshrl.u32 %v8928, 7
        %v8930 = vsub.s32 2, %v8929
        %v8931 = vrot.slane %v6358, %v8930
        %v8932 = vlaneseq
        %v8933 = vshrl.u32 %v8932, 7
        %v8934 = vsub.s32 3, %v8933
        %v8935 = vrot.slane %v6358, %v8934
        %8940 = vmatprep.subr.bf16.mxu0 %v7896
        %8941 = vmatpush1.bf16.msra.mxu0 %v7895
        %8942 = vmatprep.subr.bf16.mxu0 %v7900
        %8943 = vmatpush1.bf16.msra.mxu0 %v7899
        %8944 = vmatprep.subr.bf16.mxu0 %v7904
        %8945 = vmatpush1.bf16.msra.mxu0 %v7903
        %8946 = vmatprep.subr.bf16.mxu0 %v7908
        %8947 = vmatpush1.bf16.msra.mxu0 %v7907
        %8948 = vmatprep.subr.bf16.mxu0 %v7912
        %8949 = vmatpush1.bf16.msra.mxu0 %v7911
        %8950 = vmatprep.subr.bf16.mxu0 %v7916
        %8951 = vmatpush1.bf16.msra.mxu0 %v7915
        %8952 = vmatprep.subr.bf16.mxu0 %v7920
        %8953 = vmatpush1.bf16.msra.mxu0 %v7919
        %8954 = vmatprep.subr.bf16.mxu0 %v7924
        %8955 = vmatpush1.bf16.msra.mxu0 %v7923
        %8956 = vmatprep.subr.bf16.mxu0 %v7928
        %8957 = vmatpush1.bf16.msra.mxu0 %v7927
        %8958 = vmatprep.subr.bf16.mxu0 %v7932
        %8959 = vmatpush1.bf16.msra.mxu0 %v7931
        %8960 = vmatprep.subr.bf16.mxu0 %v7936
        %8961 = vmatpush1.bf16.msra.mxu0 %v7935
        %8962 = vmatprep.subr.bf16.mxu0 %v7940
        %8963 = vmatpush1.bf16.msra.mxu0 %v7939
        %8964 = vmatprep.subr.bf16.mxu0 %v7944
        %8965 = vmatpush1.bf16.msra.mxu0 %v7943
        %8966 = vmatprep.subr.bf16.mxu0 %v7948
        %8967 = vmatpush1.bf16.msra.mxu0 %v7947
        %8968 = vmatprep.subr.bf16.mxu0 %v7952
        %8969 = vmatpush1.bf16.msra.mxu0 %v7951
        %8970 = vmatprep.subr.bf16.mxu0 %v7956
        %8971 = vmatpush1.bf16.msra.mxu0 %v7955
        %8972 = vmatprep.mubr.bf16.mxu0 %v5831
        %8973 = vmatmul.mubr.bf16.gmra.mrb[0].mxu0 %v5830
        %v8974 = vpop.f32.mrb[0].mxu0
        %v8975 = vadd.f32 %v8923, %v8974
        %v8976 = vpop.f32.mrb[0].mxu0
        %v8977 = vadd.f32 %v8927, %v8976
        %v8978 = vpop.f32.mrb[0].mxu0
        %v8979 = vpop.f32.mrb[0].mxu0
        %8980 = vdwg.mxu0
        %8981 = vmatprep.subr.bf16.mxu0 %v7960
        %8982 = vmatpush1.bf16.msra.mxu0 %v7959
        %8983 = vmatprep.subr.bf16.mxu0 %v7964
        %8984 = vmatpush1.bf16.msra.mxu0 %v7963
        %8985 = vmatprep.subr.bf16.mxu0 %v7968
        %8986 = vmatpush1.bf16.msra.mxu0 %v7967
        %8987 = vmatprep.subr.bf16.mxu0 %v7972
        %8988 = vmatpush1.bf16.msra.mxu0 %v7971
        %8989 = vmatprep.subr.bf16.mxu0 %v7976
        %8990 = vmatpush1.bf16.msra.mxu0 %v7975
        %8991 = vmatprep.subr.bf16.mxu0 %v7980
        %8992 = vmatpush1.bf16.msra.mxu0 %v7979
        %8993 = vmatprep.subr.bf16.mxu0 %v7984
        %8994 = vmatpush1.bf16.msra.mxu0 %v7983
        %8995 = vmatprep.subr.bf16.mxu0 %v7988
        %8996 = vmatpush1.bf16.msra.mxu0 %v7987
        %8997 = vmatprep.subr.bf16.mxu0 %v7992
        %8998 = vmatpush1.bf16.msra.mxu0 %v7991
        %8999 = vmatprep.subr.bf16.mxu0 %v7996
        %9000 = vmatpush1.bf16.msra.mxu0 %v7995
        %9001 = vmatprep.subr.bf16.mxu0 %v8000
        %9002 = vmatpush1.bf16.msra.mxu0 %v7999
        %9003 = vmatprep.subr.bf16.mxu0 %v8004
        %9004 = vmatpush1.bf16.msra.mxu0 %v8003
        %9005 = vmatprep.subr.bf16.mxu0 %v8008
        %9006 = vmatpush1.bf16.msra.mxu0 %v8007
        %9007 = vmatprep.subr.bf16.mxu0 %v8012
        %9008 = vmatpush1.bf16.msra.mxu0 %v8011
        %9009 = vmatprep.subr.bf16.mxu0 %v8016
        %9010 = vmatpush1.bf16.msra.mxu0 %v8015
        %9011 = vmatprep.subr.bf16.mxu0 %v8020
        %9012 = vmatpush1.bf16.msra.mxu0 %v8019
        %9013 = vmatprep.mubr.bf16.mxu0 %v5833
        %9014 = vmatmul.mubr.bf16.gmra.mrb[0].mxu0 %v5832
        %v9015 = vpop.f32.mrb[0].mxu0
        %v9016 = vadd.f32 %v8975, %v9015
        %v9017 = vpop.f32.mrb[0].mxu0
        %v9018 = vadd.f32 %v8977, %v9017
        %v9019 = vpop.f32.mrb[0].mxu0
        %v9020 = vpop.f32.mrb[0].mxu0
        %9021 = vdwg.mxu0
        %9022 = vmatprep.subr.bf16.mxu0 %v8024
        %9023 = vmatpush1.bf16.msra.mxu0 %v8023
        %9024 = vmatprep.subr.bf16.mxu0 %v8028
        %9025 = vmatpush1.bf16.msra.mxu0 %v8027
        %9026 = vmatprep.subr.bf16.mxu0 %v8032
        %9027 = vmatpush1.bf16.msra.mxu0 %v8031
        %9028 = vmatprep.subr.bf16.mxu0 %v8036
        %9029 = vmatpush1.bf16.msra.mxu0 %v8035
        %9030 = vmatprep.subr.bf16.mxu0 %v8040
        %9031 = vmatpush1.bf16.msra.mxu0 %v8039
        %9032 = vmatprep.subr.bf16.mxu0 %v8044
        %9033 = vmatpush1.bf16.msra.mxu0 %v8043
        %9034 = vmatprep.subr.bf16.mxu0 %v8048
        %9035 = vmatpush1.bf16.msra.mxu0 %v8047
        %9036 = vmatprep.subr.bf16.mxu0 %v8052
        %9037 = vmatpush1.bf16.msra.mxu0 %v8051
        %9038 = vmatprep.subr.bf16.mxu0 %v8056
        %9039 = vmatpush1.bf16.msra.mxu0 %v8055
        %9040 = vmatprep.subr.bf16.mxu0 %v8060
        %9041 = vmatpush1.bf16.msra.mxu0 %v8059
        %9042 = vmatprep.subr.bf16.mxu0 %v8064
        %9043 = vmatpush1.bf16.msra.mxu0 %v8063
        %9044 = vmatprep.subr.bf16.mxu0 %v8068
        %9045 = vmatpush1.bf16.msra.mxu0 %v8067
        %9046 = vmatprep.subr.bf16.mxu0 %v8072
        %9047 = vmatpush1.bf16.msra.mxu0 %v8071
        %9048 = vmatprep.subr.bf16.mxu0 %v8076
        %9049 = vmatpush1.bf16.msra.mxu0 %v8075
        %9050 = vmatprep.subr.bf16.mxu0 %v8080
        %9051 = vmatpush1.bf16.msra.mxu0 %v8079
        %9052 = vmatprep.subr.bf16.mxu0 %v8084
        %9053 = vmatpush1.bf16.msra.mxu0 %v8083
        %9054 = vmatprep.mubr.bf16.mxu0 %v5835
        %9055 = vmatmul.mubr.bf16.gmra.mrb[0].mxu0 %v5834
        %v9056 = vpop.f32.mrb[0].mxu0
        %v9057 = vadd.f32 %v9016, %v9056
        %v9058 = vpop.f32.mrb[0].mxu0
        %v9059 = vadd.f32 %v9018, %v9058
        %v9060 = vpop.f32.mrb[0].mxu0
        %v9061 = vpop.f32.mrb[0].mxu0
        %9062 = vdwg.mxu0
        %9063 = vmatprep.subr.bf16.mxu0 %v8088
        %9064 = vmatpush1.bf16.msra.mxu0 %v8087
        %9065 = vmatprep.subr.bf16.mxu0 %v8092
        %9066 = vmatpush1.bf16.msra.mxu0 %v8091
        %9067 = vmatprep.subr.bf16.mxu0 %v8096
        %9068 = vmatpush1.bf16.msra.mxu0 %v8095
        %9069 = vmatprep.subr.bf16.mxu0 %v8100
        %9070 = vmatpush1.bf16.msra.mxu0 %v8099
        %9071 = vmatprep.subr.bf16.mxu0 %v8104
        %9072 = vmatpush1.bf16.msra.mxu0 %v8103
        %9073 = vmatprep.subr.bf16.mxu0 %v8108
        %9074 = vmatpush1.bf16.msra.mxu0 %v8107
        %9075 = vmatprep.subr.bf16.mxu0 %v8112
        %9076 = vmatpush1.bf16.msra.mxu0 %v8111
        %9077 = vmatprep.subr.bf16.mxu0 %v8116
        %9078 = vmatpush1.bf16.msra.mxu0 %v8115
        %9079 = vmatprep.subr.bf16.mxu0 %v8120
        %9080 = vmatpush1.bf16.msra.mxu0 %v8119
        %9081 = vmatprep.subr.bf16.mxu0 %v8124
        %9082 = vmatpush1.bf16.msra.mxu0 %v8123
        %9083 = vmatprep.subr.bf16.mxu0 %v8128
        %9084 = vmatpush1.bf16.msra.mxu0 %v8127
        %9085 = vmatprep.subr.bf16.mxu0 %v8132
        %9086 = vmatpush1.bf16.msra.mxu0 %v8131
        %9087 = vmatprep.subr.bf16.mxu0 %v8136
        %9088 = vmatpush1.bf16.msra.mxu0 %v8135
        %9089 = vmatprep.subr.bf16.mxu0 %v8140
        %9090 = vmatpush1.bf16.msra.mxu0 %v8139
        %9091 = vmatprep.subr.bf16.mxu0 %v8144
        %9092 = vmatpush1.bf16.msra.mxu0 %v8143
        %9093 = vmatprep.subr.bf16.mxu0 %v8148
        %9094 = vmatpush1.bf16.msra.mxu0 %v8147
        %9095 = vmatprep.mubr.bf16.mxu0 %v5837
        %9096 = vmatmul.mubr.bf16.gmra.mrb[0].mxu0 %v5836
        %v9097 = vpop.f32.mrb[0].mxu0
        %v9098 = vadd.f32 %v9057, %v9097
        %v9099 = vpop.f32.mrb[0].mxu0
        %v9100 = vadd.f32 %v9059, %v9099
        %v9101 = vpop.f32.mrb[0].mxu0
        %v9102 = vpop.f32.mrb[0].mxu0
        %9103 = vdwg.mxu0
        %9104 = vmatprep.subr.bf16.mxu0 %v8152
        %9105 = vmatpush1.bf16.msra.mxu0 %v8151
        %9106 = vmatprep.subr.bf16.mxu0 %v8156
        %9107 = vmatpush1.bf16.msra.mxu0 %v8155
        %9108 = vmatprep.subr.bf16.mxu0 %v8160
        %9109 = vmatpush1.bf16.msra.mxu0 %v8159
        %9110 = vmatprep.subr.bf16.mxu0 %v8164
        %9111 = vmatpush1.bf16.msra.mxu0 %v8163
        %9112 = vmatprep.subr.bf16.mxu0 %v8168
        %9113 = vmatpush1.bf16.msra.mxu0 %v8167
        %9114 = vmatprep.subr.bf16.mxu0 %v8172
        %9115 = vmatpush1.bf16.msra.mxu0 %v8171
        %9116 = vmatprep.subr.bf16.mxu0 %v8176
        %9117 = vmatpush1.bf16.msra.mxu0 %v8175
        %9118 = vmatprep.subr.bf16.mxu0 %v8180
        %9119 = vmatpush1.bf16.msra.mxu0 %v8179
        %9120 = vmatprep.subr.bf16.mxu0 %v8184
        %9121 = vmatpush1.bf16.msra.mxu0 %v8183
        %9122 = vmatprep.subr.bf16.mxu0 %v8188
        %9123 = vmatpush1.bf16.msra.mxu0 %v8187
        %9124 = vmatprep.subr.bf16.mxu0 %v8192
        %9125 = vmatpush1.bf16.msra.mxu0 %v8191
        %9126 = vmatprep.subr.bf16.mxu0 %v8196
        %9127 = vmatpush1.bf16.msra.mxu0 %v8195
        %9128 = vmatprep.subr.bf16.mxu0 %v8200
        %9129 = vmatpush1.bf16.msra.mxu0 %v8199
        %9130 = vmatprep.subr.bf16.mxu0 %v8204
        %9131 = vmatpush1.bf16.msra.mxu0 %v8203
        %9132 = vmatprep.subr.bf16.mxu0 %v8208
        %9133 = vmatpush1.bf16.msra.mxu0 %v8207
        %9134 = vmatprep.subr.bf16.mxu0 %v8212
        %9135 = vmatpush1.bf16.msra.mxu0 %v8211
        %9136 = vmatprep.mubr.bf16.mxu0 %v5839
        %9137 = vmatmul.mubr.bf16.gmra.mrb[0].mxu0 %v5838
        %v9138 = vpop.f32.mrb[0].mxu0
        %v9139 = vadd.f32 %v9098, %v9138
        %v9140 = vpop.f32.mrb[0].mxu0
        %v9141 = vadd.f32 %v9100, %v9140
        %v9142 = vpop.f32.mrb[0].mxu0
        %v9143 = vpop.f32.mrb[0].mxu0
        %9144 = vdwg.mxu0
        %9145 = vmatprep.subr.bf16.mxu0 %v8216
        %9146 = vmatpush1.bf16.msra.mxu0 %v8215
        %9147 = vmatprep.subr.bf16.mxu0 %v8220
        %9148 = vmatpush1.bf16.msra.mxu0 %v8219
        %9149 = vmatprep.subr.bf16.mxu0 %v8224
        %9150 = vmatpush1.bf16.msra.mxu0 %v8223
        %9151 = vmatprep.subr.bf16.mxu0 %v8228
        %9152 = vmatpush1.bf16.msra.mxu0 %v8227
        %9153 = vmatprep.subr.bf16.mxu0 %v8232
        %9154 = vmatpush1.bf16.msra.mxu0 %v8231
        %9155 = vmatprep.subr.bf16.mxu0 %v8236
        %9156 = vmatpush1.bf16.msra.mxu0 %v8235
        %9157 = vmatprep.subr.bf16.mxu0 %v8240
        %9158 = vmatpush1.bf16.msra.mxu0 %v8239
        %9159 = vmatprep.subr.bf16.mxu0 %v8244
        %9160 = vmatpush1.bf16.msra.mxu0 %v8243
        %9161 = vmatprep.subr.bf16.mxu0 %v8248
        %9162 = vmatpush1.bf16.msra.mxu0 %v8247
        %9163 = vmatprep.subr.bf16.mxu0 %v8252
        %9164 = vmatpush1.bf16.msra.mxu0 %v8251
        %9165 = vmatprep.subr.bf16.mxu0 %v8256
        %9166 = vmatpush1.bf16.msra.mxu0 %v8255
        %9167 = vmatprep.subr.bf16.mxu0 %v8260
        %9168 = vmatpush1.bf16.msra.mxu0 %v8259
        %9169 = vmatprep.subr.bf16.mxu0 %v8264
        %9170 = vmatpush1.bf16.msra.mxu0 %v8263
        %9171 = vmatprep.subr.bf16.mxu0 %v8268
        %9172 = vmatpush1.bf16.msra.mxu0 %v8267
        %9173 = vmatprep.subr.bf16.mxu0 %v8272
        %9174 = vmatpush1.bf16.msra.mxu0 %v8271
        %9175 = vmatprep.subr.bf16.mxu0 %v8276
        %9176 = vmatpush1.bf16.msra.mxu0 %v8275
        %9177 = vmatprep.mubr.bf16.mxu0 %v5841
        %9178 = vmatmul.mubr.bf16.gmra.mrb[0].mxu0 %v5840
        %v9179 = vpop.f32.mrb[0].mxu0
        %v9180 = vadd.f32 %v9139, %v9179
        %v9181 = vpop.f32.mrb[0].mxu0
        %v9182 = vadd.f32 %v9141, %v9181
        %v9183 = vpop.f32.mrb[0].mxu0
        %v9184 = vpop.f32.mrb[0].mxu0
        %9185 = vdwg.mxu0
        %9186 = vmatprep.subr.bf16.mxu0 %v8280
        %9187 = vmatpush1.bf16.msra.mxu0 %v8279
        %9188 = vmatprep.subr.bf16.mxu0 %v8284
        %9189 = vmatpush1.bf16.msra.mxu0 %v8283
        %9190 = vmatprep.subr.bf16.mxu0 %v8288
        %9191 = vmatpush1.bf16.msra.mxu0 %v8287
        %9192 = vmatprep.subr.bf16.mxu0 %v8292
        %9193 = vmatpush1.bf16.msra.mxu0 %v8291
        %9194 = vmatprep.subr.bf16.mxu0 %v8296
        %9195 = vmatpush1.bf16.msra.mxu0 %v8295
        %9196 = vmatprep.subr.bf16.mxu0 %v8300
        %9197 = vmatpush1.bf16.msra.mxu0 %v8299
        %9198 = vmatprep.subr.bf16.mxu0 %v8304
        %9199 = vmatpush1.bf16.msra.mxu0 %v8303
        %9200 = vmatprep.subr.bf16.mxu0 %v8308
        %9201 = vmatpush1.bf16.msra.mxu0 %v8307
        %9202 = vmatprep.subr.bf16.mxu0 %v8312
        %9203 = vmatpush1.bf16.msra.mxu0 %v8311
        %9204 = vmatprep.subr.bf16.mxu0 %v8316
        %9205 = vmatpush1.bf16.msra.mxu0 %v8315
        %9206 = vmatprep.subr.bf16.mxu0 %v8320
        %9207 = vmatpush1.bf16.msra.mxu0 %v8319
        %9208 = vmatprep.subr.bf16.mxu0 %v8324
        %9209 = vmatpush1.bf16.msra.mxu0 %v8323
        %9210 = vmatprep.subr.bf16.mxu0 %v8328
        %9211 = vmatpush1.bf16.msra.mxu0 %v8327
        %9212 = vmatprep.subr.bf16.mxu0 %v8332
        %9213 = vmatpush1.bf16.msra.mxu0 %v8331
        %9214 = vmatprep.subr.bf16.mxu0 %v8336
        %9215 = vmatpush1.bf16.msra.mxu0 %v8335
        %9216 = vmatprep.subr.bf16.mxu0 %v8340
        %9217 = vmatpush1.bf16.msra.mxu0 %v8339
        %9218 = vmatprep.mubr.bf16.mxu0 %v5843
        %9219 = vmatmul.mubr.bf16.gmra.mrb[0].mxu0 %v5842
        %v9220 = vpop.f32.mrb[0].mxu0
        %v9221 = vadd.f32 %v9180, %v9220
        %v9222 = vpop.f32.mrb[0].mxu0
        %v9223 = vadd.f32 %v9182, %v9222
        %v9224 = vpop.f32.mrb[0].mxu0
        %v9225 = vpop.f32.mrb[0].mxu0
        %9226 = vdwg.mxu0
        %9227 = vmatprep.subr.bf16.mxu0 %v8344
        %9228 = vmatpush1.bf16.msra.mxu0 %v8343
        %9229 = vmatprep.subr.bf16.mxu0 %v8348
        %9230 = vmatpush1.bf16.msra.mxu0 %v8347
        %9231 = vmatprep.subr.bf16.mxu0 %v8352
        %9232 = vmatpush1.bf16.msra.mxu0 %v8351
        %9233 = vmatprep.subr.bf16.mxu0 %v8356
        %9234 = vmatpush1.bf16.msra.mxu0 %v8355
        %9235 = vmatprep.subr.bf16.mxu0 %v8360
        %9236 = vmatpush1.bf16.msra.mxu0 %v8359
        %9237 = vmatprep.subr.bf16.mxu0 %v8364
        %9238 = vmatpush1.bf16.msra.mxu0 %v8363
        %9239 = vmatprep.subr.bf16.mxu0 %v8368
        %9240 = vmatpush1.bf16.msra.mxu0 %v8367
        %9241 = vmatprep.subr.bf16.mxu0 %v8372
        %9242 = vmatpush1.bf16.msra.mxu0 %v8371
        %9243 = vmatprep.subr.bf16.mxu0 %v8376
        %9244 = vmatpush1.bf16.msra.mxu0 %v8375
        %9245 = vmatprep.subr.bf16.mxu0 %v8380
        %9246 = vmatpush1.bf16.msra.mxu0 %v8379
        %9247 = vmatprep.subr.bf16.mxu0 %v8384
        %9248 = vmatpush1.bf16.msra.mxu0 %v8383
        %9249 = vmatprep.subr.bf16.mxu0 %v8388
        %9250 = vmatpush1.bf16.msra.mxu0 %v8387
        %9251 = vmatprep.subr.bf16.mxu0 %v8392
        %9252 = vmatpush1.bf16.msra.mxu0 %v8391
        %9253 = vmatprep.subr.bf16.mxu0 %v8396
        %9254 = vmatpush1.bf16.msra.mxu0 %v8395
        %9255 = vmatprep.subr.bf16.mxu0 %v8400
        %9256 = vmatpush1.bf16.msra.mxu0 %v8399
        %9257 = vmatprep.subr.bf16.mxu0 %v8404
        %9258 = vmatpush1.bf16.msra.mxu0 %v8403
        %9259 = vmatprep.mubr.bf16.mxu0 %v5845
        %9260 = vmatmul.mubr.bf16.gmra.mrb[0].mxu0 %v5844
        %v9261 = vpop.f32.mrb[0].mxu0
        %v9262 = vadd.f32 %v9221, %v9261
        %v9263 = vpop.f32.mrb[0].mxu0
        %v9264 = vadd.f32 %v9223, %v9263
        %v9265 = vpop.f32.mrb[0].mxu0
        %v9266 = vpop.f32.mrb[0].mxu0
        %9267 = vdwg.mxu0
        %9268 = vmatprep.subr.bf16.mxu0 %v7898
        %9269 = vmatpush1.bf16.msra.mxu0 %v7897
        %9270 = vmatprep.subr.bf16.mxu0 %v7902
        %9271 = vmatpush1.bf16.msra.mxu0 %v7901
        %9272 = vmatprep.subr.bf16.mxu0 %v7906
        %9273 = vmatpush1.bf16.msra.mxu0 %v7905
        %9274 = vmatprep.subr.bf16.mxu0 %v7910
        %9275 = vmatpush1.bf16.msra.mxu0 %v7909
        %9276 = vmatprep.subr.bf16.mxu0 %v7914
        %9277 = vmatpush1.bf16.msra.mxu0 %v7913
        %9278 = vmatprep.subr.bf16.mxu0 %v7918
        %9279 = vmatpush1.bf16.msra.mxu0 %v7917
        %9280 = vmatprep.subr.bf16.mxu0 %v7922
        %9281 = vmatpush1.bf16.msra.mxu0 %v7921
        %9282 = vmatprep.subr.bf16.mxu0 %v7926
        %9283 = vmatpush1.bf16.msra.mxu0 %v7925
        %9284 = vmatprep.subr.bf16.mxu0 %v7930
        %9285 = vmatpush1.bf16.msra.mxu0 %v7929
        %9286 = vmatprep.subr.bf16.mxu0 %v7934
        %9287 = vmatpush1.bf16.msra.mxu0 %v7933
        %9288 = vmatprep.subr.bf16.mxu0 %v7938
        %9289 = vmatpush1.bf16.msra.mxu0 %v7937
        %9290 = vmatprep.subr.bf16.mxu0 %v7942
        %9291 = vmatpush1.bf16.msra.mxu0 %v7941
        %9292 = vmatprep.subr.bf16.mxu0 %v7946
        %9293 = vmatpush1.bf16.msra.mxu0 %v7945
        %9294 = vmatprep.subr.bf16.mxu0 %v7950
        %9295 = vmatpush1.bf16.msra.mxu0 %v7949
        %9296 = vmatprep.subr.bf16.mxu0 %v7954
        %9297 = vmatpush1.bf16.msra.mxu0 %v7953
        %9298 = vmatprep.subr.bf16.mxu0 %v7958
        %9299 = vmatpush1.bf16.msra.mxu0 %v7957
        %9300 = vmatprep.mubr.bf16.mxu0 %v5831
        %9301 = vmatmul.mubr.bf16.gmra.mrb[0].mxu0 %v5830
        %v9302 = vpop.f32.mrb[0].mxu0
        %v9303 = vadd.f32 %v8931, %v9302
        %v9304 = vpop.f32.mrb[0].mxu0
        %v9305 = vadd.f32 %v8935, %v9304
        %v9306 = vpop.f32.mrb[0].mxu0
        %v9307 = vpop.f32.mrb[0].mxu0
        %9308 = vdwg.mxu0
        %9309 = vmatprep.subr.bf16.mxu0 %v7962
        %9310 = vmatpush1.bf16.msra.mxu0 %v7961
        %9311 = vmatprep.subr.bf16.mxu0 %v7966
        %9312 = vmatpush1.bf16.msra.mxu0 %v7965
        %9313 = vmatprep.subr.bf16.mxu0 %v7970
        %9314 = vmatpush1.bf16.msra.mxu0 %v7969
        %9315 = vmatprep.subr.bf16.mxu0 %v7974
        %9316 = vmatpush1.bf16.msra.mxu0 %v7973
        %9317 = vmatprep.subr.bf16.mxu0 %v7978
        %9318 = vmatpush1.bf16.msra.mxu0 %v7977
        %9319 = vmatprep.subr.bf16.mxu0 %v7982
        %9320 = vmatpush1.bf16.msra.mxu0 %v7981
        %9321 = vmatprep.subr.bf16.mxu0 %v7986
        %9322 = vmatpush1.bf16.msra.mxu0 %v7985
        %9323 = vmatprep.subr.bf16.mxu0 %v7990
        %9324 = vmatpush1.bf16.msra.mxu0 %v7989
        %9325 = vmatprep.subr.bf16.mxu0 %v7994
        %9326 = vmatpush1.bf16.msra.mxu0 %v7993
        %9327 = vmatprep.subr.bf16.mxu0 %v7998
        %9328 = vmatpush1.bf16.msra.mxu0 %v7997
        %9329 = vmatprep.subr.bf16.mxu0 %v8002
        %9330 = vmatpush1.bf16.msra.mxu0 %v8001
        %9331 = vmatprep.subr.bf16.mxu0 %v8006
        %9332 = vmatpush1.bf16.msra.mxu0 %v8005
        %9333 = vmatprep.subr.bf16.mxu0 %v8010
        %9334 = vmatpush1.bf16.msra.mxu0 %v8009
        %9335 = vmatprep.subr.bf16.mxu0 %v8014
        %9336 = vmatpush1.bf16.msra.mxu0 %v8013
        %9337 = vmatprep.subr.bf16.mxu0 %v8018
        %9338 = vmatpush1.bf16.msra.mxu0 %v8017
        %9339 = vmatprep.subr.bf16.mxu0 %v8022
        %9340 = vmatpush1.bf16.msra.mxu0 %v8021
        %9341 = vmatprep.mubr.bf16.mxu0 %v5833
        %9342 = vmatmul.mubr.bf16.gmra.mrb[0].mxu0 %v5832
        %v9343 = vpop.f32.mrb[0].mxu0
        %v9344 = vadd.f32 %v9303, %v9343
        %v9345 = vpop.f32.mrb[0].mxu0
        %v9346 = vadd.f32 %v9305, %v9345
        %v9347 = vpop.f32.mrb[0].mxu0
        %v9348 = vpop.f32.mrb[0].mxu0
        %9349 = vdwg.mxu0
        %9350 = vmatprep.subr.bf16.mxu0 %v8026
        %9351 = vmatpush1.bf16.msra.mxu0 %v8025
        %9352 = vmatprep.subr.bf16.mxu0 %v8030
        %9353 = vmatpush1.bf16.msra.mxu0 %v8029
        %9354 = vmatprep.subr.bf16.mxu0 %v8034
        %9355 = vmatpush1.bf16.msra.mxu0 %v8033
        %9356 = vmatprep.subr.bf16.mxu0 %v8038
        %9357 = vmatpush1.bf16.msra.mxu0 %v8037
        %9358 = vmatprep.subr.bf16.mxu0 %v8042
        %9359 = vmatpush1.bf16.msra.mxu0 %v8041
        %9360 = vmatprep.subr.bf16.mxu0 %v8046
        %9361 = vmatpush1.bf16.msra.mxu0 %v8045
        %9362 = vmatprep.subr.bf16.mxu0 %v8050
        %9363 = vmatpush1.bf16.msra.mxu0 %v8049
        %9364 = vmatprep.subr.bf16.mxu0 %v8054
        %9365 = vmatpush1.bf16.msra.mxu0 %v8053
        %9366 = vmatprep.subr.bf16.mxu0 %v8058
        %9367 = vmatpush1.bf16.msra.mxu0 %v8057
        %9368 = vmatprep.subr.bf16.mxu0 %v8062
        %9369 = vmatpush1.bf16.msra.mxu0 %v8061
        %9370 = vmatprep.subr.bf16.mxu0 %v8066
        %9371 = vmatpush1.bf16.msra.mxu0 %v8065
        %9372 = vmatprep.subr.bf16.mxu0 %v8070
        %9373 = vmatpush1.bf16.msra.mxu0 %v8069
        %9374 = vmatprep.subr.bf16.mxu0 %v8074
        %9375 = vmatpush1.bf16.msra.mxu0 %v8073
        %9376 = vmatprep.subr.bf16.mxu0 %v8078
        %9377 = vmatpush1.bf16.msra.mxu0 %v8077
        %9378 = vmatprep.subr.bf16.mxu0 %v8082
        %9379 = vmatpush1.bf16.msra.mxu0 %v8081
        %9380 = vmatprep.subr.bf16.mxu0 %v8086
        %9381 = vmatpush1.bf16.msra.mxu0 %v8085
        %9382 = vmatprep.mubr.bf16.mxu0 %v5835
        %9383 = vmatmul.mubr.bf16.gmra.mrb[0].mxu0 %v5834
        %v9384 = vpop.f32.mrb[0].mxu0
        %v9385 = vadd.f32 %v9344, %v9384
        %v9386 = vpop.f32.mrb[0].mxu0
        %v9387 = vadd.f32 %v9346, %v9386
        %v9388 = vpop.f32.mrb[0].mxu0
        %v9389 = vpop.f32.mrb[0].mxu0
        %9390 = vdwg.mxu0
        %9391 = vmatprep.subr.bf16.mxu0 %v8090
        %9392 = vmatpush1.bf16.msra.mxu0 %v8089
        %9393 = vmatprep.subr.bf16.mxu0 %v8094
        %9394 = vmatpush1.bf16.msra.mxu0 %v8093
        %9395 = vmatprep.subr.bf16.mxu0 %v8098
        %9396 = vmatpush1.bf16.msra.mxu0 %v8097
        %9397 = vmatprep.subr.bf16.mxu0 %v8102
        %9398 = vmatpush1.bf16.msra.mxu0 %v8101
        %9399 = vmatprep.subr.bf16.mxu0 %v8106
        %9400 = vmatpush1.bf16.msra.mxu0 %v8105
        %9401 = vmatprep.subr.bf16.mxu0 %v8110
        %9402 = vmatpush1.bf16.msra.mxu0 %v8109
        %9403 = vmatprep.subr.bf16.mxu0 %v8114
        %9404 = vmatpush1.bf16.msra.mxu0 %v8113
        %9405 = vmatprep.subr.bf16.mxu0 %v8118
        %9406 = vmatpush1.bf16.msra.mxu0 %v8117
        %9407 = vmatprep.subr.bf16.mxu0 %v8122
        %9408 = vmatpush1.bf16.msra.mxu0 %v8121
        %9409 = vmatprep.subr.bf16.mxu0 %v8126
        %9410 = vmatpush1.bf16.msra.mxu0 %v8125
        %9411 = vmatprep.subr.bf16.mxu0 %v8130
        %9412 = vmatpush1.bf16.msra.mxu0 %v8129
        %9413 = vmatprep.subr.bf16.mxu0 %v8134
        %9414 = vmatpush1.bf16.msra.mxu0 %v8133
        %9415 = vmatprep.subr.bf16.mxu0 %v8138
        %9416 = vmatpush1.bf16.msra.mxu0 %v8137
        %9417 = vmatprep.subr.bf16.mxu0 %v8142
        %9418 = vmatpush1.bf16.msra.mxu0 %v8141
        %9419 = vmatprep.subr.bf16.mxu0 %v8146
        %9420 = vmatpush1.bf16.msra.mxu0 %v8145
        %9421 = vmatprep.subr.bf16.mxu0 %v8150
        %9422 = vmatpush1.bf16.msra.mxu0 %v8149
        %9423 = vmatprep.mubr.bf16.mxu0 %v5837
        %9424 = vmatmul.mubr.bf16.gmra.mrb[0].mxu0 %v5836
        %v9425 = vpop.f32.mrb[0].mxu0
        %v9426 = vadd.f32 %v9385, %v9425
        %v9427 = vpop.f32.mrb[0].mxu0
        %v9428 = vadd.f32 %v9387, %v9427
        %v9429 = vpop.f32.mrb[0].mxu0
        %v9430 = vpop.f32.mrb[0].mxu0
        %9431 = vdwg.mxu0
        %9432 = vmatprep.subr.bf16.mxu0 %v8154
        %9433 = vmatpush1.bf16.msra.mxu0 %v8153
        %9434 = vmatprep.subr.bf16.mxu0 %v8158
        %9435 = vmatpush1.bf16.msra.mxu0 %v8157
        %9436 = vmatprep.subr.bf16.mxu0 %v8162
        %9437 = vmatpush1.bf16.msra.mxu0 %v8161
        %9438 = vmatprep.subr.bf16.mxu0 %v8166
        %9439 = vmatpush1.bf16.msra.mxu0 %v8165
        %9440 = vmatprep.subr.bf16.mxu0 %v8170
        %9441 = vmatpush1.bf16.msra.mxu0 %v8169
        %9442 = vmatprep.subr.bf16.mxu0 %v8174
        %9443 = vmatpush1.bf16.msra.mxu0 %v8173
        %9444 = vmatprep.subr.bf16.mxu0 %v8178
        %9445 = vmatpush1.bf16.msra.mxu0 %v8177
        %9446 = vmatprep.subr.bf16.mxu0 %v8182
        %9447 = vmatpush1.bf16.msra.mxu0 %v8181
        %9448 = vmatprep.subr.bf16.mxu0 %v8186
        %9449 = vmatpush1.bf16.msra.mxu0 %v8185
        %9450 = vmatprep.subr.bf16.mxu0 %v8190
        %9451 = vmatpush1.bf16.msra.mxu0 %v8189
        %9452 = vmatprep.subr.bf16.mxu0 %v8194
        %9453 = vmatpush1.bf16.msra.mxu0 %v8193
        %9454 = vmatprep.subr.bf16.mxu0 %v8198
        %9455 = vmatpush1.bf16.msra.mxu0 %v8197
        %9456 = vmatprep.subr.bf16.mxu0 %v8202
        %9457 = vmatpush1.bf16.msra.mxu0 %v8201
        %9458 = vmatprep.subr.bf16.mxu0 %v8206
        %9459 = vmatpush1.bf16.msra.mxu0 %v8205
        %9460 = vmatprep.subr.bf16.mxu0 %v8210
        %9461 = vmatpush1.bf16.msra.mxu0 %v8209
        %9462 = vmatprep.subr.bf16.mxu0 %v8214
        %9463 = vmatpush1.bf16.msra.mxu0 %v8213
        %9464 = vmatprep.mubr.bf16.mxu0 %v5839
        %9465 = vmatmul.mubr.bf16.gmra.mrb[0].mxu0 %v5838
        %v9466 = vpop.f32.mrb[0].mxu0
        %v9467 = vadd.f32 %v9426, %v9466
        %v9468 = vpop.f32.mrb[0].mxu0
        %v9469 = vadd.f32 %v9428, %v9468
        %v9470 = vpop.f32.mrb[0].mxu0
        %v9471 = vpop.f32.mrb[0].mxu0
        %9472 = vdwg.mxu0
        %9473 = vmatprep.subr.bf16.mxu0 %v8218
        %9474 = vmatpush1.bf16.msra.mxu0 %v8217
        %9475 = vmatprep.subr.bf16.mxu0 %v8222
        %9476 = vmatpush1.bf16.msra.mxu0 %v8221
        %9477 = vmatprep.subr.bf16.mxu0 %v8226
        %9478 = vmatpush1.bf16.msra.mxu0 %v8225
        %9479 = vmatprep.subr.bf16.mxu0 %v8230
        %9480 = vmatpush1.bf16.msra.mxu0 %v8229
        %9481 = vmatprep.subr.bf16.mxu0 %v8234
        %9482 = vmatpush1.bf16.msra.mxu0 %v8233
        %9483 = vmatprep.subr.bf16.mxu0 %v8238
        %9484 = vmatpush1.bf16.msra.mxu0 %v8237
        %9485 = vmatprep.subr.bf16.mxu0 %v8242
        %9486 = vmatpush1.bf16.msra.mxu0 %v8241
        %9487 = vmatprep.subr.bf16.mxu0 %v8246
        %9488 = vmatpush1.bf16.msra.mxu0 %v8245
        %9489 = vmatprep.subr.bf16.mxu0 %v8250
        %9490 = vmatpush1.bf16.msra.mxu0 %v8249
        %9491 = vmatprep.subr.bf16.mxu0 %v8254
        %9492 = vmatpush1.bf16.msra.mxu0 %v8253
        %9493 = vmatprep.subr.bf16.mxu0 %v8258
        %9494 = vmatpush1.bf16.msra.mxu0 %v8257
        %9495 = vmatprep.subr.bf16.mxu0 %v8262
        %9496 = vmatpush1.bf16.msra.mxu0 %v8261
        %9497 = vmatprep.subr.bf16.mxu0 %v8266
        %9498 = vmatpush1.bf16.msra.mxu0 %v8265
        %9499 = vmatprep.subr.bf16.mxu0 %v8270
        %9500 = vmatpush1.bf16.msra.mxu0 %v8269
        %9501 = vmatprep.subr.bf16.mxu0 %v8274
        %9502 = vmatpush1.bf16.msra.mxu0 %v8273
        %9503 = vmatprep.subr.bf16.mxu0 %v8278
        %9504 = vmatpush1.bf16.msra.mxu0 %v8277
        %9505 = vmatprep.mubr.bf16.mxu0 %v5841
        %9506 = vmatmul.mubr.bf16.gmra.mrb[0].mxu0 %v5840
        %v9507 = vpop.f32.mrb[0].mxu0
        %v9508 = vadd.f32 %v9467, %v9507
        %v9509 = vpop.f32.mrb[0].mxu0
        %v9510 = vadd.f32 %v9469, %v9509
        %v9511 = vpop.f32.mrb[0].mxu0
        %v9512 = vpop.f32.mrb[0].mxu0
        %9513 = vdwg.mxu0
        %9514 = vmatprep.subr.bf16.mxu0 %v8282
        %9515 = vmatpush1.bf16.msra.mxu0 %v8281
        %9516 = vmatprep.subr.bf16.mxu0 %v8286
        %9517 = vmatpush1.bf16.msra.mxu0 %v8285
        %9518 = vmatprep.subr.bf16.mxu0 %v8290
        %9519 = vmatpush1.bf16.msra.mxu0 %v8289
        %9520 = vmatprep.subr.bf16.mxu0 %v8294
        %9521 = vmatpush1.bf16.msra.mxu0 %v8293
        %9522 = vmatprep.subr.bf16.mxu0 %v8298
        %9523 = vmatpush1.bf16.msra.mxu0 %v8297
        %9524 = vmatprep.subr.bf16.mxu0 %v8302
        %9525 = vmatpush1.bf16.msra.mxu0 %v8301
        %9526 = vmatprep.subr.bf16.mxu0 %v8306
        %9527 = vmatpush1.bf16.msra.mxu0 %v8305
        %9528 = vmatprep.subr.bf16.mxu0 %v8310
        %9529 = vmatpush1.bf16.msra.mxu0 %v8309
        %9530 = vmatprep.subr.bf16.mxu0 %v8314
        %9531 = vmatpush1.bf16.msra.mxu0 %v8313
        %9532 = vmatprep.subr.bf16.mxu0 %v8318
        %9533 = vmatpush1.bf16.msra.mxu0 %v8317
        %9534 = vmatprep.subr.bf16.mxu0 %v8322
        %9535 = vmatpush1.bf16.msra.mxu0 %v8321
        %9536 = vmatprep.subr.bf16.mxu0 %v8326
        %9537 = vmatpush1.bf16.msra.mxu0 %v8325
        %9538 = vmatprep.subr.bf16.mxu0 %v8330
        %9539 = vmatpush1.bf16.msra.mxu0 %v8329
        %9540 = vmatprep.subr.bf16.mxu0 %v8334
        %9541 = vmatpush1.bf16.msra.mxu0 %v8333
        %9542 = vmatprep.subr.bf16.mxu0 %v8338
        %9543 = vmatpush1.bf16.msra.mxu0 %v8337
        %9544 = vmatprep.subr.bf16.mxu0 %v8342
        %9545 = vmatpush1.bf16.msra.mxu0 %v8341
        %9546 = vmatprep.mubr.bf16.mxu0 %v5843
        %9547 = vmatmul.mubr.bf16.gmra.mrb[0].mxu0 %v5842
        %v9548 = vpop.f32.mrb[0].mxu0
        %v9549 = vadd.f32 %v9508, %v9548
        %v9550 = vpop.f32.mrb[0].mxu0
        %v9551 = vadd.f32 %v9510, %v9550
        %v9552 = vpop.f32.mrb[0].mxu0
        %v9553 = vpop.f32.mrb[0].mxu0
        %9554 = vdwg.mxu0
        %9555 = vmatprep.subr.bf16.mxu0 %v8346
        %9556 = vmatpush1.bf16.msra.mxu0 %v8345
        %9557 = vmatprep.subr.bf16.mxu0 %v8350
        %9558 = vmatpush1.bf16.msra.mxu0 %v8349
        %9559 = vmatprep.subr.bf16.mxu0 %v8354
        %9560 = vmatpush1.bf16.msra.mxu0 %v8353
        %9561 = vmatprep.subr.bf16.mxu0 %v8358
        %9562 = vmatpush1.bf16.msra.mxu0 %v8357
        %9563 = vmatprep.subr.bf16.mxu0 %v8362
        %9564 = vmatpush1.bf16.msra.mxu0 %v8361
        %9565 = vmatprep.subr.bf16.mxu0 %v8366
        %9566 = vmatpush1.bf16.msra.mxu0 %v8365
        %9567 = vmatprep.subr.bf16.mxu0 %v8370
        %9568 = vmatpush1.bf16.msra.mxu0 %v8369
        %9569 = vmatprep.subr.bf16.mxu0 %v8374
        %9570 = vmatpush1.bf16.msra.mxu0 %v8373
        %9571 = vmatprep.subr.bf16.mxu0 %v8378
        %9572 = vmatpush1.bf16.msra.mxu0 %v8377
        %9573 = vmatprep.subr.bf16.mxu0 %v8382
        %9574 = vmatpush1.bf16.msra.mxu0 %v8381
        %9575 = vmatprep.subr.bf16.mxu0 %v8386
        %9576 = vmatpush1.bf16.msra.mxu0 %v8385
        %9577 = vmatprep.subr.bf16.mxu0 %v8390
        %9578 = vmatpush1.bf16.msra.mxu0 %v8389
        %9579 = vmatprep.subr.bf16.mxu0 %v8394
        %9580 = vmatpush1.bf16.msra.mxu0 %v8393
        %9581 = vmatprep.subr.bf16.mxu0 %v8398
        %9582 = vmatpush1.bf16.msra.mxu0 %v8397
        %9583 = vmatprep.subr.bf16.mxu0 %v8402
        %9584 = vmatpush1.bf16.msra.mxu0 %v8401
        %9585 = vmatprep.subr.bf16.mxu0 %v8406
        %9586 = vmatpush1.bf16.msra.mxu0 %v8405
        %9587 = vmatprep.mubr.bf16.mxu0 %v5845
        %9588 = vmatmul.mubr.bf16.gmra.mrb[0].mxu0 %v5844
        %v9589 = vpop.f32.mrb[0].mxu0
        %v9590 = vadd.f32 %v9549, %v9589
        %v9591 = vpop.f32.mrb[0].mxu0
        %v9592 = vadd.f32 %v9551, %v9591
        %v9593 = vpop.f32.mrb[0].mxu0
        %v9594 = vpop.f32.mrb[0].mxu0
        %9595 = vdwg.mxu0
        %v9596 = vmax.f32 %v9262, 0.0
        %v9597 = vmax.f32 %v9264, 0.0
        %v9598 = vmax.f32 %v9590, 0.0
        %v9599 = vmax.f32 %v9592, 0.0
        %v9600 = vpack.c.bf16 %v9596, %v9596
        %v9601 = vpack.c.bf16 %v9597, %v9597
        %v9602 = vpack.c.bf16 %v9598, %v9598
        %v9603 = vpack.c.bf16 %v9599, %v9599
        %v9604 = vld [vmem:[%s7] sm:$0xf]
        %v9605 = vld [vmem:[%s7 + $0x4] sm:$0xf]
        %v9606 = vld [vmem:[%s7 + $0x8] sm:$0xf]
        %v9607 = vld [vmem:[%s7 + $0xc] sm:$0xf]
        %v9608 = vld [vmem:[%s7 + $0x10] sm:$0xf]
        %v9609 = vld [vmem:[%s7 + $0x14] sm:$0xf]
        %v9610 = vld [vmem:[%s7 + $0x18] sm:$0xf]
        %v9611 = vld [vmem:[%s7 + $0x1c] sm:$0xf]
        %v9612 = vld [vmem:[%s7 + $0x20] sm:$0xf]
        %v9613 = vld [vmem:[%s7 + $0x24] sm:$0xf]
        %v9614 = vld [vmem:[%s7 + $0x28] sm:$0xf]
        %v9615 = vld [vmem:[%s7 + $0x2c] sm:$0xf]
        %v9616 = vld [vmem:[%s7 + $0x30] sm:$0xf]
        %v9617 = vld [vmem:[%s7 + $0x34] sm:$0xf]
        %v9618 = vld [vmem:[%s7 + $0x38] sm:$0xf]
        %v9619 = vld [vmem:[%s7 + $0x3c] sm:$0xf]
        %v9620 = vld [vmem:[%s7 + $0x40] sm:$0xf]
        %v9621 = vld [vmem:[%s7 + $0x44] sm:$0xf]
        %v9622 = vld [vmem:[%s7 + $0x48] sm:$0xf]
        %v9623 = vld [vmem:[%s7 + $0x4c] sm:$0xf]
        %v9624 = vld [vmem:[%s7 + $0x50] sm:$0xf]
        %v9625 = vld [vmem:[%s7 + $0x54] sm:$0xf]
        %v9626 = vld [vmem:[%s7 + $0x58] sm:$0xf]
        %v9627 = vld [vmem:[%s7 + $0x5c] sm:$0xf]
        %v9628 = vld [vmem:[%s7 + $0x60] sm:$0xf]
        %v9629 = vld [vmem:[%s7 + $0x64] sm:$0xf]
        %v9630 = vld [vmem:[%s7 + $0x68] sm:$0xf]
        %v9631 = vld [vmem:[%s7 + $0x6c] sm:$0xf]
        %v9632 = vld [vmem:[%s7 + $0x70] sm:$0xf]
        %v9633 = vld [vmem:[%s7 + $0x74] sm:$0xf]
        %v9634 = vld [vmem:[%s7 + $0x78] sm:$0xf]
        %v9635 = vld [vmem:[%s7 + $0x7c] sm:$0xf]
        %v9636 = vld [vmem:[%s7 + $0x80] sm:$0xf]
        %v9637 = vld [vmem:[%s7 + $0x84] sm:$0xf]
        %v9638 = vld [vmem:[%s7 + $0x88] sm:$0xf]
        %v9639 = vld [vmem:[%s7 + $0x8c] sm:$0xf]
        %v9640 = vld [vmem:[%s7 + $0x90] sm:$0xf]
        %v9641 = vld [vmem:[%s7 + $0x94] sm:$0xf]
        %v9642 = vld [vmem:[%s7 + $0x98] sm:$0xf]
        %v9643 = vld [vmem:[%s7 + $0x9c] sm:$0xf]
        %v9644 = vld [vmem:[%s7 + $0xa0] sm:$0xf]
        %v9645 = vld [vmem:[%s7 + $0xa4] sm:$0xf]
        %v9646 = vld [vmem:[%s7 + $0xa8] sm:$0xf]
        %v9647 = vld [vmem:[%s7 + $0xac] sm:$0xf]
        %v9648 = vld [vmem:[%s7 + $0xb0] sm:$0xf]
        %v9649 = vld [vmem:[%s7 + $0xb4] sm:$0xf]
        %v9650 = vld [vmem:[%s7 + $0xb8] sm:$0xf]
        %v9651 = vld [vmem:[%s7 + $0xbc] sm:$0xf]
        %v9652 = vld [vmem:[%s7 + $0xc0] sm:$0xf]
        %v9653 = vld [vmem:[%s7 + $0xc4] sm:$0xf]
        %v9654 = vld [vmem:[%s7 + $0xc8] sm:$0xf]
        %v9655 = vld [vmem:[%s7 + $0xcc] sm:$0xf]
        %v9656 = vld [vmem:[%s7 + $0xd0] sm:$0xf]
        %v9657 = vld [vmem:[%s7 + $0xd4] sm:$0xf]
        %v9658 = vld [vmem:[%s7 + $0xd8] sm:$0xf]
        %v9659 = vld [vmem:[%s7 + $0xdc] sm:$0xf]
        %v9660 = vld [vmem:[%s7 + $0xe0] sm:$0xf]
        %v9661 = vld [vmem:[%s7 + $0xe4] sm:$0xf]
        %v9662 = vld [vmem:[%s7 + $0xe8] sm:$0xf]
        %v9663 = vld [vmem:[%s7 + $0xec] sm:$0xf]
        %v9664 = vld [vmem:[%s7 + $0xf0] sm:$0xf]
        %v9665 = vld [vmem:[%s7 + $0xf4] sm:$0xf]
        %v9666 = vld [vmem:[%s7 + $0xf8] sm:$0xf]
        %v9667 = vld [vmem:[%s7 + $0xfc] sm:$0xf]
        %v9668 = vld [vmem:[%s8] sm:$0x1]
        %v9733 = vunpack.c.l.b16 %v9604
        %v9734 = vunpack.c.l.b16 %v9605
        %v9735 = vunpack.c.l.b16 %v9606
        %v9736 = vunpack.c.l.b16 %v9607
        %v9737 = vunpack.c.l.b16 %v9608
        %v9738 = vunpack.c.l.b16 %v9609
        %v9739 = vunpack.c.l.b16 %v9610
        %v9740 = vunpack.c.l.b16 %v9611
        %v9741 = vunpack.c.l.b16 %v9612
        %v9742 = vunpack.c.l.b16 %v9613
        %v9743 = vunpack.c.l.b16 %v9614
        %v9744 = vunpack.c.l.b16 %v9615
        %v9745 = vunpack.c.l.b16 %v9616
        %v9746 = vunpack.c.l.b16 %v9617
        %v9747 = vunpack.c.l.b16 %v9618
        %v9748 = vunpack.c.l.b16 %v9619
        %v9749 = vunpack.c.l.b16 %v9620
        %v9750 = vunpack.c.l.b16 %v9621
        %v9751 = vunpack.c.l.b16 %v9622
        %v9752 = vunpack.c.l.b16 %v9623
        %v9753 = vunpack.c.l.b16 %v9624
        %v9754 = vunpack.c.l.b16 %v9625
        %v9755 = vunpack.c.l.b16 %v9626
        %v9756 = vunpack.c.l.b16 %v9627
        %v9757 = vunpack.c.l.b16 %v9628
        %v9758 = vunpack.c.l.b16 %v9629
        %v9759 = vunpack.c.l.b16 %v9630
        %v9760 = vunpack.c.l.b16 %v9631
        %v9761 = vunpack.c.l.b16 %v9632
        %v9762 = vunpack.c.l.b16 %v9633
        %v9763 = vunpack.c.l.b16 %v9634
        %v9764 = vunpack.c.l.b16 %v9635
        %v9765 = vunpack.c.l.b16 %v9636
        %v9766 = vunpack.c.l.b16 %v9637
        %v9767 = vunpack.c.l.b16 %v9638
        %v9768 = vunpack.c.l.b16 %v9639
        %v9769 = vunpack.c.l.b16 %v9640
        %v9770 = vunpack.c.l.b16 %v9641
        %v9771 = vunpack.c.l.b16 %v9642
        %v9772 = vunpack.c.l.b16 %v9643
        %v9773 = vunpack.c.l.b16 %v9644
        %v9774 = vunpack.c.l.b16 %v9645
        %v9775 = vunpack.c.l.b16 %v9646
        %v9776 = vunpack.c.l.b16 %v9647
        %v9777 = vunpack.c.l.b16 %v9648
        %v9778 = vunpack.c.l.b16 %v9649
        %v9779 = vunpack.c.l.b16 %v9650
        %v9780 = vunpack.c.l.b16 %v9651
        %v9781 = vunpack.c.l.b16 %v9652
        %v9782 = vunpack.c.l.b16 %v9653
        %v9783 = vunpack.c.l.b16 %v9654
        %v9784 = vunpack.c.l.b16 %v9655
        %v9785 = vunpack.c.l.b16 %v9656
        %v9786 = vunpack.c.l.b16 %v9657
        %v9787 = vunpack.c.l.b16 %v9658
        %v9788 = vunpack.c.l.b16 %v9659
        %v9789 = vunpack.c.l.b16 %v9660
        %v9790 = vunpack.c.l.b16 %v9661
        %v9791 = vunpack.c.l.b16 %v9662
        %v9792 = vunpack.c.l.b16 %v9663
        %v9793 = vunpack.c.l.b16 %v9664
        %v9794 = vunpack.c.l.b16 %v9665
        %v9795 = vunpack.c.l.b16 %v9666
        %v9796 = vunpack.c.l.b16 %v9667
        %v9797 = vpack.c.b16 %v9734, %v9733
        %v9798 = vpack.c.b16 %v9736, %v9735
        %v9799 = vpack.c.b16 %v9738, %v9737
        %v9800 = vpack.c.b16 %v9740, %v9739
        %v9801 = vpack.c.b16 %v9742, %v9741
        %v9802 = vpack.c.b16 %v9744, %v9743
        %v9803 = vpack.c.b16 %v9746, %v9745
        %v9804 = vpack.c.b16 %v9748, %v9747
        %v9805 = vpack.c.b16 %v9750, %v9749
        %v9806 = vpack.c.b16 %v9752, %v9751
        %v9807 = vpack.c.b16 %v9754, %v9753
        %v9808 = vpack.c.b16 %v9756, %v9755
        %v9809 = vpack.c.b16 %v9758, %v9757
        %v9810 = vpack.c.b16 %v9760, %v9759
        %v9811 = vpack.c.b16 %v9762, %v9761
        %v9812 = vpack.c.b16 %v9764, %v9763
        %v9813 = vpack.c.b16 %v9766, %v9765
        %v9814 = vpack.c.b16 %v9768, %v9767
        %v9815 = vpack.c.b16 %v9770, %v9769
        %v9816 = vpack.c.b16 %v9772, %v9771
        %v9817 = vpack.c.b16 %v9774, %v9773
        %v9818 = vpack.c.b16 %v9776, %v9775
        %v9819 = vpack.c.b16 %v9778, %v9777
        %v9820 = vpack.c.b16 %v9780, %v9779
        %v9821 = vpack.c.b16 %v9782, %v9781
        %v9822 = vpack.c.b16 %v9784, %v9783
        %v9823 = vpack.c.b16 %v9786, %v9785
        %v9824 = vpack.c.b16 %v9788, %v9787
        %v9825 = vpack.c.b16 %v9790, %v9789
        %v9826 = vpack.c.b16 %v9792, %v9791
        %v9827 = vpack.c.b16 %v9794, %v9793
        %v9828 = vpack.c.b16 %v9796, %v9795
        %9861 = vmatprep.subr.bf16.mxu0 0
        %9862 = vmatpush1.bf16.msra.mxu0 %v9797
        %9863 = vmatprep.subr.bf16.mxu0 0
        %9864 = vmatpush1.bf16.msra.mxu0 %v9798
        %9865 = vmatprep.subr.bf16.mxu0 0
        %9866 = vmatpush1.bf16.msra.mxu0 %v9799
        %9867 = vmatprep.subr.bf16.mxu0 0
        %9868 = vmatpush1.bf16.msra.mxu0 %v9800
        %9869 = vmatprep.subr.bf16.mxu0 0
        %9870 = vmatpush1.bf16.msra.mxu0 %v9801
        %9871 = vmatprep.subr.bf16.mxu0 0
        %9872 = vmatpush1.bf16.msra.mxu0 %v9802
        %9873 = vmatprep.subr.bf16.mxu0 0
        %9874 = vmatpush1.bf16.msra.mxu0 %v9803
        %9875 = vmatprep.subr.bf16.mxu0 0
        %9876 = vmatpush1.bf16.msra.mxu0 %v9804
        %9877 = vmatprep.subr.bf16.mxu0 0
        %9878 = vmatpush1.bf16.msra.mxu0 %v9805
        %9879 = vmatprep.subr.bf16.mxu0 0
        %9880 = vmatpush1.bf16.msra.mxu0 %v9806
        %9881 = vmatprep.subr.bf16.mxu0 0
        %9882 = vmatpush1.bf16.msra.mxu0 %v9807
        %9883 = vmatprep.subr.bf16.mxu0 0
        %9884 = vmatpush1.bf16.msra.mxu0 %v9808
        %9885 = vmatprep.subr.bf16.mxu0 0
        %9886 = vmatpush1.bf16.msra.mxu0 %v9809
        %9887 = vmatprep.subr.bf16.mxu0 0
        %9888 = vmatpush1.bf16.msra.mxu0 %v9810
        %9889 = vmatprep.subr.bf16.mxu0 0
        %9890 = vmatpush1.bf16.msra.mxu0 %v9811
        %9891 = vmatprep.subr.bf16.mxu0 0
        %9892 = vmatpush1.bf16.msra.mxu0 %v9812
        %9893 = vmatprep.mubr.bf16.mxu0 %v9601
        %9894 = vmatmul.mubr.bf16.gmra.mrb[0].mxu0 %v9600
        %v9895 = vpop.f32.mrb[0].mxu0
        %v9896 = vadd.f32 %v9668, %v9895
        %v9897 = vpop.f32.mrb[0].mxu0
        %v9898 = vpop.f32.mrb[0].mxu0
        %v9899 = vpop.f32.mrb[0].mxu0
        %9900 = vdwg.mxu0
        %9901 = vmatprep.subr.bf16.mxu0 0
        %9902 = vmatpush1.bf16.msra.mxu0 %v9813
        %9903 = vmatprep.subr.bf16.mxu0 0
        %9904 = vmatpush1.bf16.msra.mxu0 %v9814
        %9905 = vmatprep.subr.bf16.mxu0 0
        %9906 = vmatpush1.bf16.msra.mxu0 %v9815
        %9907 = vmatprep.subr.bf16.mxu0 0
        %9908 = vmatpush1.bf16.msra.mxu0 %v9816
        %9909 = vmatprep.subr.bf16.mxu0 0
        %9910 = vmatpush1.bf16.msra.mxu0 %v9817
        %9911 = vmatprep.subr.bf16.mxu0 0
        %9912 = vmatpush1.bf16.msra.mxu0 %v9818
        %9913 = vmatprep.subr.bf16.mxu0 0
        %9914 = vmatpush1.bf16.msra.mxu0 %v9819
        %9915 = vmatprep.subr.bf16.mxu0 0
        %9916 = vmatpush1.bf16.msra.mxu0 %v9820
        %9917 = vmatprep.subr.bf16.mxu0 0
        %9918 = vmatpush1.bf16.msra.mxu0 %v9821
        %9919 = vmatprep.subr.bf16.mxu0 0
        %9920 = vmatpush1.bf16.msra.mxu0 %v9822
        %9921 = vmatprep.subr.bf16.mxu0 0
        %9922 = vmatpush1.bf16.msra.mxu0 %v9823
        %9923 = vmatprep.subr.bf16.mxu0 0
        %9924 = vmatpush1.bf16.msra.mxu0 %v9824
        %9925 = vmatprep.subr.bf16.mxu0 0
        %9926 = vmatpush1.bf16.msra.mxu0 %v9825
        %9927 = vmatprep.subr.bf16.mxu0 0
        %9928 = vmatpush1.bf16.msra.mxu0 %v9826
        %9929 = vmatprep.subr.bf16.mxu0 0
        %9930 = vmatpush1.bf16.msra.mxu0 %v9827
        %9931 = vmatprep.subr.bf16.mxu0 0
        %9932 = vmatpush1.bf16.msra.mxu0 %v9828
        %9933 = vmatprep.mubr.bf16.mxu0 %v9603
        %9934 = vmatmul.mubr.bf16.gmra.mrb[0].mxu0 %v9602
        %v9935 = vpop.f32.mrb[0].mxu0
        %v9936 = vadd.f32 %v9896, %v9935
        %v9937 = vpop.f32.mrb[0].mxu0
        %v9938 = vpop.f32.mrb[0].mxu0
        %v9939 = vpop.f32.mrb[0].mxu0
        %9940 = vdwg.mxu0
        %v9941 = vmax.f32 %v9936, 0.0
        %v9942 = vpack.c.bf16 %v9941, %v9941
        %v9943 = vld [vmem:[%s9] sm:$0xf]
        %v9944 = vld [vmem:[%s9 + $0x4] sm:$0xf]
        %v9945 = vld [vmem:[%s9 + $0x8] sm:$0xf]
        %v9946 = vld [vmem:[%s9 + $0xc] sm:$0xf]
        %v9947 = vld [vmem:[%s9 + $0x10] sm:$0xf]
        %v9948 = vld [vmem:[%s9 + $0x14] sm:$0xf]
        %v9949 = vld [vmem:[%s9 + $0x18] sm:$0xf]
        %v9950 = vld [vmem:[%s9 + $0x1c] sm:$0xf]
        %v9951 = vld [vmem:[%s9 + $0x20] sm:$0xf]
        %v9952 = vld [vmem:[%s9 + $0x24] sm:$0xf]
        %v9953 = vld [vmem:[%s9 + $0x28] sm:$0xf]
        %v9954 = vld [vmem:[%s9 + $0x2c] sm:$0xf]
        %v9955 = vld [vmem:[%s9 + $0x30] sm:$0xf]
        %v9956 = vld [vmem:[%s9 + $0x34] sm:$0xf]
        %v9957 = vld [vmem:[%s9 + $0x38] sm:$0xf]
        %v9958 = vld [vmem:[%s9 + $0x3c] sm:$0xf]
        %v9959 = vld [vmem:[%s10] sm:$0x1]
        %v9976 = vunpack.c.l.b16 %v9943
        %v9977 = vunpack.c.l.b16 %v9944
        %v9978 = vunpack.c.l.b16 %v9945
        %v9979 = vunpack.c.l.b16 %v9946
        %v9980 = vunpack.c.l.b16 %v9947
        %v9981 = vunpack.c.l.b16 %v9948
        %v9982 = vunpack.c.l.b16 %v9949
        %v9983 = vunpack.c.l.b16 %v9950
        %v9984 = vunpack.c.l.b16 %v9951
        %v9985 = vunpack.c.l.b16 %v9952
        %v9986 = vunpack.c.l.b16 %v9953
        %v9987 = vunpack.c.l.b16 %v9954
        %v9988 = vunpack.c.l.b16 %v9955
        %v9989 = vunpack.c.l.b16 %v9956
        %v9990 = vunpack.c.l.b16 %v9957
        %v9991 = vunpack.c.l.b16 %v9958
        %v9992 = vpack.c.b16 %v9977, %v9976
        %v9993 = vpack.c.b16 %v9979, %v9978
        %v9994 = vpack.c.b16 %v9981, %v9980
        %v9995 = vpack.c.b16 %v9983, %v9982
        %v9996 = vpack.c.b16 %v9985, %v9984
        %v9997 = vpack.c.b16 %v9987, %v9986
        %v9998 = vpack.c.b16 %v9989, %v9988
        %v9999 = vpack.c.b16 %v9991, %v9990
        %10008 = vmatprep.subr.bf16.mxu0 0
        %10009 = vmatpush1.bf16.msra.mxu0 %v9992
        %10010 = vmatprep.subr.bf16.mxu0 0
        %10011 = vmatpush1.bf16.msra.mxu0 %v9993
        %10012 = vmatprep.subr.bf16.mxu0 0
        %10013 = vmatpush1.bf16.msra.mxu0 %v9994
        %10014 = vmatprep.subr.bf16.mxu0 0
        %10015 = vmatpush1.bf16.msra.mxu0 %v9995
        %10016 = vmatprep.subr.bf16.mxu0 0
        %10017 = vmatpush1.bf16.msra.mxu0 %v9996
        %10018 = vmatprep.subr.bf16.mxu0 0
        %10019 = vmatpush1.bf16.msra.mxu0 %v9997
        %10020 = vmatprep.subr.bf16.mxu0 0
        %10021 = vmatpush1.bf16.msra.mxu0 %v9998
        %10022 = vmatprep.subr.bf16.mxu0 0
        %10023 = vmatpush1.bf16.msra.mxu0 %v9999
        %10024 = vmatprep.subr.bf16.mxu0 0
        %10025 = vmatpush1.bf16.msra.mxu0 0
        %10026 = vmatprep.subr.bf16.mxu0 0
        %10027 = vmatpush1.bf16.msra.mxu0 0
        %10028 = vmatprep.subr.bf16.mxu0 0
        %10029 = vmatpush1.bf16.msra.mxu0 0
        %10030 = vmatprep.subr.bf16.mxu0 0
        %10031 = vmatpush1.bf16.msra.mxu0 0
        %10032 = vmatprep.subr.bf16.mxu0 0
        %10033 = vmatpush1.bf16.msra.mxu0 0
        %10034 = vmatprep.subr.bf16.mxu0 0
        %10035 = vmatpush1.bf16.msra.mxu0 0
        %10036 = vmatprep.subr.bf16.mxu0 0
        %10037 = vmatpush1.bf16.msra.mxu0 0
        %10038 = vmatprep.subr.bf16.mxu0 0
        %10039 = vmatpush1.bf16.msra.mxu0 0
        %10040 = vmatprep.mubr.bf16.mxu0 0
        %10041 = vmatmul.mubr.bf16.gmra.mrb[0].mxu0 %v9942
        %v10042 = vpop.f32.mrb[0].mxu0
        %v10043 = vadd.f32 %v9959, %v10042
        %v10044 = vpop.f32.mrb[0].mxu0
        %v10045 = vpop.f32.mrb[0].mxu0
        %v10046 = vpop.f32.mrb[0].mxu0
        %10047 = vdwg.mxu0
        %10048 = vst [vmem:[%s378] sm:$0x1] %v10043
        %s10049 = sand.u32 %s269, 1
        %s10050 = scalar_lea.sflag [#allocation9], %s10049
        %s10051 = sand.u32 %s269, 1
        %s10052 = scalar_lea.vmem [#allocation8], %s10051
        // Predicated region
        $region65: #{split_cnn_forward.1} parent=63 // pred_check
          %p10053 = pneg %p279
        $region66: #{split_cnn_forward.1} parent=63 // pred_check_branch
          %10055 = sbr.rel (%p10053) target = $region68
        $region67: #{split_cnn_forward.1} parent=63 // pred_region
          %s10057 = ssub.s32 16, 16
          %10058 = vsyncadd %s10050, %s10057
          %s10059 = smul.addr %s25, 16
          %s10060 = scalar_lea.hbm %s11, %s10059
          %s10062 = sshll.u32 %s10052, 4
          %s10063 = int_to_ptr.vmem [resolvable:$true] %s10062
          %10065 = dma.vmem_to_hbm [thread:$0]  %s10063, 16, %s10060, %s10050
        $region68: #{split_cnn_forward.1} parent=63 // pred_fallthru
          _
      $region64: #{split_cnn_forward.1} parent=5 // pred_fallthru
        _
      %p10066 = scmp.le.s32.totalorder 2, %s20
      // Predicated region
      $region69: #{split_cnn_forward.1} parent=5 // pred_check
        %p10067 = pneg %p10066
      $region70: #{split_cnn_forward.1} parent=5 // pred_check_branch
        %10069 = sbr.rel (%p10067) target = $region72
      $region71: #{split_cnn_forward.1} parent=5 // pred_region
        %s10070 = ssub.s32 %s20, 2
        // Predicated region
        $region73: #{split_cnn_forward.1} parent=71 // pred_check
          %p10071 = pneg %p285
        $region74: #{split_cnn_forward.1} parent=71 // pred_check_branch
          %10073 = sbr.rel (%p10071) target = $region76
        $region75: #{split_cnn_forward.1} parent=71 // pred_region
          %s10074 = sand.u32 %s270, 1
          %s10075 = scalar_lea.sflag [#allocation9], %s10074
          %s10076 = sand.u32 %s270, 1
          %s10077 = scalar_lea.vmem [#allocation8], %s10076
          %10078 = dma.done %s10075, 16
        $region76: #{split_cnn_forward.1} parent=71 // pred_fallthru
          _
      $region72: #{split_cnn_forward.1} parent=5 // pred_fallthru
        _
    $region6: #{split_cnn_forward.1} parent=1 // loop_footer
      %s24 = sadd.s32 1, %s20
    $region7: #{split_cnn_forward.1} parent=1 // loop_footer_branch
      %19 = sbr.rel target = $region3
    $region8: #{split_cnn_forward.1} parent=1 // loop_exit
      _
    %10079 = vsyncpa [#allocation9], 1
    %s10080 = scalar_lea.sflag [#allocation9], 1
    %10081 = vsyncpa %s10080, 1

</llo_original>
